<compile_context>
chip_gen: v5e
topology: v5e:2x2
jax: 0.10.0
libtpu: 0.0.40
codegen_flags: <defaults>
</compile_context>

<pallas_src>
import math

import numpy as np
import jax
import jax.numpy as jnp
from jax import lax
from jax.experimental import pallas as pl
from jax.experimental.pallas import tpu as pltpu

# ------------------------- static configuration (args) -------------------------
OBS_LEN = 8        # args.obs_seq_len
PRED_LEN = 12      # args.pred_seq_len
MODEL_DIM = 32     # args.tf_model_dim
FF_DIM = 64        # args.tf_ff_dim
NHEAD = 4          # args.tf_nhead
NLAYER = 1         # args.he_tf_layer
PRED_DIM = 5       # args.output_size
KERNEL_SIZE = 3    # args.kernel_size
IN_DIM = 2
HEAD_DIM = MODEL_DIM // NHEAD

# pinn_new(5, 12): ORDER=4, N_HIDDEN=64, N_LAYERS=4
PINN_H = 5
PINN_T = 12
PINN_ORDER = 4
PINN_HIDDEN = 64
PINN_LAYERS = 4


# ============================ in-kernel helpers ============================

def _prelu(x, a):
    # a: (1, 1) PReLU weight (broadcast)
    return jnp.where(x >= 0, x, a * x)


def _ln(x, g, b, eps=1e-5):
    mu = jnp.mean(x, axis=-1, keepdims=True)
    var = jnp.mean((x - mu) ** 2, axis=-1, keepdims=True)
    return (x - mu) * lax.rsqrt(var + eps) * g + b


def _bn_cols(x, g, b, eps=1e-5):
    # BatchNorm2d (training-mode batch stats): x is (N*T*V, C); normalize per column.
    mu = jnp.mean(x, axis=0, keepdims=True)
    var = jnp.mean((x - mu) ** 2, axis=0, keepdims=True)
    return (x - mu) * lax.rsqrt(var + eps) * g + b


# ============================ fused per-branch kernel ============================
#
# refs layout:
#   0: he_in  (1, S, IN_DIM)        per-branch (stacked along dim 0 of the input)
#   1: pe     (S, D)                shared
#   2: a_bd   (S, S)                shared block-diagonal A^T
#   3: tshift (2, S, S)             shared [-1, +1] temporal shift matrices
#   4: pm     (9, L, L)             shared 3x3 spatial shift matrices (L = C*V)
#   5..: stacked branch params (leading dim 2, block size 1 along it)
#   -1: z_out (1, PRED_LEN, L)

def _branch_kernel(*refs):
    he_ref, pe_ref, abd_ref, tsh_ref, pm_ref = refs[:5]
    z_ref = refs[-1]

    S = he_ref.shape[1]
    V = S // OBS_LEN
    L = PRED_DIM * V
    C = PRED_DIM

    idx = 5
    in_fc_w = refs[idx][0]
    in_fc_b = refs[idx + 1][0]
    idx += 2

    # ---------------- HistoryEncoder: input_fc + sinusoidal time PE ----------------
    x = (jnp.dot(he_ref[0], in_fc_w, preferred_element_type=jnp.float32)
         + in_fc_b + pe_ref[...])

    for _ in range(NLAYER):
        (w_qkv, b_qkv, w_o, b_o, ln1_g, ln1_b,
         ff1_w, ff1_b, ff2_w, ff2_b, ln2_g, ln2_b) = \
            [refs[idx + i][0] for i in range(12)]
        idx += 12

        # fused QKV projection; 1/sqrt(dh) already folded into the Q columns.
        qkv = jnp.dot(x, w_qkv, preferred_element_type=jnp.float32) + b_qkv   # (S, 3D)
        heads = []
        for h in range(NHEAD):
            q = qkv[:, h * HEAD_DIM:(h + 1) * HEAD_DIM]
            k = qkv[:, MODEL_DIM + h * HEAD_DIM:MODEL_DIM + (h + 1) * HEAD_DIM]
            vv = qkv[:, 2 * MODEL_DIM + h * HEAD_DIM:2 * MODEL_DIM + (h + 1) * HEAD_DIM]
            s = lax.dot_general(q, k, (((1,), (1,)), ((), ())),
                                preferred_element_type=jnp.float32)           # (S, S)
            s = s - jnp.max(s, axis=-1, keepdims=True)
            p = jnp.exp(s)
            p = p * pl.reciprocal(jnp.sum(p, axis=-1, keepdims=True), approx=True)
            heads.append(jnp.dot(p, vv, preferred_element_type=jnp.float32))  # (S, dh)
        attn = jnp.dot(jnp.concatenate(heads, axis=-1), w_o,
                       preferred_element_type=jnp.float32) + b_o              # (S, D)

        x = _ln(x + attn, ln1_g, ln1_b)
        hdn = jnp.maximum(jnp.dot(x, ff1_w, preferred_element_type=jnp.float32) + ff1_b,
                          0.0)
        hdn = jnp.dot(hdn, ff2_w, preferred_element_type=jnp.float32) + ff2_b
        x = _ln(x + hdn, ln2_g, ln2_b)

    # ---------------- st_gcn block (plus the self_attention_stgcn PReLU) ----------------
    (prelu0, gcn_w, gcn_b, res_w, res_b, res_bn_g, res_bn_b,
     bn1_g, bn1_b, tcn_prelu, tcn_w, tcn_b, bn2_g, bn2_b, prelu_w) = \
        [refs[idx + i][0] for i in range(15)]
    idx += 15

    xg = _prelu(x, prelu0)                                                    # v_e
    # residual branch (Cin != Cout): 1x1 conv + BN
    res = _bn_cols(jnp.dot(xg, res_w, preferred_element_type=jnp.float32) + res_b,
                   res_bn_g, res_bn_b)
    # graph conv: 1x1 conv then einsum 'nctv,tvw->nctw' == one block-diagonal matmul.
    g = jnp.dot(xg, gcn_w, preferred_element_type=jnp.float32) + gcn_b
    gw = jnp.dot(abd_ref[...], g, preferred_element_type=jnp.float32)         # (S, C)
    # tcn: BN -> PReLU -> (3,1) conv pad (1,0) -> BN -> Dropout(identity)
    tk = _prelu(_bn_cols(gw, bn1_g, bn1_b), tcn_prelu)
    t_m1 = jnp.dot(tsh_ref[0], tk, preferred_element_type=jnp.float32)        # time t-1
    t_p1 = jnp.dot(tsh_ref[1], tk, preferred_element_type=jnp.float32)        # time t+1
    y = (jnp.dot(t_m1, tcn_w[0], preferred_element_type=jnp.float32)
         + jnp.dot(tk, tcn_w[1], preferred_element_type=jnp.float32)
         + jnp.dot(t_p1, tcn_w[2], preferred_element_type=jnp.float32)
         + tcn_b)
    y = _bn_cols(y, bn2_g, bn2_b)
    out = _prelu(y + res, prelu_w)                                            # (S, C)

    # ------------- torch .view(1, T, C, V) memory reinterpretation, in-kernel -------------
    # out[t*V+v, c] == stgcn_out[0, c, t, v]; flat memory order is c*T*V + t*V + v, and the
    # txp-cnn input row i is flat[i*L : (i+1)*L].
    eye_c = (lax.broadcasted_iota(jnp.int32, (C, C), 0)
             == lax.broadcasted_iota(jnp.int32, (C, C), 1)).astype(jnp.float32)
    out_t = lax.dot_general(eye_c, out, (((1,), (1,)), ((), ())),
                            preferred_element_type=jnp.float32)               # (C, S) = out^T
    flat = jnp.concatenate([out_t[c:c + 1, :] for c in range(C)], axis=1)     # (1, C*S)
    u = jnp.concatenate([flat[:, i * L:(i + 1) * L] for i in range(OBS_LEN)], axis=0)  # (T, L)

    # ---------------- txp-cnn: (3,1) conv + PReLU + 3x3 conv ----------------
    tp0_w, tp0_b, tp0_prelu, tpo_w, tpo_b = [refs[idx + i][0] for i in range(5)]

    yv = tp0_b                                                                # (PRED_LEN, 1)
    for k in range(KERNEL_SIZE):                                              # (3,1): dw = 0
        yv = yv + jnp.dot(tp0_w[k],
                          jnp.dot(u, pm_ref[k * 3 + 1],
                                  preferred_element_type=jnp.float32),
                          preferred_element_type=jnp.float32)
    yv = _prelu(yv, tp0_prelu)
    z = tpo_b
    for kk in range(9):
        z = z + jnp.dot(tpo_w[kk],
                        jnp.dot(yv, pm_ref[kk], preferred_element_type=jnp.float32),
                        preferred_element_type=jnp.float32)
    z_ref[0] = z                                                              # (PRED_LEN, L)


# ============================ pinn MLP kernel ============================

def _pinn_kernel(*refs):
    """pinn_new MLP: Linear+Tanh, 3 x (Linear+Tanh+Dropout[identity]), Linear."""
    out_ref = refs[-1]
    x = refs[0][...]
    n_lin = (len(refs) - 2) // 2
    for i in range(n_lin):
        w = refs[1 + 2 * i][...]
        b = refs[2 + 2 * i][...]
        x = jnp.dot(x, w, preferred_element_type=jnp.float32) + b
        if i < n_lin - 1:
            x = jnp.tanh(x)
    out_ref[...] = x


# ============================ constants / glue ============================

def _pe_const(T, V, D):
    pos = np.arange(T, dtype=np.float32)[:, None]
    div = np.exp(np.arange(0, D, 2, dtype=np.float32) * (-math.log(10000.0) / D))
    pe = np.zeros((T, D), np.float32)
    pe[:, 0::2] = np.sin(pos * div)
    pe[:, 1::2] = np.cos(pos * div)
    return jnp.asarray(np.repeat(pe, V, axis=0))          # PE(t) per agent (row = t*V + v)


def _tshift_const(T, V):
    S = T * V
    e = np.zeros((2, S, S), np.float32)
    e[0] = np.eye(S, k=-V, dtype=np.float32)               # selects row r-V (time t-1)
    e[1] = np.eye(S, k=V, dtype=np.float32)                # selects row r+V (time t+1)
    return jnp.asarray(e)


def _shift_matrices(H, W):
    """Constant right-multiply matrices P so that (x @ P)[:, h*W+w] = x[:, (h+dh)*W+(w+dw)]
    (zero outside), for the 3x3 neighbourhood; index kh*3 + kw with dh=kh-1, dw=kw-1."""
    Lsz = H * W
    mats = np.zeros((9, Lsz, Lsz), np.float32)
    for kh in range(3):
        for kw in range(3):
            dh, dw = kh - 1, kw - 1
            for h in range(H):
                for w in range(W):
                    hh, ww = h + dh, w + dw
                    if 0 <= hh < H and 0 <= ww < W:
                        mats[kh * 3 + kw, hh * W + ww, h * W + w] = 1.0
    return jnp.asarray(mats)


def fused_branches(he_in, pe, a_bd, tshift, pm, bp, n_agents):
    S = OBS_LEN * n_agents
    Lsz = PRED_DIM * n_agents

    args = [he_in, pe, a_bd, tshift, pm]
    in_specs = [
        pl.BlockSpec((1, S, IN_DIM), lambda b: (b, 0, 0)),
        pl.BlockSpec((S, MODEL_DIM), lambda b: (0, 0)),
        pl.BlockSpec((S, S), lambda b: (0, 0)),
        pl.BlockSpec((2, S, S), lambda b: (0, 0, 0)),
        pl.BlockSpec((9, Lsz, Lsz), lambda b: (0, 0, 0)),
    ]

    def add(p):
        args.append(p)
        nd = p.ndim
        in_specs.append(pl.BlockSpec((1,) + p.shape[1:],
                                     lambda b, _n=nd: (b,) + (0,) * (_n - 1)))

    add(bp["in_fc_w"])
    add(bp["in_fc_b"])
    for lp in bp["layers"]:
        for key in ("w_qkv", "b_qkv", "w_o", "b_o", "ln1_g", "ln1_b",
                    "ff1_w", "ff1_b", "ff2_w", "ff2_b", "ln2_g", "ln2_b"):
            add(lp[key])
    sg = bp["stgcn"]
    for key in ("prelu0", "gcn_w", "gcn_b", "res_w", "res_b", "res_bn_g", "res_bn_b",
                "bn1_g", "bn1_b", "tcn_prelu", "tcn_w", "tcn_b", "bn2_g", "bn2_b", "prelu"):
        add(sg[key])
    tp = bp["tpcnn"]
    for key in ("tp0_w", "tp0_b", "tp0_prelu", "tpo_w", "tpo_b"):
        add(tp[key])

    cost = pl.CostEstimate(flops=5_000_000, transcendentals=35_000,
                           bytes_accessed=400_000)
    return pl.pallas_call(
        _branch_kernel,
        out_shape=jax.ShapeDtypeStruct((2, PRED_LEN, Lsz), jnp.float32),
        grid=(2,),
        in_specs=in_specs,
        out_specs=pl.BlockSpec((1, PRED_LEN, Lsz), lambda b: (b, 0, 0)),
        compiler_params=pltpu.CompilerParams(dimension_semantics=("parallel",)),
        cost_estimate=cost,
    )(*args)


def pinn_mlp(x, pinn_params):
    args = [x]
    for w, b in pinn_params:
        args += [w, b]
    cost = pl.CostEstimate(flops=400_000, transcendentals=2_100, bytes_accessed=120_000)
    return pl.pallas_call(
        _pinn_kernel,
        out_shape=jax.ShapeDtypeStruct((x.shape[0], 2 * PINN_ORDER), jnp.float32),
        cost_estimate=cost,
    )(*args)


# ============================ model forward ============================

def pi_stgcn_any_order_forward(v, a, v_abs, params):
    """v, v_abs: (1, IN_DIM, T, V);  a: (T, V, V)."""
    _, in_dim, T, n = v.shape
    S = T * n
    # encode_history input: squeeze(0).permute(1,2,0) -> rows ordered t*V + agent.
    he0 = jnp.transpose(v[0], (1, 2, 0)).reshape(S, in_dim)
    he1 = jnp.transpose(v_abs[0], (1, 2, 0)).reshape(S, in_dim)
    he_in = jnp.stack([he0, he1], axis=0)                   # (2, S, IN_DIM)

    pe = _pe_const(T, n, MODEL_DIM)                         # (S, D) constant
    a_t = jnp.swapaxes(a, 1, 2)                             # A[t]^T
    a_bd = jnp.einsum('ts,tvw->tvsw', jnp.eye(T, dtype=jnp.float32), a_t).reshape(S, S)
    tshift = _tshift_const(T, n)                            # (2, S, S) constant
    pm = _shift_matrices(PRED_DIM, n)                       # (9, L, L) constant

    z = fused_branches(he_in, pe, a_bd, tshift, pm, params["branch"], n)   # (2, 12, C*V)

    V_position = z[0].reshape(1, PRED_DIM, PRED_LEN, n)     # torch .view of contiguous mem
    V_velocity = z[1].reshape(1, PRED_DIM, PRED_LEN, n)

    # pinn_new(5, 12): cat([V_pos[0], V_vel[0]], 0).permute(2,1,0).view(N, 120)
    pinn_in = jnp.transpose(z.reshape(2, PRED_LEN, PRED_DIM, n),
                            (3, 1, 0, 2)).reshape(n, 2 * PRED_LEN * PRED_DIM)
    acc = pinn_mlp(pinn_in, params["pinn"])                 # (V, 2*ORDER)
    V_poly = acc.reshape(-1, 2, PINN_ORDER)[None]           # (1, V, 2, ORDER)
    return V_position, V_velocity, V_poly, a


# ============================ parameter init ============================

class KeyGen:
    def __init__(self, seed):
        self.key = jax.random.PRNGKey(seed)

    def __call__(self, shape, scale=0.1):
        self.key, sub = jax.random.split(self.key)
        return scale * jax.random.normal(sub, shape, dtype=jnp.float32)


def init_params(seed=42):
    kg = KeyGen(seed)
    D, F, dh, C = MODEL_DIM, FF_DIM, HEAD_DIM, PRED_DIM
    att_scale = 1.0 / math.sqrt(dh)
    layers = []
    for _ in range(NLAYER):
        w_q = kg((2, D, D)) * att_scale        # 1/sqrt(dh) folded into Q (exact)
        b_q = kg((2, 1, D)) * att_scale
        layers.append(dict(
            w_qkv=jnp.concatenate([w_q, kg((2, D, D)), kg((2, D, D))], axis=-1),
            b_qkv=jnp.concatenate([b_q, kg((2, 1, D)), kg((2, 1, D))], axis=-1),
            w_o=kg((2, D, D)), b_o=kg((2, 1, D)),
            ln1_g=jnp.ones((2, 1, D), jnp.float32), ln1_b=jnp.zeros((2, 1, D), jnp.float32),
            ff1_w=kg((2, D, F)), ff1_b=kg((2, 1, F)),
            ff2_w=kg((2, F, D)), ff2_b=kg((2, 1, D)),
            ln2_g=jnp.ones((2, 1, D), jnp.float32), ln2_b=jnp.zeros((2, 1, D), jnp.float32),
        ))
    stgcn = dict(
        prelu0=jnp.full((2, 1, 1), 0.25, jnp.float32),
        gcn_w=kg((2, D, C)), gcn_b=kg((2, 1, C)),
        res_w=kg((2, D, C)), res_b=kg((2, 1, C)),
        res_bn_g=jnp.ones((2, 1, C), jnp.float32), res_bn_b=jnp.zeros((2, 1, C), jnp.float32),
        bn1_g=jnp.ones((2, 1, C), jnp.float32), bn1_b=jnp.zeros((2, 1, C), jnp.float32),
        tcn_prelu=jnp.full((2, 1, 1), 0.25, jnp.float32),
        tcn_w=kg((2, KERNEL_SIZE, C, C)),      # [k] corresponds to torch W[:, :, k, 0].T
        tcn_b=kg((2, 1, C)),
        bn2_g=jnp.ones((2, 1, C), jnp.float32), bn2_b=jnp.zeros((2, 1, C), jnp.float32),
        prelu=jnp.full((2, 1, 1), 0.25, jnp.float32),
    )
    tpcnn = dict(
        tp0_w=kg((2, KERNEL_SIZE, PRED_LEN, OBS_LEN)),   # [k] = torch W0[:, :, k, 0]
        tp0_b=kg((2, PRED_LEN, 1)),
        tp0_prelu=jnp.full((2, 1, 1), 0.25, jnp.float32),
        tpo_w=kg((2, 9, PRED_LEN, PRED_LEN)),            # [kh*3+kw] = torch W2[:, :, kh, kw]
        tpo_b=kg((2, PRED_LEN, 1)),
    )
    branch = dict(in_fc_w=kg((2, IN_DIM, MODEL_DIM)), in_fc_b=kg((2, 1, MODEL_DIM)),
                  layers=layers, stgcn=stgcn, tpcnn=tpcnn)
    dims = [2 * PINN_T * PINN_H] + [PINN_HIDDEN] * PINN_LAYERS + [2 * PINN_ORDER]
    pinn = [(kg((dims[i], dims[i + 1])), kg((1, dims[i + 1]))) for i in range(len(dims) - 1)]
    return dict(branch=branch, pinn=pinn)


# ============================ main ============================

if __name__ == "__main__":
    N_AGENTS = 8
    key = jax.random.PRNGKey(0)
    k1, k2, k3 = jax.random.split(key, 3)
    v_in = jax.random.normal(k1, (1, IN_DIM, OBS_LEN, N_AGENTS), dtype=jnp.float32)
    a_in = jax.random.normal(k2, (OBS_LEN, N_AGENTS, N_AGENTS), dtype=jnp.float32)
    v_abs_in = jax.random.normal(k3, (1, IN_DIM, OBS_LEN, N_AGENTS), dtype=jnp.float32)

    params = init_params(seed=42)

    fwd = jax.jit(pi_stgcn_any_order_forward)
    V_pos, V_vel, V_poly, a_out = fwd(v_in, a_in, v_abs_in, params)
    jax.block_until_ready((V_pos, V_vel, V_poly, a_out))

    assert V_pos.shape == (1, PRED_DIM, PRED_LEN, N_AGENTS), V_pos.shape
    assert V_vel.shape == (1, PRED_DIM, PRED_LEN, N_AGENTS), V_vel.shape
    assert V_poly.shape == (1, N_AGENTS, 2, PINN_ORDER), V_poly.shape
    assert a_out.shape == (OBS_LEN, N_AGENTS, N_AGENTS), a_out.shape
    for t in (V_pos, V_vel, V_poly):
        assert bool(jnp.all(jnp.isfinite(t)))
    print("KERNEL_OK")
</pallas_src>

<mosaic_0001>
module attributes {stable_mosaic.version = 11 : i64} {
  func.func @_branch_kernel(%arg0: i32, %arg1: memref<1x64x2xf32, #tpu.memory_space<vmem>>, %arg2: memref<64x32xf32, #tpu.memory_space<vmem>>, %arg3: memref<64x64xf32, #tpu.memory_space<vmem>>, %arg4: memref<2x64x64xf32, #tpu.memory_space<vmem>>, %arg5: memref<9x40x40xf32, #tpu.memory_space<vmem>>, %arg6: memref<1x2x32xf32, #tpu.memory_space<vmem>>, %arg7: memref<1x1x32xf32, #tpu.memory_space<vmem>>, %arg8: memref<1x32x96xf32, #tpu.memory_space<vmem>>, %arg9: memref<1x1x96xf32, #tpu.memory_space<vmem>>, %arg10: memref<1x32x32xf32, #tpu.memory_space<vmem>>, %arg11: memref<1x1x32xf32, #tpu.memory_space<vmem>>, %arg12: memref<1x1x32xf32, #tpu.memory_space<vmem>>, %arg13: memref<1x1x32xf32, #tpu.memory_space<vmem>>, %arg14: memref<1x32x64xf32, #tpu.memory_space<vmem>>, %arg15: memref<1x1x64xf32, #tpu.memory_space<vmem>>, %arg16: memref<1x64x32xf32, #tpu.memory_space<vmem>>, %arg17: memref<1x1x32xf32, #tpu.memory_space<vmem>>, %arg18: memref<1x1x32xf32, #tpu.memory_space<vmem>>, %arg19: memref<1x1x32xf32, #tpu.memory_space<vmem>>, %arg20: memref<1x1x1xf32, #tpu.memory_space<vmem>>, %arg21: memref<1x32x5xf32, #tpu.memory_space<vmem>>, %arg22: memref<1x1x5xf32, #tpu.memory_space<vmem>>, %arg23: memref<1x32x5xf32, #tpu.memory_space<vmem>>, %arg24: memref<1x1x5xf32, #tpu.memory_space<vmem>>, %arg25: memref<1x1x5xf32, #tpu.memory_space<vmem>>, %arg26: memref<1x1x5xf32, #tpu.memory_space<vmem>>, %arg27: memref<1x1x5xf32, #tpu.memory_space<vmem>>, %arg28: memref<1x1x5xf32, #tpu.memory_space<vmem>>, %arg29: memref<1x1x1xf32, #tpu.memory_space<vmem>>, %arg30: memref<1x3x5x5xf32, #tpu.memory_space<vmem>>, %arg31: memref<1x1x5xf32, #tpu.memory_space<vmem>>, %arg32: memref<1x1x5xf32, #tpu.memory_space<vmem>>, %arg33: memref<1x1x5xf32, #tpu.memory_space<vmem>>, %arg34: memref<1x1x1xf32, #tpu.memory_space<vmem>>, %arg35: memref<1x3x12x8xf32, #tpu.memory_space<vmem>>, %arg36: memref<1x12x1xf32, #tpu.memory_space<vmem>>, %arg37: memref<1x1x1xf32, #tpu.memory_space<vmem>>, %arg38: memref<1x9x12x12xf32, #tpu.memory_space<vmem>>, %arg39: memref<1x12x1xf32, #tpu.memory_space<vmem>>, %arg40: memref<1x12x40xf32, #tpu.memory_space<vmem>>) attributes {dimension_semantics = [#tpu.dimension_semantics<parallel>], iteration_bounds = array<i64: 2>, scalar_prefetch = 0 : i64, scratch_operands = 0 : i64, tpu.core_type = #tpu.core_type<tc>, window_params = [{transform_indices = @transform_0, window_bounds = array<i64: 1, 64, 2>}, {pipeline_mode = #tpu.pipeline_mode<synchronous>, transform_indices = @transform_1, window_bounds = array<i64: 64, 32>}, {pipeline_mode = #tpu.pipeline_mode<synchronous>, transform_indices = @transform_2, window_bounds = array<i64: 64, 64>}, {pipeline_mode = #tpu.pipeline_mode<synchronous>, transform_indices = @transform_3, window_bounds = array<i64: 2, 64, 64>}, {pipeline_mode = #tpu.pipeline_mode<synchronous>, transform_indices = @transform_4, window_bounds = array<i64: 9, 40, 40>}, {transform_indices = @transform_5, window_bounds = array<i64: 1, 2, 32>}, {transform_indices = @transform_6, window_bounds = array<i64: 1, 1, 32>}, {transform_indices = @transform_7, window_bounds = array<i64: 1, 32, 96>}, {transform_indices = @transform_8, window_bounds = array<i64: 1, 1, 96>}, {transform_indices = @transform_9, window_bounds = array<i64: 1, 32, 32>}, {transform_indices = @transform_10, window_bounds = array<i64: 1, 1, 32>}, {transform_indices = @transform_11, window_bounds = array<i64: 1, 1, 32>}, {transform_indices = @transform_12, window_bounds = array<i64: 1, 1, 32>}, {transform_indices = @transform_13, window_bounds = array<i64: 1, 32, 64>}, {transform_indices = @transform_14, window_bounds = array<i64: 1, 1, 64>}, {transform_indices = @transform_15, window_bounds = array<i64: 1, 64, 32>}, {transform_indices = @transform_16, window_bounds = array<i64: 1, 1, 32>}, {transform_indices = @transform_17, window_bounds = array<i64: 1, 1, 32>}, {transform_indices = @transform_18, window_bounds = array<i64: 1, 1, 32>}, {transform_indices = @transform_19, window_bounds = array<i64: 1, 1, 1>}, {transform_indices = @transform_20, window_bounds = array<i64: 1, 32, 5>}, {transform_indices = @transform_21, window_bounds = array<i64: 1, 1, 5>}, {transform_indices = @transform_22, window_bounds = array<i64: 1, 32, 5>}, {transform_indices = @transform_23, window_bounds = array<i64: 1, 1, 5>}, {transform_indices = @transform_24, window_bounds = array<i64: 1, 1, 5>}, {transform_indices = @transform_25, window_bounds = array<i64: 1, 1, 5>}, {transform_indices = @transform_26, window_bounds = array<i64: 1, 1, 5>}, {transform_indices = @transform_27, window_bounds = array<i64: 1, 1, 5>}, {transform_indices = @transform_28, window_bounds = array<i64: 1, 1, 1>}, {transform_indices = @transform_29, window_bounds = array<i64: 1, 3, 5, 5>}, {transform_indices = @transform_30, window_bounds = array<i64: 1, 1, 5>}, {transform_indices = @transform_31, window_bounds = array<i64: 1, 1, 5>}, {transform_indices = @transform_32, window_bounds = array<i64: 1, 1, 5>}, {transform_indices = @transform_33, window_bounds = array<i64: 1, 1, 1>}, {transform_indices = @transform_34, window_bounds = array<i64: 1, 3, 12, 8>}, {transform_indices = @transform_35, window_bounds = array<i64: 1, 12, 1>}, {transform_indices = @transform_36, window_bounds = array<i64: 1, 1, 1>}, {transform_indices = @transform_37, window_bounds = array<i64: 1, 9, 12, 12>}, {transform_indices = @transform_38, window_bounds = array<i64: 1, 12, 1>}, {transform_indices = @transform_39, window_bounds = array<i64: 1, 12, 40>}]} {
    %c0 = arith.constant 0 : index
    %c0_0 = arith.constant 0 : index
    %c0_1 = arith.constant 0 : index
    %0 = vector.load %arg6[%c0, %c0_0, %c0_1] : memref<1x2x32xf32, #tpu.memory_space<vmem>>, vector<1x2x32xf32>
    %1 = vector.shape_cast %0 : vector<1x2x32xf32> to vector<2x32xf32>
    %c0_2 = arith.constant 0 : index
    %c0_3 = arith.constant 0 : index
    %c0_4 = arith.constant 0 : index
    %2 = vector.load %arg7[%c0_2, %c0_3, %c0_4] : memref<1x1x32xf32, #tpu.memory_space<vmem>>, vector<1x1x32xf32>
    %3 = vector.shape_cast %2 : vector<1x1x32xf32> to vector<1x32xf32>
    %c0_5 = arith.constant 0 : index
    %c0_6 = arith.constant 0 : index
    %c0_7 = arith.constant 0 : index
    %4 = vector.load %arg1[%c0_5, %c0_6, %c0_7] : memref<1x64x2xf32, #tpu.memory_space<vmem>>, vector<1x64x2xf32>
    %5 = vector.shape_cast %4 : vector<1x64x2xf32> to vector<64x2xf32>
    %cst = arith.constant dense<0.000000e+00> : vector<64x32xf32>
    %6 = tpu.matmul %5, %1, %cst {dimension_numbers = #tpu.dot_dimension_numbers<[1], [0], [0], [1], [0, 0, 1, 1], [], []>} : vector<64x2xf32>, vector<2x32xf32>, vector<64x32xf32> -> vector<64x32xf32>
    %7 = vector.broadcast %3 : vector<1x32xf32> to vector<64x32xf32>
    %8 = arith.addf %6, %7 : vector<64x32xf32>
    %c0_8 = arith.constant 0 : index
    %c0_9 = arith.constant 0 : index
    %9 = vector.load %arg2[%c0_8, %c0_9] : memref<64x32xf32, #tpu.memory_space<vmem>>, vector<64x32xf32>
    %10 = arith.addf %8, %9 : vector<64x32xf32>
    %c0_10 = arith.constant 0 : index
    %c0_11 = arith.constant 0 : index
    %c0_12 = arith.constant 0 : index
    %11 = vector.load %arg8[%c0_10, %c0_11, %c0_12] : memref<1x32x96xf32, #tpu.memory_space<vmem>>, vector<1x32x96xf32>
    %12 = vector.shape_cast %11 : vector<1x32x96xf32> to vector<32x96xf32>
    %c0_13 = arith.constant 0 : index
    %c0_14 = arith.constant 0 : index
    %c0_15 = arith.constant 0 : index
    %13 = vector.load %arg9[%c0_13, %c0_14, %c0_15] : memref<1x1x96xf32, #tpu.memory_space<vmem>>, vector<1x1x96xf32>
    %14 = vector.shape_cast %13 : vector<1x1x96xf32> to vector<1x96xf32>
    %c0_16 = arith.constant 0 : index
    %c0_17 = arith.constant 0 : index
    %c0_18 = arith.constant 0 : index
    %15 = vector.load %arg10[%c0_16, %c0_17, %c0_18] : memref<1x32x32xf32, #tpu.memory_space<vmem>>, vector<1x32x32xf32>
    %16 = vector.shape_cast %15 : vector<1x32x32xf32> to vector<32x32xf32>
    %c0_19 = arith.constant 0 : index
    %c0_20 = arith.constant 0 : index
    %c0_21 = arith.constant 0 : index
    %17 = vector.load %arg11[%c0_19, %c0_20, %c0_21] : memref<1x1x32xf32, #tpu.memory_space<vmem>>, vector<1x1x32xf32>
    %18 = vector.shape_cast %17 : vector<1x1x32xf32> to vector<1x32xf32>
    %c0_22 = arith.constant 0 : index
    %c0_23 = arith.constant 0 : index
    %c0_24 = arith.constant 0 : index
    %19 = vector.load %arg12[%c0_22, %c0_23, %c0_24] : memref<1x1x32xf32, #tpu.memory_space<vmem>>, vector<1x1x32xf32>
    %20 = vector.shape_cast %19 : vector<1x1x32xf32> to vector<1x32xf32>
    %c0_25 = arith.constant 0 : index
    %c0_26 = arith.constant 0 : index
    %c0_27 = arith.constant 0 : index
    %21 = vector.load %arg13[%c0_25, %c0_26, %c0_27] : memref<1x1x32xf32, #tpu.memory_space<vmem>>, vector<1x1x32xf32>
    %22 = vector.shape_cast %21 : vector<1x1x32xf32> to vector<1x32xf32>
    %c0_28 = arith.constant 0 : index
    %c0_29 = arith.constant 0 : index
    %c0_30 = arith.constant 0 : index
    %23 = vector.load %arg14[%c0_28, %c0_29, %c0_30] : memref<1x32x64xf32, #tpu.memory_space<vmem>>, vector<1x32x64xf32>
    %24 = vector.shape_cast %23 : vector<1x32x64xf32> to vector<32x64xf32>
    %c0_31 = arith.constant 0 : index
    %c0_32 = arith.constant 0 : index
    %c0_33 = arith.constant 0 : index
    %25 = vector.load %arg15[%c0_31, %c0_32, %c0_33] : memref<1x1x64xf32, #tpu.memory_space<vmem>>, vector<1x1x64xf32>
    %26 = vector.shape_cast %25 : vector<1x1x64xf32> to vector<1x64xf32>
    %c0_34 = arith.constant 0 : index
    %c0_35 = arith.constant 0 : index
    %c0_36 = arith.constant 0 : index
    %27 = vector.load %arg16[%c0_34, %c0_35, %c0_36] : memref<1x64x32xf32, #tpu.memory_space<vmem>>, vector<1x64x32xf32>
    %28 = vector.shape_cast %27 : vector<1x64x32xf32> to vector<64x32xf32>
    %c0_37 = arith.constant 0 : index
    %c0_38 = arith.constant 0 : index
    %c0_39 = arith.constant 0 : index
    %29 = vector.load %arg17[%c0_37, %c0_38, %c0_39] : memref<1x1x32xf32, #tpu.memory_space<vmem>>, vector<1x1x32xf32>
    %30 = vector.shape_cast %29 : vector<1x1x32xf32> to vector<1x32xf32>
    %c0_40 = arith.constant 0 : index
    %c0_41 = arith.constant 0 : index
    %c0_42 = arith.constant 0 : index
    %31 = vector.load %arg18[%c0_40, %c0_41, %c0_42] : memref<1x1x32xf32, #tpu.memory_space<vmem>>, vector<1x1x32xf32>
    %32 = vector.shape_cast %31 : vector<1x1x32xf32> to vector<1x32xf32>
    %c0_43 = arith.constant 0 : index
    %c0_44 = arith.constant 0 : index
    %c0_45 = arith.constant 0 : index
    %33 = vector.load %arg19[%c0_43, %c0_44, %c0_45] : memref<1x1x32xf32, #tpu.memory_space<vmem>>, vector<1x1x32xf32>
    %34 = vector.shape_cast %33 : vector<1x1x32xf32> to vector<1x32xf32>
    %cst_46 = arith.constant dense<0.000000e+00> : vector<64x96xf32>
    %35 = tpu.matmul %10, %12, %cst_46 {dimension_numbers = #tpu.dot_dimension_numbers<[1], [0], [0], [1], [0, 0, 1, 1], [], []>} : vector<64x32xf32>, vector<32x96xf32>, vector<64x96xf32> -> vector<64x96xf32>
    %36 = vector.broadcast %14 : vector<1x96xf32> to vector<64x96xf32>
    %37 = arith.addf %35, %36 : vector<64x96xf32>
    %38 = vector.extract_strided_slice %37 {offsets = [0, 0], sizes = [64, 8], strides = [1, 1]} : vector<64x96xf32> to vector<64x8xf32>
    %39 = vector.extract_strided_slice %37 {offsets = [0, 32], sizes = [64, 8], strides = [1, 1]} : vector<64x96xf32> to vector<64x8xf32>
    %40 = vector.extract_strided_slice %37 {offsets = [0, 64], sizes = [64, 8], strides = [1, 1]} : vector<64x96xf32> to vector<64x8xf32>
    %cst_47 = arith.constant dense<0.000000e+00> : vector<64x64xf32>
    %41 = tpu.matmul %38, %39, %cst_47 {dimension_numbers = #tpu.dot_dimension_numbers<[1], [1], [0], [0], [0, 0, 1, 0], [], []>} : vector<64x8xf32>, vector<64x8xf32>, vector<64x64xf32> -> vector<64x64xf32>
    %cst_48 = arith.constant dense<0xFF800000> : vector<64xf32>
    %42 = vector.multi_reduction <maximumf>, %41, %cst_48 [1] : vector<64x64xf32> to vector<64xf32>
    %43 = vector.shape_cast %42 : vector<64xf32> to vector<64x1xf32>
    %44 = vector.broadcast %43 : vector<64x1xf32> to vector<64x64xf32>
    %45 = arith.subf %41, %44 : vector<64x64xf32>
    %46 = math.exp %45 : vector<64x64xf32>
    %cst_49 = arith.constant dense<0.000000e+00> : vector<64xf32>
    %47 = vector.multi_reduction <add>, %46, %cst_49 [1] : vector<64x64xf32> to vector<64xf32>
    %48 = vector.shape_cast %47 : vector<64xf32> to vector<64x1xf32>
    %49 = tpu.reciprocal %48 {approx = true} : vector<64x1xf32> -> vector<64x1xf32>
    %50 = vector.broadcast %49 : vector<64x1xf32> to vector<64x64xf32>
    %51 = arith.mulf %46, %50 : vector<64x64xf32>
    %cst_50 = arith.constant dense<0.000000e+00> : vector<64x8xf32>
    %52 = tpu.matmul %51, %40, %cst_50 {dimension_numbers = #tpu.dot_dimension_numbers<[1], [0], [0], [1], [0, 0, 1, 1], [], []>} : vector<64x64xf32>, vector<64x8xf32>, vector<64x8xf32> -> vector<64x8xf32>
    %53 = vector.extract_strided_slice %37 {offsets = [0, 8], sizes = [64, 8], strides = [1, 1]} : vector<64x96xf32> to vector<64x8xf32>
    %54 = vector.extract_strided_slice %37 {offsets = [0, 40], sizes = [64, 8], strides = [1, 1]} : vector<64x96xf32> to vector<64x8xf32>
    %55 = vector.extract_strided_slice %37 {offsets = [0, 72], sizes = [64, 8], strides = [1, 1]} : vector<64x96xf32> to vector<64x8xf32>
    %cst_51 = arith.constant dense<0.000000e+00> : vector<64x64xf32>
    %56 = tpu.matmul %53, %54, %cst_51 {dimension_numbers = #tpu.dot_dimension_numbers<[1], [1], [0], [0], [0, 0, 1, 0], [], []>} : vector<64x8xf32>, vector<64x8xf32>, vector<64x64xf32> -> vector<64x64xf32>
    %cst_52 = arith.constant dense<0xFF800000> : vector<64xf32>
    %57 = vector.multi_reduction <maximumf>, %56, %cst_52 [1] : vector<64x64xf32> to vector<64xf32>
    %58 = vector.shape_cast %57 : vector<64xf32> to vector<64x1xf32>
    %59 = vector.broadcast %58 : vector<64x1xf32> to vector<64x64xf32>
    %60 = arith.subf %56, %59 : vector<64x64xf32>
    %61 = math.exp %60 : vector<64x64xf32>
    %cst_53 = arith.constant dense<0.000000e+00> : vector<64xf32>
    %62 = vector.multi_reduction <add>, %61, %cst_53 [1] : vector<64x64xf32> to vector<64xf32>
    %63 = vector.shape_cast %62 : vector<64xf32> to vector<64x1xf32>
    %64 = tpu.reciprocal %63 {approx = true} : vector<64x1xf32> -> vector<64x1xf32>
    %65 = vector.broadcast %64 : vector<64x1xf32> to vector<64x64xf32>
    %66 = arith.mulf %61, %65 : vector<64x64xf32>
    %cst_54 = arith.constant dense<0.000000e+00> : vector<64x8xf32>
    %67 = tpu.matmul %66, %55, %cst_54 {dimension_numbers = #tpu.dot_dimension_numbers<[1], [0], [0], [1], [0, 0, 1, 1], [], []>} : vector<64x64xf32>, vector<64x8xf32>, vector<64x8xf32> -> vector<64x8xf32>
    %68 = vector.extract_strided_slice %37 {offsets = [0, 16], sizes = [64, 8], strides = [1, 1]} : vector<64x96xf32> to vector<64x8xf32>
    %69 = vector.extract_strided_slice %37 {offsets = [0, 48], sizes = [64, 8], strides = [1, 1]} : vector<64x96xf32> to vector<64x8xf32>
    %70 = vector.extract_strided_slice %37 {offsets = [0, 80], sizes = [64, 8], strides = [1, 1]} : vector<64x96xf32> to vector<64x8xf32>
    %cst_55 = arith.constant dense<0.000000e+00> : vector<64x64xf32>
    %71 = tpu.matmul %68, %69, %cst_55 {dimension_numbers = #tpu.dot_dimension_numbers<[1], [1], [0], [0], [0, 0, 1, 0], [], []>} : vector<64x8xf32>, vector<64x8xf32>, vector<64x64xf32> -> vector<64x64xf32>
    %cst_56 = arith.constant dense<0xFF800000> : vector<64xf32>
    %72 = vector.multi_reduction <maximumf>, %71, %cst_56 [1] : vector<64x64xf32> to vector<64xf32>
    %73 = vector.shape_cast %72 : vector<64xf32> to vector<64x1xf32>
    %74 = vector.broadcast %73 : vector<64x1xf32> to vector<64x64xf32>
    %75 = arith.subf %71, %74 : vector<64x64xf32>
    %76 = math.exp %75 : vector<64x64xf32>
    %cst_57 = arith.constant dense<0.000000e+00> : vector<64xf32>
    %77 = vector.multi_reduction <add>, %76, %cst_57 [1] : vector<64x64xf32> to vector<64xf32>
    %78 = vector.shape_cast %77 : vector<64xf32> to vector<64x1xf32>
    %79 = tpu.reciprocal %78 {approx = true} : vector<64x1xf32> -> vector<64x1xf32>
    %80 = vector.broadcast %79 : vector<64x1xf32> to vector<64x64xf32>
    %81 = arith.mulf %76, %80 : vector<64x64xf32>
    %cst_58 = arith.constant dense<0.000000e+00> : vector<64x8xf32>
    %82 = tpu.matmul %81, %70, %cst_58 {dimension_numbers = #tpu.dot_dimension_numbers<[1], [0], [0], [1], [0, 0, 1, 1], [], []>} : vector<64x64xf32>, vector<64x8xf32>, vector<64x8xf32> -> vector<64x8xf32>
    %83 = vector.extract_strided_slice %37 {offsets = [0, 24], sizes = [64, 8], strides = [1, 1]} : vector<64x96xf32> to vector<64x8xf32>
    %84 = vector.extract_strided_slice %37 {offsets = [0, 56], sizes = [64, 8], strides = [1, 1]} : vector<64x96xf32> to vector<64x8xf32>
    %85 = vector.extract_strided_slice %37 {offsets = [0, 88], sizes = [64, 8], strides = [1, 1]} : vector<64x96xf32> to vector<64x8xf32>
    %cst_59 = arith.constant dense<0.000000e+00> : vector<64x64xf32>
    %86 = tpu.matmul %83, %84, %cst_59 {dimension_numbers = #tpu.dot_dimension_numbers<[1], [1], [0], [0], [0, 0, 1, 0], [], []>} : vector<64x8xf32>, vector<64x8xf32>, vector<64x64xf32> -> vector<64x64xf32>
    %cst_60 = arith.constant dense<0xFF800000> : vector<64xf32>
    %87 = vector.multi_reduction <maximumf>, %86, %cst_60 [1] : vector<64x64xf32> to vector<64xf32>
    %88 = vector.shape_cast %87 : vector<64xf32> to vector<64x1xf32>
    %89 = vector.broadcast %88 : vector<64x1xf32> to vector<64x64xf32>
    %90 = arith.subf %86, %89 : vector<64x64xf32>
    %91 = math.exp %90 : vector<64x64xf32>
    %cst_61 = arith.constant dense<0.000000e+00> : vector<64xf32>
    %92 = vector.multi_reduction <add>, %91, %cst_61 [1] : vector<64x64xf32> to vector<64xf32>
    %93 = vector.shape_cast %92 : vector<64xf32> to vector<64x1xf32>
    %94 = tpu.reciprocal %93 {approx = true} : vector<64x1xf32> -> vector<64x1xf32>
    %95 = vector.broadcast %94 : vector<64x1xf32> to vector<64x64xf32>
    %96 = arith.mulf %91, %95 : vector<64x64xf32>
    %cst_62 = arith.constant dense<0.000000e+00> : vector<64x8xf32>
    %97 = tpu.matmul %96, %85, %cst_62 {dimension_numbers = #tpu.dot_dimension_numbers<[1], [0], [0], [1], [0, 0, 1, 1], [], []>} : vector<64x64xf32>, vector<64x8xf32>, vector<64x8xf32> -> vector<64x8xf32>
    %98 = tpu.concatenate %52, %67, %82, %97 in 1 : vector<64x8xf32>, vector<64x8xf32>, vector<64x8xf32>, vector<64x8xf32> -> vector<64x32xf32>
    %cst_63 = arith.constant dense<0.000000e+00> : vector<64x32xf32>
    %99 = tpu.matmul %98, %16, %cst_63 {dimension_numbers = #tpu.dot_dimension_numbers<[1], [0], [0], [1], [0, 0, 1, 1], [], []>} : vector<64x32xf32>, vector<32x32xf32>, vector<64x32xf32> -> vector<64x32xf32>
    %100 = vector.broadcast %18 : vector<1x32xf32> to vector<64x32xf32>
    %101 = arith.addf %99, %100 : vector<64x32xf32>
    %102 = arith.addf %10, %101 : vector<64x32xf32>
    %cst_64 = arith.constant dense<0.000000e+00> : vector<64xf32>
    %103 = vector.multi_reduction <add>, %102, %cst_64 [1] : vector<64x32xf32> to vector<64xf32>
    %104 = vector.shape_cast %103 : vector<64xf32> to vector<64x1xf32>
    %cst_65 = arith.constant 3.200000e+01 : f32
    %105 = vector.broadcast %cst_65 : f32 to vector<64x1xf32>
    %106 = arith.divf %104, %105 : vector<64x1xf32>
    %107 = vector.broadcast %106 : vector<64x1xf32> to vector<64x32xf32>
    %108 = arith.subf %102, %107 : vector<64x32xf32>
    %109 = arith.mulf %108, %108 : vector<64x32xf32>
    %cst_66 = arith.constant dense<0.000000e+00> : vector<64xf32>
    %110 = vector.multi_reduction <add>, %109, %cst_66 [1] : vector<64x32xf32> to vector<64xf32>
    %111 = vector.shape_cast %110 : vector<64xf32> to vector<64x1xf32>
    %cst_67 = arith.constant 3.200000e+01 : f32
    %112 = vector.broadcast %cst_67 : f32 to vector<64x1xf32>
    %113 = arith.divf %111, %112 : vector<64x1xf32>
    %114 = vector.broadcast %106 : vector<64x1xf32> to vector<64x32xf32>
    %115 = arith.subf %102, %114 : vector<64x32xf32>
    %cst_68 = arith.constant 9.99999974E-6 : f32
    %116 = vector.broadcast %cst_68 : f32 to vector<64x1xf32>
    %117 = arith.addf %113, %116 : vector<64x1xf32>
    %118 = math.rsqrt %117 : vector<64x1xf32>
    %119 = vector.broadcast %118 : vector<64x1xf32> to vector<64x32xf32>
    %120 = arith.mulf %115, %119 : vector<64x32xf32>
    %121 = vector.broadcast %20 : vector<1x32xf32> to vector<64x32xf32>
    %122 = arith.mulf %120, %121 : vector<64x32xf32>
    %123 = vector.broadcast %22 : vector<1x32xf32> to vector<64x32xf32>
    %124 = arith.addf %122, %123 : vector<64x32xf32>
    %cst_69 = arith.constant dense<0.000000e+00> : vector<64x64xf32>
    %125 = tpu.matmul %124, %24, %cst_69 {dimension_numbers = #tpu.dot_dimension_numbers<[1], [0], [0], [1], [0, 0, 1, 1], [], []>} : vector<64x32xf32>, vector<32x64xf32>, vector<64x64xf32> -> vector<64x64xf32>
    %126 = vector.broadcast %26 : vector<1x64xf32> to vector<64x64xf32>
    %127 = arith.addf %125, %126 : vector<64x64xf32>
    %cst_70 = arith.constant 0.000000e+00 : f32
    %128 = vector.broadcast %cst_70 : f32 to vector<64x64xf32>
    %129 = arith.maximumf %127, %128 : vector<64x64xf32>
    %cst_71 = arith.constant dense<0.000000e+00> : vector<64x32xf32>
    %130 = tpu.matmul %129, %28, %cst_71 {dimension_numbers = #tpu.dot_dimension_numbers<[1], [0], [0], [1], [0, 0, 1, 1], [], []>} : vector<64x64xf32>, vector<64x32xf32>, vector<64x32xf32> -> vector<64x32xf32>
    %131 = vector.broadcast %30 : vector<1x32xf32> to vector<64x32xf32>
    %132 = arith.addf %130, %131 : vector<64x32xf32>
    %133 = arith.addf %124, %132 : vector<64x32xf32>
    %cst_72 = arith.constant dense<0.000000e+00> : vector<64xf32>
    %134 = vector.multi_reduction <add>, %133, %cst_72 [1] : vector<64x32xf32> to vector<64xf32>
    %135 = vector.shape_cast %134 : vector<64xf32> to vector<64x1xf32>
    %cst_73 = arith.constant 3.200000e+01 : f32
    %136 = vector.broadcast %cst_73 : f32 to vector<64x1xf32>
    %137 = arith.divf %135, %136 : vector<64x1xf32>
    %138 = vector.broadcast %137 : vector<64x1xf32> to vector<64x32xf32>
    %139 = arith.subf %133, %138 : vector<64x32xf32>
    %140 = arith.mulf %139, %139 : vector<64x32xf32>
    %cst_74 = arith.constant dense<0.000000e+00> : vector<64xf32>
    %141 = vector.multi_reduction <add>, %140, %cst_74 [1] : vector<64x32xf32> to vector<64xf32>
    %142 = vector.shape_cast %141 : vector<64xf32> to vector<64x1xf32>
    %cst_75 = arith.constant 3.200000e+01 : f32
    %143 = vector.broadcast %cst_75 : f32 to vector<64x1xf32>
    %144 = arith.divf %142, %143 : vector<64x1xf32>
    %145 = vector.broadcast %137 : vector<64x1xf32> to vector<64x32xf32>
    %146 = arith.subf %133, %145 : vector<64x32xf32>
    %cst_76 = arith.constant 9.99999974E-6 : f32
    %147 = vector.broadcast %cst_76 : f32 to vector<64x1xf32>
    %148 = arith.addf %144, %147 : vector<64x1xf32>
    %149 = math.rsqrt %148 : vector<64x1xf32>
    %150 = vector.broadcast %149 : vector<64x1xf32> to vector<64x32xf32>
    %151 = arith.mulf %146, %150 : vector<64x32xf32>
    %152 = vector.broadcast %32 : vector<1x32xf32> to vector<64x32xf32>
    %153 = arith.mulf %151, %152 : vector<64x32xf32>
    %154 = vector.broadcast %34 : vector<1x32xf32> to vector<64x32xf32>
    %155 = arith.addf %153, %154 : vector<64x32xf32>
    %c0_77 = arith.constant 0 : index
    %c0_78 = arith.constant 0 : index
    %c0_79 = arith.constant 0 : index
    %156 = vector.load %arg20[%c0_77, %c0_78, %c0_79] : memref<1x1x1xf32, #tpu.memory_space<vmem>>, vector<1x1x1xf32>
    %157 = vector.shape_cast %156 : vector<1x1x1xf32> to vector<1x1xf32>
    %c0_80 = arith.constant 0 : index
    %c0_81 = arith.constant 0 : index
    %c0_82 = arith.constant 0 : index
    %158 = vector.load %arg21[%c0_80, %c0_81, %c0_82] : memref<1x32x5xf32, #tpu.memory_space<vmem>>, vector<1x32x5xf32>
    %159 = vector.shape_cast %158 : vector<1x32x5xf32> to vector<32x5xf32>
    %c0_83 = arith.constant 0 : index
    %c0_84 = arith.constant 0 : index
    %c0_85 = arith.constant 0 : index
    %160 = vector.load %arg22[%c0_83, %c0_84, %c0_85] : memref<1x1x5xf32, #tpu.memory_space<vmem>>, vector<1x1x5xf32>
    %161 = vector.shape_cast %160 : vector<1x1x5xf32> to vector<1x5xf32>
    %c0_86 = arith.constant 0 : index
    %c0_87 = arith.constant 0 : index
    %c0_88 = arith.constant 0 : index
    %162 = vector.load %arg23[%c0_86, %c0_87, %c0_88] : memref<1x32x5xf32, #tpu.memory_space<vmem>>, vector<1x32x5xf32>
    %163 = vector.shape_cast %162 : vector<1x32x5xf32> to vector<32x5xf32>
    %c0_89 = arith.constant 0 : index
    %c0_90 = arith.constant 0 : index
    %c0_91 = arith.constant 0 : index
    %164 = vector.load %arg24[%c0_89, %c0_90, %c0_91] : memref<1x1x5xf32, #tpu.memory_space<vmem>>, vector<1x1x5xf32>
    %165 = vector.shape_cast %164 : vector<1x1x5xf32> to vector<1x5xf32>
    %c0_92 = arith.constant 0 : index
    %c0_93 = arith.constant 0 : index
    %c0_94 = arith.constant 0 : index
    %166 = vector.load %arg25[%c0_92, %c0_93, %c0_94] : memref<1x1x5xf32, #tpu.memory_space<vmem>>, vector<1x1x5xf32>
    %167 = vector.shape_cast %166 : vector<1x1x5xf32> to vector<1x5xf32>
    %c0_95 = arith.constant 0 : index
    %c0_96 = arith.constant 0 : index
    %c0_97 = arith.constant 0 : index
    %168 = vector.load %arg26[%c0_95, %c0_96, %c0_97] : memref<1x1x5xf32, #tpu.memory_space<vmem>>, vector<1x1x5xf32>
    %169 = vector.shape_cast %168 : vector<1x1x5xf32> to vector<1x5xf32>
    %c0_98 = arith.constant 0 : index
    %c0_99 = arith.constant 0 : index
    %c0_100 = arith.constant 0 : index
    %170 = vector.load %arg27[%c0_98, %c0_99, %c0_100] : memref<1x1x5xf32, #tpu.memory_space<vmem>>, vector<1x1x5xf32>
    %171 = vector.shape_cast %170 : vector<1x1x5xf32> to vector<1x5xf32>
    %c0_101 = arith.constant 0 : index
    %c0_102 = arith.constant 0 : index
    %c0_103 = arith.constant 0 : index
    %172 = vector.load %arg28[%c0_101, %c0_102, %c0_103] : memref<1x1x5xf32, #tpu.memory_space<vmem>>, vector<1x1x5xf32>
    %173 = vector.shape_cast %172 : vector<1x1x5xf32> to vector<1x5xf32>
    %c0_104 = arith.constant 0 : index
    %c0_105 = arith.constant 0 : index
    %c0_106 = arith.constant 0 : index
    %174 = vector.load %arg29[%c0_104, %c0_105, %c0_106] : memref<1x1x1xf32, #tpu.memory_space<vmem>>, vector<1x1x1xf32>
    %175 = vector.shape_cast %174 : vector<1x1x1xf32> to vector<1x1xf32>
    %c0_107 = arith.constant 0 : index
    %c0_108 = arith.constant 0 : index
    %c0_109 = arith.constant 0 : index
    %c0_110 = arith.constant 0 : index
    %176 = vector.load %arg30[%c0_107, %c0_108, %c0_109, %c0_110] : memref<1x3x5x5xf32, #tpu.memory_space<vmem>>, vector<1x3x5x5xf32>
    %177 = vector.shape_cast %176 : vector<1x3x5x5xf32> to vector<3x5x5xf32>
    %c0_111 = arith.constant 0 : index
    %c0_112 = arith.constant 0 : index
    %c0_113 = arith.constant 0 : index
    %178 = vector.load %arg31[%c0_111, %c0_112, %c0_113] : memref<1x1x5xf32, #tpu.memory_space<vmem>>, vector<1x1x5xf32>
    %179 = vector.shape_cast %178 : vector<1x1x5xf32> to vector<1x5xf32>
    %c0_114 = arith.constant 0 : index
    %c0_115 = arith.constant 0 : index
    %c0_116 = arith.constant 0 : index
    %180 = vector.load %arg32[%c0_114, %c0_115, %c0_116] : memref<1x1x5xf32, #tpu.memory_space<vmem>>, vector<1x1x5xf32>
    %181 = vector.shape_cast %180 : vector<1x1x5xf32> to vector<1x5xf32>
    %c0_117 = arith.constant 0 : index
    %c0_118 = arith.constant 0 : index
    %c0_119 = arith.constant 0 : index
    %182 = vector.load %arg33[%c0_117, %c0_118, %c0_119] : memref<1x1x5xf32, #tpu.memory_space<vmem>>, vector<1x1x5xf32>
    %183 = vector.shape_cast %182 : vector<1x1x5xf32> to vector<1x5xf32>
    %c0_120 = arith.constant 0 : index
    %c0_121 = arith.constant 0 : index
    %c0_122 = arith.constant 0 : index
    %184 = vector.load %arg34[%c0_120, %c0_121, %c0_122] : memref<1x1x1xf32, #tpu.memory_space<vmem>>, vector<1x1x1xf32>
    %185 = vector.shape_cast %184 : vector<1x1x1xf32> to vector<1x1xf32>
    %cst_123 = arith.constant 0.000000e+00 : f32
    %186 = vector.broadcast %cst_123 : f32 to vector<64x32xf32>
    %187 = arith.cmpf oge, %155, %186 : vector<64x32xf32>
    %188 = vector.broadcast %157 : vector<1x1xf32> to vector<64x32xf32>
    %189 = arith.mulf %188, %155 : vector<64x32xf32>
    %190 = arith.select %187, %155, %189 : vector<64x32xi1>, vector<64x32xf32>
    %cst_124 = arith.constant dense<0.000000e+00> : vector<64x5xf32>
    %191 = tpu.matmul %190, %163, %cst_124 {dimension_numbers = #tpu.dot_dimension_numbers<[1], [0], [0], [1], [0, 0, 1, 1], [], []>} : vector<64x32xf32>, vector<32x5xf32>, vector<64x5xf32> -> vector<64x5xf32>
    %192 = vector.broadcast %165 : vector<1x5xf32> to vector<64x5xf32>
    %193 = arith.addf %191, %192 : vector<64x5xf32>
    %cst_125 = arith.constant dense<0.000000e+00> : vector<5xf32>
    %194 = vector.multi_reduction <add>, %193, %cst_125 [0] : vector<64x5xf32> to vector<5xf32>
    %195 = vector.shape_cast %194 : vector<5xf32> to vector<1x5xf32>
    %cst_126 = arith.constant 6.400000e+01 : f32
    %196 = vector.broadcast %cst_126 : f32 to vector<1x5xf32>
    %197 = arith.divf %195, %196 : vector<1x5xf32>
    %198 = vector.broadcast %197 : vector<1x5xf32> to vector<64x5xf32>
    %199 = arith.subf %193, %198 : vector<64x5xf32>
    %200 = arith.mulf %199, %199 : vector<64x5xf32>
    %cst_127 = arith.constant dense<0.000000e+00> : vector<5xf32>
    %201 = vector.multi_reduction <add>, %200, %cst_127 [0] : vector<64x5xf32> to vector<5xf32>
    %202 = vector.shape_cast %201 : vector<5xf32> to vector<1x5xf32>
    %cst_128 = arith.constant 6.400000e+01 : f32
    %203 = vector.broadcast %cst_128 : f32 to vector<1x5xf32>
    %204 = arith.divf %202, %203 : vector<1x5xf32>
    %205 = vector.broadcast %197 : vector<1x5xf32> to vector<64x5xf32>
    %206 = arith.subf %193, %205 : vector<64x5xf32>
    %cst_129 = arith.constant 9.99999974E-6 : f32
    %207 = vector.broadcast %cst_129 : f32 to vector<1x5xf32>
    %208 = arith.addf %204, %207 : vector<1x5xf32>
    %209 = math.rsqrt %208 : vector<1x5xf32>
    %210 = vector.broadcast %209 : vector<1x5xf32> to vector<64x5xf32>
    %211 = arith.mulf %206, %210 : vector<64x5xf32>
    %212 = vector.broadcast %167 : vector<1x5xf32> to vector<64x5xf32>
    %213 = arith.mulf %211, %212 : vector<64x5xf32>
    %214 = vector.broadcast %169 : vector<1x5xf32> to vector<64x5xf32>
    %215 = arith.addf %213, %214 : vector<64x5xf32>
    %cst_130 = arith.constant dense<0.000000e+00> : vector<64x5xf32>
    %216 = tpu.matmul %190, %159, %cst_130 {dimension_numbers = #tpu.dot_dimension_numbers<[1], [0], [0], [1], [0, 0, 1, 1], [], []>} : vector<64x32xf32>, vector<32x5xf32>, vector<64x5xf32> -> vector<64x5xf32>
    %217 = vector.broadcast %161 : vector<1x5xf32> to vector<64x5xf32>
    %218 = arith.addf %216, %217 : vector<64x5xf32>
    %c0_131 = arith.constant 0 : index
    %c0_132 = arith.constant 0 : index
    %219 = vector.load %arg3[%c0_131, %c0_132] : memref<64x64xf32, #tpu.memory_space<vmem>>, vector<64x64xf32>
    %cst_133 = arith.constant dense<0.000000e+00> : vector<64x5xf32>
    %220 = tpu.matmul %219, %218, %cst_133 {dimension_numbers = #tpu.dot_dimension_numbers<[1], [0], [0], [1], [0, 0, 1, 1], [], []>} : vector<64x64xf32>, vector<64x5xf32>, vector<64x5xf32> -> vector<64x5xf32>
    %cst_134 = arith.constant dense<0.000000e+00> : vector<5xf32>
    %221 = vector.multi_reduction <add>, %220, %cst_134 [0] : vector<64x5xf32> to vector<5xf32>
    %222 = vector.shape_cast %221 : vector<5xf32> to vector<1x5xf32>
    %cst_135 = arith.constant 6.400000e+01 : f32
    %223 = vector.broadcast %cst_135 : f32 to vector<1x5xf32>
    %224 = arith.divf %222, %223 : vector<1x5xf32>
    %225 = vector.broadcast %224 : vector<1x5xf32> to vector<64x5xf32>
    %226 = arith.subf %220, %225 : vector<64x5xf32>
    %227 = arith.mulf %226, %226 : vector<64x5xf32>
    %cst_136 = arith.constant dense<0.000000e+00> : vector<5xf32>
    %228 = vector.multi_reduction <add>, %227, %cst_136 [0] : vector<64x5xf32> to vector<5xf32>
    %229 = vector.shape_cast %228 : vector<5xf32> to vector<1x5xf32>
    %cst_137 = arith.constant 6.400000e+01 : f32
    %230 = vector.broadcast %cst_137 : f32 to vector<1x5xf32>
    %231 = arith.divf %229, %230 : vector<1x5xf32>
    %232 = vector.broadcast %224 : vector<1x5xf32> to vector<64x5xf32>
    %233 = arith.subf %220, %232 : vector<64x5xf32>
    %cst_138 = arith.constant 9.99999974E-6 : f32
    %234 = vector.broadcast %cst_138 : f32 to vector<1x5xf32>
    %235 = arith.addf %231, %234 : vector<1x5xf32>
    %236 = math.rsqrt %235 : vector<1x5xf32>
    %237 = vector.broadcast %236 : vector<1x5xf32> to vector<64x5xf32>
    %238 = arith.mulf %233, %237 : vector<64x5xf32>
    %239 = vector.broadcast %171 : vector<1x5xf32> to vector<64x5xf32>
    %240 = arith.mulf %238, %239 : vector<64x5xf32>
    %241 = vector.broadcast %173 : vector<1x5xf32> to vector<64x5xf32>
    %242 = arith.addf %240, %241 : vector<64x5xf32>
    %cst_139 = arith.constant 0.000000e+00 : f32
    %243 = vector.broadcast %cst_139 : f32 to vector<64x5xf32>
    %244 = arith.cmpf oge, %242, %243 : vector<64x5xf32>
    %245 = vector.broadcast %175 : vector<1x1xf32> to vector<64x5xf32>
    %246 = arith.mulf %245, %242 : vector<64x5xf32>
    %247 = arith.select %244, %242, %246 : vector<64x5xi1>, vector<64x5xf32>
    %c0_140 = arith.constant 0 : index
    %c0_141 = arith.constant 0 : index
    %c0_142 = arith.constant 0 : index
    %248 = vector.load %arg4[%c0_140, %c0_141, %c0_142] : memref<2x64x64xf32, #tpu.memory_space<vmem>>, vector<1x64x64xf32>
    %249 = vector.shape_cast %248 : vector<1x64x64xf32> to vector<64x64xf32>
    %cst_143 = arith.constant dense<0.000000e+00> : vector<64x5xf32>
    %250 = tpu.matmul %249, %247, %cst_143 {dimension_numbers = #tpu.dot_dimension_numbers<[1], [0], [0], [1], [0, 0, 1, 1], [], []>} : vector<64x64xf32>, vector<64x5xf32>, vector<64x5xf32> -> vector<64x5xf32>
    %c1 = arith.constant 1 : index
    %c0_144 = arith.constant 0 : index
    %c0_145 = arith.constant 0 : index
    %251 = vector.load %arg4[%c1, %c0_144, %c0_145] : memref<2x64x64xf32, #tpu.memory_space<vmem>>, vector<1x64x64xf32>
    %252 = vector.shape_cast %251 : vector<1x64x64xf32> to vector<64x64xf32>
    %cst_146 = arith.constant dense<0.000000e+00> : vector<64x5xf32>
    %253 = tpu.matmul %252, %247, %cst_146 {dimension_numbers = #tpu.dot_dimension_numbers<[1], [0], [0], [1], [0, 0, 1, 1], [], []>} : vector<64x64xf32>, vector<64x5xf32>, vector<64x5xf32> -> vector<64x5xf32>
    %254 = vector.extract_strided_slice %177 {offsets = [0, 0, 0], sizes = [1, 5, 5], strides = [1, 1, 1]} : vector<3x5x5xf32> to vector<1x5x5xf32>
    %255 = vector.shape_cast %254 : vector<1x5x5xf32> to vector<5x5xf32>
    %cst_147 = arith.constant dense<0.000000e+00> : vector<64x5xf32>
    %256 = tpu.matmul %250, %255, %cst_147 {dimension_numbers = #tpu.dot_dimension_numbers<[1], [0], [0], [1], [0, 0, 1, 1], [], []>} : vector<64x5xf32>, vector<5x5xf32>, vector<64x5xf32> -> vector<64x5xf32>
    %257 = vector.extract_strided_slice %177 {offsets = [1, 0, 0], sizes = [1, 5, 5], strides = [1, 1, 1]} : vector<3x5x5xf32> to vector<1x5x5xf32>
    %258 = vector.shape_cast %257 : vector<1x5x5xf32> to vector<5x5xf32>
    %cst_148 = arith.constant dense<0.000000e+00> : vector<64x5xf32>
    %259 = tpu.matmul %247, %258, %cst_148 {dimension_numbers = #tpu.dot_dimension_numbers<[1], [0], [0], [1], [0, 0, 1, 1], [], []>} : vector<64x5xf32>, vector<5x5xf32>, vector<64x5xf32> -> vector<64x5xf32>
    %260 = arith.addf %256, %259 : vector<64x5xf32>
    %261 = vector.extract_strided_slice %177 {offsets = [2, 0, 0], sizes = [1, 5, 5], strides = [1, 1, 1]} : vector<3x5x5xf32> to vector<1x5x5xf32>
    %262 = vector.shape_cast %261 : vector<1x5x5xf32> to vector<5x5xf32>
    %cst_149 = arith.constant dense<0.000000e+00> : vector<64x5xf32>
    %263 = tpu.matmul %253, %262, %cst_149 {dimension_numbers = #tpu.dot_dimension_numbers<[1], [0], [0], [1], [0, 0, 1, 1], [], []>} : vector<64x5xf32>, vector<5x5xf32>, vector<64x5xf32> -> vector<64x5xf32>
    %264 = arith.addf %260, %263 : vector<64x5xf32>
    %265 = vector.broadcast %179 : vector<1x5xf32> to vector<64x5xf32>
    %266 = arith.addf %264, %265 : vector<64x5xf32>
    %cst_150 = arith.constant dense<0.000000e+00> : vector<5xf32>
    %267 = vector.multi_reduction <add>, %266, %cst_150 [0] : vector<64x5xf32> to vector<5xf32>
    %268 = vector.shape_cast %267 : vector<5xf32> to vector<1x5xf32>
    %cst_151 = arith.constant 6.400000e+01 : f32
    %269 = vector.broadcast %cst_151 : f32 to vector<1x5xf32>
    %270 = arith.divf %268, %269 : vector<1x5xf32>
    %271 = vector.broadcast %270 : vector<1x5xf32> to vector<64x5xf32>
    %272 = arith.subf %266, %271 : vector<64x5xf32>
    %273 = arith.mulf %272, %272 : vector<64x5xf32>
    %cst_152 = arith.constant dense<0.000000e+00> : vector<5xf32>
    %274 = vector.multi_reduction <add>, %273, %cst_152 [0] : vector<64x5xf32> to vector<5xf32>
    %275 = vector.shape_cast %274 : vector<5xf32> to vector<1x5xf32>
    %cst_153 = arith.constant 6.400000e+01 : f32
    %276 = vector.broadcast %cst_153 : f32 to vector<1x5xf32>
    %277 = arith.divf %275, %276 : vector<1x5xf32>
    %278 = vector.broadcast %270 : vector<1x5xf32> to vector<64x5xf32>
    %279 = arith.subf %266, %278 : vector<64x5xf32>
    %cst_154 = arith.constant 9.99999974E-6 : f32
    %280 = vector.broadcast %cst_154 : f32 to vector<1x5xf32>
    %281 = arith.addf %277, %280 : vector<1x5xf32>
    %282 = math.rsqrt %281 : vector<1x5xf32>
    %283 = vector.broadcast %282 : vector<1x5xf32> to vector<64x5xf32>
    %284 = arith.mulf %279, %283 : vector<64x5xf32>
    %285 = vector.broadcast %181 : vector<1x5xf32> to vector<64x5xf32>
    %286 = arith.mulf %284, %285 : vector<64x5xf32>
    %287 = vector.broadcast %183 : vector<1x5xf32> to vector<64x5xf32>
    %288 = arith.addf %286, %287 : vector<64x5xf32>
    %289 = arith.addf %288, %215 : vector<64x5xf32>
    %cst_155 = arith.constant 0.000000e+00 : f32
    %290 = vector.broadcast %cst_155 : f32 to vector<64x5xf32>
    %291 = arith.cmpf oge, %289, %290 : vector<64x5xf32>
    %292 = vector.broadcast %185 : vector<1x1xf32> to vector<64x5xf32>
    %293 = arith.mulf %292, %289 : vector<64x5xf32>
    %294 = arith.select %291, %289, %293 : vector<64x5xi1>, vector<64x5xf32>
    %295 = tpu.iota {dimensions = array<i32: 0>} : vector<5x5xi32>
    %296 = tpu.iota {dimensions = array<i32: 1>} : vector<5x5xi32>
    %297 = arith.cmpi eq, %295, %296 : vector<5x5xi32>
    %298 = arith.extui %297 : vector<5x5xi1> to vector<5x5xi32>
    %299 = arith.sitofp %298 : vector<5x5xi32> to vector<5x5xf32>
    %cst_156 = arith.constant dense<0.000000e+00> : vector<5x64xf32>
    %300 = tpu.matmul %299, %294, %cst_156 {dimension_numbers = #tpu.dot_dimension_numbers<[1], [1], [0], [0], [0, 0, 1, 0], [], []>} : vector<5x5xf32>, vector<64x5xf32>, vector<5x64xf32> -> vector<5x64xf32>
    %301 = vector.extract_strided_slice %300 {offsets = [0, 0], sizes = [1, 64], strides = [1, 1]} : vector<5x64xf32> to vector<1x64xf32>
    %302 = vector.extract_strided_slice %300 {offsets = [1, 0], sizes = [1, 64], strides = [1, 1]} : vector<5x64xf32> to vector<1x64xf32>
    %303 = vector.extract_strided_slice %300 {offsets = [2, 0], sizes = [1, 64], strides = [1, 1]} : vector<5x64xf32> to vector<1x64xf32>
    %304 = vector.extract_strided_slice %300 {offsets = [3, 0], sizes = [1, 64], strides = [1, 1]} : vector<5x64xf32> to vector<1x64xf32>
    %305 = vector.extract_strided_slice %300 {offsets = [4, 0], sizes = [1, 64], strides = [1, 1]} : vector<5x64xf32> to vector<1x64xf32>
    %306 = tpu.concatenate %301, %302, %303, %304, %305 in 1 : vector<1x64xf32>, vector<1x64xf32>, vector<1x64xf32>, vector<1x64xf32>, vector<1x64xf32> -> vector<1x320xf32>
    %307 = vector.extract_strided_slice %306 {offsets = [0, 0], sizes = [1, 40], strides = [1, 1]} : vector<1x320xf32> to vector<1x40xf32>
    %308 = vector.extract_strided_slice %306 {offsets = [0, 40], sizes = [1, 40], strides = [1, 1]} : vector<1x320xf32> to vector<1x40xf32>
    %309 = vector.extract_strided_slice %306 {offsets = [0, 80], sizes = [1, 40], strides = [1, 1]} : vector<1x320xf32> to vector<1x40xf32>
    %310 = vector.extract_strided_slice %306 {offsets = [0, 120], sizes = [1, 40], strides = [1, 1]} : vector<1x320xf32> to vector<1x40xf32>
    %311 = vector.extract_strided_slice %306 {offsets = [0, 160], sizes = [1, 40], strides = [1, 1]} : vector<1x320xf32> to vector<1x40xf32>
    %312 = vector.extract_strided_slice %306 {offsets = [0, 200], sizes = [1, 40], strides = [1, 1]} : vector<1x320xf32> to vector<1x40xf32>
    %313 = vector.extract_strided_slice %306 {offsets = [0, 240], sizes = [1, 40], strides = [1, 1]} : vector<1x320xf32> to vector<1x40xf32>
    %314 = vector.extract_strided_slice %306 {offsets = [0, 280], sizes = [1, 40], strides = [1, 1]} : vector<1x320xf32> to vector<1x40xf32>
    %315 = tpu.concatenate %307, %308, %309, %310, %311, %312, %313, %314 in 0 : vector<1x40xf32>, vector<1x40xf32>, vector<1x40xf32>, vector<1x40xf32>, vector<1x40xf32>, vector<1x40xf32>, vector<1x40xf32>, vector<1x40xf32> -> vector<8x40xf32>
    %c0_157 = arith.constant 0 : index
    %c0_158 = arith.constant 0 : index
    %c0_159 = arith.constant 0 : index
    %c0_160 = arith.constant 0 : index
    %316 = vector.load %arg35[%c0_157, %c0_158, %c0_159, %c0_160] : memref<1x3x12x8xf32, #tpu.memory_space<vmem>>, vector<1x3x12x8xf32>
    %317 = vector.shape_cast %316 : vector<1x3x12x8xf32> to vector<3x12x8xf32>
    %c0_161 = arith.constant 0 : index
    %c0_162 = arith.constant 0 : index
    %c0_163 = arith.constant 0 : index
    %318 = vector.load %arg36[%c0_161, %c0_162, %c0_163] : memref<1x12x1xf32, #tpu.memory_space<vmem>>, vector<1x12x1xf32>
    %319 = vector.shape_cast %318 : vector<1x12x1xf32> to vector<12x1xf32>
    %c0_164 = arith.constant 0 : index
    %c0_165 = arith.constant 0 : index
    %c0_166 = arith.constant 0 : index
    %320 = vector.load %arg37[%c0_164, %c0_165, %c0_166] : memref<1x1x1xf32, #tpu.memory_space<vmem>>, vector<1x1x1xf32>
    %321 = vector.shape_cast %320 : vector<1x1x1xf32> to vector<1x1xf32>
    %c0_167 = arith.constant 0 : index
    %c0_168 = arith.constant 0 : index
    %c0_169 = arith.constant 0 : index
    %c0_170 = arith.constant 0 : index
    %322 = vector.load %arg38[%c0_167, %c0_168, %c0_169, %c0_170] : memref<1x9x12x12xf32, #tpu.memory_space<vmem>>, vector<1x9x12x12xf32>
    %323 = vector.shape_cast %322 : vector<1x9x12x12xf32> to vector<9x12x12xf32>
    %c0_171 = arith.constant 0 : index
    %c0_172 = arith.constant 0 : index
    %c0_173 = arith.constant 0 : index
    %324 = vector.load %arg39[%c0_171, %c0_172, %c0_173] : memref<1x12x1xf32, #tpu.memory_space<vmem>>, vector<1x12x1xf32>
    %325 = vector.shape_cast %324 : vector<1x12x1xf32> to vector<12x1xf32>
    %326 = vector.extract_strided_slice %317 {offsets = [0, 0, 0], sizes = [1, 12, 8], strides = [1, 1, 1]} : vector<3x12x8xf32> to vector<1x12x8xf32>
    %327 = vector.shape_cast %326 : vector<1x12x8xf32> to vector<12x8xf32>
    %c1_174 = arith.constant 1 : index
    %c0_175 = arith.constant 0 : index
    %c0_176 = arith.constant 0 : index
    %328 = vector.load %arg5[%c1_174, %c0_175, %c0_176] : memref<9x40x40xf32, #tpu.memory_space<vmem>>, vector<1x40x40xf32>
    %329 = vector.shape_cast %328 : vector<1x40x40xf32> to vector<40x40xf32>
    %cst_177 = arith.constant dense<0.000000e+00> : vector<8x40xf32>
    %330 = tpu.matmul %315, %329, %cst_177 {dimension_numbers = #tpu.dot_dimension_numbers<[1], [0], [0], [1], [0, 0, 1, 1], [], []>} : vector<8x40xf32>, vector<40x40xf32>, vector<8x40xf32> -> vector<8x40xf32>
    %cst_178 = arith.constant dense<0.000000e+00> : vector<12x40xf32>
    %331 = tpu.matmul %327, %330, %cst_178 {dimension_numbers = #tpu.dot_dimension_numbers<[1], [0], [0], [1], [0, 0, 1, 1], [], []>} : vector<12x8xf32>, vector<8x40xf32>, vector<12x40xf32> -> vector<12x40xf32>
    %332 = vector.broadcast %319 : vector<12x1xf32> to vector<12x40xf32>
    %333 = arith.addf %332, %331 : vector<12x40xf32>
    %334 = vector.extract_strided_slice %317 {offsets = [1, 0, 0], sizes = [1, 12, 8], strides = [1, 1, 1]} : vector<3x12x8xf32> to vector<1x12x8xf32>
    %335 = vector.shape_cast %334 : vector<1x12x8xf32> to vector<12x8xf32>
    %c4 = arith.constant 4 : index
    %c0_179 = arith.constant 0 : index
    %c0_180 = arith.constant 0 : index
    %336 = vector.load %arg5[%c4, %c0_179, %c0_180] : memref<9x40x40xf32, #tpu.memory_space<vmem>>, vector<1x40x40xf32>
    %337 = vector.shape_cast %336 : vector<1x40x40xf32> to vector<40x40xf32>
    %cst_181 = arith.constant dense<0.000000e+00> : vector<8x40xf32>
    %338 = tpu.matmul %315, %337, %cst_181 {dimension_numbers = #tpu.dot_dimension_numbers<[1], [0], [0], [1], [0, 0, 1, 1], [], []>} : vector<8x40xf32>, vector<40x40xf32>, vector<8x40xf32> -> vector<8x40xf32>
    %cst_182 = arith.constant dense<0.000000e+00> : vector<12x40xf32>
    %339 = tpu.matmul %335, %338, %cst_182 {dimension_numbers = #tpu.dot_dimension_numbers<[1], [0], [0], [1], [0, 0, 1, 1], [], []>} : vector<12x8xf32>, vector<8x40xf32>, vector<12x40xf32> -> vector<12x40xf32>
    %340 = arith.addf %333, %339 : vector<12x40xf32>
    %341 = vector.extract_strided_slice %317 {offsets = [2, 0, 0], sizes = [1, 12, 8], strides = [1, 1, 1]} : vector<3x12x8xf32> to vector<1x12x8xf32>
    %342 = vector.shape_cast %341 : vector<1x12x8xf32> to vector<12x8xf32>
    %c7 = arith.constant 7 : index
    %c0_183 = arith.constant 0 : index
    %c0_184 = arith.constant 0 : index
    %343 = vector.load %arg5[%c7, %c0_183, %c0_184] : memref<9x40x40xf32, #tpu.memory_space<vmem>>, vector<1x40x40xf32>
    %344 = vector.shape_cast %343 : vector<1x40x40xf32> to vector<40x40xf32>
    %cst_185 = arith.constant dense<0.000000e+00> : vector<8x40xf32>
    %345 = tpu.matmul %315, %344, %cst_185 {dimension_numbers = #tpu.dot_dimension_numbers<[1], [0], [0], [1], [0, 0, 1, 1], [], []>} : vector<8x40xf32>, vector<40x40xf32>, vector<8x40xf32> -> vector<8x40xf32>
    %cst_186 = arith.constant dense<0.000000e+00> : vector<12x40xf32>
    %346 = tpu.matmul %342, %345, %cst_186 {dimension_numbers = #tpu.dot_dimension_numbers<[1], [0], [0], [1], [0, 0, 1, 1], [], []>} : vector<12x8xf32>, vector<8x40xf32>, vector<12x40xf32> -> vector<12x40xf32>
    %347 = arith.addf %340, %346 : vector<12x40xf32>
    %cst_187 = arith.constant 0.000000e+00 : f32
    %348 = vector.broadcast %cst_187 : f32 to vector<12x40xf32>
    %349 = arith.cmpf oge, %347, %348 : vector<12x40xf32>
    %350 = vector.broadcast %321 : vector<1x1xf32> to vector<12x40xf32>
    %351 = arith.mulf %350, %347 : vector<12x40xf32>
    %352 = arith.select %349, %347, %351 : vector<12x40xi1>, vector<12x40xf32>
    %353 = vector.extract_strided_slice %323 {offsets = [0, 0, 0], sizes = [1, 12, 12], strides = [1, 1, 1]} : vector<9x12x12xf32> to vector<1x12x12xf32>
    %354 = vector.shape_cast %353 : vector<1x12x12xf32> to vector<12x12xf32>
    %c0_188 = arith.constant 0 : index
    %c0_189 = arith.constant 0 : index
    %c0_190 = arith.constant 0 : index
    %355 = vector.load %arg5[%c0_188, %c0_189, %c0_190] : memref<9x40x40xf32, #tpu.memory_space<vmem>>, vector<1x40x40xf32>
    %356 = vector.shape_cast %355 : vector<1x40x40xf32> to vector<40x40xf32>
    %cst_191 = arith.constant dense<0.000000e+00> : vector<12x40xf32>
    %357 = tpu.matmul %352, %356, %cst_191 {dimension_numbers = #tpu.dot_dimension_numbers<[1], [0], [0], [1], [0, 0, 1, 1], [], []>} : vector<12x40xf32>, vector<40x40xf32>, vector<12x40xf32> -> vector<12x40xf32>
    %cst_192 = arith.constant dense<0.000000e+00> : vector<12x40xf32>
    %358 = tpu.matmul %354, %357, %cst_192 {dimension_numbers = #tpu.dot_dimension_numbers<[1], [0], [0], [1], [0, 0, 1, 1], [], []>} : vector<12x12xf32>, vector<12x40xf32>, vector<12x40xf32> -> vector<12x40xf32>
    %359 = vector.broadcast %325 : vector<12x1xf32> to vector<12x40xf32>
    %360 = arith.addf %359, %358 : vector<12x40xf32>
    %361 = vector.extract_strided_slice %323 {offsets = [1, 0, 0], sizes = [1, 12, 12], strides = [1, 1, 1]} : vector<9x12x12xf32> to vector<1x12x12xf32>
    %362 = vector.shape_cast %361 : vector<1x12x12xf32> to vector<12x12xf32>
    %c1_193 = arith.constant 1 : index
    %c0_194 = arith.constant 0 : index
    %c0_195 = arith.constant 0 : index
    %363 = vector.load %arg5[%c1_193, %c0_194, %c0_195] : memref<9x40x40xf32, #tpu.memory_space<vmem>>, vector<1x40x40xf32>
    %364 = vector.shape_cast %363 : vector<1x40x40xf32> to vector<40x40xf32>
    %cst_196 = arith.constant dense<0.000000e+00> : vector<12x40xf32>
    %365 = tpu.matmul %352, %364, %cst_196 {dimension_numbers = #tpu.dot_dimension_numbers<[1], [0], [0], [1], [0, 0, 1, 1], [], []>} : vector<12x40xf32>, vector<40x40xf32>, vector<12x40xf32> -> vector<12x40xf32>
    %cst_197 = arith.constant dense<0.000000e+00> : vector<12x40xf32>
    %366 = tpu.matmul %362, %365, %cst_197 {dimension_numbers = #tpu.dot_dimension_numbers<[1], [0], [0], [1], [0, 0, 1, 1], [], []>} : vector<12x12xf32>, vector<12x40xf32>, vector<12x40xf32> -> vector<12x40xf32>
    %367 = arith.addf %360, %366 : vector<12x40xf32>
    %368 = vector.extract_strided_slice %323 {offsets = [2, 0, 0], sizes = [1, 12, 12], strides = [1, 1, 1]} : vector<9x12x12xf32> to vector<1x12x12xf32>
    %369 = vector.shape_cast %368 : vector<1x12x12xf32> to vector<12x12xf32>
    %c2 = arith.constant 2 : index
    %c0_198 = arith.constant 0 : index
    %c0_199 = arith.constant 0 : index
    %370 = vector.load %arg5[%c2, %c0_198, %c0_199] : memref<9x40x40xf32, #tpu.memory_space<vmem>>, vector<1x40x40xf32>
    %371 = vector.shape_cast %370 : vector<1x40x40xf32> to vector<40x40xf32>
    %cst_200 = arith.constant dense<0.000000e+00> : vector<12x40xf32>
    %372 = tpu.matmul %352, %371, %cst_200 {dimension_numbers = #tpu.dot_dimension_numbers<[1], [0], [0], [1], [0, 0, 1, 1], [], []>} : vector<12x40xf32>, vector<40x40xf32>, vector<12x40xf32> -> vector<12x40xf32>
    %cst_201 = arith.constant dense<0.000000e+00> : vector<12x40xf32>
    %373 = tpu.matmul %369, %372, %cst_201 {dimension_numbers = #tpu.dot_dimension_numbers<[1], [0], [0], [1], [0, 0, 1, 1], [], []>} : vector<12x12xf32>, vector<12x40xf32>, vector<12x40xf32> -> vector<12x40xf32>
    %374 = arith.addf %367, %373 : vector<12x40xf32>
    %375 = vector.extract_strided_slice %323 {offsets = [3, 0, 0], sizes = [1, 12, 12], strides = [1, 1, 1]} : vector<9x12x12xf32> to vector<1x12x12xf32>
    %376 = vector.shape_cast %375 : vector<1x12x12xf32> to vector<12x12xf32>
    %c3 = arith.constant 3 : index
    %c0_202 = arith.constant 0 : index
    %c0_203 = arith.constant 0 : index
    %377 = vector.load %arg5[%c3, %c0_202, %c0_203] : memref<9x40x40xf32, #tpu.memory_space<vmem>>, vector<1x40x40xf32>
    %378 = vector.shape_cast %377 : vector<1x40x40xf32> to vector<40x40xf32>
    %cst_204 = arith.constant dense<0.000000e+00> : vector<12x40xf32>
    %379 = tpu.matmul %352, %378, %cst_204 {dimension_numbers = #tpu.dot_dimension_numbers<[1], [0], [0], [1], [0, 0, 1, 1], [], []>} : vector<12x40xf32>, vector<40x40xf32>, vector<12x40xf32> -> vector<12x40xf32>
    %cst_205 = arith.constant dense<0.000000e+00> : vector<12x40xf32>
    %380 = tpu.matmul %376, %379, %cst_205 {dimension_numbers = #tpu.dot_dimension_numbers<[1], [0], [0], [1], [0, 0, 1, 1], [], []>} : vector<12x12xf32>, vector<12x40xf32>, vector<12x40xf32> -> vector<12x40xf32>
    %381 = arith.addf %374, %380 : vector<12x40xf32>
    %382 = vector.extract_strided_slice %323 {offsets = [4, 0, 0], sizes = [1, 12, 12], strides = [1, 1, 1]} : vector<9x12x12xf32> to vector<1x12x12xf32>
    %383 = vector.shape_cast %382 : vector<1x12x12xf32> to vector<12x12xf32>
    %c4_206 = arith.constant 4 : index
    %c0_207 = arith.constant 0 : index
    %c0_208 = arith.constant 0 : index
    %384 = vector.load %arg5[%c4_206, %c0_207, %c0_208] : memref<9x40x40xf32, #tpu.memory_space<vmem>>, vector<1x40x40xf32>
    %385 = vector.shape_cast %384 : vector<1x40x40xf32> to vector<40x40xf32>
    %cst_209 = arith.constant dense<0.000000e+00> : vector<12x40xf32>
    %386 = tpu.matmul %352, %385, %cst_209 {dimension_numbers = #tpu.dot_dimension_numbers<[1], [0], [0], [1], [0, 0, 1, 1], [], []>} : vector<12x40xf32>, vector<40x40xf32>, vector<12x40xf32> -> vector<12x40xf32>
    %cst_210 = arith.constant dense<0.000000e+00> : vector<12x40xf32>
    %387 = tpu.matmul %383, %386, %cst_210 {dimension_numbers = #tpu.dot_dimension_numbers<[1], [0], [0], [1], [0, 0, 1, 1], [], []>} : vector<12x12xf32>, vector<12x40xf32>, vector<12x40xf32> -> vector<12x40xf32>
    %388 = arith.addf %381, %387 : vector<12x40xf32>
    %389 = vector.extract_strided_slice %323 {offsets = [5, 0, 0], sizes = [1, 12, 12], strides = [1, 1, 1]} : vector<9x12x12xf32> to vector<1x12x12xf32>
    %390 = vector.shape_cast %389 : vector<1x12x12xf32> to vector<12x12xf32>
    %c5 = arith.constant 5 : index
    %c0_211 = arith.constant 0 : index
    %c0_212 = arith.constant 0 : index
    %391 = vector.load %arg5[%c5, %c0_211, %c0_212] : memref<9x40x40xf32, #tpu.memory_space<vmem>>, vector<1x40x40xf32>
    %392 = vector.shape_cast %391 : vector<1x40x40xf32> to vector<40x40xf32>
    %cst_213 = arith.constant dense<0.000000e+00> : vector<12x40xf32>
    %393 = tpu.matmul %352, %392, %cst_213 {dimension_numbers = #tpu.dot_dimension_numbers<[1], [0], [0], [1], [0, 0, 1, 1], [], []>} : vector<12x40xf32>, vector<40x40xf32>, vector<12x40xf32> -> vector<12x40xf32>
    %cst_214 = arith.constant dense<0.000000e+00> : vector<12x40xf32>
    %394 = tpu.matmul %390, %393, %cst_214 {dimension_numbers = #tpu.dot_dimension_numbers<[1], [0], [0], [1], [0, 0, 1, 1], [], []>} : vector<12x12xf32>, vector<12x40xf32>, vector<12x40xf32> -> vector<12x40xf32>
    %395 = arith.addf %388, %394 : vector<12x40xf32>
    %396 = vector.extract_strided_slice %323 {offsets = [6, 0, 0], sizes = [1, 12, 12], strides = [1, 1, 1]} : vector<9x12x12xf32> to vector<1x12x12xf32>
    %397 = vector.shape_cast %396 : vector<1x12x12xf32> to vector<12x12xf32>
    %c6 = arith.constant 6 : index
    %c0_215 = arith.constant 0 : index
    %c0_216 = arith.constant 0 : index
    %398 = vector.load %arg5[%c6, %c0_215, %c0_216] : memref<9x40x40xf32, #tpu.memory_space<vmem>>, vector<1x40x40xf32>
    %399 = vector.shape_cast %398 : vector<1x40x40xf32> to vector<40x40xf32>
    %cst_217 = arith.constant dense<0.000000e+00> : vector<12x40xf32>
    %400 = tpu.matmul %352, %399, %cst_217 {dimension_numbers = #tpu.dot_dimension_numbers<[1], [0], [0], [1], [0, 0, 1, 1], [], []>} : vector<12x40xf32>, vector<40x40xf32>, vector<12x40xf32> -> vector<12x40xf32>
    %cst_218 = arith.constant dense<0.000000e+00> : vector<12x40xf32>
    %401 = tpu.matmul %397, %400, %cst_218 {dimension_numbers = #tpu.dot_dimension_numbers<[1], [0], [0], [1], [0, 0, 1, 1], [], []>} : vector<12x12xf32>, vector<12x40xf32>, vector<12x40xf32> -> vector<12x40xf32>
    %402 = arith.addf %395, %401 : vector<12x40xf32>
    %403 = vector.extract_strided_slice %323 {offsets = [7, 0, 0], sizes = [1, 12, 12], strides = [1, 1, 1]} : vector<9x12x12xf32> to vector<1x12x12xf32>
    %404 = vector.shape_cast %403 : vector<1x12x12xf32> to vector<12x12xf32>
    %c7_219 = arith.constant 7 : index
    %c0_220 = arith.constant 0 : index
    %c0_221 = arith.constant 0 : index
    %405 = vector.load %arg5[%c7_219, %c0_220, %c0_221] : memref<9x40x40xf32, #tpu.memory_space<vmem>>, vector<1x40x40xf32>
    %406 = vector.shape_cast %405 : vector<1x40x40xf32> to vector<40x40xf32>
    %cst_222 = arith.constant dense<0.000000e+00> : vector<12x40xf32>
    %407 = tpu.matmul %352, %406, %cst_222 {dimension_numbers = #tpu.dot_dimension_numbers<[1], [0], [0], [1], [0, 0, 1, 1], [], []>} : vector<12x40xf32>, vector<40x40xf32>, vector<12x40xf32> -> vector<12x40xf32>
    %cst_223 = arith.constant dense<0.000000e+00> : vector<12x40xf32>
    %408 = tpu.matmul %404, %407, %cst_223 {dimension_numbers = #tpu.dot_dimension_numbers<[1], [0], [0], [1], [0, 0, 1, 1], [], []>} : vector<12x12xf32>, vector<12x40xf32>, vector<12x40xf32> -> vector<12x40xf32>
    %409 = arith.addf %402, %408 : vector<12x40xf32>
    %410 = vector.extract_strided_slice %323 {offsets = [8, 0, 0], sizes = [1, 12, 12], strides = [1, 1, 1]} : vector<9x12x12xf32> to vector<1x12x12xf32>
    %411 = vector.shape_cast %410 : vector<1x12x12xf32> to vector<12x12xf32>
    %c8 = arith.constant 8 : index
    %c0_224 = arith.constant 0 : index
    %c0_225 = arith.constant 0 : index
    %412 = vector.load %arg5[%c8, %c0_224, %c0_225] : memref<9x40x40xf32, #tpu.memory_space<vmem>>, vector<1x40x40xf32>
    %413 = vector.shape_cast %412 : vector<1x40x40xf32> to vector<40x40xf32>
    %cst_226 = arith.constant dense<0.000000e+00> : vector<12x40xf32>
    %414 = tpu.matmul %352, %413, %cst_226 {dimension_numbers = #tpu.dot_dimension_numbers<[1], [0], [0], [1], [0, 0, 1, 1], [], []>} : vector<12x40xf32>, vector<40x40xf32>, vector<12x40xf32> -> vector<12x40xf32>
    %cst_227 = arith.constant dense<0.000000e+00> : vector<12x40xf32>
    %415 = tpu.matmul %411, %414, %cst_227 {dimension_numbers = #tpu.dot_dimension_numbers<[1], [0], [0], [1], [0, 0, 1, 1], [], []>} : vector<12x12xf32>, vector<12x40xf32>, vector<12x40xf32> -> vector<12x40xf32>
    %416 = arith.addf %409, %415 : vector<12x40xf32>
    %c0_228 = arith.constant 0 : index
    %c0_229 = arith.constant 0 : index
    %c0_230 = arith.constant 0 : index
    %417 = vector.load %arg40[%c0_228, %c0_229, %c0_230] : memref<1x12x40xf32, #tpu.memory_space<vmem>>, vector<1x12x40xf32>
    %418 = vector.shape_cast %417 : vector<1x12x40xf32> to vector<12x40xf32>
    %419 = vector.shape_cast %416 : vector<12x40xf32> to vector<1x12x40xf32>
    tpu.vector_store %arg40[%c0_228, %c0_229, %c0_230], %419 {strides = array<i32>} : memref<1x12x40xf32, #tpu.memory_space<vmem>>, vector<1x12x40xf32>,
    return
  }
  func.func @transform_0(%arg0: i32) -> (i32, i32, i32) {
    %c0_i32 = arith.constant 0 : i32
    %c0_i32_0 = arith.constant 0 : i32
    %c0_i32_1 = arith.constant 0 : i32
    return %arg0, %c0_i32, %c0_i32_0 : i32, i32, i32
  }
  func.func @transform_1(%arg0: i32) -> (i32, i32) {
    %c0_i32 = arith.constant 0 : i32
    %c0_i32_0 = arith.constant 0 : i32
    %c0_i32_1 = arith.constant 0 : i32
    return %c0_i32, %c0_i32_0 : i32, i32
  }
  func.func @transform_2(%arg0: i32) -> (i32, i32) {
    %c0_i32 = arith.constant 0 : i32
    %c0_i32_0 = arith.constant 0 : i32
    %c0_i32_1 = arith.constant 0 : i32
    return %c0_i32, %c0_i32_0 : i32, i32
  }
  func.func @transform_3(%arg0: i32) -> (i32, i32, i32) {
    %c0_i32 = arith.constant 0 : i32
    %c0_i32_0 = arith.constant 0 : i32
    %c0_i32_1 = arith.constant 0 : i32
    %c0_i32_2 = arith.constant 0 : i32
    return %c0_i32, %c0_i32_0, %c0_i32_1 : i32, i32, i32
  }
  func.func @transform_4(%arg0: i32) -> (i32, i32, i32) {
    %c0_i32 = arith.constant 0 : i32
    %c0_i32_0 = arith.constant 0 : i32
    %c0_i32_1 = arith.constant 0 : i32
    %c0_i32_2 = arith.constant 0 : i32
    return %c0_i32, %c0_i32_0, %c0_i32_1 : i32, i32, i32
  }
  func.func @transform_5(%arg0: i32) -> (i32, i32, i32) {
    %c0_i32 = arith.constant 0 : i32
    %c0_i32_0 = arith.constant 0 : i32
    %c0_i32_1 = arith.constant 0 : i32
    return %arg0, %c0_i32, %c0_i32_0 : i32, i32, i32
  }
  func.func @transform_6(%arg0: i32) -> (i32, i32, i32) {
    %c0_i32 = arith.constant 0 : i32
    %c0_i32_0 = arith.constant 0 : i32
    %c0_i32_1 = arith.constant 0 : i32
    return %arg0, %c0_i32, %c0_i32_0 : i32, i32, i32
  }
  func.func @transform_7(%arg0: i32) -> (i32, i32, i32) {
    %c0_i32 = arith.constant 0 : i32
    %c0_i32_0 = arith.constant 0 : i32
    %c0_i32_1 = arith.constant 0 : i32
    return %arg0, %c0_i32, %c0_i32_0 : i32, i32, i32
  }
  func.func @transform_8(%arg0: i32) -> (i32, i32, i32) {
    %c0_i32 = arith.constant 0 : i32
    %c0_i32_0 = arith.constant 0 : i32
    %c0_i32_1 = arith.constant 0 : i32
    return %arg0, %c0_i32, %c0_i32_0 : i32, i32, i32
  }
  func.func @transform_9(%arg0: i32) -> (i32, i32, i32) {
    %c0_i32 = arith.constant 0 : i32
    %c0_i32_0 = arith.constant 0 : i32
    %c0_i32_1 = arith.constant 0 : i32
    return %arg0, %c0_i32, %c0_i32_0 : i32, i32, i32
  }
  func.func @transform_10(%arg0: i32) -> (i32, i32, i32) {
    %c0_i32 = arith.constant 0 : i32
    %c0_i32_0 = arith.constant 0 : i32
    %c0_i32_1 = arith.constant 0 : i32
    return %arg0, %c0_i32, %c0_i32_0 : i32, i32, i32
  }
  func.func @transform_11(%arg0: i32) -> (i32, i32, i32) {
    %c0_i32 = arith.constant 0 : i32
    %c0_i32_0 = arith.constant 0 : i32
    %c0_i32_1 = arith.constant 0 : i32
    return %arg0, %c0_i32, %c0_i32_0 : i32, i32, i32
  }
  func.func @transform_12(%arg0: i32) -> (i32, i32, i32) {
    %c0_i32 = arith.constant 0 : i32
    %c0_i32_0 = arith.constant 0 : i32
    %c0_i32_1 = arith.constant 0 : i32
    return %arg0, %c0_i32, %c0_i32_0 : i32, i32, i32
  }
  func.func @transform_13(%arg0: i32) -> (i32, i32, i32) {
    %c0_i32 = arith.constant 0 : i32
    %c0_i32_0 = arith.constant 0 : i32
    %c0_i32_1 = arith.constant 0 : i32
    return %arg0, %c0_i32, %c0_i32_0 : i32, i32, i32
  }
  func.func @transform_14(%arg0: i32) -> (i32, i32, i32) {
    %c0_i32 = arith.constant 0 : i32
    %c0_i32_0 = arith.constant 0 : i32
    %c0_i32_1 = arith.constant 0 : i32
    return %arg0, %c0_i32, %c0_i32_0 : i32, i32, i32
  }
  func.func @transform_15(%arg0: i32) -> (i32, i32, i32) {
    %c0_i32 = arith.constant 0 : i32
    %c0_i32_0 = arith.constant 0 : i32
    %c0_i32_1 = arith.constant 0 : i32
    return %arg0, %c0_i32, %c0_i32_0 : i32, i32, i32
  }
  func.func @transform_16(%arg0: i32) -> (i32, i32, i32) {
    %c0_i32 = arith.constant 0 : i32
    %c0_i32_0 = arith.constant 0 : i32
    %c0_i32_1 = arith.constant 0 : i32
    return %arg0, %c0_i32, %c0_i32_0 : i32, i32, i32
  }
  func.func @transform_17(%arg0: i32) -> (i32, i32, i32) {
    %c0_i32 = arith.constant 0 : i32
    %c0_i32_0 = arith.constant 0 : i32
    %c0_i32_1 = arith.constant 0 : i32
    return %arg0, %c0_i32, %c0_i32_0 : i32, i32, i32
  }
  func.func @transform_18(%arg0: i32) -> (i32, i32, i32) {
    %c0_i32 = arith.constant 0 : i32
    %c0_i32_0 = arith.constant 0 : i32
    %c0_i32_1 = arith.constant 0 : i32
    return %arg0, %c0_i32, %c0_i32_0 : i32, i32, i32
  }
  func.func @transform_19(%arg0: i32) -> (i32, i32, i32) {
    %c0_i32 = arith.constant 0 : i32
    %c0_i32_0 = arith.constant 0 : i32
    %c0_i32_1 = arith.constant 0 : i32
    return %arg0, %c0_i32, %c0_i32_0 : i32, i32, i32
  }
  func.func @transform_20(%arg0: i32) -> (i32, i32, i32) {
    %c0_i32 = arith.constant 0 : i32
    %c0_i32_0 = arith.constant 0 : i32
    %c0_i32_1 = arith.constant 0 : i32
    return %arg0, %c0_i32, %c0_i32_0 : i32, i32, i32
  }
  func.func @transform_21(%arg0: i32) -> (i32, i32, i32) {
    %c0_i32 = arith.constant 0 : i32
    %c0_i32_0 = arith.constant 0 : i32
    %c0_i32_1 = arith.constant 0 : i32
    return %arg0, %c0_i32, %c0_i32_0 : i32, i32, i32
  }
  func.func @transform_22(%arg0: i32) -> (i32, i32, i32) {
    %c0_i32 = arith.constant 0 : i32
    %c0_i32_0 = arith.constant 0 : i32
    %c0_i32_1 = arith.constant 0 : i32
    return %arg0, %c0_i32, %c0_i32_0 : i32, i32, i32
  }
  func.func @transform_23(%arg0: i32) -> (i32, i32, i32) {
    %c0_i32 = arith.constant 0 : i32
    %c0_i32_0 = arith.constant 0 : i32
    %c0_i32_1 = arith.constant 0 : i32
    return %arg0, %c0_i32, %c0_i32_0 : i32, i32, i32
  }
  func.func @transform_24(%arg0: i32) -> (i32, i32, i32) {
    %c0_i32 = arith.constant 0 : i32
    %c0_i32_0 = arith.constant 0 : i32
    %c0_i32_1 = arith.constant 0 : i32
    return %arg0, %c0_i32, %c0_i32_0 : i32, i32, i32
  }
  func.func @transform_25(%arg0: i32) -> (i32, i32, i32) {
    %c0_i32 = arith.constant 0 : i32
    %c0_i32_0 = arith.constant 0 : i32
    %c0_i32_1 = arith.constant 0 : i32
    return %arg0, %c0_i32, %c0_i32_0 : i32, i32, i32
  }
  func.func @transform_26(%arg0: i32) -> (i32, i32, i32) {
    %c0_i32 = arith.constant 0 : i32
    %c0_i32_0 = arith.constant 0 : i32
    %c0_i32_1 = arith.constant 0 : i32
    return %arg0, %c0_i32, %c0_i32_0 : i32, i32, i32
  }
  func.func @transform_27(%arg0: i32) -> (i32, i32, i32) {
    %c0_i32 = arith.constant 0 : i32
    %c0_i32_0 = arith.constant 0 : i32
    %c0_i32_1 = arith.constant 0 : i32
    return %arg0, %c0_i32, %c0_i32_0 : i32, i32, i32
  }
  func.func @transform_28(%arg0: i32) -> (i32, i32, i32) {
    %c0_i32 = arith.constant 0 : i32
    %c0_i32_0 = arith.constant 0 : i32
    %c0_i32_1 = arith.constant 0 : i32
    return %arg0, %c0_i32, %c0_i32_0 : i32, i32, i32
  }
  func.func @transform_29(%arg0: i32) -> (i32, i32, i32, i32) {
    %c0_i32 = arith.constant 0 : i32
    %c0_i32_0 = arith.constant 0 : i32
    %c0_i32_1 = arith.constant 0 : i32
    %c0_i32_2 = arith.constant 0 : i32
    return %arg0, %c0_i32, %c0_i32_0, %c0_i32_1 : i32, i32, i32, i32
  }
  func.func @transform_30(%arg0: i32) -> (i32, i32, i32) {
    %c0_i32 = arith.constant 0 : i32
    %c0_i32_0 = arith.constant 0 : i32
    %c0_i32_1 = arith.constant 0 : i32
    return %arg0, %c0_i32, %c0_i32_0 : i32, i32, i32
  }
  func.func @transform_31(%arg0: i32) -> (i32, i32, i32) {
    %c0_i32 = arith.constant 0 : i32
    %c0_i32_0 = arith.constant 0 : i32
    %c0_i32_1 = arith.constant 0 : i32
    return %arg0, %c0_i32, %c0_i32_0 : i32, i32, i32
  }
  func.func @transform_32(%arg0: i32) -> (i32, i32, i32) {
    %c0_i32 = arith.constant 0 : i32
    %c0_i32_0 = arith.constant 0 : i32
    %c0_i32_1 = arith.constant 0 : i32
    return %arg0, %c0_i32, %c0_i32_0 : i32, i32, i32
  }
  func.func @transform_33(%arg0: i32) -> (i32, i32, i32) {
    %c0_i32 = arith.constant 0 : i32
    %c0_i32_0 = arith.constant 0 : i32
    %c0_i32_1 = arith.constant 0 : i32
    return %arg0, %c0_i32, %c0_i32_0 : i32, i32, i32
  }
  func.func @transform_34(%arg0: i32) -> (i32, i32, i32, i32) {
    %c0_i32 = arith.constant 0 : i32
    %c0_i32_0 = arith.constant 0 : i32
    %c0_i32_1 = arith.constant 0 : i32
    %c0_i32_2 = arith.constant 0 : i32
    return %arg0, %c0_i32, %c0_i32_0, %c0_i32_1 : i32, i32, i32, i32
  }
  func.func @transform_35(%arg0: i32) -> (i32, i32, i32) {
    %c0_i32 = arith.constant 0 : i32
    %c0_i32_0 = arith.constant 0 : i32
    %c0_i32_1 = arith.constant 0 : i32
    return %arg0, %c0_i32, %c0_i32_0 : i32, i32, i32
  }
  func.func @transform_36(%arg0: i32) -> (i32, i32, i32) {
    %c0_i32 = arith.constant 0 : i32
    %c0_i32_0 = arith.constant 0 : i32
    %c0_i32_1 = arith.constant 0 : i32
    return %arg0, %c0_i32, %c0_i32_0 : i32, i32, i32
  }
  func.func @transform_37(%arg0: i32) -> (i32, i32, i32, i32) {
    %c0_i32 = arith.constant 0 : i32
    %c0_i32_0 = arith.constant 0 : i32
    %c0_i32_1 = arith.constant 0 : i32
    %c0_i32_2 = arith.constant 0 : i32
    return %arg0, %c0_i32, %c0_i32_0, %c0_i32_1 : i32, i32, i32, i32
  }
  func.func @transform_38(%arg0: i32) -> (i32, i32, i32) {
    %c0_i32 = arith.constant 0 : i32
    %c0_i32_0 = arith.constant 0 : i32
    %c0_i32_1 = arith.constant 0 : i32
    return %arg0, %c0_i32, %c0_i32_0 : i32, i32, i32
  }
  func.func @transform_39(%arg0: i32) -> (i32, i32, i32) {
    %c0_i32 = arith.constant 0 : i32
    %c0_i32_0 = arith.constant 0 : i32
    %c0_i32_1 = arith.constant 0 : i32
    return %arg0, %c0_i32, %c0_i32_0 : i32, i32, i32
  }
}

module attributes {stable_mosaic.version = 11 : i64} {
  func.func @_pinn_kernel(%arg0: memref<8x120xf32, #tpu.memory_space<vmem>>, %arg1: memref<120x64xf32, #tpu.memory_space<vmem>>, %arg2: memref<1x64xf32, #tpu.memory_space<vmem>>, %arg3: memref<64x64xf32, #tpu.memory_space<vmem>>, %arg4: memref<1x64xf32, #tpu.memory_space<vmem>>, %arg5: memref<64x64xf32, #tpu.memory_space<vmem>>, %arg6: memref<1x64xf32, #tpu.memory_space<vmem>>, %arg7: memref<64x64xf32, #tpu.memory_space<vmem>>, %arg8: memref<1x64xf32, #tpu.memory_space<vmem>>, %arg9: memref<64x8xf32, #tpu.memory_space<vmem>>, %arg10: memref<1x8xf32, #tpu.memory_space<vmem>>, %arg11: memref<8x8xf32, #tpu.memory_space<vmem>>) attributes {dimension_semantics = [], scalar_prefetch = 0 : i64, scratch_operands = 0 : i64, tpu.core_type = #tpu.core_type<tc>} {
    %c0 = arith.constant 0 : index
    %c0_0 = arith.constant 0 : index
    %0 = vector.load %arg0[%c0, %c0_0] : memref<8x120xf32, #tpu.memory_space<vmem>>, vector<8x120xf32>
    %c0_1 = arith.constant 0 : index
    %c0_2 = arith.constant 0 : index
    %1 = vector.load %arg1[%c0_1, %c0_2] : memref<120x64xf32, #tpu.memory_space<vmem>>, vector<120x64xf32>
    %c0_3 = arith.constant 0 : index
    %c0_4 = arith.constant 0 : index
    %2 = vector.load %arg2[%c0_3, %c0_4] : memref<1x64xf32, #tpu.memory_space<vmem>>, vector<1x64xf32>
    %cst = arith.constant dense<0.000000e+00> : vector<8x64xf32>
    %3 = tpu.matmul %0, %1, %cst {dimension_numbers = #tpu.dot_dimension_numbers<[1], [0], [0], [1], [0, 0, 1, 1], [], []>} : vector<8x120xf32>, vector<120x64xf32>, vector<8x64xf32> -> vector<8x64xf32>
    %4 = vector.broadcast %2 : vector<1x64xf32> to vector<8x64xf32>
    %5 = arith.addf %3, %4 : vector<8x64xf32>
    %6 = math.tanh %5 : vector<8x64xf32>
    %c0_5 = arith.constant 0 : index
    %c0_6 = arith.constant 0 : index
    %7 = vector.load %arg3[%c0_5, %c0_6] : memref<64x64xf32, #tpu.memory_space<vmem>>, vector<64x64xf32>
    %c0_7 = arith.constant 0 : index
    %c0_8 = arith.constant 0 : index
    %8 = vector.load %arg4[%c0_7, %c0_8] : memref<1x64xf32, #tpu.memory_space<vmem>>, vector<1x64xf32>
    %cst_9 = arith.constant dense<0.000000e+00> : vector<8x64xf32>
    %9 = tpu.matmul %6, %7, %cst_9 {dimension_numbers = #tpu.dot_dimension_numbers<[1], [0], [0], [1], [0, 0, 1, 1], [], []>} : vector<8x64xf32>, vector<64x64xf32>, vector<8x64xf32> -> vector<8x64xf32>
    %10 = vector.broadcast %8 : vector<1x64xf32> to vector<8x64xf32>
    %11 = arith.addf %9, %10 : vector<8x64xf32>
    %12 = math.tanh %11 : vector<8x64xf32>
    %c0_10 = arith.constant 0 : index
    %c0_11 = arith.constant 0 : index
    %13 = vector.load %arg5[%c0_10, %c0_11] : memref<64x64xf32, #tpu.memory_space<vmem>>, vector<64x64xf32>
    %c0_12 = arith.constant 0 : index
    %c0_13 = arith.constant 0 : index
    %14 = vector.load %arg6[%c0_12, %c0_13] : memref<1x64xf32, #tpu.memory_space<vmem>>, vector<1x64xf32>
    %cst_14 = arith.constant dense<0.000000e+00> : vector<8x64xf32>
    %15 = tpu.matmul %12, %13, %cst_14 {dimension_numbers = #tpu.dot_dimension_numbers<[1], [0], [0], [1], [0, 0, 1, 1], [], []>} : vector<8x64xf32>, vector<64x64xf32>, vector<8x64xf32> -> vector<8x64xf32>
    %16 = vector.broadcast %14 : vector<1x64xf32> to vector<8x64xf32>
    %17 = arith.addf %15, %16 : vector<8x64xf32>
    %18 = math.tanh %17 : vector<8x64xf32>
    %c0_15 = arith.constant 0 : index
    %c0_16 = arith.constant 0 : index
    %19 = vector.load %arg7[%c0_15, %c0_16] : memref<64x64xf32, #tpu.memory_space<vmem>>, vector<64x64xf32>
    %c0_17 = arith.constant 0 : index
    %c0_18 = arith.constant 0 : index
    %20 = vector.load %arg8[%c0_17, %c0_18] : memref<1x64xf32, #tpu.memory_space<vmem>>, vector<1x64xf32>
    %cst_19 = arith.constant dense<0.000000e+00> : vector<8x64xf32>
    %21 = tpu.matmul %18, %19, %cst_19 {dimension_numbers = #tpu.dot_dimension_numbers<[1], [0], [0], [1], [0, 0, 1, 1], [], []>} : vector<8x64xf32>, vector<64x64xf32>, vector<8x64xf32> -> vector<8x64xf32>
    %22 = vector.broadcast %20 : vector<1x64xf32> to vector<8x64xf32>
    %23 = arith.addf %21, %22 : vector<8x64xf32>
    %24 = math.tanh %23 : vector<8x64xf32>
    %c0_20 = arith.constant 0 : index
    %c0_21 = arith.constant 0 : index
    %25 = vector.load %arg9[%c0_20, %c0_21] : memref<64x8xf32, #tpu.memory_space<vmem>>, vector<64x8xf32>
    %c0_22 = arith.constant 0 : index
    %c0_23 = arith.constant 0 : index
    %26 = vector.load %arg10[%c0_22, %c0_23] : memref<1x8xf32, #tpu.memory_space<vmem>>, vector<1x8xf32>
    %cst_24 = arith.constant dense<0.000000e+00> : vector<8x8xf32>
    %27 = tpu.matmul %24, %25, %cst_24 {dimension_numbers = #tpu.dot_dimension_numbers<[1], [0], [0], [1], [0, 0, 1, 1], [], []>} : vector<8x64xf32>, vector<64x8xf32>, vector<8x8xf32> -> vector<8x8xf32>
    %28 = vector.broadcast %26 : vector<1x8xf32> to vector<8x8xf32>
    %29 = arith.addf %27, %28 : vector<8x8xf32>
    %c0_25 = arith.constant 0 : index
    %c0_26 = arith.constant 0 : index
    %30 = vector.load %arg11[%c0_25, %c0_26] : memref<8x8xf32, #tpu.memory_space<vmem>>, vector<8x8xf32>
    tpu.vector_store %arg11[%c0_25, %c0_26], %29 {strides = array<i32>} : memref<8x8xf32, #tpu.memory_space<vmem>>, vector<8x8xf32>,
    return
  }
}

</mosaic_0001>

<llo_original>
// kernel: squeeze.6
$region0: #{squeeze.6}
  %s0 = inlined_call_operand.vmem [shape: f32[1,12,40], index: 0, kind: input, shape index: {}]
  %s1 = inlined_call_operand.vmem [shape: f32[1,5,12,8], index: 1, kind: output, shape index: {}]
  %v2 = vld [vmem:[%s0] sm:$0xff]
  %vm3 = vcmask 64512
  %4 = vst.msk [vmem:[%s1] ss:$5 sm:$0x7] %vm3, %v2
  %s5 = scalar_lea.vmem %s1, 4
  %6 = vst.msk [vmem:[%s5] ss:$5 sm:$0x18] %vm3, %v2
  %s7 = scalar_lea.vmem %s1, 8
  %8 = vst.msk [vmem:[%s7] ss:$5 sm:$0xe0] %vm3, %v2
  %s9 = scalar_lea.vmem %s0, 8
  %v10 = vld [vmem:[%s9] sm:$0xf]
  %vm11 = vcmask 64512
  %s12 = scalar_lea.vmem %s1, 52
  %13 = vst.msk [vmem:[%s12] ss:$5 sm:$0x3] %vm11, %v10
  %s14 = scalar_lea.vmem %s1, 56
  %15 = vst.msk [vmem:[%s14] ss:$5 sm:$0xc] %vm11, %v10
  %v16 = vld.sshfl [vmem:[%s0] sm:$0xff pattern:$0x72b61a50]
  %17 = vrot.lane.b32.xlu0 %v16, 120
  %v18 = vpop.permute.xlu0 %17
  %vm19 = vcmask 64512
  %s20 = scalar_lea.vmem %s1, 1
  %21 = vst.msk [vmem:[%s20] ss:$33 sm:$0x7] %vm19, %v18
  %s22 = scalar_lea.vmem %s1, 4294967203
  %23 = vst.msk [vmem:[%s22] ss:$33 sm:$0x38] %vm19, %v18
  %s24 = scalar_lea.vmem %s1, 4294967085
  %25 = vst.msk [vmem:[%s24] ss:$37 sm:$0xc0] %vm19, %v18
  %s26 = scalar_lea.vmem %s0, 3
  %v27 = vld.sshfl [vmem:[%s26] sm:$0xff pattern:$0x66666150]
  %28 = vrot.lane.b32.xlu0 %v27, 120
  %v29 = vpop.permute.xlu0 %28
  %vm30 = vcmask 64512
  %s31 = scalar_lea.vmem %s1, 20
  %32 = vst.msk [vmem:[%s31] ss:$33 sm:$0x3] %vm30, %v29
  %s33 = scalar_lea.vmem %s1, 4294967255
  %34 = vst.msk [vmem:[%s33] ss:$33 sm:$0xc] %vm30, %v29
  %v35 = vld.sshfl [vmem:[%s0] sm:$0xff pattern:$0x72b61a50]
  %36 = vrot.lane.b32.xlu0 %v35, 112
  %v37 = vpop.permute.xlu0 %36
  %vm38 = vcmask 64512
  %s39 = scalar_lea.vmem %s1, 2
  %40 = vst.msk [vmem:[%s39] ss:$33 sm:$0x7] %vm38, %v37
  %s41 = scalar_lea.vmem %s1, 4294967204
  %42 = vst.msk [vmem:[%s41] ss:$33 sm:$0x38] %vm38, %v37
  %s43 = scalar_lea.vmem %s1, 4294967114
  %44 = vst.msk [vmem:[%s43] ss:$33 sm:$0xc0] %vm38, %v37
  %s45 = scalar_lea.vmem %s0, 3
  %v46 = vld.sshfl [vmem:[%s45] sm:$0xff pattern:$0x66666150]
  %47 = vrot.lane.b32.xlu0 %v46, 112
  %v48 = vpop.permute.xlu0 %47
  %vm49 = vcmask 64512
  %s50 = scalar_lea.vmem %s1, 21
  %51 = vst.msk [vmem:[%s50] ss:$33 sm:$0x3] %vm49, %v48
  %s52 = scalar_lea.vmem %s1, 4294967256
  %53 = vst.msk [vmem:[%s52] ss:$33 sm:$0xc] %vm49, %v48
  %v54 = vld.sshfl [vmem:[%s0] sm:$0xff pattern:$0x2b61a509]
  %55 = vrot.lane.b32.xlu0 %v54, 104
  %v56 = vpop.permute.xlu0 %55
  %vm57 = vcmask 64512
  %s58 = scalar_lea.vmem %s1, 64
  %59 = vst.msk [vmem:[%s58] ss:$-61 sm:$0x3] %vm57, %v56
  %s60 = scalar_lea.vmem %s1, 4294967266
  %61 = vst.msk [vmem:[%s60] ss:$33 sm:$0xc] %vm57, %v56
  %s62 = scalar_lea.vmem %s1, 4294967172
  %63 = vst.msk [vmem:[%s62] ss:$33 sm:$0x70] %vm57, %v56
  %s64 = scalar_lea.vmem %s1, 10
  %65 = vst.msk [vmem:[%s64] sm:$0x80] %vm57, %v56
  %s66 = scalar_lea.vmem %s0, 3
  %v67 = vld.sshfl [vmem:[%s66] sm:$0xff pattern:$0x11111504]
  %68 = vrot.lane.b32.xlu0 %v67, 104
  %v69 = vpop.permute.xlu0 %68
  %vm70 = vcmask 64512
  %s71 = scalar_lea.vmem %s1, 50
  %72 = vst.msk [vmem:[%s71] ss:$-28 sm:$0x3] %vm70, %v69
  %s73 = scalar_lea.vmem %s1, 111
  %74 = vst.msk [vmem:[%s73] ss:$-28 sm:$0xc] %vm70, %v69
  %v75 = vld.sshfl [vmem:[%s0] sm:$0xff pattern:$0xb61a5094]
  %76 = vrot.lane.b32.xlu0 %v75, 96
  %v77 = vpop.permute.xlu0 %76
  %vm78 = vcmask 64512
  %s79 = scalar_lea.vmem %s1, 32
  %80 = vst.msk [vmem:[%s79] ss:$33 sm:$0x3] %vm78, %v77
  %s81 = scalar_lea.vmem %s1, 4294967234
  %82 = vst.msk [vmem:[%s81] ss:$33 sm:$0x1c] %vm78, %v77
  %s83 = scalar_lea.vmem %s1, 4294967140
  %84 = vst.msk [vmem:[%s83] ss:$33 sm:$0xe0] %vm78, %v77
  %s85 = scalar_lea.vmem %s0, 2
  %v86 = vld.sshfl [vmem:[%s85] sm:$0xff pattern:$0x66666150]
  %87 = vrot.lane.b32.xlu0 %v86, 96
  %v88 = vpop.permute.xlu0 %87
  %vm89 = vcmask 64512
  %s90 = scalar_lea.vmem %s1, 18
  %91 = vst.msk [vmem:[%s90] ss:$33 sm:$0x3] %vm89, %v88
  %s92 = scalar_lea.vmem %s1, 4294967253
  %93 = vst.msk [vmem:[%s92] ss:$33 sm:$0xc] %vm89, %v88

// kernel: pi_stgcn_any_order_forward.3
$region0: #{pi_stgcn_any_order_forward.3}
  #allocation0 [shape = 'u32[]', space=smem, size = 0x4, offset = 0x4, fixed_abs, tag = 'smem constant byte address 0x4 - core index']
  #allocation1 [shape = 'u32[72,128]{1,0:T(1,128)}', space=vmem, size = 0x9000, scoped, tag = 'internal scratch']
  %s0 = inlined_call_operand.vmem [shape: f32[8,120], index: 0, kind: input, shape index: {}]
  %s1 = inlined_call_operand.vmem [shape: f32[120,64], index: 1, kind: input, shape index: {}]
  %s2 = inlined_call_operand.vmem [shape: f32[1,64], index: 2, kind: input, shape index: {}]
  %s3 = inlined_call_operand.vmem [shape: f32[64,64], index: 3, kind: input, shape index: {}]
  %s4 = inlined_call_operand.vmem [shape: f32[1,64], index: 4, kind: input, shape index: {}]
  %s5 = inlined_call_operand.vmem [shape: f32[64,64], index: 5, kind: input, shape index: {}]
  %s6 = inlined_call_operand.vmem [shape: f32[1,64], index: 6, kind: input, shape index: {}]
  %s7 = inlined_call_operand.vmem [shape: f32[64,64], index: 7, kind: input, shape index: {}]
  %s8 = inlined_call_operand.vmem [shape: f32[1,64], index: 8, kind: input, shape index: {}]
  %s9 = inlined_call_operand.vmem [shape: f32[64,8], index: 9, kind: input, shape index: {}]
  %s10 = inlined_call_operand.vmem [shape: f32[1,8], index: 10, kind: input, shape index: {}]
  %s11 = inlined_call_operand.vmem [shape: f32[8,8], index: 11, kind: output, shape index: {}]
  %s12 = sld [smem:[#allocation0]]
  $region54: #{pi_stgcn_any_order_forward.3} parent=0
    _
  %s14 = ssub.s32 1, %s12
  %s15 = scalar_select 0, %s14, %s12
  // Predicated region
  $region2: #{pi_stgcn_any_order_forward.3} parent=0 // pred_check
    _
  $region3: #{pi_stgcn_any_order_forward.3} parent=0 // pred_check_branch
    %17 = sbr.rel (0) target = $region5
  $region4: #{pi_stgcn_any_order_forward.3} parent=0 // pred_region
    _
  $region5: #{pi_stgcn_any_order_forward.3} parent=0 // pred_fallthru
    _
  // Predicated region
  $region6: #{pi_stgcn_any_order_forward.3} parent=0 // pred_check
    _
  $region7: #{pi_stgcn_any_order_forward.3} parent=0 // pred_check_branch
    %19 = sbr.rel (0) target = $region9
  $region8: #{pi_stgcn_any_order_forward.3} parent=0 // pred_region
    _
  $region9: #{pi_stgcn_any_order_forward.3} parent=0 // pred_fallthru
    _
  // Predicated region
  $region10: #{pi_stgcn_any_order_forward.3} parent=0 // pred_check
    _
  $region11: #{pi_stgcn_any_order_forward.3} parent=0 // pred_check_branch
    %21 = sbr.rel (0) target = $region13
  $region12: #{pi_stgcn_any_order_forward.3} parent=0 // pred_region
    _
  $region13: #{pi_stgcn_any_order_forward.3} parent=0 // pred_fallthru
    _
  // Predicated region
  $region14: #{pi_stgcn_any_order_forward.3} parent=0 // pred_check
    _
  $region15: #{pi_stgcn_any_order_forward.3} parent=0 // pred_check_branch
    %23 = sbr.rel (0) target = $region17
  $region16: #{pi_stgcn_any_order_forward.3} parent=0 // pred_region
    _
  $region17: #{pi_stgcn_any_order_forward.3} parent=0 // pred_fallthru
    _
  // Predicated region
  $region18: #{pi_stgcn_any_order_forward.3} parent=0 // pred_check
    _
  $region19: #{pi_stgcn_any_order_forward.3} parent=0 // pred_check_branch
    %25 = sbr.rel (0) target = $region21
  $region20: #{pi_stgcn_any_order_forward.3} parent=0 // pred_region
    _
  $region21: #{pi_stgcn_any_order_forward.3} parent=0 // pred_fallthru
    _
  // Predicated region
  $region22: #{pi_stgcn_any_order_forward.3} parent=0 // pred_check
    _
  $region23: #{pi_stgcn_any_order_forward.3} parent=0 // pred_check_branch
    %27 = sbr.rel (0) target = $region25
  $region24: #{pi_stgcn_any_order_forward.3} parent=0 // pred_region
    _
  $region25: #{pi_stgcn_any_order_forward.3} parent=0 // pred_fallthru
    _
  // Predicated region
  $region26: #{pi_stgcn_any_order_forward.3} parent=0 // pred_check
    _
  $region27: #{pi_stgcn_any_order_forward.3} parent=0 // pred_check_branch
    %29 = sbr.rel (0) target = $region29
  $region28: #{pi_stgcn_any_order_forward.3} parent=0 // pred_region
    _
  $region29: #{pi_stgcn_any_order_forward.3} parent=0 // pred_fallthru
    _
  // Predicated region
  $region30: #{pi_stgcn_any_order_forward.3} parent=0 // pred_check
    _
  $region31: #{pi_stgcn_any_order_forward.3} parent=0 // pred_check_branch
    %31 = sbr.rel (0) target = $region33
  $region32: #{pi_stgcn_any_order_forward.3} parent=0 // pred_region
    _
  $region33: #{pi_stgcn_any_order_forward.3} parent=0 // pred_fallthru
    _
  // Predicated region
  $region34: #{pi_stgcn_any_order_forward.3} parent=0 // pred_check
    _
  $region35: #{pi_stgcn_any_order_forward.3} parent=0 // pred_check_branch
    %33 = sbr.rel (0) target = $region37
  $region36: #{pi_stgcn_any_order_forward.3} parent=0 // pred_region
    _
  $region37: #{pi_stgcn_any_order_forward.3} parent=0 // pred_fallthru
    _
  // Predicated region
  $region38: #{pi_stgcn_any_order_forward.3} parent=0 // pred_check
    _
  $region39: #{pi_stgcn_any_order_forward.3} parent=0 // pred_check_branch
    %35 = sbr.rel (0) target = $region41
  $region40: #{pi_stgcn_any_order_forward.3} parent=0 // pred_region
    _
  $region41: #{pi_stgcn_any_order_forward.3} parent=0 // pred_fallthru
    _
  // Predicated region
  $region42: #{pi_stgcn_any_order_forward.3} parent=0 // pred_check
    _
  $region43: #{pi_stgcn_any_order_forward.3} parent=0 // pred_check_branch
    %37 = sbr.rel (0) target = $region45
  $region44: #{pi_stgcn_any_order_forward.3} parent=0 // pred_region
    _
  $region45: #{pi_stgcn_any_order_forward.3} parent=0 // pred_fallthru
    _
  %v38 = vld [vmem:[%s0] sm:$0xff]
  %v39 = vld [vmem:[%s1] sm:$0xff]
  %v40 = vld [vmem:[%s1 + $0x8] sm:$0xff]
  %v41 = vld [vmem:[%s1 + $0x10] sm:$0xff]
  %v42 = vld [vmem:[%s1 + $0x18] sm:$0xff]
  %v43 = vld [vmem:[%s1 + $0x20] sm:$0xff]
  %v44 = vld [vmem:[%s1 + $0x28] sm:$0xff]
  %v45 = vld [vmem:[%s1 + $0x30] sm:$0xff]
  %v46 = vld [vmem:[%s1 + $0x38] sm:$0xff]
  %v47 = vld [vmem:[%s1 + $0x40] sm:$0xff]
  %v48 = vld [vmem:[%s1 + $0x48] sm:$0xff]
  %v49 = vld [vmem:[%s1 + $0x50] sm:$0xff]
  %v50 = vld [vmem:[%s1 + $0x58] sm:$0xff]
  %v51 = vld [vmem:[%s1 + $0x60] sm:$0xff]
  %v52 = vld [vmem:[%s1 + $0x68] sm:$0xff]
  %v53 = vld [vmem:[%s1 + $0x70] sm:$0xff]
  %v54 = vld [vmem:[%s2] sm:$0x1]
  %v56 = vperm.slane %v54, 0
  %vm58 = vcmask 982016
  %v60 = vsel %vm58, %v38, 0
  %62 = vmatpush.msra.mxu0 0.0
  %63 = vmatpush.msra.mxu0 %v53
  %64 = vmatpush.msra.mxu0 %v52
  %65 = vmatpush.msra.mxu0 %v51
  %66 = vmatpush.msra.mxu0 %v50
  %67 = vmatpush.msra.mxu0 %v49
  %68 = vmatpush.msra.mxu0 %v48
  %69 = vmatpush.msra.mxu0 %v47
  %70 = vmatpush.msra.mxu0 %v46
  %71 = vmatpush.msra.mxu0 %v45
  %72 = vmatpush.msra.mxu0 %v44
  %73 = vmatpush.msra.mxu0 %v43
  %74 = vmatpush.msra.mxu0 %v42
  %75 = vmatpush.msra.mxu0 %v41
  %76 = vmatpush.msra.mxu0 %v40
  %77 = vmatpush.msra.mxu0 %v39
  %78 = vmatmul.f32.gmra.mxu0 %v60
  %v79 = vpop.f32.mrf.mxu0
  %v80 = vadd.f32 %v56, %v79
  %81 = vdwg.mxu0
  %v82 = vtanh.pop %v80
  %v83 = vld [vmem:[%s3] sm:$0xff]
  %v84 = vld [vmem:[%s3 + $0x8] sm:$0xff]
  %v85 = vld [vmem:[%s3 + $0x10] sm:$0xff]
  %v86 = vld [vmem:[%s3 + $0x18] sm:$0xff]
  %v87 = vld [vmem:[%s3 + $0x20] sm:$0xff]
  %v88 = vld [vmem:[%s3 + $0x28] sm:$0xff]
  %v89 = vld [vmem:[%s3 + $0x30] sm:$0xff]
  %v90 = vld [vmem:[%s3 + $0x38] sm:$0xff]
  %v91 = vld [vmem:[%s4] sm:$0x1]
  %v93 = vperm.slane %v91, 0
  %vm95 = vcmask 523264
  %v97 = vsel %vm95, %v82, 0
  %99 = vmatpush.msra.mxu0 0.0
  %100 = vmatpush.msra.mxu0 0.0
  %101 = vmatpush.msra.mxu0 0.0
  %102 = vmatpush.msra.mxu0 0.0
  %103 = vmatpush.msra.mxu0 0.0
  %104 = vmatpush.msra.mxu0 0.0
  %105 = vmatpush.msra.mxu0 0.0
  %106 = vmatpush.msra.mxu0 0.0
  %107 = vmatpush.msra.mxu0 %v90
  %108 = vmatpush.msra.mxu0 %v89
  %109 = vmatpush.msra.mxu0 %v88
  %110 = vmatpush.msra.mxu0 %v87
  %111 = vmatpush.msra.mxu0 %v86
  %112 = vmatpush.msra.mxu0 %v85
  %113 = vmatpush.msra.mxu0 %v84
  %114 = vmatpush.msra.mxu0 %v83
  %115 = vmatmul.f32.gmra.mxu0 %v97
  %v116 = vpop.f32.mrf.mxu0
  %v117 = vadd.f32 %v93, %v116
  %118 = vdwg.mxu0
  %v119 = vtanh.pop %v117
  %v120 = vld [vmem:[%s5] sm:$0xff]
  %v121 = vld [vmem:[%s5 + $0x8] sm:$0xff]
  %v122 = vld [vmem:[%s5 + $0x10] sm:$0xff]
  %v123 = vld [vmem:[%s5 + $0x18] sm:$0xff]
  %v124 = vld [vmem:[%s5 + $0x20] sm:$0xff]
  %v125 = vld [vmem:[%s5 + $0x28] sm:$0xff]
  %v126 = vld [vmem:[%s5 + $0x30] sm:$0xff]
  %v127 = vld [vmem:[%s5 + $0x38] sm:$0xff]
  %v128 = vld [vmem:[%s6] sm:$0x1]
  %v130 = vperm.slane %v128, 0
  %v133 = vsel %vm95, %v119, 0
  %135 = vmatpush.msra.mxu0 0.0
  %136 = vmatpush.msra.mxu0 0.0
  %137 = vmatpush.msra.mxu0 0.0
  %138 = vmatpush.msra.mxu0 0.0
  %139 = vmatpush.msra.mxu0 0.0
  %140 = vmatpush.msra.mxu0 0.0
  %141 = vmatpush.msra.mxu0 0.0
  %142 = vmatpush.msra.mxu0 0.0
  %143 = vmatpush.msra.mxu0 %v127
  %144 = vmatpush.msra.mxu0 %v126
  %145 = vmatpush.msra.mxu0 %v125
  %146 = vmatpush.msra.mxu0 %v124
  %147 = vmatpush.msra.mxu0 %v123
  %148 = vmatpush.msra.mxu0 %v122
  %149 = vmatpush.msra.mxu0 %v121
  %150 = vmatpush.msra.mxu0 %v120
  %151 = vmatmul.f32.gmra.mxu0 %v133
  %v152 = vpop.f32.mrf.mxu0
  %v153 = vadd.f32 %v130, %v152
  %154 = vdwg.mxu0
  %v155 = vtanh.pop %v153
  %v156 = vld [vmem:[%s7] sm:$0xff]
  %v157 = vld [vmem:[%s7 + $0x8] sm:$0xff]
  %v158 = vld [vmem:[%s7 + $0x10] sm:$0xff]
  %v159 = vld [vmem:[%s7 + $0x18] sm:$0xff]
  %v160 = vld [vmem:[%s7 + $0x20] sm:$0xff]
  %v161 = vld [vmem:[%s7 + $0x28] sm:$0xff]
  %v162 = vld [vmem:[%s7 + $0x30] sm:$0xff]
  %v163 = vld [vmem:[%s7 + $0x38] sm:$0xff]
  %v164 = vld [vmem:[%s8] sm:$0x1]
  %v166 = vperm.slane %v164, 0
  %v169 = vsel %vm95, %v155, 0
  %171 = vmatpush.msra.mxu0 0.0
  %172 = vmatpush.msra.mxu0 0.0
  %173 = vmatpush.msra.mxu0 0.0
  %174 = vmatpush.msra.mxu0 0.0
  %175 = vmatpush.msra.mxu0 0.0
  %176 = vmatpush.msra.mxu0 0.0
  %177 = vmatpush.msra.mxu0 0.0
  %178 = vmatpush.msra.mxu0 0.0
  %179 = vmatpush.msra.mxu0 %v163
  %180 = vmatpush.msra.mxu0 %v162
  %181 = vmatpush.msra.mxu0 %v161
  %182 = vmatpush.msra.mxu0 %v160
  %183 = vmatpush.msra.mxu0 %v159
  %184 = vmatpush.msra.mxu0 %v158
  %185 = vmatpush.msra.mxu0 %v157
  %186 = vmatpush.msra.mxu0 %v156
  %187 = vmatmul.f32.gmra.mxu0 %v169
  %v188 = vpop.f32.mrf.mxu0
  %v189 = vadd.f32 %v166, %v188
  %190 = vdwg.mxu0
  %v191 = vtanh.pop %v189
  %v192 = vld [vmem:[%s9] sm:$0xff]
  %v193 = vld [vmem:[%s9 + $0x8] sm:$0xff]
  %v194 = vld [vmem:[%s9 + $0x10] sm:$0xff]
  %v195 = vld [vmem:[%s9 + $0x18] sm:$0xff]
  %v196 = vld [vmem:[%s9 + $0x20] sm:$0xff]
  %v197 = vld [vmem:[%s9 + $0x28] sm:$0xff]
  %v198 = vld [vmem:[%s9 + $0x30] sm:$0xff]
  %v199 = vld [vmem:[%s9 + $0x38] sm:$0xff]
  %v200 = vld [vmem:[%s10] sm:$0x1]
  %v202 = vperm.slane %v200, 0
  %v205 = vsel %vm95, %v191, 0
  %207 = vmatpush.msra.mxu0 0.0
  %208 = vmatpush.msra.mxu0 0.0
  %209 = vmatpush.msra.mxu0 0.0
  %210 = vmatpush.msra.mxu0 0.0
  %211 = vmatpush.msra.mxu0 0.0
  %212 = vmatpush.msra.mxu0 0.0
  %213 = vmatpush.msra.mxu0 0.0
  %214 = vmatpush.msra.mxu0 0.0
  %215 = vmatpush.msra.mxu0 %v199
  %216 = vmatpush.msra.mxu0 %v198
  %217 = vmatpush.msra.mxu0 %v197
  %218 = vmatpush.msra.mxu0 %v196
  %219 = vmatpush.msra.mxu0 %v195
  %220 = vmatpush.msra.mxu0 %v194
  %221 = vmatpush.msra.mxu0 %v193
  %222 = vmatpush.msra.mxu0 %v192
  %223 = vmatmul.f32.gmra.mxu0 %v205
  %v224 = vpop.f32.mrf.mxu0
  %v225 = vadd.f32 %v202, %v224
  %226 = vdwg.mxu0
  %vm227 = vcmask 64512
  %228 = vst.msk [vmem:[%s11] sm:$0xff] %vm227, %v225
  // Predicated region
  $region46: #{pi_stgcn_any_order_forward.3} parent=0 // pred_check
    _
  $region47: #{pi_stgcn_any_order_forward.3} parent=0 // pred_check_branch
    %230 = sbr.rel (0) target = $region49
  $region48: #{pi_stgcn_any_order_forward.3} parent=0 // pred_region
    _
  $region49: #{pi_stgcn_any_order_forward.3} parent=0 // pred_fallthru
    _
  // Predicated region
  $region50: #{pi_stgcn_any_order_forward.3} parent=0 // pred_check
    _
  $region51: #{pi_stgcn_any_order_forward.3} parent=0 // pred_check_branch
    %232 = sbr.rel (0) target = $region53
  $region52: #{pi_stgcn_any_order_forward.3} parent=0 // pred_region
    _
  $region53: #{pi_stgcn_any_order_forward.3} parent=0 // pred_fallthru
    _

// kernel: pi_stgcn_any_order_forward.2
$region0: #{pi_stgcn_any_order_forward.2}
  #allocation0 [shape = 'u32[]', space=smem, size = 0x4, offset = 0x4, fixed_abs, tag = 'smem constant byte address 0x4 - core index']
  #allocation1 [shape = 'u32[72,128]{1,0:T(1,128)}', space=vmem, size = 0x9000, scoped, tag = 'internal scratch']
  %s0 = inlined_call_operand.smem [shape: u32[40], index: -1, kind: input, shape index: {}]
  %s1 = sld [smem:[%s0]]
  %s2 = scalar_lea.smem %s0, 1
  %s3 = sld [smem:[%s2]]
  %s4 = scalar_lea.smem %s0, 2
  %s5 = sld [smem:[%s4]]
  %s6 = scalar_lea.smem %s0, 3
  %s7 = sld [smem:[%s6]]
  %s8 = scalar_lea.smem %s0, 4
  %s9 = sld [smem:[%s8]]
  %s10 = scalar_lea.smem %s0, 5
  %s11 = sld [smem:[%s10]]
  %s12 = scalar_lea.smem %s0, 6
  %s13 = sld [smem:[%s12]]
  %s14 = scalar_lea.smem %s0, 7
  %s15 = sld [smem:[%s14]]
  %s16 = scalar_lea.smem %s0, 8
  %s17 = sld [smem:[%s16]]
  %s18 = scalar_lea.smem %s0, 9
  %s19 = sld [smem:[%s18]]
  %s20 = scalar_lea.smem %s0, 10
  %s21 = sld [smem:[%s20]]
  %s22 = scalar_lea.smem %s0, 11
  %s23 = sld [smem:[%s22]]
  %s24 = scalar_lea.smem %s0, 12
  %s25 = sld [smem:[%s24]]
  %s26 = scalar_lea.smem %s0, 13
  %s27 = sld [smem:[%s26]]
  %s28 = scalar_lea.smem %s0, 14
  %s29 = sld [smem:[%s28]]
  %s30 = scalar_lea.smem %s0, 15
  %s31 = sld [smem:[%s30]]
  %s32 = scalar_lea.smem %s0, 16
  %s33 = sld [smem:[%s32]]
  %s34 = scalar_lea.smem %s0, 17
  %s35 = sld [smem:[%s34]]
  %s36 = scalar_lea.smem %s0, 18
  %s37 = sld [smem:[%s36]]
  %s38 = scalar_lea.smem %s0, 19
  %s39 = sld [smem:[%s38]]
  %s40 = scalar_lea.smem %s0, 20
  %s41 = sld [smem:[%s40]]
  %s42 = scalar_lea.smem %s0, 21
  %s43 = sld [smem:[%s42]]
  %s44 = scalar_lea.smem %s0, 22
  %s45 = sld [smem:[%s44]]
  %s46 = scalar_lea.smem %s0, 23
  %s47 = sld [smem:[%s46]]
  %s48 = scalar_lea.smem %s0, 24
  %s49 = sld [smem:[%s48]]
  %s50 = scalar_lea.smem %s0, 25
  %s51 = sld [smem:[%s50]]
  %s52 = scalar_lea.smem %s0, 26
  %s53 = sld [smem:[%s52]]
  %s54 = scalar_lea.smem %s0, 27
  %s55 = sld [smem:[%s54]]
  %s56 = scalar_lea.smem %s0, 28
  %s57 = sld [smem:[%s56]]
  %s58 = scalar_lea.smem %s0, 29
  %s59 = sld [smem:[%s58]]
  %s60 = scalar_lea.smem %s0, 30
  %s61 = sld [smem:[%s60]]
  %s62 = scalar_lea.smem %s0, 31
  %s63 = sld [smem:[%s62]]
  %s64 = scalar_lea.smem %s0, 32
  %s65 = sld [smem:[%s64]]
  %s66 = scalar_lea.smem %s0, 33
  %s67 = sld [smem:[%s66]]
  %s68 = scalar_lea.smem %s0, 34
  %s69 = sld [smem:[%s68]]
  %s70 = scalar_lea.smem %s0, 35
  %s71 = sld [smem:[%s70]]
  %s72 = scalar_lea.smem %s0, 36
  %s73 = sld [smem:[%s72]]
  %s74 = scalar_lea.smem %s0, 37
  %s75 = sld [smem:[%s74]]
  %s76 = scalar_lea.smem %s0, 38
  %s77 = sld [smem:[%s76]]
  %s78 = scalar_lea.smem %s0, 39
  %s79 = sld [smem:[%s78]]
  %s80 = sld [smem:[#allocation0]]
  $region189: #{pi_stgcn_any_order_forward.2} parent=0
    _
  %s82 = ssub.s32 1, %s80
  %s83 = scalar_select 0, %s82, %s80
  loop: start=0, step=1, limit=4
  $region2: #{pi_stgcn_any_order_forward.2} parent=0 // loop_pre_header
    _
  $region3: #{pi_stgcn_any_order_forward.2} parent=0 // loop_header
    %s85 = sphi 0, %s89
    %p86 = scmp.ge.s32.totalorder %s85, 4
    %s95 = sphi 0, %s97
    %s98 = sphi 0, %s95
    %s99 = sphi 0, %s98
    %s115 = sphi 0, %s99
    %s119 = sphi 0, %s119
    %s121 = sphi 0, %s119
    %s122 = sphi 0, %s121
    %s136 = sphi 0, %s122
    %s140 = sphi 0, %s140
    %s142 = sphi 0, %s140
    %s143 = sphi 0, %s142
    %s157 = sphi 0, %s143
    %s161 = sphi 0, %s161
    %s163 = sphi 0, %s161
    %s164 = sphi 0, %s163
    %s178 = sphi 0, %s164
    %s182 = sphi 0, %s182
    %s184 = sphi 0, %s182
    %s185 = sphi 0, %s184
    %s199 = sphi 0, %s185
    %s205 = sphi 0, %s207
    %s208 = sphi 0, %s205
    %s209 = sphi 0, %s208
    %s225 = sphi 0, %s209
    %s231 = sphi 0, %s233
    %s234 = sphi 0, %s231
    %s235 = sphi 0, %s234
    %s251 = sphi 0, %s235
    %s257 = sphi 0, %s259
    %s260 = sphi 0, %s257
    %s261 = sphi 0, %s260
    %s277 = sphi 0, %s261
    %s283 = sphi 0, %s285
    %s286 = sphi 0, %s283
    %s287 = sphi 0, %s286
    %s303 = sphi 0, %s287
    %s309 = sphi 0, %s311
    %s312 = sphi 0, %s309
    %s313 = sphi 0, %s312
    %s329 = sphi 0, %s313
    %s335 = sphi 0, %s337
    %s338 = sphi 0, %s335
    %s339 = sphi 0, %s338
    %s355 = sphi 0, %s339
    %s361 = sphi 0, %s363
    %s364 = sphi 0, %s361
    %s365 = sphi 0, %s364
    %s381 = sphi 0, %s365
    %s387 = sphi 0, %s389
    %s390 = sphi 0, %s387
    %s391 = sphi 0, %s390
    %s407 = sphi 0, %s391
    %s413 = sphi 0, %s415
    %s416 = sphi 0, %s413
    %s417 = sphi 0, %s416
    %s433 = sphi 0, %s417
    %s439 = sphi 0, %s441
    %s442 = sphi 0, %s439
    %s443 = sphi 0, %s442
    %s459 = sphi 0, %s443
    %s465 = sphi 0, %s467
    %s468 = sphi 0, %s465
    %s469 = sphi 0, %s468
    %s485 = sphi 0, %s469
    %s491 = sphi 0, %s493
    %s494 = sphi 0, %s491
    %s495 = sphi 0, %s494
    %s511 = sphi 0, %s495
    %s517 = sphi 0, %s519
    %s520 = sphi 0, %s517
    %s521 = sphi 0, %s520
    %s537 = sphi 0, %s521
    %s543 = sphi 0, %s545
    %s546 = sphi 0, %s543
    %s547 = sphi 0, %s546
    %s563 = sphi 0, %s547
    %s569 = sphi 0, %s571
    %s572 = sphi 0, %s569
    %s573 = sphi 0, %s572
    %s589 = sphi 0, %s573
    %s595 = sphi 0, %s597
    %s598 = sphi 0, %s595
    %s599 = sphi 0, %s598
    %s615 = sphi 0, %s599
    %s621 = sphi 0, %s623
    %s624 = sphi 0, %s621
    %s625 = sphi 0, %s624
    %s641 = sphi 0, %s625
    %s647 = sphi 0, %s649
    %s650 = sphi 0, %s647
    %s651 = sphi 0, %s650
    %s667 = sphi 0, %s651
    %s673 = sphi 0, %s675
    %s676 = sphi 0, %s673
    %s677 = sphi 0, %s676
    %s693 = sphi 0, %s677
    %s699 = sphi 0, %s701
    %s702 = sphi 0, %s699
    %s703 = sphi 0, %s702
    %s719 = sphi 0, %s703
    %s725 = sphi 0, %s727
    %s728 = sphi 0, %s725
    %s729 = sphi 0, %s728
    %s745 = sphi 0, %s729
    %s751 = sphi 0, %s753
    %s754 = sphi 0, %s751
    %s755 = sphi 0, %s754
    %s771 = sphi 0, %s755
    %s777 = sphi 0, %s779
    %s780 = sphi 0, %s777
    %s781 = sphi 0, %s780
    %s797 = sphi 0, %s781
    %s803 = sphi 0, %s805
    %s806 = sphi 0, %s803
    %s807 = sphi 0, %s806
    %s823 = sphi 0, %s807
    %s829 = sphi 0, %s831
    %s832 = sphi 0, %s829
    %s833 = sphi 0, %s832
    %s849 = sphi 0, %s833
    %s855 = sphi 0, %s857
    %s858 = sphi 0, %s855
    %s859 = sphi 0, %s858
    %s875 = sphi 0, %s859
    %s881 = sphi 0, %s883
    %s884 = sphi 0, %s881
    %s885 = sphi 0, %s884
    %s901 = sphi 0, %s885
    %s907 = sphi 0, %s909
    %s910 = sphi 0, %s907
    %s911 = sphi 0, %s910
    %s927 = sphi 0, %s911
    %s933 = sphi 0, %s935
    %s936 = sphi 0, %s933
    %s937 = sphi 0, %s936
    %s953 = sphi 0, %s937
    %s959 = sphi 0, %s961
    %s962 = sphi 0, %s959
    %s963 = sphi 0, %s962
    %s979 = sphi 0, %s963
    %s985 = sphi 0, %s987
    %s988 = sphi 0, %s985
    %s989 = sphi 0, %s988
    %s1005 = sphi 0, %s989
    %s1011 = sphi 0, %s1013
    %s1014 = sphi 0, %s1011
    %s1015 = sphi 0, %s1014
    %s1031 = sphi 0, %s1015
    %s1037 = sphi 0, %s1039
    %s1040 = sphi 0, %s1037
    %s1041 = sphi 0, %s1040
    %s1057 = sphi 0, %s1041
    %s1063 = sphi 0, %s1065
    %s1066 = sphi 0, %s1063
    %s1067 = sphi 0, %s1066
    %s1083 = sphi 0, %s1067
    %s1089 = sphi 0, %s1091
    %s1092 = sphi 0, %s1089
    %s1093 = sphi 0, %s1092
    %s1109 = sphi 0, %s1093
  $region4: #{pi_stgcn_any_order_forward.2} parent=0 // loop_header_branch
    %88 = sbr.rel (%p86) target = $region8
  $region5: #{pi_stgcn_any_order_forward.2} parent=0 // loop_body
    %s90 = ssub.s32 %s85, 1
    %s91 = ssub.s32 %s85, 2
    %s92 = sadd.s32 %s85, 1
    %s93 = ssub.s32 %s85, %s92
    %p94 = scmp.eq.s32.totalorder %s93, 0
    %s96 = sadd.s32 %s95, 1
    %s97 = scalar_select %p94, %s95, %s96
    %p100 = pneg %p94
    %p101 = scmp.eq.s32.totalorder %s85, 1
    %p102 = por %p100, %p101
    %p103 = scmp.ne.s32.totalorder %s95, %s98
    %p104 = scmp.eq.s32.totalorder %s85, 0
    %p105 = por %p103, %p104
    %p106 = scmp.ne.s32.totalorder %s95, %s98
    %p107 = scmp.eq.s32.totalorder %s90, 1
    %p108 = por %p106, %p107
    %p109 = scmp.ne.s32.totalorder %s98, %s99
    %p110 = scmp.eq.s32.totalorder %s90, 0
    %p111 = por %p109, %p110
    %p112 = scmp.ne.s32.totalorder %s98, %s99
    %p113 = scmp.eq.s32.totalorder %s91, 1
    %p114 = por %p112, %p113
    %p116 = scmp.ne.s32.totalorder %s99, %s115
    %p117 = scmp.eq.s32.totalorder %s91, 0
    %p118 = por %p116, %p117
    %s120 = sadd.s32 %s119, 1
    %p123 = scmp.eq.s32.totalorder %s85, 1
    %p124 = scmp.ne.s32.totalorder %s119, %s121
    %p125 = scmp.eq.s32.totalorder %s85, 0
    %p126 = por %p124, %p125
    %p127 = scmp.ne.s32.totalorder %s119, %s121
    %p128 = scmp.eq.s32.totalorder %s90, 1
    %p129 = por %p127, %p128
    %p130 = scmp.ne.s32.totalorder %s121, %s122
    %p131 = scmp.eq.s32.totalorder %s90, 0
    %p132 = por %p130, %p131
    %p133 = scmp.ne.s32.totalorder %s121, %s122
    %p134 = scmp.eq.s32.totalorder %s91, 1
    %p135 = por %p133, %p134
    %p137 = scmp.ne.s32.totalorder %s122, %s136
    %p138 = scmp.eq.s32.totalorder %s91, 0
    %p139 = por %p137, %p138
    %s141 = sadd.s32 %s140, 1
    %p144 = scmp.eq.s32.totalorder %s85, 1
    %p145 = scmp.ne.s32.totalorder %s140, %s142
    %p146 = scmp.eq.s32.totalorder %s85, 0
    %p147 = por %p145, %p146
    %p148 = scmp.ne.s32.totalorder %s140, %s142
    %p149 = scmp.eq.s32.totalorder %s90, 1
    %p150 = por %p148, %p149
    %p151 = scmp.ne.s32.totalorder %s142, %s143
    %p152 = scmp.eq.s32.totalorder %s90, 0
    %p153 = por %p151, %p152
    %p154 = scmp.ne.s32.totalorder %s142, %s143
    %p155 = scmp.eq.s32.totalorder %s91, 1
    %p156 = por %p154, %p155
    %p158 = scmp.ne.s32.totalorder %s143, %s157
    %p159 = scmp.eq.s32.totalorder %s91, 0
    %p160 = por %p158, %p159
    %s162 = sadd.s32 %s161, 1
    %p165 = scmp.eq.s32.totalorder %s85, 1
    %p166 = scmp.ne.s32.totalorder %s161, %s163
    %p167 = scmp.eq.s32.totalorder %s85, 0
    %p168 = por %p166, %p167
    %p169 = scmp.ne.s32.totalorder %s161, %s163
    %p170 = scmp.eq.s32.totalorder %s90, 1
    %p171 = por %p169, %p170
    %p172 = scmp.ne.s32.totalorder %s163, %s164
    %p173 = scmp.eq.s32.totalorder %s90, 0
    %p174 = por %p172, %p173
    %p175 = scmp.ne.s32.totalorder %s163, %s164
    %p176 = scmp.eq.s32.totalorder %s91, 1
    %p177 = por %p175, %p176
    %p179 = scmp.ne.s32.totalorder %s164, %s178
    %p180 = scmp.eq.s32.totalorder %s91, 0
    %p181 = por %p179, %p180
    %s183 = sadd.s32 %s182, 1
    %p186 = scmp.eq.s32.totalorder %s85, 1
    %p187 = scmp.ne.s32.totalorder %s182, %s184
    %p188 = scmp.eq.s32.totalorder %s85, 0
    %p189 = por %p187, %p188
    %p190 = scmp.ne.s32.totalorder %s182, %s184
    %p191 = scmp.eq.s32.totalorder %s90, 1
    %p192 = por %p190, %p191
    %p193 = scmp.ne.s32.totalorder %s184, %s185
    %p194 = scmp.eq.s32.totalorder %s90, 0
    %p195 = por %p193, %p194
    %p196 = scmp.ne.s32.totalorder %s184, %s185
    %p197 = scmp.eq.s32.totalorder %s91, 1
    %p198 = por %p196, %p197
    %p200 = scmp.ne.s32.totalorder %s185, %s199
    %p201 = scmp.eq.s32.totalorder %s91, 0
    %p202 = por %p200, %p201
    %s203 = ssub.s32 %s85, %s92
    %p204 = scmp.eq.s32.totalorder %s203, 0
    %s206 = sadd.s32 %s205, 1
    %s207 = scalar_select %p204, %s205, %s206
    %p210 = pneg %p204
    %p211 = scmp.eq.s32.totalorder %s85, 1
    %p212 = por %p210, %p211
    %p213 = scmp.ne.s32.totalorder %s205, %s208
    %p214 = scmp.eq.s32.totalorder %s85, 0
    %p215 = por %p213, %p214
    %p216 = scmp.ne.s32.totalorder %s205, %s208
    %p217 = scmp.eq.s32.totalorder %s90, 1
    %p218 = por %p216, %p217
    %p219 = scmp.ne.s32.totalorder %s208, %s209
    %p220 = scmp.eq.s32.totalorder %s90, 0
    %p221 = por %p219, %p220
    %p222 = scmp.ne.s32.totalorder %s208, %s209
    %p223 = scmp.eq.s32.totalorder %s91, 1
    %p224 = por %p222, %p223
    %p226 = scmp.ne.s32.totalorder %s209, %s225
    %p227 = scmp.eq.s32.totalorder %s91, 0
    %p228 = por %p226, %p227
    %s229 = ssub.s32 %s85, %s92
    %p230 = scmp.eq.s32.totalorder %s229, 0
    %s232 = sadd.s32 %s231, 1
    %s233 = scalar_select %p230, %s231, %s232
    %p236 = pneg %p230
    %p237 = scmp.eq.s32.totalorder %s85, 1
    %p238 = por %p236, %p237
    %p239 = scmp.ne.s32.totalorder %s231, %s234
    %p240 = scmp.eq.s32.totalorder %s85, 0
    %p241 = por %p239, %p240
    %p242 = scmp.ne.s32.totalorder %s231, %s234
    %p243 = scmp.eq.s32.totalorder %s90, 1
    %p244 = por %p242, %p243
    %p245 = scmp.ne.s32.totalorder %s234, %s235
    %p246 = scmp.eq.s32.totalorder %s90, 0
    %p247 = por %p245, %p246
    %p248 = scmp.ne.s32.totalorder %s234, %s235
    %p249 = scmp.eq.s32.totalorder %s91, 1
    %p250 = por %p248, %p249
    %p252 = scmp.ne.s32.totalorder %s235, %s251
    %p253 = scmp.eq.s32.totalorder %s91, 0
    %p254 = por %p252, %p253
    %s255 = ssub.s32 %s85, %s92
    %p256 = scmp.eq.s32.totalorder %s255, 0
    %s258 = sadd.s32 %s257, 1
    %s259 = scalar_select %p256, %s257, %s258
    %p262 = pneg %p256
    %p263 = scmp.eq.s32.totalorder %s85, 1
    %p264 = por %p262, %p263
    %p265 = scmp.ne.s32.totalorder %s257, %s260
    %p266 = scmp.eq.s32.totalorder %s85, 0
    %p267 = por %p265, %p266
    %p268 = scmp.ne.s32.totalorder %s257, %s260
    %p269 = scmp.eq.s32.totalorder %s90, 1
    %p270 = por %p268, %p269
    %p271 = scmp.ne.s32.totalorder %s260, %s261
    %p272 = scmp.eq.s32.totalorder %s90, 0
    %p273 = por %p271, %p272
    %p274 = scmp.ne.s32.totalorder %s260, %s261
    %p275 = scmp.eq.s32.totalorder %s91, 1
    %p276 = por %p274, %p275
    %p278 = scmp.ne.s32.totalorder %s261, %s277
    %p279 = scmp.eq.s32.totalorder %s91, 0
    %p280 = por %p278, %p279
    %s281 = ssub.s32 %s85, %s92
    %p282 = scmp.eq.s32.totalorder %s281, 0
    %s284 = sadd.s32 %s283, 1
    %s285 = scalar_select %p282, %s283, %s284
    %p288 = pneg %p282
    %p289 = scmp.eq.s32.totalorder %s85, 1
    %p290 = por %p288, %p289
    %p291 = scmp.ne.s32.totalorder %s283, %s286
    %p292 = scmp.eq.s32.totalorder %s85, 0
    %p293 = por %p291, %p292
    %p294 = scmp.ne.s32.totalorder %s283, %s286
    %p295 = scmp.eq.s32.totalorder %s90, 1
    %p296 = por %p294, %p295
    %p297 = scmp.ne.s32.totalorder %s286, %s287
    %p298 = scmp.eq.s32.totalorder %s90, 0
    %p299 = por %p297, %p298
    %p300 = scmp.ne.s32.totalorder %s286, %s287
    %p301 = scmp.eq.s32.totalorder %s91, 1
    %p302 = por %p300, %p301
    %p304 = scmp.ne.s32.totalorder %s287, %s303
    %p305 = scmp.eq.s32.totalorder %s91, 0
    %p306 = por %p304, %p305
    %s307 = ssub.s32 %s85, %s92
    %p308 = scmp.eq.s32.totalorder %s307, 0
    %s310 = sadd.s32 %s309, 1
    %s311 = scalar_select %p308, %s309, %s310
    %p314 = pneg %p308
    %p315 = scmp.eq.s32.totalorder %s85, 1
    %p316 = por %p314, %p315
    %p317 = scmp.ne.s32.totalorder %s309, %s312
    %p318 = scmp.eq.s32.totalorder %s85, 0
    %p319 = por %p317, %p318
    %p320 = scmp.ne.s32.totalorder %s309, %s312
    %p321 = scmp.eq.s32.totalorder %s90, 1
    %p322 = por %p320, %p321
    %p323 = scmp.ne.s32.totalorder %s312, %s313
    %p324 = scmp.eq.s32.totalorder %s90, 0
    %p325 = por %p323, %p324
    %p326 = scmp.ne.s32.totalorder %s312, %s313
    %p327 = scmp.eq.s32.totalorder %s91, 1
    %p328 = por %p326, %p327
    %p330 = scmp.ne.s32.totalorder %s313, %s329
    %p331 = scmp.eq.s32.totalorder %s91, 0
    %p332 = por %p330, %p331
    %s333 = ssub.s32 %s85, %s92
    %p334 = scmp.eq.s32.totalorder %s333, 0
    %s336 = sadd.s32 %s335, 1
    %s337 = scalar_select %p334, %s335, %s336
    %p340 = pneg %p334
    %p341 = scmp.eq.s32.totalorder %s85, 1
    %p342 = por %p340, %p341
    %p343 = scmp.ne.s32.totalorder %s335, %s338
    %p344 = scmp.eq.s32.totalorder %s85, 0
    %p345 = por %p343, %p344
    %p346 = scmp.ne.s32.totalorder %s335, %s338
    %p347 = scmp.eq.s32.totalorder %s90, 1
    %p348 = por %p346, %p347
    %p349 = scmp.ne.s32.totalorder %s338, %s339
    %p350 = scmp.eq.s32.totalorder %s90, 0
    %p351 = por %p349, %p350
    %p352 = scmp.ne.s32.totalorder %s338, %s339
    %p353 = scmp.eq.s32.totalorder %s91, 1
    %p354 = por %p352, %p353
    %p356 = scmp.ne.s32.totalorder %s339, %s355
    %p357 = scmp.eq.s32.totalorder %s91, 0
    %p358 = por %p356, %p357
    %s359 = ssub.s32 %s85, %s92
    %p360 = scmp.eq.s32.totalorder %s359, 0
    %s362 = sadd.s32 %s361, 1
    %s363 = scalar_select %p360, %s361, %s362
    %p366 = pneg %p360
    %p367 = scmp.eq.s32.totalorder %s85, 1
    %p368 = por %p366, %p367
    %p369 = scmp.ne.s32.totalorder %s361, %s364
    %p370 = scmp.eq.s32.totalorder %s85, 0
    %p371 = por %p369, %p370
    %p372 = scmp.ne.s32.totalorder %s361, %s364
    %p373 = scmp.eq.s32.totalorder %s90, 1
    %p374 = por %p372, %p373
    %p375 = scmp.ne.s32.totalorder %s364, %s365
    %p376 = scmp.eq.s32.totalorder %s90, 0
    %p377 = por %p375, %p376
    %p378 = scmp.ne.s32.totalorder %s364, %s365
    %p379 = scmp.eq.s32.totalorder %s91, 1
    %p380 = por %p378, %p379
    %p382 = scmp.ne.s32.totalorder %s365, %s381
    %p383 = scmp.eq.s32.totalorder %s91, 0
    %p384 = por %p382, %p383
    %s385 = ssub.s32 %s85, %s92
    %p386 = scmp.eq.s32.totalorder %s385, 0
    %s388 = sadd.s32 %s387, 1
    %s389 = scalar_select %p386, %s387, %s388
    %p392 = pneg %p386
    %p393 = scmp.eq.s32.totalorder %s85, 1
    %p394 = por %p392, %p393
    %p395 = scmp.ne.s32.totalorder %s387, %s390
    %p396 = scmp.eq.s32.totalorder %s85, 0
    %p397 = por %p395, %p396
    %p398 = scmp.ne.s32.totalorder %s387, %s390
    %p399 = scmp.eq.s32.totalorder %s90, 1
    %p400 = por %p398, %p399
    %p401 = scmp.ne.s32.totalorder %s390, %s391
    %p402 = scmp.eq.s32.totalorder %s90, 0
    %p403 = por %p401, %p402
    %p404 = scmp.ne.s32.totalorder %s390, %s391
    %p405 = scmp.eq.s32.totalorder %s91, 1
    %p406 = por %p404, %p405
    %p408 = scmp.ne.s32.totalorder %s391, %s407
    %p409 = scmp.eq.s32.totalorder %s91, 0
    %p410 = por %p408, %p409
    %s411 = ssub.s32 %s85, %s92
    %p412 = scmp.eq.s32.totalorder %s411, 0
    %s414 = sadd.s32 %s413, 1
    %s415 = scalar_select %p412, %s413, %s414
    %p418 = pneg %p412
    %p419 = scmp.eq.s32.totalorder %s85, 1
    %p420 = por %p418, %p419
    %p421 = scmp.ne.s32.totalorder %s413, %s416
    %p422 = scmp.eq.s32.totalorder %s85, 0
    %p423 = por %p421, %p422
    %p424 = scmp.ne.s32.totalorder %s413, %s416
    %p425 = scmp.eq.s32.totalorder %s90, 1
    %p426 = por %p424, %p425
    %p427 = scmp.ne.s32.totalorder %s416, %s417
    %p428 = scmp.eq.s32.totalorder %s90, 0
    %p429 = por %p427, %p428
    %p430 = scmp.ne.s32.totalorder %s416, %s417
    %p431 = scmp.eq.s32.totalorder %s91, 1
    %p432 = por %p430, %p431
    %p434 = scmp.ne.s32.totalorder %s417, %s433
    %p435 = scmp.eq.s32.totalorder %s91, 0
    %p436 = por %p434, %p435
    %s437 = ssub.s32 %s85, %s92
    %p438 = scmp.eq.s32.totalorder %s437, 0
    %s440 = sadd.s32 %s439, 1
    %s441 = scalar_select %p438, %s439, %s440
    %p444 = pneg %p438
    %p445 = scmp.eq.s32.totalorder %s85, 1
    %p446 = por %p444, %p445
    %p447 = scmp.ne.s32.totalorder %s439, %s442
    %p448 = scmp.eq.s32.totalorder %s85, 0
    %p449 = por %p447, %p448
    %p450 = scmp.ne.s32.totalorder %s439, %s442
    %p451 = scmp.eq.s32.totalorder %s90, 1
    %p452 = por %p450, %p451
    %p453 = scmp.ne.s32.totalorder %s442, %s443
    %p454 = scmp.eq.s32.totalorder %s90, 0
    %p455 = por %p453, %p454
    %p456 = scmp.ne.s32.totalorder %s442, %s443
    %p457 = scmp.eq.s32.totalorder %s91, 1
    %p458 = por %p456, %p457
    %p460 = scmp.ne.s32.totalorder %s443, %s459
    %p461 = scmp.eq.s32.totalorder %s91, 0
    %p462 = por %p460, %p461
    %s463 = ssub.s32 %s85, %s92
    %p464 = scmp.eq.s32.totalorder %s463, 0
    %s466 = sadd.s32 %s465, 1
    %s467 = scalar_select %p464, %s465, %s466
    %p470 = pneg %p464
    %p471 = scmp.eq.s32.totalorder %s85, 1
    %p472 = por %p470, %p471
    %p473 = scmp.ne.s32.totalorder %s465, %s468
    %p474 = scmp.eq.s32.totalorder %s85, 0
    %p475 = por %p473, %p474
    %p476 = scmp.ne.s32.totalorder %s465, %s468
    %p477 = scmp.eq.s32.totalorder %s90, 1
    %p478 = por %p476, %p477
    %p479 = scmp.ne.s32.totalorder %s468, %s469
    %p480 = scmp.eq.s32.totalorder %s90, 0
    %p481 = por %p479, %p480
    %p482 = scmp.ne.s32.totalorder %s468, %s469
    %p483 = scmp.eq.s32.totalorder %s91, 1
    %p484 = por %p482, %p483
    %p486 = scmp.ne.s32.totalorder %s469, %s485
    %p487 = scmp.eq.s32.totalorder %s91, 0
    %p488 = por %p486, %p487
    %s489 = ssub.s32 %s85, %s92
    %p490 = scmp.eq.s32.totalorder %s489, 0
    %s492 = sadd.s32 %s491, 1
    %s493 = scalar_select %p490, %s491, %s492
    %p496 = pneg %p490
    %p497 = scmp.eq.s32.totalorder %s85, 1
    %p498 = por %p496, %p497
    %p499 = scmp.ne.s32.totalorder %s491, %s494
    %p500 = scmp.eq.s32.totalorder %s85, 0
    %p501 = por %p499, %p500
    %p502 = scmp.ne.s32.totalorder %s491, %s494
    %p503 = scmp.eq.s32.totalorder %s90, 1
    %p504 = por %p502, %p503
    %p505 = scmp.ne.s32.totalorder %s494, %s495
    %p506 = scmp.eq.s32.totalorder %s90, 0
    %p507 = por %p505, %p506
    %p508 = scmp.ne.s32.totalorder %s494, %s495
    %p509 = scmp.eq.s32.totalorder %s91, 1
    %p510 = por %p508, %p509
    %p512 = scmp.ne.s32.totalorder %s495, %s511
    %p513 = scmp.eq.s32.totalorder %s91, 0
    %p514 = por %p512, %p513
    %s515 = ssub.s32 %s85, %s92
    %p516 = scmp.eq.s32.totalorder %s515, 0
    %s518 = sadd.s32 %s517, 1
    %s519 = scalar_select %p516, %s517, %s518
    %p522 = pneg %p516
    %p523 = scmp.eq.s32.totalorder %s85, 1
    %p524 = por %p522, %p523
    %p525 = scmp.ne.s32.totalorder %s517, %s520
    %p526 = scmp.eq.s32.totalorder %s85, 0
    %p527 = por %p525, %p526
    %p528 = scmp.ne.s32.totalorder %s517, %s520
    %p529 = scmp.eq.s32.totalorder %s90, 1
    %p530 = por %p528, %p529
    %p531 = scmp.ne.s32.totalorder %s520, %s521
    %p532 = scmp.eq.s32.totalorder %s90, 0
    %p533 = por %p531, %p532
    %p534 = scmp.ne.s32.totalorder %s520, %s521
    %p535 = scmp.eq.s32.totalorder %s91, 1
    %p536 = por %p534, %p535
    %p538 = scmp.ne.s32.totalorder %s521, %s537
    %p539 = scmp.eq.s32.totalorder %s91, 0
    %p540 = por %p538, %p539
    %s541 = ssub.s32 %s85, %s92
    %p542 = scmp.eq.s32.totalorder %s541, 0
    %s544 = sadd.s32 %s543, 1
    %s545 = scalar_select %p542, %s543, %s544
    %p548 = pneg %p542
    %p549 = scmp.eq.s32.totalorder %s85, 1
    %p550 = por %p548, %p549
    %p551 = scmp.ne.s32.totalorder %s543, %s546
    %p552 = scmp.eq.s32.totalorder %s85, 0
    %p553 = por %p551, %p552
    %p554 = scmp.ne.s32.totalorder %s543, %s546
    %p555 = scmp.eq.s32.totalorder %s90, 1
    %p556 = por %p554, %p555
    %p557 = scmp.ne.s32.totalorder %s546, %s547
    %p558 = scmp.eq.s32.totalorder %s90, 0
    %p559 = por %p557, %p558
    %p560 = scmp.ne.s32.totalorder %s546, %s547
    %p561 = scmp.eq.s32.totalorder %s91, 1
    %p562 = por %p560, %p561
    %p564 = scmp.ne.s32.totalorder %s547, %s563
    %p565 = scmp.eq.s32.totalorder %s91, 0
    %p566 = por %p564, %p565
    %s567 = ssub.s32 %s85, %s92
    %p568 = scmp.eq.s32.totalorder %s567, 0
    %s570 = sadd.s32 %s569, 1
    %s571 = scalar_select %p568, %s569, %s570
    %p574 = pneg %p568
    %p575 = scmp.eq.s32.totalorder %s85, 1
    %p576 = por %p574, %p575
    %p577 = scmp.ne.s32.totalorder %s569, %s572
    %p578 = scmp.eq.s32.totalorder %s85, 0
    %p579 = por %p577, %p578
    %p580 = scmp.ne.s32.totalorder %s569, %s572
    %p581 = scmp.eq.s32.totalorder %s90, 1
    %p582 = por %p580, %p581
    %p583 = scmp.ne.s32.totalorder %s572, %s573
    %p584 = scmp.eq.s32.totalorder %s90, 0
    %p585 = por %p583, %p584
    %p586 = scmp.ne.s32.totalorder %s572, %s573
    %p587 = scmp.eq.s32.totalorder %s91, 1
    %p588 = por %p586, %p587
    %p590 = scmp.ne.s32.totalorder %s573, %s589
    %p591 = scmp.eq.s32.totalorder %s91, 0
    %p592 = por %p590, %p591
    %s593 = ssub.s32 %s85, %s92
    %p594 = scmp.eq.s32.totalorder %s593, 0
    %s596 = sadd.s32 %s595, 1
    %s597 = scalar_select %p594, %s595, %s596
    %p600 = pneg %p594
    %p601 = scmp.eq.s32.totalorder %s85, 1
    %p602 = por %p600, %p601
    %p603 = scmp.ne.s32.totalorder %s595, %s598
    %p604 = scmp.eq.s32.totalorder %s85, 0
    %p605 = por %p603, %p604
    %p606 = scmp.ne.s32.totalorder %s595, %s598
    %p607 = scmp.eq.s32.totalorder %s90, 1
    %p608 = por %p606, %p607
    %p609 = scmp.ne.s32.totalorder %s598, %s599
    %p610 = scmp.eq.s32.totalorder %s90, 0
    %p611 = por %p609, %p610
    %p612 = scmp.ne.s32.totalorder %s598, %s599
    %p613 = scmp.eq.s32.totalorder %s91, 1
    %p614 = por %p612, %p613
    %p616 = scmp.ne.s32.totalorder %s599, %s615
    %p617 = scmp.eq.s32.totalorder %s91, 0
    %p618 = por %p616, %p617
    %s619 = ssub.s32 %s85, %s92
    %p620 = scmp.eq.s32.totalorder %s619, 0
    %s622 = sadd.s32 %s621, 1
    %s623 = scalar_select %p620, %s621, %s622
    %p626 = pneg %p620
    %p627 = scmp.eq.s32.totalorder %s85, 1
    %p628 = por %p626, %p627
    %p629 = scmp.ne.s32.totalorder %s621, %s624
    %p630 = scmp.eq.s32.totalorder %s85, 0
    %p631 = por %p629, %p630
    %p632 = scmp.ne.s32.totalorder %s621, %s624
    %p633 = scmp.eq.s32.totalorder %s90, 1
    %p634 = por %p632, %p633
    %p635 = scmp.ne.s32.totalorder %s624, %s625
    %p636 = scmp.eq.s32.totalorder %s90, 0
    %p637 = por %p635, %p636
    %p638 = scmp.ne.s32.totalorder %s624, %s625
    %p639 = scmp.eq.s32.totalorder %s91, 1
    %p640 = por %p638, %p639
    %p642 = scmp.ne.s32.totalorder %s625, %s641
    %p643 = scmp.eq.s32.totalorder %s91, 0
    %p644 = por %p642, %p643
    %s645 = ssub.s32 %s85, %s92
    %p646 = scmp.eq.s32.totalorder %s645, 0
    %s648 = sadd.s32 %s647, 1
    %s649 = scalar_select %p646, %s647, %s648
    %p652 = pneg %p646
    %p653 = scmp.eq.s32.totalorder %s85, 1
    %p654 = por %p652, %p653
    %p655 = scmp.ne.s32.totalorder %s647, %s650
    %p656 = scmp.eq.s32.totalorder %s85, 0
    %p657 = por %p655, %p656
    %p658 = scmp.ne.s32.totalorder %s647, %s650
    %p659 = scmp.eq.s32.totalorder %s90, 1
    %p660 = por %p658, %p659
    %p661 = scmp.ne.s32.totalorder %s650, %s651
    %p662 = scmp.eq.s32.totalorder %s90, 0
    %p663 = por %p661, %p662
    %p664 = scmp.ne.s32.totalorder %s650, %s651
    %p665 = scmp.eq.s32.totalorder %s91, 1
    %p666 = por %p664, %p665
    %p668 = scmp.ne.s32.totalorder %s651, %s667
    %p669 = scmp.eq.s32.totalorder %s91, 0
    %p670 = por %p668, %p669
    %s671 = ssub.s32 %s85, %s92
    %p672 = scmp.eq.s32.totalorder %s671, 0
    %s674 = sadd.s32 %s673, 1
    %s675 = scalar_select %p672, %s673, %s674
    %p678 = pneg %p672
    %p679 = scmp.eq.s32.totalorder %s85, 1
    %p680 = por %p678, %p679
    %p681 = scmp.ne.s32.totalorder %s673, %s676
    %p682 = scmp.eq.s32.totalorder %s85, 0
    %p683 = por %p681, %p682
    %p684 = scmp.ne.s32.totalorder %s673, %s676
    %p685 = scmp.eq.s32.totalorder %s90, 1
    %p686 = por %p684, %p685
    %p687 = scmp.ne.s32.totalorder %s676, %s677
    %p688 = scmp.eq.s32.totalorder %s90, 0
    %p689 = por %p687, %p688
    %p690 = scmp.ne.s32.totalorder %s676, %s677
    %p691 = scmp.eq.s32.totalorder %s91, 1
    %p692 = por %p690, %p691
    %p694 = scmp.ne.s32.totalorder %s677, %s693
    %p695 = scmp.eq.s32.totalorder %s91, 0
    %p696 = por %p694, %p695
    %s697 = ssub.s32 %s85, %s92
    %p698 = scmp.eq.s32.totalorder %s697, 0
    %s700 = sadd.s32 %s699, 1
    %s701 = scalar_select %p698, %s699, %s700
    %p704 = pneg %p698
    %p705 = scmp.eq.s32.totalorder %s85, 1
    %p706 = por %p704, %p705
    %p707 = scmp.ne.s32.totalorder %s699, %s702
    %p708 = scmp.eq.s32.totalorder %s85, 0
    %p709 = por %p707, %p708
    %p710 = scmp.ne.s32.totalorder %s699, %s702
    %p711 = scmp.eq.s32.totalorder %s90, 1
    %p712 = por %p710, %p711
    %p713 = scmp.ne.s32.totalorder %s702, %s703
    %p714 = scmp.eq.s32.totalorder %s90, 0
    %p715 = por %p713, %p714
    %p716 = scmp.ne.s32.totalorder %s702, %s703
    %p717 = scmp.eq.s32.totalorder %s91, 1
    %p718 = por %p716, %p717
    %p720 = scmp.ne.s32.totalorder %s703, %s719
    %p721 = scmp.eq.s32.totalorder %s91, 0
    %p722 = por %p720, %p721
    %s723 = ssub.s32 %s85, %s92
    %p724 = scmp.eq.s32.totalorder %s723, 0
    %s726 = sadd.s32 %s725, 1
    %s727 = scalar_select %p724, %s725, %s726
    %p730 = pneg %p724
    %p731 = scmp.eq.s32.totalorder %s85, 1
    %p732 = por %p730, %p731
    %p733 = scmp.ne.s32.totalorder %s725, %s728
    %p734 = scmp.eq.s32.totalorder %s85, 0
    %p735 = por %p733, %p734
    %p736 = scmp.ne.s32.totalorder %s725, %s728
    %p737 = scmp.eq.s32.totalorder %s90, 1
    %p738 = por %p736, %p737
    %p739 = scmp.ne.s32.totalorder %s728, %s729
    %p740 = scmp.eq.s32.totalorder %s90, 0
    %p741 = por %p739, %p740
    %p742 = scmp.ne.s32.totalorder %s728, %s729
    %p743 = scmp.eq.s32.totalorder %s91, 1
    %p744 = por %p742, %p743
    %p746 = scmp.ne.s32.totalorder %s729, %s745
    %p747 = scmp.eq.s32.totalorder %s91, 0
    %p748 = por %p746, %p747
    %s749 = ssub.s32 %s85, %s92
    %p750 = scmp.eq.s32.totalorder %s749, 0
    %s752 = sadd.s32 %s751, 1
    %s753 = scalar_select %p750, %s751, %s752
    %p756 = pneg %p750
    %p757 = scmp.eq.s32.totalorder %s85, 1
    %p758 = por %p756, %p757
    %p759 = scmp.ne.s32.totalorder %s751, %s754
    %p760 = scmp.eq.s32.totalorder %s85, 0
    %p761 = por %p759, %p760
    %p762 = scmp.ne.s32.totalorder %s751, %s754
    %p763 = scmp.eq.s32.totalorder %s90, 1
    %p764 = por %p762, %p763
    %p765 = scmp.ne.s32.totalorder %s754, %s755
    %p766 = scmp.eq.s32.totalorder %s90, 0
    %p767 = por %p765, %p766
    %p768 = scmp.ne.s32.totalorder %s754, %s755
    %p769 = scmp.eq.s32.totalorder %s91, 1
    %p770 = por %p768, %p769
    %p772 = scmp.ne.s32.totalorder %s755, %s771
    %p773 = scmp.eq.s32.totalorder %s91, 0
    %p774 = por %p772, %p773
    %s775 = ssub.s32 %s85, %s92
    %p776 = scmp.eq.s32.totalorder %s775, 0
    %s778 = sadd.s32 %s777, 1
    %s779 = scalar_select %p776, %s777, %s778
    %p782 = pneg %p776
    %p783 = scmp.eq.s32.totalorder %s85, 1
    %p784 = por %p782, %p783
    %p785 = scmp.ne.s32.totalorder %s777, %s780
    %p786 = scmp.eq.s32.totalorder %s85, 0
    %p787 = por %p785, %p786
    %p788 = scmp.ne.s32.totalorder %s777, %s780
    %p789 = scmp.eq.s32.totalorder %s90, 1
    %p790 = por %p788, %p789
    %p791 = scmp.ne.s32.totalorder %s780, %s781
    %p792 = scmp.eq.s32.totalorder %s90, 0
    %p793 = por %p791, %p792
    %p794 = scmp.ne.s32.totalorder %s780, %s781
    %p795 = scmp.eq.s32.totalorder %s91, 1
    %p796 = por %p794, %p795
    %p798 = scmp.ne.s32.totalorder %s781, %s797
    %p799 = scmp.eq.s32.totalorder %s91, 0
    %p800 = por %p798, %p799
    %s801 = ssub.s32 %s85, %s92
    %p802 = scmp.eq.s32.totalorder %s801, 0
    %s804 = sadd.s32 %s803, 1
    %s805 = scalar_select %p802, %s803, %s804
    %p808 = pneg %p802
    %p809 = scmp.eq.s32.totalorder %s85, 1
    %p810 = por %p808, %p809
    %p811 = scmp.ne.s32.totalorder %s803, %s806
    %p812 = scmp.eq.s32.totalorder %s85, 0
    %p813 = por %p811, %p812
    %p814 = scmp.ne.s32.totalorder %s803, %s806
    %p815 = scmp.eq.s32.totalorder %s90, 1
    %p816 = por %p814, %p815
    %p817 = scmp.ne.s32.totalorder %s806, %s807
    %p818 = scmp.eq.s32.totalorder %s90, 0
    %p819 = por %p817, %p818
    %p820 = scmp.ne.s32.totalorder %s806, %s807
    %p821 = scmp.eq.s32.totalorder %s91, 1
    %p822 = por %p820, %p821
    %p824 = scmp.ne.s32.totalorder %s807, %s823
    %p825 = scmp.eq.s32.totalorder %s91, 0
    %p826 = por %p824, %p825
    %s827 = ssub.s32 %s85, %s92
    %p828 = scmp.eq.s32.totalorder %s827, 0
    %s830 = sadd.s32 %s829, 1
    %s831 = scalar_select %p828, %s829, %s830
    %p834 = pneg %p828
    %p835 = scmp.eq.s32.totalorder %s85, 1
    %p836 = por %p834, %p835
    %p837 = scmp.ne.s32.totalorder %s829, %s832
    %p838 = scmp.eq.s32.totalorder %s85, 0
    %p839 = por %p837, %p838
    %p840 = scmp.ne.s32.totalorder %s829, %s832
    %p841 = scmp.eq.s32.totalorder %s90, 1
    %p842 = por %p840, %p841
    %p843 = scmp.ne.s32.totalorder %s832, %s833
    %p844 = scmp.eq.s32.totalorder %s90, 0
    %p845 = por %p843, %p844
    %p846 = scmp.ne.s32.totalorder %s832, %s833
    %p847 = scmp.eq.s32.totalorder %s91, 1
    %p848 = por %p846, %p847
    %p850 = scmp.ne.s32.totalorder %s833, %s849
    %p851 = scmp.eq.s32.totalorder %s91, 0
    %p852 = por %p850, %p851
    %s853 = ssub.s32 %s85, %s92
    %p854 = scmp.eq.s32.totalorder %s853, 0
    %s856 = sadd.s32 %s855, 1
    %s857 = scalar_select %p854, %s855, %s856
    %p860 = pneg %p854
    %p861 = scmp.eq.s32.totalorder %s85, 1
    %p862 = por %p860, %p861
    %p863 = scmp.ne.s32.totalorder %s855, %s858
    %p864 = scmp.eq.s32.totalorder %s85, 0
    %p865 = por %p863, %p864
    %p866 = scmp.ne.s32.totalorder %s855, %s858
    %p867 = scmp.eq.s32.totalorder %s90, 1
    %p868 = por %p866, %p867
    %p869 = scmp.ne.s32.totalorder %s858, %s859
    %p870 = scmp.eq.s32.totalorder %s90, 0
    %p871 = por %p869, %p870
    %p872 = scmp.ne.s32.totalorder %s858, %s859
    %p873 = scmp.eq.s32.totalorder %s91, 1
    %p874 = por %p872, %p873
    %p876 = scmp.ne.s32.totalorder %s859, %s875
    %p877 = scmp.eq.s32.totalorder %s91, 0
    %p878 = por %p876, %p877
    %s879 = ssub.s32 %s85, %s92
    %p880 = scmp.eq.s32.totalorder %s879, 0
    %s882 = sadd.s32 %s881, 1
    %s883 = scalar_select %p880, %s881, %s882
    %p886 = pneg %p880
    %p887 = scmp.eq.s32.totalorder %s85, 1
    %p888 = por %p886, %p887
    %p889 = scmp.ne.s32.totalorder %s881, %s884
    %p890 = scmp.eq.s32.totalorder %s85, 0
    %p891 = por %p889, %p890
    %p892 = scmp.ne.s32.totalorder %s881, %s884
    %p893 = scmp.eq.s32.totalorder %s90, 1
    %p894 = por %p892, %p893
    %p895 = scmp.ne.s32.totalorder %s884, %s885
    %p896 = scmp.eq.s32.totalorder %s90, 0
    %p897 = por %p895, %p896
    %p898 = scmp.ne.s32.totalorder %s884, %s885
    %p899 = scmp.eq.s32.totalorder %s91, 1
    %p900 = por %p898, %p899
    %p902 = scmp.ne.s32.totalorder %s885, %s901
    %p903 = scmp.eq.s32.totalorder %s91, 0
    %p904 = por %p902, %p903
    %s905 = ssub.s32 %s85, %s92
    %p906 = scmp.eq.s32.totalorder %s905, 0
    %s908 = sadd.s32 %s907, 1
    %s909 = scalar_select %p906, %s907, %s908
    %p912 = pneg %p906
    %p913 = scmp.eq.s32.totalorder %s85, 1
    %p914 = por %p912, %p913
    %p915 = scmp.ne.s32.totalorder %s907, %s910
    %p916 = scmp.eq.s32.totalorder %s85, 0
    %p917 = por %p915, %p916
    %p918 = scmp.ne.s32.totalorder %s907, %s910
    %p919 = scmp.eq.s32.totalorder %s90, 1
    %p920 = por %p918, %p919
    %p921 = scmp.ne.s32.totalorder %s910, %s911
    %p922 = scmp.eq.s32.totalorder %s90, 0
    %p923 = por %p921, %p922
    %p924 = scmp.ne.s32.totalorder %s910, %s911
    %p925 = scmp.eq.s32.totalorder %s91, 1
    %p926 = por %p924, %p925
    %p928 = scmp.ne.s32.totalorder %s911, %s927
    %p929 = scmp.eq.s32.totalorder %s91, 0
    %p930 = por %p928, %p929
    %s931 = ssub.s32 %s85, %s92
    %p932 = scmp.eq.s32.totalorder %s931, 0
    %s934 = sadd.s32 %s933, 1
    %s935 = scalar_select %p932, %s933, %s934
    %p938 = pneg %p932
    %p939 = scmp.eq.s32.totalorder %s85, 1
    %p940 = por %p938, %p939
    %p941 = scmp.ne.s32.totalorder %s933, %s936
    %p942 = scmp.eq.s32.totalorder %s85, 0
    %p943 = por %p941, %p942
    %p944 = scmp.ne.s32.totalorder %s933, %s936
    %p945 = scmp.eq.s32.totalorder %s90, 1
    %p946 = por %p944, %p945
    %p947 = scmp.ne.s32.totalorder %s936, %s937
    %p948 = scmp.eq.s32.totalorder %s90, 0
    %p949 = por %p947, %p948
    %p950 = scmp.ne.s32.totalorder %s936, %s937
    %p951 = scmp.eq.s32.totalorder %s91, 1
    %p952 = por %p950, %p951
    %p954 = scmp.ne.s32.totalorder %s937, %s953
    %p955 = scmp.eq.s32.totalorder %s91, 0
    %p956 = por %p954, %p955
    %s957 = ssub.s32 %s85, %s92
    %p958 = scmp.eq.s32.totalorder %s957, 0
    %s960 = sadd.s32 %s959, 1
    %s961 = scalar_select %p958, %s959, %s960
    %p964 = pneg %p958
    %p965 = scmp.eq.s32.totalorder %s85, 1
    %p966 = por %p964, %p965
    %p967 = scmp.ne.s32.totalorder %s959, %s962
    %p968 = scmp.eq.s32.totalorder %s85, 0
    %p969 = por %p967, %p968
    %p970 = scmp.ne.s32.totalorder %s959, %s962
    %p971 = scmp.eq.s32.totalorder %s90, 1
    %p972 = por %p970, %p971
    %p973 = scmp.ne.s32.totalorder %s962, %s963
    %p974 = scmp.eq.s32.totalorder %s90, 0
    %p975 = por %p973, %p974
    %p976 = scmp.ne.s32.totalorder %s962, %s963
    %p977 = scmp.eq.s32.totalorder %s91, 1
    %p978 = por %p976, %p977
    %p980 = scmp.ne.s32.totalorder %s963, %s979
    %p981 = scmp.eq.s32.totalorder %s91, 0
    %p982 = por %p980, %p981
    %s983 = ssub.s32 %s85, %s92
    %p984 = scmp.eq.s32.totalorder %s983, 0
    %s986 = sadd.s32 %s985, 1
    %s987 = scalar_select %p984, %s985, %s986
    %p990 = pneg %p984
    %p991 = scmp.eq.s32.totalorder %s85, 1
    %p992 = por %p990, %p991
    %p993 = scmp.ne.s32.totalorder %s985, %s988
    %p994 = scmp.eq.s32.totalorder %s85, 0
    %p995 = por %p993, %p994
    %p996 = scmp.ne.s32.totalorder %s985, %s988
    %p997 = scmp.eq.s32.totalorder %s90, 1
    %p998 = por %p996, %p997
    %p999 = scmp.ne.s32.totalorder %s988, %s989
    %p1000 = scmp.eq.s32.totalorder %s90, 0
    %p1001 = por %p999, %p1000
    %p1002 = scmp.ne.s32.totalorder %s988, %s989
    %p1003 = scmp.eq.s32.totalorder %s91, 1
    %p1004 = por %p1002, %p1003
    %p1006 = scmp.ne.s32.totalorder %s989, %s1005
    %p1007 = scmp.eq.s32.totalorder %s91, 0
    %p1008 = por %p1006, %p1007
    %s1009 = ssub.s32 %s85, %s92
    %p1010 = scmp.eq.s32.totalorder %s1009, 0
    %s1012 = sadd.s32 %s1011, 1
    %s1013 = scalar_select %p1010, %s1011, %s1012
    %p1016 = pneg %p1010
    %p1017 = scmp.eq.s32.totalorder %s85, 1
    %p1018 = por %p1016, %p1017
    %p1019 = scmp.ne.s32.totalorder %s1011, %s1014
    %p1020 = scmp.eq.s32.totalorder %s85, 0
    %p1021 = por %p1019, %p1020
    %p1022 = scmp.ne.s32.totalorder %s1011, %s1014
    %p1023 = scmp.eq.s32.totalorder %s90, 1
    %p1024 = por %p1022, %p1023
    %p1025 = scmp.ne.s32.totalorder %s1014, %s1015
    %p1026 = scmp.eq.s32.totalorder %s90, 0
    %p1027 = por %p1025, %p1026
    %p1028 = scmp.ne.s32.totalorder %s1014, %s1015
    %p1029 = scmp.eq.s32.totalorder %s91, 1
    %p1030 = por %p1028, %p1029
    %p1032 = scmp.ne.s32.totalorder %s1015, %s1031
    %p1033 = scmp.eq.s32.totalorder %s91, 0
    %p1034 = por %p1032, %p1033
    %s1035 = ssub.s32 %s85, %s92
    %p1036 = scmp.eq.s32.totalorder %s1035, 0
    %s1038 = sadd.s32 %s1037, 1
    %s1039 = scalar_select %p1036, %s1037, %s1038
    %p1042 = pneg %p1036
    %p1043 = scmp.eq.s32.totalorder %s85, 1
    %p1044 = por %p1042, %p1043
    %p1045 = scmp.ne.s32.totalorder %s1037, %s1040
    %p1046 = scmp.eq.s32.totalorder %s85, 0
    %p1047 = por %p1045, %p1046
    %p1048 = scmp.ne.s32.totalorder %s1037, %s1040
    %p1049 = scmp.eq.s32.totalorder %s90, 1
    %p1050 = por %p1048, %p1049
    %p1051 = scmp.ne.s32.totalorder %s1040, %s1041
    %p1052 = scmp.eq.s32.totalorder %s90, 0
    %p1053 = por %p1051, %p1052
    %p1054 = scmp.ne.s32.totalorder %s1040, %s1041
    %p1055 = scmp.eq.s32.totalorder %s91, 1
    %p1056 = por %p1054, %p1055
    %p1058 = scmp.ne.s32.totalorder %s1041, %s1057
    %p1059 = scmp.eq.s32.totalorder %s91, 0
    %p1060 = por %p1058, %p1059
    %s1061 = ssub.s32 %s85, %s92
    %p1062 = scmp.eq.s32.totalorder %s1061, 0
    %s1064 = sadd.s32 %s1063, 1
    %s1065 = scalar_select %p1062, %s1063, %s1064
    %p1068 = pneg %p1062
    %p1069 = scmp.eq.s32.totalorder %s85, 1
    %p1070 = por %p1068, %p1069
    %p1071 = scmp.ne.s32.totalorder %s1063, %s1066
    %p1072 = scmp.eq.s32.totalorder %s85, 0
    %p1073 = por %p1071, %p1072
    %p1074 = scmp.ne.s32.totalorder %s1063, %s1066
    %p1075 = scmp.eq.s32.totalorder %s90, 1
    %p1076 = por %p1074, %p1075
    %p1077 = scmp.ne.s32.totalorder %s1066, %s1067
    %p1078 = scmp.eq.s32.totalorder %s90, 0
    %p1079 = por %p1077, %p1078
    %p1080 = scmp.ne.s32.totalorder %s1066, %s1067
    %p1081 = scmp.eq.s32.totalorder %s91, 1
    %p1082 = por %p1080, %p1081
    %p1084 = scmp.ne.s32.totalorder %s1067, %s1083
    %p1085 = scmp.eq.s32.totalorder %s91, 0
    %p1086 = por %p1084, %p1085
    %s1087 = ssub.s32 %s85, %s92
    %p1088 = scmp.eq.s32.totalorder %s1087, 0
    %s1090 = sadd.s32 %s1089, 1
    %s1091 = scalar_select %p1088, %s1089, %s1090
    %p1094 = pneg %p1088
    %p1095 = scmp.eq.s32.totalorder %s85, 1
    %p1096 = por %p1094, %p1095
    %p1097 = scmp.ne.s32.totalorder %s1089, %s1092
    %p1098 = scmp.eq.s32.totalorder %s85, 0
    %p1099 = por %p1097, %p1098
    %p1100 = scmp.ne.s32.totalorder %s1089, %s1092
    %p1101 = scmp.eq.s32.totalorder %s90, 1
    %p1102 = por %p1100, %p1101
    %p1103 = scmp.ne.s32.totalorder %s1092, %s1093
    %p1104 = scmp.eq.s32.totalorder %s90, 0
    %p1105 = por %p1103, %p1104
    %p1106 = scmp.ne.s32.totalorder %s1092, %s1093
    %p1107 = scmp.eq.s32.totalorder %s91, 1
    %p1108 = por %p1106, %p1107
    %p1110 = scmp.ne.s32.totalorder %s1093, %s1109
    %p1111 = scmp.eq.s32.totalorder %s91, 0
    %p1112 = por %p1110, %p1111
    %p1113 = scmp.le.s32.totalorder 1, %s85
    %p1114 = scmp.lt.s32.totalorder %s85, 3
    %p1115 = pnand %p1113, %p1114
    %p1116 = pneg %p1115
    // Predicated region
    $region9: #{pi_stgcn_any_order_forward.2} parent=5 // pred_check
      _
    $region10: #{pi_stgcn_any_order_forward.2} parent=5 // pred_check_branch
      %1118 = sbr.rel (%p1115) target = $region12
    $region11: #{pi_stgcn_any_order_forward.2} parent=5 // pred_region
      %s1119 = ssub.s32 %s85, 1
      // Predicated region
      $region13: #{pi_stgcn_any_order_forward.2} parent=11 // pred_check
        %p1120 = pneg %p132
      $region14: #{pi_stgcn_any_order_forward.2} parent=11 // pred_check_branch
        %1122 = sbr.rel (%p1120) target = $region16
      $region15: #{pi_stgcn_any_order_forward.2} parent=11 // pred_region
        _
      $region16: #{pi_stgcn_any_order_forward.2} parent=11 // pred_fallthru
        _
      // Predicated region
      $region17: #{pi_stgcn_any_order_forward.2} parent=11 // pred_check
        %p1123 = pneg %p153
      $region18: #{pi_stgcn_any_order_forward.2} parent=11 // pred_check_branch
        %1125 = sbr.rel (%p1123) target = $region20
      $region19: #{pi_stgcn_any_order_forward.2} parent=11 // pred_region
        _
      $region20: #{pi_stgcn_any_order_forward.2} parent=11 // pred_fallthru
        _
      // Predicated region
      $region21: #{pi_stgcn_any_order_forward.2} parent=11 // pred_check
        %p1126 = pneg %p174
      $region22: #{pi_stgcn_any_order_forward.2} parent=11 // pred_check_branch
        %1128 = sbr.rel (%p1126) target = $region24
      $region23: #{pi_stgcn_any_order_forward.2} parent=11 // pred_region
        _
      $region24: #{pi_stgcn_any_order_forward.2} parent=11 // pred_fallthru
        _
      // Predicated region
      $region25: #{pi_stgcn_any_order_forward.2} parent=11 // pred_check
        %p1129 = pneg %p195
      $region26: #{pi_stgcn_any_order_forward.2} parent=11 // pred_check_branch
        %1131 = sbr.rel (%p1129) target = $region28
      $region27: #{pi_stgcn_any_order_forward.2} parent=11 // pred_region
        _
      $region28: #{pi_stgcn_any_order_forward.2} parent=11 // pred_fallthru
        _
    $region12: #{pi_stgcn_any_order_forward.2} parent=5 // pred_fallthru
      _
    %p1132 = scmp.lt.s32.totalorder %s85, 2
    // Predicated region
    $region29: #{pi_stgcn_any_order_forward.2} parent=5 // pred_check
      %p1133 = pneg %p1132
    $region30: #{pi_stgcn_any_order_forward.2} parent=5 // pred_check_branch
      %1135 = sbr.rel (%p1133) target = $region32
    $region31: #{pi_stgcn_any_order_forward.2} parent=5 // pred_region
      // Predicated region
      $region33: #{pi_stgcn_any_order_forward.2} parent=31 // pred_check
        %p1136 = pneg %p105
      $region34: #{pi_stgcn_any_order_forward.2} parent=31 // pred_check_branch
        %1138 = sbr.rel (%p1136) target = $region36
      $region35: #{pi_stgcn_any_order_forward.2} parent=31 // pred_region
        %p1139 = scmp.lt.s32.totalorder %s85, 1
        %s1140 = scalar_select %p1139, %s85, 1
        %s1141 = smul.addr %s1140, 8
        %s1142 = smul.addr %s1141, 8
        %s1143 = scalar_lea.vmem %s1, %s1142
      $region36: #{pi_stgcn_any_order_forward.2} parent=31 // pred_fallthru
        _
      // Predicated region
      $region37: #{pi_stgcn_any_order_forward.2} parent=31 // pred_check
        %p1144 = pneg %p215
      $region38: #{pi_stgcn_any_order_forward.2} parent=31 // pred_check_branch
        %1146 = sbr.rel (%p1144) target = $region40
      $region39: #{pi_stgcn_any_order_forward.2} parent=31 // pred_region
        %p1147 = scmp.lt.s32.totalorder %s85, 1
        %s1148 = scalar_select %p1147, %s85, 1
        %s1149 = smul.addr %s1148, 2
        %s1150 = scalar_lea.vmem %s11, %s1149
      $region40: #{pi_stgcn_any_order_forward.2} parent=31 // pred_fallthru
        _
      // Predicated region
      $region41: #{pi_stgcn_any_order_forward.2} parent=31 // pred_check
        %p1151 = pneg %p241
      $region42: #{pi_stgcn_any_order_forward.2} parent=31 // pred_check_branch
        %1153 = sbr.rel (%p1151) target = $region44
      $region43: #{pi_stgcn_any_order_forward.2} parent=31 // pred_region
        %p1154 = scmp.lt.s32.totalorder %s85, 1
        %s1155 = scalar_select %p1154, %s85, 1
        %s1156 = scalar_lea.vmem %s13, %s1155
      $region44: #{pi_stgcn_any_order_forward.2} parent=31 // pred_fallthru
        _
      // Predicated region
      $region45: #{pi_stgcn_any_order_forward.2} parent=31 // pred_check
        %p1157 = pneg %p267
      $region46: #{pi_stgcn_any_order_forward.2} parent=31 // pred_check_branch
        %1159 = sbr.rel (%p1157) target = $region48
      $region47: #{pi_stgcn_any_order_forward.2} parent=31 // pred_region
        %p1160 = scmp.lt.s32.totalorder %s85, 1
        %s1161 = scalar_select %p1160, %s85, 1
        %s1162 = smul.addr %s1161, 4
        %s1163 = smul.addr %s1162, 8
        %s1164 = scalar_lea.vmem %s15, %s1163
      $region48: #{pi_stgcn_any_order_forward.2} parent=31 // pred_fallthru
        _
      // Predicated region
      $region49: #{pi_stgcn_any_order_forward.2} parent=31 // pred_check
        %p1165 = pneg %p293
      $region50: #{pi_stgcn_any_order_forward.2} parent=31 // pred_check_branch
        %1167 = sbr.rel (%p1165) target = $region52
      $region51: #{pi_stgcn_any_order_forward.2} parent=31 // pred_region
        %p1168 = scmp.lt.s32.totalorder %s85, 1
        %s1169 = scalar_select %p1168, %s85, 1
        %s1170 = scalar_lea.vmem %s17, %s1169
      $region52: #{pi_stgcn_any_order_forward.2} parent=31 // pred_fallthru
        _
      // Predicated region
      $region53: #{pi_stgcn_any_order_forward.2} parent=31 // pred_check
        %p1171 = pneg %p319
      $region54: #{pi_stgcn_any_order_forward.2} parent=31 // pred_check_branch
        %1173 = sbr.rel (%p1171) target = $region56
      $region55: #{pi_stgcn_any_order_forward.2} parent=31 // pred_region
        %p1174 = scmp.lt.s32.totalorder %s85, 1
        %s1175 = scalar_select %p1174, %s85, 1
        %s1176 = smul.addr %s1175, 4
        %s1177 = smul.addr %s1176, 8
        %s1178 = scalar_lea.vmem %s19, %s1177
      $region56: #{pi_stgcn_any_order_forward.2} parent=31 // pred_fallthru
        _
      // Predicated region
      $region57: #{pi_stgcn_any_order_forward.2} parent=31 // pred_check
        %p1179 = pneg %p345
      $region58: #{pi_stgcn_any_order_forward.2} parent=31 // pred_check_branch
        %1181 = sbr.rel (%p1179) target = $region60
      $region59: #{pi_stgcn_any_order_forward.2} parent=31 // pred_region
        %p1182 = scmp.lt.s32.totalorder %s85, 1
        %s1183 = scalar_select %p1182, %s85, 1
        %s1184 = scalar_lea.vmem %s21, %s1183
      $region60: #{pi_stgcn_any_order_forward.2} parent=31 // pred_fallthru
        _
      // Predicated region
      $region61: #{pi_stgcn_any_order_forward.2} parent=31 // pred_check
        %p1185 = pneg %p371
      $region62: #{pi_stgcn_any_order_forward.2} parent=31 // pred_check_branch
        %1187 = sbr.rel (%p1185) target = $region64
      $region63: #{pi_stgcn_any_order_forward.2} parent=31 // pred_region
        %p1188 = scmp.lt.s32.totalorder %s85, 1
        %s1189 = scalar_select %p1188, %s85, 1
        %s1190 = scalar_lea.vmem %s23, %s1189
      $region64: #{pi_stgcn_any_order_forward.2} parent=31 // pred_fallthru
        _
      // Predicated region
      $region65: #{pi_stgcn_any_order_forward.2} parent=31 // pred_check
        %p1191 = pneg %p397
      $region66: #{pi_stgcn_any_order_forward.2} parent=31 // pred_check_branch
        %1193 = sbr.rel (%p1191) target = $region68
      $region67: #{pi_stgcn_any_order_forward.2} parent=31 // pred_region
        %p1194 = scmp.lt.s32.totalorder %s85, 1
        %s1195 = scalar_select %p1194, %s85, 1
        %s1196 = scalar_lea.vmem %s25, %s1195
      $region68: #{pi_stgcn_any_order_forward.2} parent=31 // pred_fallthru
        _
      // Predicated region
      $region69: #{pi_stgcn_any_order_forward.2} parent=31 // pred_check
        %p1197 = pneg %p423
      $region70: #{pi_stgcn_any_order_forward.2} parent=31 // pred_check_branch
        %1199 = sbr.rel (%p1197) target = $region72
      $region71: #{pi_stgcn_any_order_forward.2} parent=31 // pred_region
        %p1200 = scmp.lt.s32.totalorder %s85, 1
        %s1201 = scalar_select %p1200, %s85, 1
        %s1202 = smul.addr %s1201, 4
        %s1203 = smul.addr %s1202, 8
        %s1204 = scalar_lea.vmem %s27, %s1203
      $region72: #{pi_stgcn_any_order_forward.2} parent=31 // pred_fallthru
        _
      // Predicated region
      $region73: #{pi_stgcn_any_order_forward.2} parent=31 // pred_check
        %p1205 = pneg %p449
      $region74: #{pi_stgcn_any_order_forward.2} parent=31 // pred_check_branch
        %1207 = sbr.rel (%p1205) target = $region76
      $region75: #{pi_stgcn_any_order_forward.2} parent=31 // pred_region
        %p1208 = scmp.lt.s32.totalorder %s85, 1
        %s1209 = scalar_select %p1208, %s85, 1
        %s1210 = scalar_lea.vmem %s29, %s1209
      $region76: #{pi_stgcn_any_order_forward.2} parent=31 // pred_fallthru
        _
      // Predicated region
      $region77: #{pi_stgcn_any_order_forward.2} parent=31 // pred_check
        %p1211 = pneg %p475
      $region78: #{pi_stgcn_any_order_forward.2} parent=31 // pred_check_branch
        %1213 = sbr.rel (%p1211) target = $region80
      $region79: #{pi_stgcn_any_order_forward.2} parent=31 // pred_region
        %p1214 = scmp.lt.s32.totalorder %s85, 1
        %s1215 = scalar_select %p1214, %s85, 1
        %s1216 = smul.addr %s1215, 8
        %s1217 = smul.addr %s1216, 8
        %s1218 = scalar_lea.vmem %s31, %s1217
      $region80: #{pi_stgcn_any_order_forward.2} parent=31 // pred_fallthru
        _
      // Predicated region
      $region81: #{pi_stgcn_any_order_forward.2} parent=31 // pred_check
        %p1219 = pneg %p501
      $region82: #{pi_stgcn_any_order_forward.2} parent=31 // pred_check_branch
        %1221 = sbr.rel (%p1219) target = $region84
      $region83: #{pi_stgcn_any_order_forward.2} parent=31 // pred_region
        %p1222 = scmp.lt.s32.totalorder %s85, 1
        %s1223 = scalar_select %p1222, %s85, 1
        %s1224 = scalar_lea.vmem %s33, %s1223
      $region84: #{pi_stgcn_any_order_forward.2} parent=31 // pred_fallthru
        _
      // Predicated region
      $region85: #{pi_stgcn_any_order_forward.2} parent=31 // pred_check
        %p1225 = pneg %p527
      $region86: #{pi_stgcn_any_order_forward.2} parent=31 // pred_check_branch
        %1227 = sbr.rel (%p1225) target = $region88
      $region87: #{pi_stgcn_any_order_forward.2} parent=31 // pred_region
        %p1228 = scmp.lt.s32.totalorder %s85, 1
        %s1229 = scalar_select %p1228, %s85, 1
        %s1230 = scalar_lea.vmem %s35, %s1229
      $region88: #{pi_stgcn_any_order_forward.2} parent=31 // pred_fallthru
        _
      // Predicated region
      $region89: #{pi_stgcn_any_order_forward.2} parent=31 // pred_check
        %p1231 = pneg %p553
      $region90: #{pi_stgcn_any_order_forward.2} parent=31 // pred_check_branch
        %1233 = sbr.rel (%p1231) target = $region92
      $region91: #{pi_stgcn_any_order_forward.2} parent=31 // pred_region
        %p1234 = scmp.lt.s32.totalorder %s85, 1
        %s1235 = scalar_select %p1234, %s85, 1
        %s1236 = scalar_lea.vmem %s37, %s1235
      $region92: #{pi_stgcn_any_order_forward.2} parent=31 // pred_fallthru
        _
      // Predicated region
      $region93: #{pi_stgcn_any_order_forward.2} parent=31 // pred_check
        %p1237 = pneg %p579
      $region94: #{pi_stgcn_any_order_forward.2} parent=31 // pred_check_branch
        %1239 = sbr.rel (%p1237) target = $region96
      $region95: #{pi_stgcn_any_order_forward.2} parent=31 // pred_region
        %p1240 = scmp.lt.s32.totalorder %s85, 1
        %s1241 = scalar_select %p1240, %s85, 1
        %s1242 = scalar_lea.vmem %s39, %s1241
      $region96: #{pi_stgcn_any_order_forward.2} parent=31 // pred_fallthru
        _
      // Predicated region
      $region97: #{pi_stgcn_any_order_forward.2} parent=31 // pred_check
        %p1243 = pneg %p605
      $region98: #{pi_stgcn_any_order_forward.2} parent=31 // pred_check_branch
        %1245 = sbr.rel (%p1243) target = $region100
      $region99: #{pi_stgcn_any_order_forward.2} parent=31 // pred_region
        %p1246 = scmp.lt.s32.totalorder %s85, 1
        %s1247 = scalar_select %p1246, %s85, 1
        %s1248 = smul.addr %s1247, 4
        %s1249 = smul.addr %s1248, 8
        %s1250 = scalar_lea.vmem %s41, %s1249
      $region100: #{pi_stgcn_any_order_forward.2} parent=31 // pred_fallthru
        _
      // Predicated region
      $region101: #{pi_stgcn_any_order_forward.2} parent=31 // pred_check
        %p1251 = pneg %p631
      $region102: #{pi_stgcn_any_order_forward.2} parent=31 // pred_check_branch
        %1253 = sbr.rel (%p1251) target = $region104
      $region103: #{pi_stgcn_any_order_forward.2} parent=31 // pred_region
        %p1254 = scmp.lt.s32.totalorder %s85, 1
        %s1255 = scalar_select %p1254, %s85, 1
        %s1256 = scalar_lea.vmem %s43, %s1255
      $region104: #{pi_stgcn_any_order_forward.2} parent=31 // pred_fallthru
        _
      // Predicated region
      $region105: #{pi_stgcn_any_order_forward.2} parent=31 // pred_check
        %p1257 = pneg %p657
      $region106: #{pi_stgcn_any_order_forward.2} parent=31 // pred_check_branch
        %1259 = sbr.rel (%p1257) target = $region108
      $region107: #{pi_stgcn_any_order_forward.2} parent=31 // pred_region
        %p1260 = scmp.lt.s32.totalorder %s85, 1
        %s1261 = scalar_select %p1260, %s85, 1
        %s1262 = smul.addr %s1261, 4
        %s1263 = smul.addr %s1262, 8
        %s1264 = scalar_lea.vmem %s45, %s1263
      $region108: #{pi_stgcn_any_order_forward.2} parent=31 // pred_fallthru
        _
      // Predicated region
      $region109: #{pi_stgcn_any_order_forward.2} parent=31 // pred_check
        %p1265 = pneg %p683
      $region110: #{pi_stgcn_any_order_forward.2} parent=31 // pred_check_branch
        %1267 = sbr.rel (%p1265) target = $region112
      $region111: #{pi_stgcn_any_order_forward.2} parent=31 // pred_region
        %p1268 = scmp.lt.s32.totalorder %s85, 1
        %s1269 = scalar_select %p1268, %s85, 1
        %s1270 = scalar_lea.vmem %s47, %s1269
      $region112: #{pi_stgcn_any_order_forward.2} parent=31 // pred_fallthru
        _
      // Predicated region
      $region113: #{pi_stgcn_any_order_forward.2} parent=31 // pred_check
        %p1271 = pneg %p709
      $region114: #{pi_stgcn_any_order_forward.2} parent=31 // pred_check_branch
        %1273 = sbr.rel (%p1271) target = $region116
      $region115: #{pi_stgcn_any_order_forward.2} parent=31 // pred_region
        %p1274 = scmp.lt.s32.totalorder %s85, 1
        %s1275 = scalar_select %p1274, %s85, 1
        %s1276 = scalar_lea.vmem %s49, %s1275
      $region116: #{pi_stgcn_any_order_forward.2} parent=31 // pred_fallthru
        _
      // Predicated region
      $region117: #{pi_stgcn_any_order_forward.2} parent=31 // pred_check
        %p1277 = pneg %p735
      $region118: #{pi_stgcn_any_order_forward.2} parent=31 // pred_check_branch
        %1279 = sbr.rel (%p1277) target = $region120
      $region119: #{pi_stgcn_any_order_forward.2} parent=31 // pred_region
        %p1280 = scmp.lt.s32.totalorder %s85, 1
        %s1281 = scalar_select %p1280, %s85, 1
        %s1282 = scalar_lea.vmem %s51, %s1281
      $region120: #{pi_stgcn_any_order_forward.2} parent=31 // pred_fallthru
        _
      // Predicated region
      $region121: #{pi_stgcn_any_order_forward.2} parent=31 // pred_check
        %p1283 = pneg %p761
      $region122: #{pi_stgcn_any_order_forward.2} parent=31 // pred_check_branch
        %1285 = sbr.rel (%p1283) target = $region124
      $region123: #{pi_stgcn_any_order_forward.2} parent=31 // pred_region
        %p1286 = scmp.lt.s32.totalorder %s85, 1
        %s1287 = scalar_select %p1286, %s85, 1
        %s1288 = scalar_lea.vmem %s53, %s1287
      $region124: #{pi_stgcn_any_order_forward.2} parent=31 // pred_fallthru
        _
      // Predicated region
      $region125: #{pi_stgcn_any_order_forward.2} parent=31 // pred_check
        %p1289 = pneg %p787
      $region126: #{pi_stgcn_any_order_forward.2} parent=31 // pred_check_branch
        %1291 = sbr.rel (%p1289) target = $region128
      $region127: #{pi_stgcn_any_order_forward.2} parent=31 // pred_region
        %p1292 = scmp.lt.s32.totalorder %s85, 1
        %s1293 = scalar_select %p1292, %s85, 1
        %s1294 = scalar_lea.vmem %s55, %s1293
      $region128: #{pi_stgcn_any_order_forward.2} parent=31 // pred_fallthru
        _
      // Predicated region
      $region129: #{pi_stgcn_any_order_forward.2} parent=31 // pred_check
        %p1295 = pneg %p813
      $region130: #{pi_stgcn_any_order_forward.2} parent=31 // pred_check_branch
        %1297 = sbr.rel (%p1295) target = $region132
      $region131: #{pi_stgcn_any_order_forward.2} parent=31 // pred_region
        %p1298 = scmp.lt.s32.totalorder %s85, 1
        %s1299 = scalar_select %p1298, %s85, 1
        %s1300 = scalar_lea.vmem %s57, %s1299
      $region132: #{pi_stgcn_any_order_forward.2} parent=31 // pred_fallthru
        _
      // Predicated region
      $region133: #{pi_stgcn_any_order_forward.2} parent=31 // pred_check
        %p1301 = pneg %p839
      $region134: #{pi_stgcn_any_order_forward.2} parent=31 // pred_check_branch
        %1303 = sbr.rel (%p1301) target = $region136
      $region135: #{pi_stgcn_any_order_forward.2} parent=31 // pred_region
        %p1304 = scmp.lt.s32.totalorder %s85, 1
        %s1305 = scalar_select %p1304, %s85, 1
        %s1306 = smul.addr %s1305, 3
        %s1307 = smul.addr %s1306, 8
        %s1308 = scalar_lea.vmem %s59, %s1307
      $region136: #{pi_stgcn_any_order_forward.2} parent=31 // pred_fallthru
        _
      // Predicated region
      $region137: #{pi_stgcn_any_order_forward.2} parent=31 // pred_check
        %p1309 = pneg %p865
      $region138: #{pi_stgcn_any_order_forward.2} parent=31 // pred_check_branch
        %1311 = sbr.rel (%p1309) target = $region140
      $region139: #{pi_stgcn_any_order_forward.2} parent=31 // pred_region
        %p1312 = scmp.lt.s32.totalorder %s85, 1
        %s1313 = scalar_select %p1312, %s85, 1
        %s1314 = scalar_lea.vmem %s61, %s1313
      $region140: #{pi_stgcn_any_order_forward.2} parent=31 // pred_fallthru
        _
      // Predicated region
      $region141: #{pi_stgcn_any_order_forward.2} parent=31 // pred_check
        %p1315 = pneg %p891
      $region142: #{pi_stgcn_any_order_forward.2} parent=31 // pred_check_branch
        %1317 = sbr.rel (%p1315) target = $region144
      $region143: #{pi_stgcn_any_order_forward.2} parent=31 // pred_region
        %p1318 = scmp.lt.s32.totalorder %s85, 1
        %s1319 = scalar_select %p1318, %s85, 1
        %s1320 = scalar_lea.vmem %s63, %s1319
      $region144: #{pi_stgcn_any_order_forward.2} parent=31 // pred_fallthru
        _
      // Predicated region
      $region145: #{pi_stgcn_any_order_forward.2} parent=31 // pred_check
        %p1321 = pneg %p917
      $region146: #{pi_stgcn_any_order_forward.2} parent=31 // pred_check_branch
        %1323 = sbr.rel (%p1321) target = $region148
      $region147: #{pi_stgcn_any_order_forward.2} parent=31 // pred_region
        %p1324 = scmp.lt.s32.totalorder %s85, 1
        %s1325 = scalar_select %p1324, %s85, 1
        %s1326 = scalar_lea.vmem %s65, %s1325
      $region148: #{pi_stgcn_any_order_forward.2} parent=31 // pred_fallthru
        _
      // Predicated region
      $region149: #{pi_stgcn_any_order_forward.2} parent=31 // pred_check
        %p1327 = pneg %p943
      $region150: #{pi_stgcn_any_order_forward.2} parent=31 // pred_check_branch
        %1329 = sbr.rel (%p1327) target = $region152
      $region151: #{pi_stgcn_any_order_forward.2} parent=31 // pred_region
        %p1330 = scmp.lt.s32.totalorder %s85, 1
        %s1331 = scalar_select %p1330, %s85, 1
        %s1332 = scalar_lea.vmem %s67, %s1331
      $region152: #{pi_stgcn_any_order_forward.2} parent=31 // pred_fallthru
        _
      // Predicated region
      $region153: #{pi_stgcn_any_order_forward.2} parent=31 // pred_check
        %p1333 = pneg %p969
      $region154: #{pi_stgcn_any_order_forward.2} parent=31 // pred_check_branch
        %1335 = sbr.rel (%p1333) target = $region156
      $region155: #{pi_stgcn_any_order_forward.2} parent=31 // pred_region
        %p1336 = scmp.lt.s32.totalorder %s85, 1
        %s1337 = scalar_select %p1336, %s85, 1
        %s1338 = smul.addr %s1337, 6
        %s1339 = smul.addr %s1338, 8
        %s1340 = scalar_lea.vmem %s69, %s1339
      $region156: #{pi_stgcn_any_order_forward.2} parent=31 // pred_fallthru
        _
      // Predicated region
      $region157: #{pi_stgcn_any_order_forward.2} parent=31 // pred_check
        %p1341 = pneg %p995
      $region158: #{pi_stgcn_any_order_forward.2} parent=31 // pred_check_branch
        %1343 = sbr.rel (%p1341) target = $region160
      $region159: #{pi_stgcn_any_order_forward.2} parent=31 // pred_region
        %p1344 = scmp.lt.s32.totalorder %s85, 1
        %s1345 = scalar_select %p1344, %s85, 1
        %s1346 = smul.addr %s1345, 2
        %s1347 = smul.addr %s1346, 8
        %s1348 = scalar_lea.vmem %s71, %s1347
      $region160: #{pi_stgcn_any_order_forward.2} parent=31 // pred_fallthru
        _
      // Predicated region
      $region161: #{pi_stgcn_any_order_forward.2} parent=31 // pred_check
        %p1349 = pneg %p1021
      $region162: #{pi_stgcn_any_order_forward.2} parent=31 // pred_check_branch
        %1351 = sbr.rel (%p1349) target = $region164
      $region163: #{pi_stgcn_any_order_forward.2} parent=31 // pred_region
        %p1352 = scmp.lt.s32.totalorder %s85, 1
        %s1353 = scalar_select %p1352, %s85, 1
        %s1354 = scalar_lea.vmem %s73, %s1353
      $region164: #{pi_stgcn_any_order_forward.2} parent=31 // pred_fallthru
        _
      // Predicated region
      $region165: #{pi_stgcn_any_order_forward.2} parent=31 // pred_check
        %p1355 = pneg %p1047
      $region166: #{pi_stgcn_any_order_forward.2} parent=31 // pred_check_branch
        %1357 = sbr.rel (%p1355) target = $region168
      $region167: #{pi_stgcn_any_order_forward.2} parent=31 // pred_region
        %p1358 = scmp.lt.s32.totalorder %s85, 1
        %s1359 = scalar_select %p1358, %s85, 1
        %s1360 = smul.addr %s1359, 18
        %s1361 = smul.addr %s1360, 8
        %s1362 = scalar_lea.vmem %s75, %s1361
      $region168: #{pi_stgcn_any_order_forward.2} parent=31 // pred_fallthru
        _
      // Predicated region
      $region169: #{pi_stgcn_any_order_forward.2} parent=31 // pred_check
        %p1363 = pneg %p1073
      $region170: #{pi_stgcn_any_order_forward.2} parent=31 // pred_check_branch
        %1365 = sbr.rel (%p1363) target = $region172
      $region171: #{pi_stgcn_any_order_forward.2} parent=31 // pred_region
        %p1366 = scmp.lt.s32.totalorder %s85, 1
        %s1367 = scalar_select %p1366, %s85, 1
        %s1368 = smul.addr %s1367, 2
        %s1369 = smul.addr %s1368, 8
        %s1370 = scalar_lea.vmem %s77, %s1369
      $region172: #{pi_stgcn_any_order_forward.2} parent=31 // pred_fallthru
        _
    $region32: #{pi_stgcn_any_order_forward.2} parent=5 // pred_fallthru
      _
    %p1371 = scmp.le.s32.totalorder 1, %s85
    %p1372 = scmp.lt.s32.totalorder %s85, 3
    %p1373 = pnand %p1371, %p1372
    %p1374 = pneg %p1373
    // Predicated region
    $region173: #{pi_stgcn_any_order_forward.2} parent=5 // pred_check
      _
    $region174: #{pi_stgcn_any_order_forward.2} parent=5 // pred_check_branch
      %1376 = sbr.rel (%p1373) target = $region176
    $region175: #{pi_stgcn_any_order_forward.2} parent=5 // pred_region
      %s1377 = ssub.s32 %s85, 1
      %p1378 = scmp.lt.s32.totalorder %s90, 1
      %s1379 = scalar_select %p1378, %s90, 1
      %s1380 = smul.addr %s1379, 8
      %s1381 = smul.addr %s1380, 8
      %s1382 = scalar_lea.vmem %s1, %s1381
      %p1383 = pneg %p111
      %p1384 = pneg %p108
      %p1385 = pneg %p132
      %p1386 = pneg %p129
      %p1387 = pneg %p153
      %p1388 = pneg %p150
      %p1389 = pneg %p174
      %p1390 = pneg %p171
      %p1391 = pneg %p195
      %p1392 = pneg %p192
      %p1393 = scmp.lt.s32.totalorder %s90, 1
      %s1394 = scalar_select %p1393, %s90, 1
      %s1395 = smul.addr %s1394, 2
      %s1396 = scalar_lea.vmem %s11, %s1395
      %p1397 = pneg %p221
      %p1398 = pneg %p218
      %p1399 = scmp.lt.s32.totalorder %s90, 1
      %s1400 = scalar_select %p1399, %s90, 1
      %s1401 = scalar_lea.vmem %s13, %s1400
      %p1402 = pneg %p247
      %p1403 = pneg %p244
      %p1404 = scmp.lt.s32.totalorder %s90, 1
      %s1405 = scalar_select %p1404, %s90, 1
      %s1406 = smul.addr %s1405, 4
      %s1407 = smul.addr %s1406, 8
      %s1408 = scalar_lea.vmem %s15, %s1407
      %p1409 = pneg %p273
      %p1410 = pneg %p270
      %p1411 = scmp.lt.s32.totalorder %s90, 1
      %s1412 = scalar_select %p1411, %s90, 1
      %s1413 = scalar_lea.vmem %s17, %s1412
      %p1414 = pneg %p299
      %p1415 = pneg %p296
      %p1416 = scmp.lt.s32.totalorder %s90, 1
      %s1417 = scalar_select %p1416, %s90, 1
      %s1418 = smul.addr %s1417, 4
      %s1419 = smul.addr %s1418, 8
      %s1420 = scalar_lea.vmem %s19, %s1419
      %p1421 = pneg %p325
      %p1422 = pneg %p322
      %p1423 = scmp.lt.s32.totalorder %s90, 1
      %s1424 = scalar_select %p1423, %s90, 1
      %s1425 = scalar_lea.vmem %s21, %s1424
      %p1426 = pneg %p351
      %p1427 = pneg %p348
      %p1428 = scmp.lt.s32.totalorder %s90, 1
      %s1429 = scalar_select %p1428, %s90, 1
      %s1430 = scalar_lea.vmem %s23, %s1429
      %p1431 = pneg %p377
      %p1432 = pneg %p374
      %p1433 = scmp.lt.s32.totalorder %s90, 1
      %s1434 = scalar_select %p1433, %s90, 1
      %s1435 = scalar_lea.vmem %s25, %s1434
      %p1436 = pneg %p403
      %p1437 = pneg %p400
      %p1438 = scmp.lt.s32.totalorder %s90, 1
      %s1439 = scalar_select %p1438, %s90, 1
      %s1440 = smul.addr %s1439, 4
      %s1441 = smul.addr %s1440, 8
      %s1442 = scalar_lea.vmem %s27, %s1441
      %p1443 = pneg %p429
      %p1444 = pneg %p426
      %p1445 = scmp.lt.s32.totalorder %s90, 1
      %s1446 = scalar_select %p1445, %s90, 1
      %s1447 = scalar_lea.vmem %s29, %s1446
      %p1448 = pneg %p455
      %p1449 = pneg %p452
      %p1450 = scmp.lt.s32.totalorder %s90, 1
      %s1451 = scalar_select %p1450, %s90, 1
      %s1452 = smul.addr %s1451, 8
      %s1453 = smul.addr %s1452, 8
      %s1454 = scalar_lea.vmem %s31, %s1453
      %p1455 = pneg %p481
      %p1456 = pneg %p478
      %p1457 = scmp.lt.s32.totalorder %s90, 1
      %s1458 = scalar_select %p1457, %s90, 1
      %s1459 = scalar_lea.vmem %s33, %s1458
      %p1460 = pneg %p507
      %p1461 = pneg %p504
      %p1462 = scmp.lt.s32.totalorder %s90, 1
      %s1463 = scalar_select %p1462, %s90, 1
      %s1464 = scalar_lea.vmem %s35, %s1463
      %p1465 = pneg %p533
      %p1466 = pneg %p530
      %p1467 = scmp.lt.s32.totalorder %s90, 1
      %s1468 = scalar_select %p1467, %s90, 1
      %s1469 = scalar_lea.vmem %s37, %s1468
      %p1470 = pneg %p559
      %p1471 = pneg %p556
      %p1472 = scmp.lt.s32.totalorder %s90, 1
      %s1473 = scalar_select %p1472, %s90, 1
      %s1474 = scalar_lea.vmem %s39, %s1473
      %p1475 = pneg %p585
      %p1476 = pneg %p582
      %p1477 = scmp.lt.s32.totalorder %s90, 1
      %s1478 = scalar_select %p1477, %s90, 1
      %s1479 = smul.addr %s1478, 4
      %s1480 = smul.addr %s1479, 8
      %s1481 = scalar_lea.vmem %s41, %s1480
      %p1482 = pneg %p611
      %p1483 = pneg %p608
      %p1484 = scmp.lt.s32.totalorder %s90, 1
      %s1485 = scalar_select %p1484, %s90, 1
      %s1486 = scalar_lea.vmem %s43, %s1485
      %p1487 = pneg %p637
      %p1488 = pneg %p634
      %p1489 = scmp.lt.s32.totalorder %s90, 1
      %s1490 = scalar_select %p1489, %s90, 1
      %s1491 = smul.addr %s1490, 4
      %s1492 = smul.addr %s1491, 8
      %s1493 = scalar_lea.vmem %s45, %s1492
      %p1494 = pneg %p663
      %p1495 = pneg %p660
      %p1496 = scmp.lt.s32.totalorder %s90, 1
      %s1497 = scalar_select %p1496, %s90, 1
      %s1498 = scalar_lea.vmem %s47, %s1497
      %p1499 = pneg %p689
      %p1500 = pneg %p686
      %p1501 = scmp.lt.s32.totalorder %s90, 1
      %s1502 = scalar_select %p1501, %s90, 1
      %s1503 = scalar_lea.vmem %s49, %s1502
      %p1504 = pneg %p715
      %p1505 = pneg %p712
      %p1506 = scmp.lt.s32.totalorder %s90, 1
      %s1507 = scalar_select %p1506, %s90, 1
      %s1508 = scalar_lea.vmem %s51, %s1507
      %p1509 = pneg %p741
      %p1510 = pneg %p738
      %p1511 = scmp.lt.s32.totalorder %s90, 1
      %s1512 = scalar_select %p1511, %s90, 1
      %s1513 = scalar_lea.vmem %s53, %s1512
      %p1514 = pneg %p767
      %p1515 = pneg %p764
      %p1516 = scmp.lt.s32.totalorder %s90, 1
      %s1517 = scalar_select %p1516, %s90, 1
      %s1518 = scalar_lea.vmem %s55, %s1517
      %p1519 = pneg %p793
      %p1520 = pneg %p790
      %p1521 = scmp.lt.s32.totalorder %s90, 1
      %s1522 = scalar_select %p1521, %s90, 1
      %s1523 = scalar_lea.vmem %s57, %s1522
      %p1524 = pneg %p819
      %p1525 = pneg %p816
      %p1526 = scmp.lt.s32.totalorder %s90, 1
      %s1527 = scalar_select %p1526, %s90, 1
      %s1528 = smul.addr %s1527, 3
      %s1529 = smul.addr %s1528, 8
      %s1530 = scalar_lea.vmem %s59, %s1529
      %p1531 = pneg %p845
      %p1532 = pneg %p842
      %p1533 = scmp.lt.s32.totalorder %s90, 1
      %s1534 = scalar_select %p1533, %s90, 1
      %s1535 = scalar_lea.vmem %s61, %s1534
      %p1536 = pneg %p871
      %p1537 = pneg %p868
      %p1538 = scmp.lt.s32.totalorder %s90, 1
      %s1539 = scalar_select %p1538, %s90, 1
      %s1540 = scalar_lea.vmem %s63, %s1539
      %p1541 = pneg %p897
      %p1542 = pneg %p894
      %p1543 = scmp.lt.s32.totalorder %s90, 1
      %s1544 = scalar_select %p1543, %s90, 1
      %s1545 = scalar_lea.vmem %s65, %s1544
      %p1546 = pneg %p923
      %p1547 = pneg %p920
      %p1548 = scmp.lt.s32.totalorder %s90, 1
      %s1549 = scalar_select %p1548, %s90, 1
      %s1550 = scalar_lea.vmem %s67, %s1549
      %p1551 = pneg %p949
      %p1552 = pneg %p946
      %p1553 = scmp.lt.s32.totalorder %s90, 1
      %s1554 = scalar_select %p1553, %s90, 1
      %s1555 = smul.addr %s1554, 6
      %s1556 = smul.addr %s1555, 8
      %s1557 = scalar_lea.vmem %s69, %s1556
      %p1558 = pneg %p975
      %p1559 = pneg %p972
      %p1560 = scmp.lt.s32.totalorder %s90, 1
      %s1561 = scalar_select %p1560, %s90, 1
      %s1562 = smul.addr %s1561, 2
      %s1563 = smul.addr %s1562, 8
      %s1564 = scalar_lea.vmem %s71, %s1563
      %p1565 = pneg %p1001
      %p1566 = pneg %p998
      %p1567 = scmp.lt.s32.totalorder %s90, 1
      %s1568 = scalar_select %p1567, %s90, 1
      %s1569 = scalar_lea.vmem %s73, %s1568
      %p1570 = pneg %p1027
      %p1571 = pneg %p1024
      %p1572 = scmp.lt.s32.totalorder %s90, 1
      %s1573 = scalar_select %p1572, %s90, 1
      %s1574 = smul.addr %s1573, 18
      %s1575 = smul.addr %s1574, 8
      %s1576 = scalar_lea.vmem %s75, %s1575
      %p1577 = pneg %p1053
      %p1578 = pneg %p1050
      %p1579 = scmp.lt.s32.totalorder %s90, 1
      %s1580 = scalar_select %p1579, %s90, 1
      %s1581 = smul.addr %s1580, 2
      %s1582 = smul.addr %s1581, 8
      %s1583 = scalar_lea.vmem %s77, %s1582
      %p1584 = pneg %p1079
      %p1585 = pneg %p1076
      %p1586 = pneg %p1105
      %p1587 = pneg %p1102
      %p1588 = scmp.lt.s32.totalorder %s90, 1
      %s1589 = scalar_select %p1588, %s90, 1
      %s1590 = smul.addr %s1589, 2
      %s1591 = smul.addr %s1590, 8
      %s1592 = scalar_lea.vmem %s79, %s1591
      %p1593 = scmp.lt.s32.totalorder %s90, 1
      %s1594 = scalar_select %p1593, %s90, 1
      %s1595 = smul.addr %s1594, 8
      %s1596 = smul.addr %s1595, 8
      %s1597 = scalar_lea.vmem %s1, %s1596
      %p1598 = scmp.lt.s32.totalorder %s90, 1
      %s1599 = scalar_select %p1598, %s90, 1
      %s1600 = smul.addr %s1599, 2
      %s1601 = scalar_lea.vmem %s11, %s1600
      %p1602 = scmp.lt.s32.totalorder %s90, 1
      %s1603 = scalar_select %p1602, %s90, 1
      %s1604 = scalar_lea.vmem %s13, %s1603
      %p1605 = scmp.lt.s32.totalorder %s90, 1
      %s1606 = scalar_select %p1605, %s90, 1
      %s1607 = smul.addr %s1606, 4
      %s1608 = smul.addr %s1607, 8
      %s1609 = scalar_lea.vmem %s15, %s1608
      %p1610 = scmp.lt.s32.totalorder %s90, 1
      %s1611 = scalar_select %p1610, %s90, 1
      %s1612 = scalar_lea.vmem %s17, %s1611
      %p1613 = scmp.lt.s32.totalorder %s90, 1
      %s1614 = scalar_select %p1613, %s90, 1
      %s1615 = smul.addr %s1614, 4
      %s1616 = smul.addr %s1615, 8
      %s1617 = scalar_lea.vmem %s19, %s1616
      %p1618 = scmp.lt.s32.totalorder %s90, 1
      %s1619 = scalar_select %p1618, %s90, 1
      %s1620 = scalar_lea.vmem %s21, %s1619
      %p1621 = scmp.lt.s32.totalorder %s90, 1
      %s1622 = scalar_select %p1621, %s90, 1
      %s1623 = scalar_lea.vmem %s23, %s1622
      %p1624 = scmp.lt.s32.totalorder %s90, 1
      %s1625 = scalar_select %p1624, %s90, 1
      %s1626 = scalar_lea.vmem %s25, %s1625
      %p1627 = scmp.lt.s32.totalorder %s90, 1
      %s1628 = scalar_select %p1627, %s90, 1
      %s1629 = smul.addr %s1628, 4
      %s1630 = smul.addr %s1629, 8
      %s1631 = scalar_lea.vmem %s27, %s1630
      %p1632 = scmp.lt.s32.totalorder %s90, 1
      %s1633 = scalar_select %p1632, %s90, 1
      %s1634 = scalar_lea.vmem %s29, %s1633
      %p1635 = scmp.lt.s32.totalorder %s90, 1
      %s1636 = scalar_select %p1635, %s90, 1
      %s1637 = smul.addr %s1636, 8
      %s1638 = smul.addr %s1637, 8
      %s1639 = scalar_lea.vmem %s31, %s1638
      %p1640 = scmp.lt.s32.totalorder %s90, 1
      %s1641 = scalar_select %p1640, %s90, 1
      %s1642 = scalar_lea.vmem %s33, %s1641
      %p1643 = scmp.lt.s32.totalorder %s90, 1
      %s1644 = scalar_select %p1643, %s90, 1
      %s1645 = scalar_lea.vmem %s35, %s1644
      %p1646 = scmp.lt.s32.totalorder %s90, 1
      %s1647 = scalar_select %p1646, %s90, 1
      %s1648 = scalar_lea.vmem %s37, %s1647
      %p1649 = scmp.lt.s32.totalorder %s90, 1
      %s1650 = scalar_select %p1649, %s90, 1
      %s1651 = scalar_lea.vmem %s39, %s1650
      %p1652 = scmp.lt.s32.totalorder %s90, 1
      %s1653 = scalar_select %p1652, %s90, 1
      %s1654 = smul.addr %s1653, 4
      %s1655 = smul.addr %s1654, 8
      %s1656 = scalar_lea.vmem %s41, %s1655
      %p1657 = scmp.lt.s32.totalorder %s90, 1
      %s1658 = scalar_select %p1657, %s90, 1
      %s1659 = scalar_lea.vmem %s43, %s1658
      %p1660 = scmp.lt.s32.totalorder %s90, 1
      %s1661 = scalar_select %p1660, %s90, 1
      %s1662 = smul.addr %s1661, 4
      %s1663 = smul.addr %s1662, 8
      %s1664 = scalar_lea.vmem %s45, %s1663
      %p1665 = scmp.lt.s32.totalorder %s90, 1
      %s1666 = scalar_select %p1665, %s90, 1
      %s1667 = scalar_lea.vmem %s47, %s1666
      %p1668 = scmp.lt.s32.totalorder %s90, 1
      %s1669 = scalar_select %p1668, %s90, 1
      %s1670 = scalar_lea.vmem %s49, %s1669
      %p1671 = scmp.lt.s32.totalorder %s90, 1
      %s1672 = scalar_select %p1671, %s90, 1
      %s1673 = scalar_lea.vmem %s51, %s1672
      %p1674 = scmp.lt.s32.totalorder %s90, 1
      %s1675 = scalar_select %p1674, %s90, 1
      %s1676 = scalar_lea.vmem %s53, %s1675
      %p1677 = scmp.lt.s32.totalorder %s90, 1
      %s1678 = scalar_select %p1677, %s90, 1
      %s1679 = scalar_lea.vmem %s55, %s1678
      %p1680 = scmp.lt.s32.totalorder %s90, 1
      %s1681 = scalar_select %p1680, %s90, 1
      %s1682 = scalar_lea.vmem %s57, %s1681
      %p1683 = scmp.lt.s32.totalorder %s90, 1
      %s1684 = scalar_select %p1683, %s90, 1
      %s1685 = smul.addr %s1684, 3
      %s1686 = smul.addr %s1685, 8
      %s1687 = scalar_lea.vmem %s59, %s1686
      %p1688 = scmp.lt.s32.totalorder %s90, 1
      %s1689 = scalar_select %p1688, %s90, 1
      %s1690 = scalar_lea.vmem %s61, %s1689
      %p1691 = scmp.lt.s32.totalorder %s90, 1
      %s1692 = scalar_select %p1691, %s90, 1
      %s1693 = scalar_lea.vmem %s63, %s1692
      %p1694 = scmp.lt.s32.totalorder %s90, 1
      %s1695 = scalar_select %p1694, %s90, 1
      %s1696 = scalar_lea.vmem %s65, %s1695
      %p1697 = scmp.lt.s32.totalorder %s90, 1
      %s1698 = scalar_select %p1697, %s90, 1
      %s1699 = scalar_lea.vmem %s67, %s1698
      %p1700 = scmp.lt.s32.totalorder %s90, 1
      %s1701 = scalar_select %p1700, %s90, 1
      %s1702 = smul.addr %s1701, 6
      %s1703 = smul.addr %s1702, 8
      %s1704 = scalar_lea.vmem %s69, %s1703
      %p1705 = scmp.lt.s32.totalorder %s90, 1
      %s1706 = scalar_select %p1705, %s90, 1
      %s1707 = smul.addr %s1706, 2
      %s1708 = smul.addr %s1707, 8
      %s1709 = scalar_lea.vmem %s71, %s1708
      %p1710 = scmp.lt.s32.totalorder %s90, 1
      %s1711 = scalar_select %p1710, %s90, 1
      %s1712 = scalar_lea.vmem %s73, %s1711
      %p1713 = scmp.lt.s32.totalorder %s90, 1
      %s1714 = scalar_select %p1713, %s90, 1
      %s1715 = smul.addr %s1714, 18
      %s1716 = smul.addr %s1715, 8
      %s1717 = scalar_lea.vmem %s75, %s1716
      %p1718 = scmp.lt.s32.totalorder %s90, 1
      %s1719 = scalar_select %p1718, %s90, 1
      %s1720 = smul.addr %s1719, 2
      %s1721 = smul.addr %s1720, 8
      %s1722 = scalar_lea.vmem %s77, %s1721
      %p1723 = scmp.lt.s32.totalorder %s90, 1
      %s1724 = scalar_select %p1723, %s90, 1
      %s1725 = smul.addr %s1724, 2
      %s1726 = smul.addr %s1725, 8
      %s1727 = scalar_lea.vmem %s79, %s1726
      %v1728 = vld [vmem:[%s1601] sm:$0x3]
      %v1729 = vld [vmem:[%s1604] sm:$0x1]
      %v1730 = vld [vmem:[%s1597] sm:$0xff]
      %v1731 = vld [vmem:[%s1597 + $0x8] sm:$0xff]
      %v1732 = vld [vmem:[%s1597 + $0x10] sm:$0xff]
      %v1733 = vld [vmem:[%s1597 + $0x18] sm:$0xff]
      %v1734 = vld [vmem:[%s1597 + $0x20] sm:$0xff]
      %v1735 = vld [vmem:[%s1597 + $0x28] sm:$0xff]
      %v1736 = vld [vmem:[%s1597 + $0x30] sm:$0xff]
      %v1737 = vld [vmem:[%s1597 + $0x38] sm:$0xff]
      %v1739 = vperm.slane %v1729, 0
      %vm1741 = vcmask 15360
      %v1743 = vsel %vm1741, %v1730, 0
      %v1746 = vsel %vm1741, %v1731, 0
      %v1749 = vsel %vm1741, %v1732, 0
      %v1752 = vsel %vm1741, %v1733, 0
      %v1755 = vsel %vm1741, %v1734, 0
      %v1758 = vsel %vm1741, %v1735, 0
      %v1761 = vsel %vm1741, %v1736, 0
      %v1764 = vsel %vm1741, %v1737, 0
      %vm1766 = vcmask 1041408
      %v1768 = vsel %vm1766, %v1728, 0
      %1770 = vmatpush.msra.mxu0 0.0
      %1771 = vmatpush.msra.mxu0 0.0
      %1772 = vmatpush.msra.mxu0 0.0
      %1773 = vmatpush.msra.mxu0 0.0
      %1774 = vmatpush.msra.mxu0 0.0
      %1775 = vmatpush.msra.mxu0 0.0
      %1776 = vmatpush.msra.mxu0 0.0
      %1777 = vmatpush.msra.mxu0 0.0
      %1778 = vmatpush.msra.mxu0 0.0
      %1779 = vmatpush.msra.mxu0 0.0
      %1780 = vmatpush.msra.mxu0 0.0
      %1781 = vmatpush.msra.mxu0 0.0
      %1782 = vmatpush.msra.mxu0 0.0
      %1783 = vmatpush.msra.mxu0 0.0
      %1784 = vmatpush.msra.mxu0 0.0
      %1785 = vmatpush.msra.mxu0 %v1768
      %1786 = vmatmul.f32.gmra.mxu0 %v1743
      %v1787 = vpop.f32.mrf.mxu0
      %v1788 = vadd.f32 %v1739, %v1787
      %1789 = vmatmul.f32.gmra.mxu0 %v1746
      %v1790 = vpop.f32.mrf.mxu0
      %v1791 = vadd.f32 %v1739, %v1790
      %1792 = vmatmul.f32.gmra.mxu0 %v1749
      %v1793 = vpop.f32.mrf.mxu0
      %v1794 = vadd.f32 %v1739, %v1793
      %1795 = vmatmul.f32.gmra.mxu0 %v1752
      %v1796 = vpop.f32.mrf.mxu0
      %v1797 = vadd.f32 %v1739, %v1796
      %1798 = vmatmul.f32.gmra.mxu0 %v1755
      %v1799 = vpop.f32.mrf.mxu0
      %v1800 = vadd.f32 %v1739, %v1799
      %1801 = vmatmul.f32.gmra.mxu0 %v1758
      %v1802 = vpop.f32.mrf.mxu0
      %v1803 = vadd.f32 %v1739, %v1802
      %1804 = vmatmul.f32.gmra.mxu0 %v1761
      %v1805 = vpop.f32.mrf.mxu0
      %v1806 = vadd.f32 %v1739, %v1805
      %1807 = vmatmul.f32.gmra.mxu0 %v1764
      %v1808 = vpop.f32.mrf.mxu0
      %v1809 = vadd.f32 %v1739, %v1808
      %1810 = vdwg.mxu0
      %v1811 = vld [vmem:[%s3] sm:$0xff]
      %v1812 = vld [vmem:[%s3 + $0x8] sm:$0xff]
      %v1813 = vld [vmem:[%s3 + $0x10] sm:$0xff]
      %v1814 = vld [vmem:[%s3 + $0x18] sm:$0xff]
      %v1815 = vld [vmem:[%s3 + $0x20] sm:$0xff]
      %v1816 = vld [vmem:[%s3 + $0x28] sm:$0xff]
      %v1817 = vld [vmem:[%s3 + $0x30] sm:$0xff]
      %v1818 = vld [vmem:[%s3 + $0x38] sm:$0xff]
      %v1819 = vadd.f32 %v1788, %v1811
      %v1820 = vadd.f32 %v1791, %v1812
      %v1821 = vadd.f32 %v1794, %v1813
      %v1822 = vadd.f32 %v1797, %v1814
      %v1823 = vadd.f32 %v1800, %v1815
      %v1824 = vadd.f32 %v1803, %v1816
      %v1825 = vadd.f32 %v1806, %v1817
      %v1826 = vadd.f32 %v1809, %v1818
      %v1827 = vld [vmem:[%s1609] sm:$0xff]
      %v1828 = vld [vmem:[%s1609 + $0x8] sm:$0xff]
      %v1829 = vld [vmem:[%s1609 + $0x10] sm:$0xff]
      %v1830 = vld [vmem:[%s1609 + $0x18] sm:$0xff]
      %v1831 = vld [vmem:[%s1612] sm:$0x1]
      %v1832 = vld [vmem:[%s1617] sm:$0xff]
      %v1833 = vld [vmem:[%s1617 + $0x8] sm:$0xff]
      %v1834 = vld [vmem:[%s1617 + $0x10] sm:$0xff]
      %v1835 = vld [vmem:[%s1617 + $0x18] sm:$0xff]
      %v1836 = vld [vmem:[%s1620] sm:$0x1]
      %v1837 = vld [vmem:[%s1623] sm:$0x1]
      %v1838 = vld [vmem:[%s1626] sm:$0x1]
      %v1839 = vld [vmem:[%s1631] sm:$0xff]
      %v1840 = vld [vmem:[%s1631 + $0x8] sm:$0xff]
      %v1841 = vld [vmem:[%s1631 + $0x10] sm:$0xff]
      %v1842 = vld [vmem:[%s1631 + $0x18] sm:$0xff]
      %v1843 = vld [vmem:[%s1634] sm:$0x1]
      %v1844 = vld [vmem:[%s1639] sm:$0xff]
      %v1845 = vld [vmem:[%s1639 + $0x8] sm:$0xff]
      %v1846 = vld [vmem:[%s1639 + $0x10] sm:$0xff]
      %v1847 = vld [vmem:[%s1639 + $0x18] sm:$0xff]
      %v1848 = vld [vmem:[%s1639 + $0x20] sm:$0xff]
      %v1849 = vld [vmem:[%s1639 + $0x28] sm:$0xff]
      %v1850 = vld [vmem:[%s1639 + $0x30] sm:$0xff]
      %v1851 = vld [vmem:[%s1639 + $0x38] sm:$0xff]
      %v1852 = vld [vmem:[%s1642] sm:$0x1]
      %v1853 = vld [vmem:[%s1645] sm:$0x1]
      %v1854 = vld [vmem:[%s1648] sm:$0x1]
      %v1856 = vperm.slane %v1831, 0
      %vm1858 = vcmask 261120
      %v1860 = vsel %vm1858, %v1819, 0
      %v1863 = vsel %vm1858, %v1820, 0
      %v1866 = vsel %vm1858, %v1821, 0
      %v1869 = vsel %vm1858, %v1822, 0
      %v1872 = vsel %vm1858, %v1823, 0
      %v1875 = vsel %vm1858, %v1824, 0
      %v1878 = vsel %vm1858, %v1825, 0
      %v1881 = vsel %vm1858, %v1826, 0
      %1883 = vmatpush.msra.mxu0 0.0
      %1884 = vmatpush.msra.mxu0 0.0
      %1885 = vmatpush.msra.mxu0 0.0
      %1886 = vmatpush.msra.mxu0 0.0
      %1887 = vmatpush.msra.mxu0 0.0
      %1888 = vmatpush.msra.mxu0 0.0
      %1889 = vmatpush.msra.mxu0 0.0
      %1890 = vmatpush.msra.mxu0 0.0
      %1891 = vmatpush.msra.mxu0 0.0
      %1892 = vmatpush.msra.mxu0 0.0
      %1893 = vmatpush.msra.mxu0 0.0
      %1894 = vmatpush.msra.mxu0 0.0
      %1895 = vmatpush.msra.mxu0 %v1830
      %1896 = vmatpush.msra.mxu0 %v1829
      %1897 = vmatpush.msra.mxu0 %v1828
      %1898 = vmatpush.msra.mxu0 %v1827
      %1899 = vmatmul.f32.gmra.mxu0 %v1860
      %v1900 = vpop.f32.mrf.mxu0
      %v1901 = vadd.f32 %v1856, %v1900
      %1902 = vmatmul.f32.gmra.mxu0 %v1863
      %v1903 = vpop.f32.mrf.mxu0
      %v1904 = vadd.f32 %v1856, %v1903
      %1905 = vmatmul.f32.gmra.mxu0 %v1866
      %v1906 = vpop.f32.mrf.mxu0
      %v1907 = vadd.f32 %v1856, %v1906
      %1908 = vmatmul.f32.gmra.mxu0 %v1869
      %v1909 = vpop.f32.mrf.mxu0
      %v1910 = vadd.f32 %v1856, %v1909
      %1911 = vmatmul.f32.gmra.mxu0 %v1872
      %v1912 = vpop.f32.mrf.mxu0
      %v1913 = vadd.f32 %v1856, %v1912
      %1914 = vmatmul.f32.gmra.mxu0 %v1875
      %v1915 = vpop.f32.mrf.mxu0
      %v1916 = vadd.f32 %v1856, %v1915
      %1917 = vmatmul.f32.gmra.mxu0 %v1878
      %v1918 = vpop.f32.mrf.mxu0
      %v1919 = vadd.f32 %v1856, %v1918
      %1920 = vmatmul.f32.gmra.mxu0 %v1881
      %v1921 = vpop.f32.mrf.mxu0
      %v1922 = vadd.f32 %v1856, %v1921
      %1923 = vdwg.mxu0
      %1932 = vrot.lane.b32.xlu0 %v1901, 96
      %v1933 = vpop.permute.xlu0 %1932
      %1934 = vrot.lane.b32.xlu0 %v1904, 96
      %v1935 = vpop.permute.xlu0 %1934
      %1936 = vrot.lane.b32.xlu0 %v1907, 96
      %v1937 = vpop.permute.xlu0 %1936
      %1938 = vrot.lane.b32.xlu0 %v1910, 96
      %v1939 = vpop.permute.xlu0 %1938
      %1940 = vrot.lane.b32.xlu0 %v1913, 96
      %v1941 = vpop.permute.xlu0 %1940
      %1942 = vrot.lane.b32.xlu0 %v1916, 96
      %v1943 = vpop.permute.xlu0 %1942
      %1944 = vrot.lane.b32.xlu0 %v1919, 96
      %v1945 = vpop.permute.xlu0 %1944
      %1946 = vrot.lane.b32.xlu0 %v1922, 96
      %v1947 = vpop.permute.xlu0 %1946
      %vm1948 = vcmask 64512
      %v1949 = vsel %vm1948, %v1901, 0
      %v1951 = vsel %vm1948, %v1904, 0
      %v1953 = vsel %vm1948, %v1907, 0
      %v1955 = vsel %vm1948, %v1910, 0
      %v1957 = vsel %vm1948, %v1913, 0
      %v1959 = vsel %vm1948, %v1916, 0
      %v1961 = vsel %vm1948, %v1919, 0
      %v1963 = vsel %vm1948, %v1922, 0
      %v1965 = vsel %vm1948, %v1933, 0
      %v1967 = vsel %vm1948, %v1935, 0
      %v1969 = vsel %vm1948, %v1937, 0
      %v1971 = vsel %vm1948, %v1939, 0
      %v1973 = vsel %vm1948, %v1941, 0
      %v1975 = vsel %vm1948, %v1943, 0
      %v1977 = vsel %vm1948, %v1945, 0
      %v1979 = vsel %vm1948, %v1947, 0
      %1981 = vmatpush.xpose.msra.mxu0 0.0
      %1982 = vmatpush.xpose.msra.mxu0 0.0
      %1983 = vmatpush.xpose.msra.mxu0 0.0
      %1984 = vmatpush.xpose.msra.mxu0 0.0
      %1985 = vmatpush.xpose.msra.mxu0 0.0
      %1986 = vmatpush.xpose.msra.mxu0 0.0
      %1987 = vmatpush.xpose.msra.mxu0 0.0
      %1988 = vmatpush.xpose.msra.mxu0 0.0
      %1989 = vmatpush.xpose.msra.mxu0 %v1979
      %1990 = vmatpush.xpose.msra.mxu0 %v1977
      %1991 = vmatpush.xpose.msra.mxu0 %v1975
      %1992 = vmatpush.xpose.msra.mxu0 %v1973
      %1993 = vmatpush.xpose.msra.mxu0 %v1971
      %1994 = vmatpush.xpose.msra.mxu0 %v1969
      %1995 = vmatpush.xpose.msra.mxu0 %v1967
      %1996 = vmatpush.xpose.msra.mxu0 %v1965
      %1997 = vmatmul.f32.gmra.mxu0 %v1949
      %v1998 = vpop.f32.mrf.mxu0
      %v1999 = vadd.f32 0.0, %v1998
      %2000 = vmatmul.f32.gmra.mxu0 %v1951
      %v2001 = vpop.f32.mrf.mxu0
      %v2002 = vadd.f32 0.0, %v2001
      %2003 = vmatmul.f32.gmra.mxu0 %v1953
      %v2004 = vpop.f32.mrf.mxu0
      %v2005 = vadd.f32 0.0, %v2004
      %2006 = vmatmul.f32.gmra.mxu0 %v1955
      %v2007 = vpop.f32.mrf.mxu0
      %v2008 = vadd.f32 0.0, %v2007
      %2009 = vmatmul.f32.gmra.mxu0 %v1957
      %v2010 = vpop.f32.mrf.mxu0
      %v2011 = vadd.f32 0.0, %v2010
      %2012 = vmatmul.f32.gmra.mxu0 %v1959
      %v2013 = vpop.f32.mrf.mxu0
      %v2014 = vadd.f32 0.0, %v2013
      %2015 = vmatmul.f32.gmra.mxu0 %v1961
      %v2016 = vpop.f32.mrf.mxu0
      %v2017 = vadd.f32 0.0, %v2016
      %2018 = vmatmul.f32.gmra.mxu0 %v1963
      %v2019 = vpop.f32.mrf.mxu0
      %v2020 = vadd.f32 0.0, %v2019
      %2021 = vdwg.mxu0
      %vm2022 = vcmask 523264
      %v2023 = vsel %vm2022, %v1999, -inf
      %2024 = vmax.xlane.f32.xlu0 %v2023
      %v2025 = vpop.xlane.xlu0 %2024
      %v2026 = vsel %vm2022, %v2002, -inf
      %2027 = vmax.xlane.f32.xlu0 %v2026
      %v2028 = vpop.xlane.xlu0 %2027
      %v2029 = vsel %vm2022, %v2005, -inf
      %2030 = vmax.xlane.f32.xlu0 %v2029
      %v2031 = vpop.xlane.xlu0 %2030
      %v2032 = vsel %vm2022, %v2008, -inf
      %2033 = vmax.xlane.f32.xlu0 %v2032
      %v2034 = vpop.xlane.xlu0 %2033
      %v2035 = vsel %vm2022, %v2011, -inf
      %2036 = vmax.xlane.f32.xlu0 %v2035
      %v2037 = vpop.xlane.xlu0 %2036
      %v2038 = vsel %vm2022, %v2014, -inf
      %2039 = vmax.xlane.f32.xlu0 %v2038
      %v2040 = vpop.xlane.xlu0 %2039
      %v2041 = vsel %vm2022, %v2017, -inf
      %2042 = vmax.xlane.f32.xlu0 %v2041
      %v2043 = vpop.xlane.xlu0 %2042
      %v2044 = vsel %vm2022, %v2020, -inf
      %2045 = vmax.xlane.f32.xlu0 %v2044
      %v2046 = vpop.xlane.xlu0 %2045
      %v2047 = vsub.f32 %v1999, %v2025
      %v2048 = vsub.f32 %v2002, %v2028
      %v2049 = vsub.f32 %v2005, %v2031
      %v2050 = vsub.f32 %v2008, %v2034
      %v2051 = vsub.f32 %v2011, %v2037
      %v2052 = vsub.f32 %v2014, %v2040
      %v2053 = vsub.f32 %v2017, %v2043
      %v2054 = vsub.f32 %v2020, %v2046
      %v2055 = vmul.f32 %v2047, 1.442695
      %v2056 = vpow.pop %v2055
      %v2057 = vmul.f32 %v2048, 1.442695
      %v2058 = vpow.pop %v2057
      %v2059 = vmul.f32 %v2049, 1.442695
      %v2060 = vpow.pop %v2059
      %v2061 = vmul.f32 %v2050, 1.442695
      %v2062 = vpow.pop %v2061
      %v2063 = vmul.f32 %v2051, 1.442695
      %v2064 = vpow.pop %v2063
      %v2065 = vmul.f32 %v2052, 1.442695
      %v2066 = vpow.pop %v2065
      %v2067 = vmul.f32 %v2053, 1.442695
      %v2068 = vpow.pop %v2067
      %v2069 = vmul.f32 %v2054, 1.442695
      %v2070 = vpow.pop %v2069
      %v2071 = vsel %vm2022, %v2056, 0.0
      %2072 = vadd.xlane.f32.xlu0 %v2071
      %v2073 = vpop.xlane.xlu0 %2072
      %v2074 = vsel %vm2022, %v2058, 0.0
      %2075 = vadd.xlane.f32.xlu0 %v2074
      %v2076 = vpop.xlane.xlu0 %2075
      %v2077 = vsel %vm2022, %v2060, 0.0
      %2078 = vadd.xlane.f32.xlu0 %v2077
      %v2079 = vpop.xlane.xlu0 %2078
      %v2080 = vsel %vm2022, %v2062, 0.0
      %2081 = vadd.xlane.f32.xlu0 %v2080
      %v2082 = vpop.xlane.xlu0 %2081
      %v2083 = vsel %vm2022, %v2064, 0.0
      %2084 = vadd.xlane.f32.xlu0 %v2083
      %v2085 = vpop.xlane.xlu0 %2084
      %v2086 = vsel %vm2022, %v2066, 0.0
      %2087 = vadd.xlane.f32.xlu0 %v2086
      %v2088 = vpop.xlane.xlu0 %2087
      %v2089 = vsel %vm2022, %v2068, 0.0
      %2090 = vadd.xlane.f32.xlu0 %v2089
      %v2091 = vpop.xlane.xlu0 %2090
      %v2092 = vsel %vm2022, %v2070, 0.0
      %2093 = vadd.xlane.f32.xlu0 %v2092
      %v2094 = vpop.xlane.xlu0 %2093
      %v2095 = vrcp.pop %v2073
      %v2096 = vrcp.pop %v2076
      %v2097 = vrcp.pop %v2079
      %v2098 = vrcp.pop %v2082
      %v2099 = vrcp.pop %v2085
      %v2100 = vrcp.pop %v2088
      %v2101 = vrcp.pop %v2091
      %v2102 = vrcp.pop %v2094
      %v2103 = vmul.f32 %v2056, %v2095
      %v2104 = vmul.f32 %v2058, %v2096
      %v2105 = vmul.f32 %v2060, %v2097
      %v2106 = vmul.f32 %v2062, %v2098
      %v2107 = vmul.f32 %v2064, %v2099
      %v2108 = vmul.f32 %v2066, %v2100
      %v2109 = vmul.f32 %v2068, %v2101
      %v2110 = vmul.f32 %v2070, %v2102
      %2111 = vrot.lane.b32.xlu0 %v1901, 64
      %v2112 = vpop.permute.xlu0 %2111
      %2113 = vrot.lane.b32.xlu0 %v1904, 64
      %v2114 = vpop.permute.xlu0 %2113
      %2115 = vrot.lane.b32.xlu0 %v1907, 64
      %v2116 = vpop.permute.xlu0 %2115
      %2117 = vrot.lane.b32.xlu0 %v1910, 64
      %v2118 = vpop.permute.xlu0 %2117
      %2119 = vrot.lane.b32.xlu0 %v1913, 64
      %v2120 = vpop.permute.xlu0 %2119
      %2121 = vrot.lane.b32.xlu0 %v1916, 64
      %v2122 = vpop.permute.xlu0 %2121
      %2123 = vrot.lane.b32.xlu0 %v1919, 64
      %v2124 = vpop.permute.xlu0 %2123
      %2125 = vrot.lane.b32.xlu0 %v1922, 64
      %v2126 = vpop.permute.xlu0 %2125
      %v2136 = vsel %vm2022, %v2103, 0
      %v2139 = vsel %vm2022, %v2104, 0
      %v2142 = vsel %vm2022, %v2105, 0
      %v2145 = vsel %vm2022, %v2106, 0
      %v2148 = vsel %vm2022, %v2107, 0
      %v2151 = vsel %vm2022, %v2108, 0
      %v2154 = vsel %vm2022, %v2109, 0
      %v2157 = vsel %vm2022, %v2110, 0
      %2159 = vmatpush.msra.mxu0 0.0
      %2160 = vmatpush.msra.mxu0 0.0
      %2161 = vmatpush.msra.mxu0 0.0
      %2162 = vmatpush.msra.mxu0 0.0
      %2163 = vmatpush.msra.mxu0 0.0
      %2164 = vmatpush.msra.mxu0 0.0
      %2165 = vmatpush.msra.mxu0 0.0
      %2166 = vmatpush.msra.mxu0 0.0
      %2167 = vmatpush.msra.mxu0 %v2126
      %2168 = vmatpush.msra.mxu0 %v2124
      %2169 = vmatpush.msra.mxu0 %v2122
      %2170 = vmatpush.msra.mxu0 %v2120
      %2171 = vmatpush.msra.mxu0 %v2118
      %2172 = vmatpush.msra.mxu0 %v2116
      %2173 = vmatpush.msra.mxu0 %v2114
      %2174 = vmatpush.msra.mxu0 %v2112
      %2175 = vmatmul.f32.gmra.mxu0 %v2136
      %v2176 = vpop.f32.mrf.mxu0
      %v2177 = vadd.f32 0.0, %v2176
      %2178 = vmatmul.f32.gmra.mxu0 %v2139
      %v2179 = vpop.f32.mrf.mxu0
      %v2180 = vadd.f32 0.0, %v2179
      %2181 = vmatmul.f32.gmra.mxu0 %v2142
      %v2182 = vpop.f32.mrf.mxu0
      %v2183 = vadd.f32 0.0, %v2182
      %2184 = vmatmul.f32.gmra.mxu0 %v2145
      %v2185 = vpop.f32.mrf.mxu0
      %v2186 = vadd.f32 0.0, %v2185
      %2187 = vmatmul.f32.gmra.mxu0 %v2148
      %v2188 = vpop.f32.mrf.mxu0
      %v2189 = vadd.f32 0.0, %v2188
      %2190 = vmatmul.f32.gmra.mxu0 %v2151
      %v2191 = vpop.f32.mrf.mxu0
      %v2192 = vadd.f32 0.0, %v2191
      %2193 = vmatmul.f32.gmra.mxu0 %v2154
      %v2194 = vpop.f32.mrf.mxu0
      %v2195 = vadd.f32 0.0, %v2194
      %2196 = vmatmul.f32.gmra.mxu0 %v2157
      %v2197 = vpop.f32.mrf.mxu0
      %v2198 = vadd.f32 0.0, %v2197
      %2199 = vdwg.mxu0
      %2200 = vrot.lane.b32.xlu0 %v1901, 120
      %v2201 = vpop.permute.xlu0 %2200
      %2202 = vrot.lane.b32.xlu0 %v1904, 120
      %v2203 = vpop.permute.xlu0 %2202
      %2204 = vrot.lane.b32.xlu0 %v1907, 120
      %v2205 = vpop.permute.xlu0 %2204
      %2206 = vrot.lane.b32.xlu0 %v1910, 120
      %v2207 = vpop.permute.xlu0 %2206
      %2208 = vrot.lane.b32.xlu0 %v1913, 120
      %v2209 = vpop.permute.xlu0 %2208
      %2210 = vrot.lane.b32.xlu0 %v1916, 120
      %v2211 = vpop.permute.xlu0 %2210
      %2212 = vrot.lane.b32.xlu0 %v1919, 120
      %v2213 = vpop.permute.xlu0 %2212
      %2214 = vrot.lane.b32.xlu0 %v1922, 120
      %v2215 = vpop.permute.xlu0 %2214
      %2216 = vrot.lane.b32.xlu0 %v1901, 88
      %v2217 = vpop.permute.xlu0 %2216
      %2218 = vrot.lane.b32.xlu0 %v1904, 88
      %v2219 = vpop.permute.xlu0 %2218
      %2220 = vrot.lane.b32.xlu0 %v1907, 88
      %v2221 = vpop.permute.xlu0 %2220
      %2222 = vrot.lane.b32.xlu0 %v1910, 88
      %v2223 = vpop.permute.xlu0 %2222
      %2224 = vrot.lane.b32.xlu0 %v1913, 88
      %v2225 = vpop.permute.xlu0 %2224
      %2226 = vrot.lane.b32.xlu0 %v1916, 88
      %v2227 = vpop.permute.xlu0 %2226
      %2228 = vrot.lane.b32.xlu0 %v1919, 88
      %v2229 = vpop.permute.xlu0 %2228
      %2230 = vrot.lane.b32.xlu0 %v1922, 88
      %v2231 = vpop.permute.xlu0 %2230
      %v2232 = vsel %vm1948, %v2201, 0
      %v2234 = vsel %vm1948, %v2203, 0
      %v2236 = vsel %vm1948, %v2205, 0
      %v2238 = vsel %vm1948, %v2207, 0
      %v2240 = vsel %vm1948, %v2209, 0
      %v2242 = vsel %vm1948, %v2211, 0
      %v2244 = vsel %vm1948, %v2213, 0
      %v2246 = vsel %vm1948, %v2215, 0
      %v2248 = vsel %vm1948, %v2217, 0
      %v2250 = vsel %vm1948, %v2219, 0
      %v2252 = vsel %vm1948, %v2221, 0
      %v2254 = vsel %vm1948, %v2223, 0
      %v2256 = vsel %vm1948, %v2225, 0
      %v2258 = vsel %vm1948, %v2227, 0
      %v2260 = vsel %vm1948, %v2229, 0
      %v2262 = vsel %vm1948, %v2231, 0
      %2264 = vmatpush.xpose.msra.mxu0 0.0
      %2265 = vmatpush.xpose.msra.mxu0 0.0
      %2266 = vmatpush.xpose.msra.mxu0 0.0
      %2267 = vmatpush.xpose.msra.mxu0 0.0
      %2268 = vmatpush.xpose.msra.mxu0 0.0
      %2269 = vmatpush.xpose.msra.mxu0 0.0
      %2270 = vmatpush.xpose.msra.mxu0 0.0
      %2271 = vmatpush.xpose.msra.mxu0 0.0
      %2272 = vmatpush.xpose.msra.mxu0 %v2262
      %2273 = vmatpush.xpose.msra.mxu0 %v2260
      %2274 = vmatpush.xpose.msra.mxu0 %v2258
      %2275 = vmatpush.xpose.msra.mxu0 %v2256
      %2276 = vmatpush.xpose.msra.mxu0 %v2254
      %2277 = vmatpush.xpose.msra.mxu0 %v2252
      %2278 = vmatpush.xpose.msra.mxu0 %v2250
      %2279 = vmatpush.xpose.msra.mxu0 %v2248
      %2280 = vmatmul.f32.gmra.mxu0 %v2232
      %v2281 = vpop.f32.mrf.mxu0
      %v2282 = vadd.f32 0.0, %v2281
      %2283 = vmatmul.f32.gmra.mxu0 %v2234
      %v2284 = vpop.f32.mrf.mxu0
      %v2285 = vadd.f32 0.0, %v2284
      %2286 = vmatmul.f32.gmra.mxu0 %v2236
      %v2287 = vpop.f32.mrf.mxu0
      %v2288 = vadd.f32 0.0, %v2287
      %2289 = vmatmul.f32.gmra.mxu0 %v2238
      %v2290 = vpop.f32.mrf.mxu0
      %v2291 = vadd.f32 0.0, %v2290
      %2292 = vmatmul.f32.gmra.mxu0 %v2240
      %v2293 = vpop.f32.mrf.mxu0
      %v2294 = vadd.f32 0.0, %v2293
      %2295 = vmatmul.f32.gmra.mxu0 %v2242
      %v2296 = vpop.f32.mrf.mxu0
      %v2297 = vadd.f32 0.0, %v2296
      %2298 = vmatmul.f32.gmra.mxu0 %v2244
      %v2299 = vpop.f32.mrf.mxu0
      %v2300 = vadd.f32 0.0, %v2299
      %2301 = vmatmul.f32.gmra.mxu0 %v2246
      %v2302 = vpop.f32.mrf.mxu0
      %v2303 = vadd.f32 0.0, %v2302
      %2304 = vdwg.mxu0
      %v2305 = vsel %vm2022, %v2282, -inf
      %2306 = vmax.xlane.f32.xlu0 %v2305
      %v2307 = vpop.xlane.xlu0 %2306
      %v2308 = vsel %vm2022, %v2285, -inf
      %2309 = vmax.xlane.f32.xlu0 %v2308
      %v2310 = vpop.xlane.xlu0 %2309
      %v2311 = vsel %vm2022, %v2288, -inf
      %2312 = vmax.xlane.f32.xlu0 %v2311
      %v2313 = vpop.xlane.xlu0 %2312
      %v2314 = vsel %vm2022, %v2291, -inf
      %2315 = vmax.xlane.f32.xlu0 %v2314
      %v2316 = vpop.xlane.xlu0 %2315
      %v2317 = vsel %vm2022, %v2294, -inf
      %2318 = vmax.xlane.f32.xlu0 %v2317
      %v2319 = vpop.xlane.xlu0 %2318
      %v2320 = vsel %vm2022, %v2297, -inf
      %2321 = vmax.xlane.f32.xlu0 %v2320
      %v2322 = vpop.xlane.xlu0 %2321
      %v2323 = vsel %vm2022, %v2300, -inf
      %2324 = vmax.xlane.f32.xlu0 %v2323
      %v2325 = vpop.xlane.xlu0 %2324
      %v2326 = vsel %vm2022, %v2303, -inf
      %2327 = vmax.xlane.f32.xlu0 %v2326
      %v2328 = vpop.xlane.xlu0 %2327
      %v2329 = vsub.f32 %v2282, %v2307
      %v2330 = vsub.f32 %v2285, %v2310
      %v2331 = vsub.f32 %v2288, %v2313
      %v2332 = vsub.f32 %v2291, %v2316
      %v2333 = vsub.f32 %v2294, %v2319
      %v2334 = vsub.f32 %v2297, %v2322
      %v2335 = vsub.f32 %v2300, %v2325
      %v2336 = vsub.f32 %v2303, %v2328
      %v2337 = vmul.f32 %v2329, 1.442695
      %v2338 = vpow.pop %v2337
      %v2339 = vmul.f32 %v2330, 1.442695
      %v2340 = vpow.pop %v2339
      %v2341 = vmul.f32 %v2331, 1.442695
      %v2342 = vpow.pop %v2341
      %v2343 = vmul.f32 %v2332, 1.442695
      %v2344 = vpow.pop %v2343
      %v2345 = vmul.f32 %v2333, 1.442695
      %v2346 = vpow.pop %v2345
      %v2347 = vmul.f32 %v2334, 1.442695
      %v2348 = vpow.pop %v2347
      %v2349 = vmul.f32 %v2335, 1.442695
      %v2350 = vpow.pop %v2349
      %v2351 = vmul.f32 %v2336, 1.442695
      %v2352 = vpow.pop %v2351
      %v2353 = vsel %vm2022, %v2338, 0.0
      %2354 = vadd.xlane.f32.xlu0 %v2353
      %v2355 = vpop.xlane.xlu0 %2354
      %v2356 = vsel %vm2022, %v2340, 0.0
      %2357 = vadd.xlane.f32.xlu0 %v2356
      %v2358 = vpop.xlane.xlu0 %2357
      %v2359 = vsel %vm2022, %v2342, 0.0
      %2360 = vadd.xlane.f32.xlu0 %v2359
      %v2361 = vpop.xlane.xlu0 %2360
      %v2362 = vsel %vm2022, %v2344, 0.0
      %2363 = vadd.xlane.f32.xlu0 %v2362
      %v2364 = vpop.xlane.xlu0 %2363
      %v2365 = vsel %vm2022, %v2346, 0.0
      %2366 = vadd.xlane.f32.xlu0 %v2365
      %v2367 = vpop.xlane.xlu0 %2366
      %v2368 = vsel %vm2022, %v2348, 0.0
      %2369 = vadd.xlane.f32.xlu0 %v2368
      %v2370 = vpop.xlane.xlu0 %2369
      %v2371 = vsel %vm2022, %v2350, 0.0
      %2372 = vadd.xlane.f32.xlu0 %v2371
      %v2373 = vpop.xlane.xlu0 %2372
      %v2374 = vsel %vm2022, %v2352, 0.0
      %2375 = vadd.xlane.f32.xlu0 %v2374
      %v2376 = vpop.xlane.xlu0 %2375
      %v2377 = vrcp.pop %v2355
      %v2378 = vrcp.pop %v2358
      %v2379 = vrcp.pop %v2361
      %v2380 = vrcp.pop %v2364
      %v2381 = vrcp.pop %v2367
      %v2382 = vrcp.pop %v2370
      %v2383 = vrcp.pop %v2373
      %v2384 = vrcp.pop %v2376
      %v2385 = vmul.f32 %v2338, %v2377
      %v2386 = vmul.f32 %v2340, %v2378
      %v2387 = vmul.f32 %v2342, %v2379
      %v2388 = vmul.f32 %v2344, %v2380
      %v2389 = vmul.f32 %v2346, %v2381
      %v2390 = vmul.f32 %v2348, %v2382
      %v2391 = vmul.f32 %v2350, %v2383
      %v2392 = vmul.f32 %v2352, %v2384
      %2393 = vrot.lane.b32.xlu0 %v1901, 56
      %v2394 = vpop.permute.xlu0 %2393
      %2395 = vrot.lane.b32.xlu0 %v1904, 56
      %v2396 = vpop.permute.xlu0 %2395
      %2397 = vrot.lane.b32.xlu0 %v1907, 56
      %v2398 = vpop.permute.xlu0 %2397
      %2399 = vrot.lane.b32.xlu0 %v1910, 56
      %v2400 = vpop.permute.xlu0 %2399
      %2401 = vrot.lane.b32.xlu0 %v1913, 56
      %v2402 = vpop.permute.xlu0 %2401
      %2403 = vrot.lane.b32.xlu0 %v1916, 56
      %v2404 = vpop.permute.xlu0 %2403
      %2405 = vrot.lane.b32.xlu0 %v1919, 56
      %v2406 = vpop.permute.xlu0 %2405
      %2407 = vrot.lane.b32.xlu0 %v1922, 56
      %v2408 = vpop.permute.xlu0 %2407
      %v2418 = vsel %vm2022, %v2385, 0
      %v2421 = vsel %vm2022, %v2386, 0
      %v2424 = vsel %vm2022, %v2387, 0
      %v2427 = vsel %vm2022, %v2388, 0
      %v2430 = vsel %vm2022, %v2389, 0
      %v2433 = vsel %vm2022, %v2390, 0
      %v2436 = vsel %vm2022, %v2391, 0
      %v2439 = vsel %vm2022, %v2392, 0
      %2441 = vmatpush.msra.mxu0 0.0
      %2442 = vmatpush.msra.mxu0 0.0
      %2443 = vmatpush.msra.mxu0 0.0
      %2444 = vmatpush.msra.mxu0 0.0
      %2445 = vmatpush.msra.mxu0 0.0
      %2446 = vmatpush.msra.mxu0 0.0
      %2447 = vmatpush.msra.mxu0 0.0
      %2448 = vmatpush.msra.mxu0 0.0
      %2449 = vmatpush.msra.mxu0 %v2408
      %2450 = vmatpush.msra.mxu0 %v2406
      %2451 = vmatpush.msra.mxu0 %v2404
      %2452 = vmatpush.msra.mxu0 %v2402
      %2453 = vmatpush.msra.mxu0 %v2400
      %2454 = vmatpush.msra.mxu0 %v2398
      %2455 = vmatpush.msra.mxu0 %v2396
      %2456 = vmatpush.msra.mxu0 %v2394
      %2457 = vmatmul.f32.gmra.mxu0 %v2418
      %v2458 = vpop.f32.mrf.mxu0
      %v2459 = vadd.f32 0.0, %v2458
      %2460 = vmatmul.f32.gmra.mxu0 %v2421
      %v2461 = vpop.f32.mrf.mxu0
      %v2462 = vadd.f32 0.0, %v2461
      %2463 = vmatmul.f32.gmra.mxu0 %v2424
      %v2464 = vpop.f32.mrf.mxu0
      %v2465 = vadd.f32 0.0, %v2464
      %2466 = vmatmul.f32.gmra.mxu0 %v2427
      %v2467 = vpop.f32.mrf.mxu0
      %v2468 = vadd.f32 0.0, %v2467
      %2469 = vmatmul.f32.gmra.mxu0 %v2430
      %v2470 = vpop.f32.mrf.mxu0
      %v2471 = vadd.f32 0.0, %v2470
      %2472 = vmatmul.f32.gmra.mxu0 %v2433
      %v2473 = vpop.f32.mrf.mxu0
      %v2474 = vadd.f32 0.0, %v2473
      %2475 = vmatmul.f32.gmra.mxu0 %v2436
      %v2476 = vpop.f32.mrf.mxu0
      %v2477 = vadd.f32 0.0, %v2476
      %2478 = vmatmul.f32.gmra.mxu0 %v2439
      %v2479 = vpop.f32.mrf.mxu0
      %v2480 = vadd.f32 0.0, %v2479
      %2481 = vdwg.mxu0
      %2482 = vrot.lane.b32.xlu0 %v1901, 112
      %v2483 = vpop.permute.xlu0 %2482
      %2484 = vrot.lane.b32.xlu0 %v1904, 112
      %v2485 = vpop.permute.xlu0 %2484
      %2486 = vrot.lane.b32.xlu0 %v1907, 112
      %v2487 = vpop.permute.xlu0 %2486
      %2488 = vrot.lane.b32.xlu0 %v1910, 112
      %v2489 = vpop.permute.xlu0 %2488
      %2490 = vrot.lane.b32.xlu0 %v1913, 112
      %v2491 = vpop.permute.xlu0 %2490
      %2492 = vrot.lane.b32.xlu0 %v1916, 112
      %v2493 = vpop.permute.xlu0 %2492
      %2494 = vrot.lane.b32.xlu0 %v1919, 112
      %v2495 = vpop.permute.xlu0 %2494
      %2496 = vrot.lane.b32.xlu0 %v1922, 112
      %v2497 = vpop.permute.xlu0 %2496
      %2498 = vrot.lane.b32.xlu0 %v1901, 80
      %v2499 = vpop.permute.xlu0 %2498
      %2500 = vrot.lane.b32.xlu0 %v1904, 80
      %v2501 = vpop.permute.xlu0 %2500
      %2502 = vrot.lane.b32.xlu0 %v1907, 80
      %v2503 = vpop.permute.xlu0 %2502
      %2504 = vrot.lane.b32.xlu0 %v1910, 80
      %v2505 = vpop.permute.xlu0 %2504
      %2506 = vrot.lane.b32.xlu0 %v1913, 80
      %v2507 = vpop.permute.xlu0 %2506
      %2508 = vrot.lane.b32.xlu0 %v1916, 80
      %v2509 = vpop.permute.xlu0 %2508
      %2510 = vrot.lane.b32.xlu0 %v1919, 80
      %v2511 = vpop.permute.xlu0 %2510
      %2512 = vrot.lane.b32.xlu0 %v1922, 80
      %v2513 = vpop.permute.xlu0 %2512
      %v2514 = vsel %vm1948, %v2483, 0
      %v2516 = vsel %vm1948, %v2485, 0
      %v2518 = vsel %vm1948, %v2487, 0
      %v2520 = vsel %vm1948, %v2489, 0
      %v2522 = vsel %vm1948, %v2491, 0
      %v2524 = vsel %vm1948, %v2493, 0
      %v2526 = vsel %vm1948, %v2495, 0
      %v2528 = vsel %vm1948, %v2497, 0
      %v2530 = vsel %vm1948, %v2499, 0
      %v2532 = vsel %vm1948, %v2501, 0
      %v2534 = vsel %vm1948, %v2503, 0
      %v2536 = vsel %vm1948, %v2505, 0
      %v2538 = vsel %vm1948, %v2507, 0
      %v2540 = vsel %vm1948, %v2509, 0
      %v2542 = vsel %vm1948, %v2511, 0
      %v2544 = vsel %vm1948, %v2513, 0
      %2546 = vmatpush.xpose.msra.mxu0 0.0
      %2547 = vmatpush.xpose.msra.mxu0 0.0
      %2548 = vmatpush.xpose.msra.mxu0 0.0
      %2549 = vmatpush.xpose.msra.mxu0 0.0
      %2550 = vmatpush.xpose.msra.mxu0 0.0
      %2551 = vmatpush.xpose.msra.mxu0 0.0
      %2552 = vmatpush.xpose.msra.mxu0 0.0
      %2553 = vmatpush.xpose.msra.mxu0 0.0
      %2554 = vmatpush.xpose.msra.mxu0 %v2544
      %2555 = vmatpush.xpose.msra.mxu0 %v2542
      %2556 = vmatpush.xpose.msra.mxu0 %v2540
      %2557 = vmatpush.xpose.msra.mxu0 %v2538
      %2558 = vmatpush.xpose.msra.mxu0 %v2536
      %2559 = vmatpush.xpose.msra.mxu0 %v2534
      %2560 = vmatpush.xpose.msra.mxu0 %v2532
      %2561 = vmatpush.xpose.msra.mxu0 %v2530
      %2562 = vmatmul.f32.gmra.mxu0 %v2514
      %v2563 = vpop.f32.mrf.mxu0
      %v2564 = vadd.f32 0.0, %v2563
      %2565 = vmatmul.f32.gmra.mxu0 %v2516
      %v2566 = vpop.f32.mrf.mxu0
      %v2567 = vadd.f32 0.0, %v2566
      %2568 = vmatmul.f32.gmra.mxu0 %v2518
      %v2569 = vpop.f32.mrf.mxu0
      %v2570 = vadd.f32 0.0, %v2569
      %2571 = vmatmul.f32.gmra.mxu0 %v2520
      %v2572 = vpop.f32.mrf.mxu0
      %v2573 = vadd.f32 0.0, %v2572
      %2574 = vmatmul.f32.gmra.mxu0 %v2522
      %v2575 = vpop.f32.mrf.mxu0
      %v2576 = vadd.f32 0.0, %v2575
      %2577 = vmatmul.f32.gmra.mxu0 %v2524
      %v2578 = vpop.f32.mrf.mxu0
      %v2579 = vadd.f32 0.0, %v2578
      %2580 = vmatmul.f32.gmra.mxu0 %v2526
      %v2581 = vpop.f32.mrf.mxu0
      %v2582 = vadd.f32 0.0, %v2581
      %2583 = vmatmul.f32.gmra.mxu0 %v2528
      %v2584 = vpop.f32.mrf.mxu0
      %v2585 = vadd.f32 0.0, %v2584
      %2586 = vdwg.mxu0
      %v2587 = vsel %vm2022, %v2564, -inf
      %2588 = vmax.xlane.f32.xlu0 %v2587
      %v2589 = vpop.xlane.xlu0 %2588
      %v2590 = vsel %vm2022, %v2567, -inf
      %2591 = vmax.xlane.f32.xlu0 %v2590
      %v2592 = vpop.xlane.xlu0 %2591
      %v2593 = vsel %vm2022, %v2570, -inf
      %2594 = vmax.xlane.f32.xlu0 %v2593
      %v2595 = vpop.xlane.xlu0 %2594
      %v2596 = vsel %vm2022, %v2573, -inf
      %2597 = vmax.xlane.f32.xlu0 %v2596
      %v2598 = vpop.xlane.xlu0 %2597
      %v2599 = vsel %vm2022, %v2576, -inf
      %2600 = vmax.xlane.f32.xlu0 %v2599
      %v2601 = vpop.xlane.xlu0 %2600
      %v2602 = vsel %vm2022, %v2579, -inf
      %2603 = vmax.xlane.f32.xlu0 %v2602
      %v2604 = vpop.xlane.xlu0 %2603
      %v2605 = vsel %vm2022, %v2582, -inf
      %2606 = vmax.xlane.f32.xlu0 %v2605
      %v2607 = vpop.xlane.xlu0 %2606
      %v2608 = vsel %vm2022, %v2585, -inf
      %2609 = vmax.xlane.f32.xlu0 %v2608
      %v2610 = vpop.xlane.xlu0 %2609
      %v2611 = vsub.f32 %v2564, %v2589
      %v2612 = vsub.f32 %v2567, %v2592
      %v2613 = vsub.f32 %v2570, %v2595
      %v2614 = vsub.f32 %v2573, %v2598
      %v2615 = vsub.f32 %v2576, %v2601
      %v2616 = vsub.f32 %v2579, %v2604
      %v2617 = vsub.f32 %v2582, %v2607
      %v2618 = vsub.f32 %v2585, %v2610
      %v2619 = vmul.f32 %v2611, 1.442695
      %v2620 = vpow.pop %v2619
      %v2621 = vmul.f32 %v2612, 1.442695
      %v2622 = vpow.pop %v2621
      %v2623 = vmul.f32 %v2613, 1.442695
      %v2624 = vpow.pop %v2623
      %v2625 = vmul.f32 %v2614, 1.442695
      %v2626 = vpow.pop %v2625
      %v2627 = vmul.f32 %v2615, 1.442695
      %v2628 = vpow.pop %v2627
      %v2629 = vmul.f32 %v2616, 1.442695
      %v2630 = vpow.pop %v2629
      %v2631 = vmul.f32 %v2617, 1.442695
      %v2632 = vpow.pop %v2631
      %v2633 = vmul.f32 %v2618, 1.442695
      %v2634 = vpow.pop %v2633
      %v2635 = vsel %vm2022, %v2620, 0.0
      %2636 = vadd.xlane.f32.xlu0 %v2635
      %v2637 = vpop.xlane.xlu0 %2636
      %v2638 = vsel %vm2022, %v2622, 0.0
      %2639 = vadd.xlane.f32.xlu0 %v2638
      %v2640 = vpop.xlane.xlu0 %2639
      %v2641 = vsel %vm2022, %v2624, 0.0
      %2642 = vadd.xlane.f32.xlu0 %v2641
      %v2643 = vpop.xlane.xlu0 %2642
      %v2644 = vsel %vm2022, %v2626, 0.0
      %2645 = vadd.xlane.f32.xlu0 %v2644
      %v2646 = vpop.xlane.xlu0 %2645
      %v2647 = vsel %vm2022, %v2628, 0.0
      %2648 = vadd.xlane.f32.xlu0 %v2647
      %v2649 = vpop.xlane.xlu0 %2648
      %v2650 = vsel %vm2022, %v2630, 0.0
      %2651 = vadd.xlane.f32.xlu0 %v2650
      %v2652 = vpop.xlane.xlu0 %2651
      %v2653 = vsel %vm2022, %v2632, 0.0
      %2654 = vadd.xlane.f32.xlu0 %v2653
      %v2655 = vpop.xlane.xlu0 %2654
      %v2656 = vsel %vm2022, %v2634, 0.0
      %2657 = vadd.xlane.f32.xlu0 %v2656
      %v2658 = vpop.xlane.xlu0 %2657
      %v2659 = vrcp.pop %v2637
      %v2660 = vrcp.pop %v2640
      %v2661 = vrcp.pop %v2643
      %v2662 = vrcp.pop %v2646
      %v2663 = vrcp.pop %v2649
      %v2664 = vrcp.pop %v2652
      %v2665 = vrcp.pop %v2655
      %v2666 = vrcp.pop %v2658
      %v2667 = vmul.f32 %v2620, %v2659
      %v2668 = vmul.f32 %v2622, %v2660
      %v2669 = vmul.f32 %v2624, %v2661
      %v2670 = vmul.f32 %v2626, %v2662
      %v2671 = vmul.f32 %v2628, %v2663
      %v2672 = vmul.f32 %v2630, %v2664
      %v2673 = vmul.f32 %v2632, %v2665
      %v2674 = vmul.f32 %v2634, %v2666
      %2675 = vrot.lane.b32.xlu0 %v1901, 48
      %v2676 = vpop.permute.xlu0 %2675
      %2677 = vrot.lane.b32.xlu0 %v1904, 48
      %v2678 = vpop.permute.xlu0 %2677
      %2679 = vrot.lane.b32.xlu0 %v1907, 48
      %v2680 = vpop.permute.xlu0 %2679
      %2681 = vrot.lane.b32.xlu0 %v1910, 48
      %v2682 = vpop.permute.xlu0 %2681
      %2683 = vrot.lane.b32.xlu0 %v1913, 48
      %v2684 = vpop.permute.xlu0 %2683
      %2685 = vrot.lane.b32.xlu0 %v1916, 48
      %v2686 = vpop.permute.xlu0 %2685
      %2687 = vrot.lane.b32.xlu0 %v1919, 48
      %v2688 = vpop.permute.xlu0 %2687
      %2689 = vrot.lane.b32.xlu0 %v1922, 48
      %v2690 = vpop.permute.xlu0 %2689
      %v2700 = vsel %vm2022, %v2667, 0
      %v2703 = vsel %vm2022, %v2668, 0
      %v2706 = vsel %vm2022, %v2669, 0
      %v2709 = vsel %vm2022, %v2670, 0
      %v2712 = vsel %vm2022, %v2671, 0
      %v2715 = vsel %vm2022, %v2672, 0
      %v2718 = vsel %vm2022, %v2673, 0
      %v2721 = vsel %vm2022, %v2674, 0
      %2723 = vmatpush.msra.mxu0 0.0
      %2724 = vmatpush.msra.mxu0 0.0
      %2725 = vmatpush.msra.mxu0 0.0
      %2726 = vmatpush.msra.mxu0 0.0
      %2727 = vmatpush.msra.mxu0 0.0
      %2728 = vmatpush.msra.mxu0 0.0
      %2729 = vmatpush.msra.mxu0 0.0
      %2730 = vmatpush.msra.mxu0 0.0
      %2731 = vmatpush.msra.mxu0 %v2690
      %2732 = vmatpush.msra.mxu0 %v2688
      %2733 = vmatpush.msra.mxu0 %v2686
      %2734 = vmatpush.msra.mxu0 %v2684
      %2735 = vmatpush.msra.mxu0 %v2682
      %2736 = vmatpush.msra.mxu0 %v2680
      %2737 = vmatpush.msra.mxu0 %v2678
      %2738 = vmatpush.msra.mxu0 %v2676
      %2739 = vmatmul.f32.gmra.mxu0 %v2700
      %v2740 = vpop.f32.mrf.mxu0
      %v2741 = vadd.f32 0.0, %v2740
      %2742 = vmatmul.f32.gmra.mxu0 %v2703
      %v2743 = vpop.f32.mrf.mxu0
      %v2744 = vadd.f32 0.0, %v2743
      %2745 = vmatmul.f32.gmra.mxu0 %v2706
      %v2746 = vpop.f32.mrf.mxu0
      %v2747 = vadd.f32 0.0, %v2746
      %2748 = vmatmul.f32.gmra.mxu0 %v2709
      %v2749 = vpop.f32.mrf.mxu0
      %v2750 = vadd.f32 0.0, %v2749
      %2751 = vmatmul.f32.gmra.mxu0 %v2712
      %v2752 = vpop.f32.mrf.mxu0
      %v2753 = vadd.f32 0.0, %v2752
      %2754 = vmatmul.f32.gmra.mxu0 %v2715
      %v2755 = vpop.f32.mrf.mxu0
      %v2756 = vadd.f32 0.0, %v2755
      %2757 = vmatmul.f32.gmra.mxu0 %v2718
      %v2758 = vpop.f32.mrf.mxu0
      %v2759 = vadd.f32 0.0, %v2758
      %2760 = vmatmul.f32.gmra.mxu0 %v2721
      %v2761 = vpop.f32.mrf.mxu0
      %v2762 = vadd.f32 0.0, %v2761
      %2763 = vdwg.mxu0
      %2764 = vrot.lane.b32.xlu0 %v1901, 104
      %v2765 = vpop.permute.xlu0 %2764
      %2766 = vrot.lane.b32.xlu0 %v1904, 104
      %v2767 = vpop.permute.xlu0 %2766
      %2768 = vrot.lane.b32.xlu0 %v1907, 104
      %v2769 = vpop.permute.xlu0 %2768
      %2770 = vrot.lane.b32.xlu0 %v1910, 104
      %v2771 = vpop.permute.xlu0 %2770
      %2772 = vrot.lane.b32.xlu0 %v1913, 104
      %v2773 = vpop.permute.xlu0 %2772
      %2774 = vrot.lane.b32.xlu0 %v1916, 104
      %v2775 = vpop.permute.xlu0 %2774
      %2776 = vrot.lane.b32.xlu0 %v1919, 104
      %v2777 = vpop.permute.xlu0 %2776
      %2778 = vrot.lane.b32.xlu0 %v1922, 104
      %v2779 = vpop.permute.xlu0 %2778
      %2780 = vrot.lane.b32.xlu0 %v1901, 72
      %v2781 = vpop.permute.xlu0 %2780
      %2782 = vrot.lane.b32.xlu0 %v1904, 72
      %v2783 = vpop.permute.xlu0 %2782
      %2784 = vrot.lane.b32.xlu0 %v1907, 72
      %v2785 = vpop.permute.xlu0 %2784
      %2786 = vrot.lane.b32.xlu0 %v1910, 72
      %v2787 = vpop.permute.xlu0 %2786
      %2788 = vrot.lane.b32.xlu0 %v1913, 72
      %v2789 = vpop.permute.xlu0 %2788
      %2790 = vrot.lane.b32.xlu0 %v1916, 72
      %v2791 = vpop.permute.xlu0 %2790
      %2792 = vrot.lane.b32.xlu0 %v1919, 72
      %v2793 = vpop.permute.xlu0 %2792
      %2794 = vrot.lane.b32.xlu0 %v1922, 72
      %v2795 = vpop.permute.xlu0 %2794
      %v2796 = vsel %vm1948, %v2765, 0
      %v2798 = vsel %vm1948, %v2767, 0
      %v2800 = vsel %vm1948, %v2769, 0
      %v2802 = vsel %vm1948, %v2771, 0
      %v2804 = vsel %vm1948, %v2773, 0
      %v2806 = vsel %vm1948, %v2775, 0
      %v2808 = vsel %vm1948, %v2777, 0
      %v2810 = vsel %vm1948, %v2779, 0
      %v2812 = vsel %vm1948, %v2781, 0
      %v2814 = vsel %vm1948, %v2783, 0
      %v2816 = vsel %vm1948, %v2785, 0
      %v2818 = vsel %vm1948, %v2787, 0
      %v2820 = vsel %vm1948, %v2789, 0
      %v2822 = vsel %vm1948, %v2791, 0
      %v2824 = vsel %vm1948, %v2793, 0
      %v2826 = vsel %vm1948, %v2795, 0
      %2828 = vmatpush.xpose.msra.mxu0 0.0
      %2829 = vmatpush.xpose.msra.mxu0 0.0
      %2830 = vmatpush.xpose.msra.mxu0 0.0
      %2831 = vmatpush.xpose.msra.mxu0 0.0
      %2832 = vmatpush.xpose.msra.mxu0 0.0
      %2833 = vmatpush.xpose.msra.mxu0 0.0
      %2834 = vmatpush.xpose.msra.mxu0 0.0
      %2835 = vmatpush.xpose.msra.mxu0 0.0
      %2836 = vmatpush.xpose.msra.mxu0 %v2826
      %2837 = vmatpush.xpose.msra.mxu0 %v2824
      %2838 = vmatpush.xpose.msra.mxu0 %v2822
      %2839 = vmatpush.xpose.msra.mxu0 %v2820
      %2840 = vmatpush.xpose.msra.mxu0 %v2818
      %2841 = vmatpush.xpose.msra.mxu0 %v2816
      %2842 = vmatpush.xpose.msra.mxu0 %v2814
      %2843 = vmatpush.xpose.msra.mxu0 %v2812
      %2844 = vmatmul.f32.gmra.mxu0 %v2796
      %v2845 = vpop.f32.mrf.mxu0
      %v2846 = vadd.f32 0.0, %v2845
      %2847 = vmatmul.f32.gmra.mxu0 %v2798
      %v2848 = vpop.f32.mrf.mxu0
      %v2849 = vadd.f32 0.0, %v2848
      %2850 = vmatmul.f32.gmra.mxu0 %v2800
      %v2851 = vpop.f32.mrf.mxu0
      %v2852 = vadd.f32 0.0, %v2851
      %2853 = vmatmul.f32.gmra.mxu0 %v2802
      %v2854 = vpop.f32.mrf.mxu0
      %v2855 = vadd.f32 0.0, %v2854
      %2856 = vmatmul.f32.gmra.mxu0 %v2804
      %v2857 = vpop.f32.mrf.mxu0
      %v2858 = vadd.f32 0.0, %v2857
      %2859 = vmatmul.f32.gmra.mxu0 %v2806
      %v2860 = vpop.f32.mrf.mxu0
      %v2861 = vadd.f32 0.0, %v2860
      %2862 = vmatmul.f32.gmra.mxu0 %v2808
      %v2863 = vpop.f32.mrf.mxu0
      %v2864 = vadd.f32 0.0, %v2863
      %2865 = vmatmul.f32.gmra.mxu0 %v2810
      %v2866 = vpop.f32.mrf.mxu0
      %v2867 = vadd.f32 0.0, %v2866
      %2868 = vdwg.mxu0
      %v2869 = vsel %vm2022, %v2846, -inf
      %2870 = vmax.xlane.f32.xlu0 %v2869
      %v2871 = vpop.xlane.xlu0 %2870
      %v2872 = vsel %vm2022, %v2849, -inf
      %2873 = vmax.xlane.f32.xlu0 %v2872
      %v2874 = vpop.xlane.xlu0 %2873
      %v2875 = vsel %vm2022, %v2852, -inf
      %2876 = vmax.xlane.f32.xlu0 %v2875
      %v2877 = vpop.xlane.xlu0 %2876
      %v2878 = vsel %vm2022, %v2855, -inf
      %2879 = vmax.xlane.f32.xlu0 %v2878
      %v2880 = vpop.xlane.xlu0 %2879
      %v2881 = vsel %vm2022, %v2858, -inf
      %2882 = vmax.xlane.f32.xlu0 %v2881
      %v2883 = vpop.xlane.xlu0 %2882
      %v2884 = vsel %vm2022, %v2861, -inf
      %2885 = vmax.xlane.f32.xlu0 %v2884
      %v2886 = vpop.xlane.xlu0 %2885
      %v2887 = vsel %vm2022, %v2864, -inf
      %2888 = vmax.xlane.f32.xlu0 %v2887
      %v2889 = vpop.xlane.xlu0 %2888
      %v2890 = vsel %vm2022, %v2867, -inf
      %2891 = vmax.xlane.f32.xlu0 %v2890
      %v2892 = vpop.xlane.xlu0 %2891
      %v2893 = vsub.f32 %v2846, %v2871
      %v2894 = vsub.f32 %v2849, %v2874
      %v2895 = vsub.f32 %v2852, %v2877
      %v2896 = vsub.f32 %v2855, %v2880
      %v2897 = vsub.f32 %v2858, %v2883
      %v2898 = vsub.f32 %v2861, %v2886
      %v2899 = vsub.f32 %v2864, %v2889
      %v2900 = vsub.f32 %v2867, %v2892
      %v2901 = vmul.f32 %v2893, 1.442695
      %v2902 = vpow.pop %v2901
      %v2903 = vmul.f32 %v2894, 1.442695
      %v2904 = vpow.pop %v2903
      %v2905 = vmul.f32 %v2895, 1.442695
      %v2906 = vpow.pop %v2905
      %v2907 = vmul.f32 %v2896, 1.442695
      %v2908 = vpow.pop %v2907
      %v2909 = vmul.f32 %v2897, 1.442695
      %v2910 = vpow.pop %v2909
      %v2911 = vmul.f32 %v2898, 1.442695
      %v2912 = vpow.pop %v2911
      %v2913 = vmul.f32 %v2899, 1.442695
      %v2914 = vpow.pop %v2913
      %v2915 = vmul.f32 %v2900, 1.442695
      %v2916 = vpow.pop %v2915
      %v2917 = vsel %vm2022, %v2902, 0.0
      %2918 = vadd.xlane.f32.xlu0 %v2917
      %v2919 = vpop.xlane.xlu0 %2918
      %v2920 = vsel %vm2022, %v2904, 0.0
      %2921 = vadd.xlane.f32.xlu0 %v2920
      %v2922 = vpop.xlane.xlu0 %2921
      %v2923 = vsel %vm2022, %v2906, 0.0
      %2924 = vadd.xlane.f32.xlu0 %v2923
      %v2925 = vpop.xlane.xlu0 %2924
      %v2926 = vsel %vm2022, %v2908, 0.0
      %2927 = vadd.xlane.f32.xlu0 %v2926
      %v2928 = vpop.xlane.xlu0 %2927
      %v2929 = vsel %vm2022, %v2910, 0.0
      %2930 = vadd.xlane.f32.xlu0 %v2929
      %v2931 = vpop.xlane.xlu0 %2930
      %v2932 = vsel %vm2022, %v2912, 0.0
      %2933 = vadd.xlane.f32.xlu0 %v2932
      %v2934 = vpop.xlane.xlu0 %2933
      %v2935 = vsel %vm2022, %v2914, 0.0
      %2936 = vadd.xlane.f32.xlu0 %v2935
      %v2937 = vpop.xlane.xlu0 %2936
      %v2938 = vsel %vm2022, %v2916, 0.0
      %2939 = vadd.xlane.f32.xlu0 %v2938
      %v2940 = vpop.xlane.xlu0 %2939
      %v2941 = vrcp.pop %v2919
      %v2942 = vrcp.pop %v2922
      %v2943 = vrcp.pop %v2925
      %v2944 = vrcp.pop %v2928
      %v2945 = vrcp.pop %v2931
      %v2946 = vrcp.pop %v2934
      %v2947 = vrcp.pop %v2937
      %v2948 = vrcp.pop %v2940
      %v2949 = vmul.f32 %v2902, %v2941
      %v2950 = vmul.f32 %v2904, %v2942
      %v2951 = vmul.f32 %v2906, %v2943
      %v2952 = vmul.f32 %v2908, %v2944
      %v2953 = vmul.f32 %v2910, %v2945
      %v2954 = vmul.f32 %v2912, %v2946
      %v2955 = vmul.f32 %v2914, %v2947
      %v2956 = vmul.f32 %v2916, %v2948
      %2957 = vrot.lane.b32.xlu0 %v1901, 40
      %v2958 = vpop.permute.xlu0 %2957
      %2959 = vrot.lane.b32.xlu0 %v1904, 40
      %v2960 = vpop.permute.xlu0 %2959
      %2961 = vrot.lane.b32.xlu0 %v1907, 40
      %v2962 = vpop.permute.xlu0 %2961
      %2963 = vrot.lane.b32.xlu0 %v1910, 40
      %v2964 = vpop.permute.xlu0 %2963
      %2965 = vrot.lane.b32.xlu0 %v1913, 40
      %v2966 = vpop.permute.xlu0 %2965
      %2967 = vrot.lane.b32.xlu0 %v1916, 40
      %v2968 = vpop.permute.xlu0 %2967
      %2969 = vrot.lane.b32.xlu0 %v1919, 40
      %v2970 = vpop.permute.xlu0 %2969
      %2971 = vrot.lane.b32.xlu0 %v1922, 40
      %v2972 = vpop.permute.xlu0 %2971
      %v2982 = vsel %vm2022, %v2949, 0
      %v2985 = vsel %vm2022, %v2950, 0
      %v2988 = vsel %vm2022, %v2951, 0
      %v2991 = vsel %vm2022, %v2952, 0
      %v2994 = vsel %vm2022, %v2953, 0
      %v2997 = vsel %vm2022, %v2954, 0
      %v3000 = vsel %vm2022, %v2955, 0
      %v3003 = vsel %vm2022, %v2956, 0
      %3005 = vmatpush.msra.mxu0 0.0
      %3006 = vmatpush.msra.mxu0 0.0
      %3007 = vmatpush.msra.mxu0 0.0
      %3008 = vmatpush.msra.mxu0 0.0
      %3009 = vmatpush.msra.mxu0 0.0
      %3010 = vmatpush.msra.mxu0 0.0
      %3011 = vmatpush.msra.mxu0 0.0
      %3012 = vmatpush.msra.mxu0 0.0
      %3013 = vmatpush.msra.mxu0 %v2972
      %3014 = vmatpush.msra.mxu0 %v2970
      %3015 = vmatpush.msra.mxu0 %v2968
      %3016 = vmatpush.msra.mxu0 %v2966
      %3017 = vmatpush.msra.mxu0 %v2964
      %3018 = vmatpush.msra.mxu0 %v2962
      %3019 = vmatpush.msra.mxu0 %v2960
      %3020 = vmatpush.msra.mxu0 %v2958
      %3021 = vmatmul.f32.gmra.mxu0 %v2982
      %v3022 = vpop.f32.mrf.mxu0
      %v3023 = vadd.f32 0.0, %v3022
      %3024 = vmatmul.f32.gmra.mxu0 %v2985
      %v3025 = vpop.f32.mrf.mxu0
      %v3026 = vadd.f32 0.0, %v3025
      %3027 = vmatmul.f32.gmra.mxu0 %v2988
      %v3028 = vpop.f32.mrf.mxu0
      %v3029 = vadd.f32 0.0, %v3028
      %3030 = vmatmul.f32.gmra.mxu0 %v2991
      %v3031 = vpop.f32.mrf.mxu0
      %v3032 = vadd.f32 0.0, %v3031
      %3033 = vmatmul.f32.gmra.mxu0 %v2994
      %v3034 = vpop.f32.mrf.mxu0
      %v3035 = vadd.f32 0.0, %v3034
      %3036 = vmatmul.f32.gmra.mxu0 %v2997
      %v3037 = vpop.f32.mrf.mxu0
      %v3038 = vadd.f32 0.0, %v3037
      %3039 = vmatmul.f32.gmra.mxu0 %v3000
      %v3040 = vpop.f32.mrf.mxu0
      %v3041 = vadd.f32 0.0, %v3040
      %3042 = vmatmul.f32.gmra.mxu0 %v3003
      %v3043 = vpop.f32.mrf.mxu0
      %v3044 = vadd.f32 0.0, %v3043
      %3045 = vdwg.mxu0
      %3054 = vrot.lane.b32.xlu0 %v2459, 8
      %v3055 = vpop.permute.xlu0 %3054
      %3056 = vrot.lane.b32.xlu0 %v2462, 8
      %v3057 = vpop.permute.xlu0 %3056
      %3058 = vrot.lane.b32.xlu0 %v2465, 8
      %v3059 = vpop.permute.xlu0 %3058
      %3060 = vrot.lane.b32.xlu0 %v2468, 8
      %v3061 = vpop.permute.xlu0 %3060
      %3062 = vrot.lane.b32.xlu0 %v2471, 8
      %v3063 = vpop.permute.xlu0 %3062
      %3064 = vrot.lane.b32.xlu0 %v2474, 8
      %v3065 = vpop.permute.xlu0 %3064
      %3066 = vrot.lane.b32.xlu0 %v2477, 8
      %v3067 = vpop.permute.xlu0 %3066
      %3068 = vrot.lane.b32.xlu0 %v2480, 8
      %v3069 = vpop.permute.xlu0 %3068
      %3086 = vrot.lane.b32.xlu0 %v2741, 16
      %v3087 = vpop.permute.xlu0 %3086
      %3088 = vrot.lane.b32.xlu0 %v2744, 16
      %v3089 = vpop.permute.xlu0 %3088
      %3090 = vrot.lane.b32.xlu0 %v2747, 16
      %v3091 = vpop.permute.xlu0 %3090
      %3092 = vrot.lane.b32.xlu0 %v2750, 16
      %v3093 = vpop.permute.xlu0 %3092
      %3094 = vrot.lane.b32.xlu0 %v2753, 16
      %v3095 = vpop.permute.xlu0 %3094
      %3096 = vrot.lane.b32.xlu0 %v2756, 16
      %v3097 = vpop.permute.xlu0 %3096
      %3098 = vrot.lane.b32.xlu0 %v2759, 16
      %v3099 = vpop.permute.xlu0 %3098
      %3100 = vrot.lane.b32.xlu0 %v2762, 16
      %v3101 = vpop.permute.xlu0 %3100
      %3118 = vrot.lane.b32.xlu0 %v3023, 24
      %v3119 = vpop.permute.xlu0 %3118
      %3120 = vrot.lane.b32.xlu0 %v3026, 24
      %v3121 = vpop.permute.xlu0 %3120
      %3122 = vrot.lane.b32.xlu0 %v3029, 24
      %v3123 = vpop.permute.xlu0 %3122
      %3124 = vrot.lane.b32.xlu0 %v3032, 24
      %v3125 = vpop.permute.xlu0 %3124
      %3126 = vrot.lane.b32.xlu0 %v3035, 24
      %v3127 = vpop.permute.xlu0 %3126
      %3128 = vrot.lane.b32.xlu0 %v3038, 24
      %v3129 = vpop.permute.xlu0 %3128
      %3130 = vrot.lane.b32.xlu0 %v3041, 24
      %v3131 = vpop.permute.xlu0 %3130
      %3132 = vrot.lane.b32.xlu0 %v3044, 24
      %v3133 = vpop.permute.xlu0 %3132
      %v3142 = vsel %vm1948, %v2177, %v3055
      %v3143 = vsel %vm1948, %v2180, %v3057
      %v3144 = vsel %vm1948, %v2183, %v3059
      %v3145 = vsel %vm1948, %v2186, %v3061
      %v3146 = vsel %vm1948, %v2189, %v3063
      %v3147 = vsel %vm1948, %v2192, %v3065
      %v3148 = vsel %vm1948, %v2195, %v3067
      %v3149 = vsel %vm1948, %v2198, %v3069
      %vm3150 = vcmask 130048
      %v3151 = vsel %vm3150, %v3142, %v3087
      %v3152 = vsel %vm3150, %v3143, %v3089
      %v3153 = vsel %vm3150, %v3144, %v3091
      %v3154 = vsel %vm3150, %v3145, %v3093
      %v3155 = vsel %vm3150, %v3146, %v3095
      %v3156 = vsel %vm3150, %v3147, %v3097
      %v3157 = vsel %vm3150, %v3148, %v3099
      %v3158 = vsel %vm3150, %v3149, %v3101
      %vm3159 = vcmask 195584
      %v3160 = vsel %vm3159, %v3151, %v3119
      %v3161 = vsel %vm3159, %v3152, %v3121
      %v3162 = vsel %vm3159, %v3153, %v3123
      %v3163 = vsel %vm3159, %v3154, %v3125
      %v3164 = vsel %vm3159, %v3155, %v3127
      %v3165 = vsel %vm3159, %v3156, %v3129
      %v3166 = vsel %vm3159, %v3157, %v3131
      %v3167 = vsel %vm3159, %v3158, %v3133
      %v3169 = vperm.slane %v1836, 0
      %v3172 = vsel %vm1858, %v3160, 0
      %v3175 = vsel %vm1858, %v3161, 0
      %v3178 = vsel %vm1858, %v3162, 0
      %v3181 = vsel %vm1858, %v3163, 0
      %v3184 = vsel %vm1858, %v3164, 0
      %v3187 = vsel %vm1858, %v3165, 0
      %v3190 = vsel %vm1858, %v3166, 0
      %v3193 = vsel %vm1858, %v3167, 0
      %3195 = vmatpush.msra.mxu0 0.0
      %3196 = vmatpush.msra.mxu0 0.0
      %3197 = vmatpush.msra.mxu0 0.0
      %3198 = vmatpush.msra.mxu0 0.0
      %3199 = vmatpush.msra.mxu0 0.0
      %3200 = vmatpush.msra.mxu0 0.0
      %3201 = vmatpush.msra.mxu0 0.0
      %3202 = vmatpush.msra.mxu0 0.0
      %3203 = vmatpush.msra.mxu0 0.0
      %3204 = vmatpush.msra.mxu0 0.0
      %3205 = vmatpush.msra.mxu0 0.0
      %3206 = vmatpush.msra.mxu0 0.0
      %3207 = vmatpush.msra.mxu0 %v1835
      %3208 = vmatpush.msra.mxu0 %v1834
      %3209 = vmatpush.msra.mxu0 %v1833
      %3210 = vmatpush.msra.mxu0 %v1832
      %3211 = vmatmul.f32.gmra.mxu0 %v3172
      %v3212 = vpop.f32.mrf.mxu0
      %v3213 = vadd.f32 %v3169, %v3212
      %3214 = vmatmul.f32.gmra.mxu0 %v3175
      %v3215 = vpop.f32.mrf.mxu0
      %v3216 = vadd.f32 %v3169, %v3215
      %3217 = vmatmul.f32.gmra.mxu0 %v3178
      %v3218 = vpop.f32.mrf.mxu0
      %v3219 = vadd.f32 %v3169, %v3218
      %3220 = vmatmul.f32.gmra.mxu0 %v3181
      %v3221 = vpop.f32.mrf.mxu0
      %v3222 = vadd.f32 %v3169, %v3221
      %3223 = vmatmul.f32.gmra.mxu0 %v3184
      %v3224 = vpop.f32.mrf.mxu0
      %v3225 = vadd.f32 %v3169, %v3224
      %3226 = vmatmul.f32.gmra.mxu0 %v3187
      %v3227 = vpop.f32.mrf.mxu0
      %v3228 = vadd.f32 %v3169, %v3227
      %3229 = vmatmul.f32.gmra.mxu0 %v3190
      %v3230 = vpop.f32.mrf.mxu0
      %v3231 = vadd.f32 %v3169, %v3230
      %3232 = vmatmul.f32.gmra.mxu0 %v3193
      %v3233 = vpop.f32.mrf.mxu0
      %v3234 = vadd.f32 %v3169, %v3233
      %3235 = vdwg.mxu0
      %v3236 = vadd.f32 %v1819, %v3213
      %v3237 = vadd.f32 %v1820, %v3216
      %v3238 = vadd.f32 %v1821, %v3219
      %v3239 = vadd.f32 %v1822, %v3222
      %v3240 = vadd.f32 %v1823, %v3225
      %v3241 = vadd.f32 %v1824, %v3228
      %v3242 = vadd.f32 %v1825, %v3231
      %v3243 = vadd.f32 %v1826, %v3234
      %v3244 = vsel %vm1858, %v3236, 0.0
      %3245 = vadd.xlane.f32.xlu0 %v3244
      %v3246 = vpop.xlane.xlu0 %3245
      %v3247 = vsel %vm1858, %v3237, 0.0
      %3248 = vadd.xlane.f32.xlu0 %v3247
      %v3249 = vpop.xlane.xlu0 %3248
      %v3250 = vsel %vm1858, %v3238, 0.0
      %3251 = vadd.xlane.f32.xlu0 %v3250
      %v3252 = vpop.xlane.xlu0 %3251
      %v3253 = vsel %vm1858, %v3239, 0.0
      %3254 = vadd.xlane.f32.xlu0 %v3253
      %v3255 = vpop.xlane.xlu0 %3254
      %v3256 = vsel %vm1858, %v3240, 0.0
      %3257 = vadd.xlane.f32.xlu0 %v3256
      %v3258 = vpop.xlane.xlu0 %3257
      %v3259 = vsel %vm1858, %v3241, 0.0
      %3260 = vadd.xlane.f32.xlu0 %v3259
      %v3261 = vpop.xlane.xlu0 %3260
      %v3262 = vsel %vm1858, %v3242, 0.0
      %3263 = vadd.xlane.f32.xlu0 %v3262
      %v3264 = vpop.xlane.xlu0 %3263
      %v3265 = vsel %vm1858, %v3243, 0.0
      %3266 = vadd.xlane.f32.xlu0 %v3265
      %v3267 = vpop.xlane.xlu0 %3266
      %v3268 = vrcp.pop 32.0
      %v3269 = vmul.f32 32.0, %v3268
      %v3270 = vsub.f32 1.0, %v3269
      %v3271 = vmul.f32 %v3268, %v3270
      %v3272 = vadd.f32 %v3268, %v3271
      %vm3273 = vweird.f32 %v3268
      %v3274 = vsel %vm3273, %v3268, %v3272
      %v3275 = vmul.f32 %v3246, %v3274
      %v3276 = vmul.f32 %v3249, %v3274
      %v3277 = vmul.f32 %v3252, %v3274
      %v3278 = vmul.f32 %v3255, %v3274
      %v3279 = vmul.f32 %v3258, %v3274
      %v3280 = vmul.f32 %v3261, %v3274
      %v3281 = vmul.f32 %v3264, %v3274
      %v3282 = vmul.f32 %v3267, %v3274
      %v3283 = vsub.f32 %v3236, %v3275
      %v3284 = vsub.f32 %v3237, %v3276
      %v3285 = vsub.f32 %v3238, %v3277
      %v3286 = vsub.f32 %v3239, %v3278
      %v3287 = vsub.f32 %v3240, %v3279
      %v3288 = vsub.f32 %v3241, %v3280
      %v3289 = vsub.f32 %v3242, %v3281
      %v3290 = vsub.f32 %v3243, %v3282
      %v3291 = vmul.f32 %v3283, %v3283
      %v3292 = vmul.f32 %v3284, %v3284
      %v3293 = vmul.f32 %v3285, %v3285
      %v3294 = vmul.f32 %v3286, %v3286
      %v3295 = vmul.f32 %v3287, %v3287
      %v3296 = vmul.f32 %v3288, %v3288
      %v3297 = vmul.f32 %v3289, %v3289
      %v3298 = vmul.f32 %v3290, %v3290
      %v3299 = vsel %vm1858, %v3291, 0.0
      %3300 = vadd.xlane.f32.xlu0 %v3299
      %v3301 = vpop.xlane.xlu0 %3300
      %v3302 = vsel %vm1858, %v3292, 0.0
      %3303 = vadd.xlane.f32.xlu0 %v3302
      %v3304 = vpop.xlane.xlu0 %3303
      %v3305 = vsel %vm1858, %v3293, 0.0
      %3306 = vadd.xlane.f32.xlu0 %v3305
      %v3307 = vpop.xlane.xlu0 %3306
      %v3308 = vsel %vm1858, %v3294, 0.0
      %3309 = vadd.xlane.f32.xlu0 %v3308
      %v3310 = vpop.xlane.xlu0 %3309
      %v3311 = vsel %vm1858, %v3295, 0.0
      %3312 = vadd.xlane.f32.xlu0 %v3311
      %v3313 = vpop.xlane.xlu0 %3312
      %v3314 = vsel %vm1858, %v3296, 0.0
      %3315 = vadd.xlane.f32.xlu0 %v3314
      %v3316 = vpop.xlane.xlu0 %3315
      %v3317 = vsel %vm1858, %v3297, 0.0
      %3318 = vadd.xlane.f32.xlu0 %v3317
      %v3319 = vpop.xlane.xlu0 %3318
      %v3320 = vsel %vm1858, %v3298, 0.0
      %3321 = vadd.xlane.f32.xlu0 %v3320
      %v3322 = vpop.xlane.xlu0 %3321
      %v3323 = vmul.f32 %v3301, %v3274
      %v3324 = vmul.f32 %v3304, %v3274
      %v3325 = vmul.f32 %v3307, %v3274
      %v3326 = vmul.f32 %v3310, %v3274
      %v3327 = vmul.f32 %v3313, %v3274
      %v3328 = vmul.f32 %v3316, %v3274
      %v3329 = vmul.f32 %v3319, %v3274
      %v3330 = vmul.f32 %v3322, %v3274
      %v3331 = vadd.f32 %v3323, 1e-05
      %v3332 = vadd.f32 %v3324, 1e-05
      %v3333 = vadd.f32 %v3325, 1e-05
      %v3334 = vadd.f32 %v3326, 1e-05
      %v3335 = vadd.f32 %v3327, 1e-05
      %v3336 = vadd.f32 %v3328, 1e-05
      %v3337 = vadd.f32 %v3329, 1e-05
      %v3338 = vadd.f32 %v3330, 1e-05
      %v3339 = vrsqrt.pop %v3331
      %v3340 = vmul.f32 %v3339, %v3331
      %v3341 = vmul.f32 %v3340, %v3339
      %v3342 = vmul.f32 0.5, %v3341
      %v3343 = vsub.f32 1.5, %v3342
      %v3344 = vmul.f32 %v3339, %v3343
      %vm3345 = vweird.f32 %v3331
      %vm3346 = vweird.f32 %v3339
      %vm3347 = vmor %vm3345, %vm3346
      %v3348 = vsel %vm3347, %v3339, %v3344
      %v3349 = vrsqrt.pop %v3332
      %v3350 = vmul.f32 %v3349, %v3332
      %v3351 = vmul.f32 %v3350, %v3349
      %v3352 = vmul.f32 0.5, %v3351
      %v3353 = vsub.f32 1.5, %v3352
      %v3354 = vmul.f32 %v3349, %v3353
      %vm3355 = vweird.f32 %v3332
      %vm3356 = vweird.f32 %v3349
      %vm3357 = vmor %vm3355, %vm3356
      %v3358 = vsel %vm3357, %v3349, %v3354
      %v3359 = vrsqrt.pop %v3333
      %v3360 = vmul.f32 %v3359, %v3333
      %v3361 = vmul.f32 %v3360, %v3359
      %v3362 = vmul.f32 0.5, %v3361
      %v3363 = vsub.f32 1.5, %v3362
      %v3364 = vmul.f32 %v3359, %v3363
      %vm3365 = vweird.f32 %v3333
      %vm3366 = vweird.f32 %v3359
      %vm3367 = vmor %vm3365, %vm3366
      %v3368 = vsel %vm3367, %v3359, %v3364
      %v3369 = vrsqrt.pop %v3334
      %v3370 = vmul.f32 %v3369, %v3334
      %v3371 = vmul.f32 %v3370, %v3369
      %v3372 = vmul.f32 0.5, %v3371
      %v3373 = vsub.f32 1.5, %v3372
      %v3374 = vmul.f32 %v3369, %v3373
      %vm3375 = vweird.f32 %v3334
      %vm3376 = vweird.f32 %v3369
      %vm3377 = vmor %vm3375, %vm3376
      %v3378 = vsel %vm3377, %v3369, %v3374
      %v3379 = vrsqrt.pop %v3335
      %v3380 = vmul.f32 %v3379, %v3335
      %v3381 = vmul.f32 %v3380, %v3379
      %v3382 = vmul.f32 0.5, %v3381
      %v3383 = vsub.f32 1.5, %v3382
      %v3384 = vmul.f32 %v3379, %v3383
      %vm3385 = vweird.f32 %v3335
      %vm3386 = vweird.f32 %v3379
      %vm3387 = vmor %vm3385, %vm3386
      %v3388 = vsel %vm3387, %v3379, %v3384
      %v3389 = vrsqrt.pop %v3336
      %v3390 = vmul.f32 %v3389, %v3336
      %v3391 = vmul.f32 %v3390, %v3389
      %v3392 = vmul.f32 0.5, %v3391
      %v3393 = vsub.f32 1.5, %v3392
      %v3394 = vmul.f32 %v3389, %v3393
      %vm3395 = vweird.f32 %v3336
      %vm3396 = vweird.f32 %v3389
      %vm3397 = vmor %vm3395, %vm3396
      %v3398 = vsel %vm3397, %v3389, %v3394
      %v3399 = vrsqrt.pop %v3337
      %v3400 = vmul.f32 %v3399, %v3337
      %v3401 = vmul.f32 %v3400, %v3399
      %v3402 = vmul.f32 0.5, %v3401
      %v3403 = vsub.f32 1.5, %v3402
      %v3404 = vmul.f32 %v3399, %v3403
      %vm3405 = vweird.f32 %v3337
      %vm3406 = vweird.f32 %v3399
      %vm3407 = vmor %vm3405, %vm3406
      %v3408 = vsel %vm3407, %v3399, %v3404
      %v3409 = vrsqrt.pop %v3338
      %v3410 = vmul.f32 %v3409, %v3338
      %v3411 = vmul.f32 %v3410, %v3409
      %v3412 = vmul.f32 0.5, %v3411
      %v3413 = vsub.f32 1.5, %v3412
      %v3414 = vmul.f32 %v3409, %v3413
      %vm3415 = vweird.f32 %v3338
      %vm3416 = vweird.f32 %v3409
      %vm3417 = vmor %vm3415, %vm3416
      %v3418 = vsel %vm3417, %v3409, %v3414
      %v3419 = vmul.f32 %v3283, %v3348
      %v3420 = vmul.f32 %v3284, %v3358
      %v3421 = vmul.f32 %v3285, %v3368
      %v3422 = vmul.f32 %v3286, %v3378
      %v3423 = vmul.f32 %v3287, %v3388
      %v3424 = vmul.f32 %v3288, %v3398
      %v3425 = vmul.f32 %v3289, %v3408
      %v3426 = vmul.f32 %v3290, %v3418
      %v3428 = vperm.slane %v1837, 0
      %v3430 = vmul.f32 %v3419, %v3428
      %v3431 = vmul.f32 %v3420, %v3428
      %v3432 = vmul.f32 %v3421, %v3428
      %v3433 = vmul.f32 %v3422, %v3428
      %v3434 = vmul.f32 %v3423, %v3428
      %v3435 = vmul.f32 %v3424, %v3428
      %v3436 = vmul.f32 %v3425, %v3428
      %v3437 = vmul.f32 %v3426, %v3428
      %v3439 = vperm.slane %v1838, 0
      %v3441 = vadd.f32 %v3430, %v3439
      %v3442 = vadd.f32 %v3431, %v3439
      %v3443 = vadd.f32 %v3432, %v3439
      %v3444 = vadd.f32 %v3433, %v3439
      %v3445 = vadd.f32 %v3434, %v3439
      %v3446 = vadd.f32 %v3435, %v3439
      %v3447 = vadd.f32 %v3436, %v3439
      %v3448 = vadd.f32 %v3437, %v3439
      %v3450 = vperm.slane %v1843, 0
      %v3453 = vsel %vm1858, %v3441, 0
      %v3456 = vsel %vm1858, %v3442, 0
      %v3459 = vsel %vm1858, %v3443, 0
      %v3462 = vsel %vm1858, %v3444, 0
      %v3465 = vsel %vm1858, %v3445, 0
      %v3468 = vsel %vm1858, %v3446, 0
      %v3471 = vsel %vm1858, %v3447, 0
      %v3474 = vsel %vm1858, %v3448, 0
      %3476 = vmatpush.msra.mxu0 0.0
      %3477 = vmatpush.msra.mxu0 0.0
      %3478 = vmatpush.msra.mxu0 0.0
      %3479 = vmatpush.msra.mxu0 0.0
      %3480 = vmatpush.msra.mxu0 0.0
      %3481 = vmatpush.msra.mxu0 0.0
      %3482 = vmatpush.msra.mxu0 0.0
      %3483 = vmatpush.msra.mxu0 0.0
      %3484 = vmatpush.msra.mxu0 0.0
      %3485 = vmatpush.msra.mxu0 0.0
      %3486 = vmatpush.msra.mxu0 0.0
      %3487 = vmatpush.msra.mxu0 0.0
      %3488 = vmatpush.msra.mxu0 %v1842
      %3489 = vmatpush.msra.mxu0 %v1841
      %3490 = vmatpush.msra.mxu0 %v1840
      %3491 = vmatpush.msra.mxu0 %v1839
      %3492 = vmatmul.f32.gmra.mxu0 %v3453
      %v3493 = vpop.f32.mrf.mxu0
      %v3494 = vadd.f32 %v3450, %v3493
      %3495 = vmatmul.f32.gmra.mxu0 %v3456
      %v3496 = vpop.f32.mrf.mxu0
      %v3497 = vadd.f32 %v3450, %v3496
      %3498 = vmatmul.f32.gmra.mxu0 %v3459
      %v3499 = vpop.f32.mrf.mxu0
      %v3500 = vadd.f32 %v3450, %v3499
      %3501 = vmatmul.f32.gmra.mxu0 %v3462
      %v3502 = vpop.f32.mrf.mxu0
      %v3503 = vadd.f32 %v3450, %v3502
      %3504 = vmatmul.f32.gmra.mxu0 %v3465
      %v3505 = vpop.f32.mrf.mxu0
      %v3506 = vadd.f32 %v3450, %v3505
      %3507 = vmatmul.f32.gmra.mxu0 %v3468
      %v3508 = vpop.f32.mrf.mxu0
      %v3509 = vadd.f32 %v3450, %v3508
      %3510 = vmatmul.f32.gmra.mxu0 %v3471
      %v3511 = vpop.f32.mrf.mxu0
      %v3512 = vadd.f32 %v3450, %v3511
      %3513 = vmatmul.f32.gmra.mxu0 %v3474
      %v3514 = vpop.f32.mrf.mxu0
      %v3515 = vadd.f32 %v3450, %v3514
      %3516 = vdwg.mxu0
      %v3517 = vmax.f32 %v3494, 0.0
      %v3518 = vmax.f32 %v3497, 0.0
      %v3519 = vmax.f32 %v3500, 0.0
      %v3520 = vmax.f32 %v3503, 0.0
      %v3521 = vmax.f32 %v3506, 0.0
      %v3522 = vmax.f32 %v3509, 0.0
      %v3523 = vmax.f32 %v3512, 0.0
      %v3524 = vmax.f32 %v3515, 0.0
      %v3526 = vperm.slane %v1852, 0
      %v3529 = vsel %vm2022, %v3517, 0
      %v3532 = vsel %vm2022, %v3518, 0
      %v3535 = vsel %vm2022, %v3519, 0
      %v3538 = vsel %vm2022, %v3520, 0
      %v3541 = vsel %vm2022, %v3521, 0
      %v3544 = vsel %vm2022, %v3522, 0
      %v3547 = vsel %vm2022, %v3523, 0
      %v3550 = vsel %vm2022, %v3524, 0
      %3552 = vmatpush.msra.mxu0 0.0
      %3553 = vmatpush.msra.mxu0 0.0
      %3554 = vmatpush.msra.mxu0 0.0
      %3555 = vmatpush.msra.mxu0 0.0
      %3556 = vmatpush.msra.mxu0 0.0
      %3557 = vmatpush.msra.mxu0 0.0
      %3558 = vmatpush.msra.mxu0 0.0
      %3559 = vmatpush.msra.mxu0 0.0
      %3560 = vmatpush.msra.mxu0 %v1851
      %3561 = vmatpush.msra.mxu0 %v1850
      %3562 = vmatpush.msra.mxu0 %v1849
      %3563 = vmatpush.msra.mxu0 %v1848
      %3564 = vmatpush.msra.mxu0 %v1847
      %3565 = vmatpush.msra.mxu0 %v1846
      %3566 = vmatpush.msra.mxu0 %v1845
      %3567 = vmatpush.msra.mxu0 %v1844
      %3568 = vmatmul.f32.gmra.mxu0 %v3529
      %v3569 = vpop.f32.mrf.mxu0
      %v3570 = vadd.f32 %v3526, %v3569
      %3571 = vmatmul.f32.gmra.mxu0 %v3532
      %v3572 = vpop.f32.mrf.mxu0
      %v3573 = vadd.f32 %v3526, %v3572
      %3574 = vmatmul.f32.gmra.mxu0 %v3535
      %v3575 = vpop.f32.mrf.mxu0
      %v3576 = vadd.f32 %v3526, %v3575
      %3577 = vmatmul.f32.gmra.mxu0 %v3538
      %v3578 = vpop.f32.mrf.mxu0
      %v3579 = vadd.f32 %v3526, %v3578
      %3580 = vmatmul.f32.gmra.mxu0 %v3541
      %v3581 = vpop.f32.mrf.mxu0
      %v3582 = vadd.f32 %v3526, %v3581
      %3583 = vmatmul.f32.gmra.mxu0 %v3544
      %v3584 = vpop.f32.mrf.mxu0
      %v3585 = vadd.f32 %v3526, %v3584
      %3586 = vmatmul.f32.gmra.mxu0 %v3547
      %v3587 = vpop.f32.mrf.mxu0
      %v3588 = vadd.f32 %v3526, %v3587
      %3589 = vmatmul.f32.gmra.mxu0 %v3550
      %v3590 = vpop.f32.mrf.mxu0
      %v3591 = vadd.f32 %v3526, %v3590
      %3592 = vdwg.mxu0
      %v3593 = vadd.f32 %v3441, %v3570
      %v3594 = vadd.f32 %v3442, %v3573
      %v3595 = vadd.f32 %v3443, %v3576
      %v3596 = vadd.f32 %v3444, %v3579
      %v3597 = vadd.f32 %v3445, %v3582
      %v3598 = vadd.f32 %v3446, %v3585
      %v3599 = vadd.f32 %v3447, %v3588
      %v3600 = vadd.f32 %v3448, %v3591
      %v3601 = vsel %vm1858, %v3593, 0.0
      %3602 = vadd.xlane.f32.xlu0 %v3601
      %v3603 = vpop.xlane.xlu0 %3602
      %v3604 = vsel %vm1858, %v3594, 0.0
      %3605 = vadd.xlane.f32.xlu0 %v3604
      %v3606 = vpop.xlane.xlu0 %3605
      %v3607 = vsel %vm1858, %v3595, 0.0
      %3608 = vadd.xlane.f32.xlu0 %v3607
      %v3609 = vpop.xlane.xlu0 %3608
      %v3610 = vsel %vm1858, %v3596, 0.0
      %3611 = vadd.xlane.f32.xlu0 %v3610
      %v3612 = vpop.xlane.xlu0 %3611
      %v3613 = vsel %vm1858, %v3597, 0.0
      %3614 = vadd.xlane.f32.xlu0 %v3613
      %v3615 = vpop.xlane.xlu0 %3614
      %v3616 = vsel %vm1858, %v3598, 0.0
      %3617 = vadd.xlane.f32.xlu0 %v3616
      %v3618 = vpop.xlane.xlu0 %3617
      %v3619 = vsel %vm1858, %v3599, 0.0
      %3620 = vadd.xlane.f32.xlu0 %v3619
      %v3621 = vpop.xlane.xlu0 %3620
      %v3622 = vsel %vm1858, %v3600, 0.0
      %3623 = vadd.xlane.f32.xlu0 %v3622
      %v3624 = vpop.xlane.xlu0 %3623
      %v3625 = vmul.f32 %v3603, %v3274
      %v3626 = vmul.f32 %v3606, %v3274
      %v3627 = vmul.f32 %v3609, %v3274
      %v3628 = vmul.f32 %v3612, %v3274
      %v3629 = vmul.f32 %v3615, %v3274
      %v3630 = vmul.f32 %v3618, %v3274
      %v3631 = vmul.f32 %v3621, %v3274
      %v3632 = vmul.f32 %v3624, %v3274
      %v3633 = vsub.f32 %v3593, %v3625
      %v3634 = vsub.f32 %v3594, %v3626
      %v3635 = vsub.f32 %v3595, %v3627
      %v3636 = vsub.f32 %v3596, %v3628
      %v3637 = vsub.f32 %v3597, %v3629
      %v3638 = vsub.f32 %v3598, %v3630
      %v3639 = vsub.f32 %v3599, %v3631
      %v3640 = vsub.f32 %v3600, %v3632
      %v3641 = vmul.f32 %v3633, %v3633
      %v3642 = vmul.f32 %v3634, %v3634
      %v3643 = vmul.f32 %v3635, %v3635
      %v3644 = vmul.f32 %v3636, %v3636
      %v3645 = vmul.f32 %v3637, %v3637
      %v3646 = vmul.f32 %v3638, %v3638
      %v3647 = vmul.f32 %v3639, %v3639
      %v3648 = vmul.f32 %v3640, %v3640
      %v3649 = vsel %vm1858, %v3641, 0.0
      %3650 = vadd.xlane.f32.xlu0 %v3649
      %v3651 = vpop.xlane.xlu0 %3650
      %v3652 = vsel %vm1858, %v3642, 0.0
      %3653 = vadd.xlane.f32.xlu0 %v3652
      %v3654 = vpop.xlane.xlu0 %3653
      %v3655 = vsel %vm1858, %v3643, 0.0
      %3656 = vadd.xlane.f32.xlu0 %v3655
      %v3657 = vpop.xlane.xlu0 %3656
      %v3658 = vsel %vm1858, %v3644, 0.0
      %3659 = vadd.xlane.f32.xlu0 %v3658
      %v3660 = vpop.xlane.xlu0 %3659
      %v3661 = vsel %vm1858, %v3645, 0.0
      %3662 = vadd.xlane.f32.xlu0 %v3661
      %v3663 = vpop.xlane.xlu0 %3662
      %v3664 = vsel %vm1858, %v3646, 0.0
      %3665 = vadd.xlane.f32.xlu0 %v3664
      %v3666 = vpop.xlane.xlu0 %3665
      %v3667 = vsel %vm1858, %v3647, 0.0
      %3668 = vadd.xlane.f32.xlu0 %v3667
      %v3669 = vpop.xlane.xlu0 %3668
      %v3670 = vsel %vm1858, %v3648, 0.0
      %3671 = vadd.xlane.f32.xlu0 %v3670
      %v3672 = vpop.xlane.xlu0 %3671
      %v3673 = vmul.f32 %v3651, %v3274
      %v3674 = vmul.f32 %v3654, %v3274
      %v3675 = vmul.f32 %v3657, %v3274
      %v3676 = vmul.f32 %v3660, %v3274
      %v3677 = vmul.f32 %v3663, %v3274
      %v3678 = vmul.f32 %v3666, %v3274
      %v3679 = vmul.f32 %v3669, %v3274
      %v3680 = vmul.f32 %v3672, %v3274
      %v3681 = vadd.f32 %v3673, 1e-05
      %v3682 = vadd.f32 %v3674, 1e-05
      %v3683 = vadd.f32 %v3675, 1e-05
      %v3684 = vadd.f32 %v3676, 1e-05
      %v3685 = vadd.f32 %v3677, 1e-05
      %v3686 = vadd.f32 %v3678, 1e-05
      %v3687 = vadd.f32 %v3679, 1e-05
      %v3688 = vadd.f32 %v3680, 1e-05
      %v3689 = vrsqrt.pop %v3681
      %v3690 = vmul.f32 %v3689, %v3681
      %v3691 = vmul.f32 %v3690, %v3689
      %v3692 = vmul.f32 0.5, %v3691
      %v3693 = vsub.f32 1.5, %v3692
      %v3694 = vmul.f32 %v3689, %v3693
      %vm3695 = vweird.f32 %v3681
      %vm3696 = vweird.f32 %v3689
      %vm3697 = vmor %vm3695, %vm3696
      %v3698 = vsel %vm3697, %v3689, %v3694
      %v3699 = vrsqrt.pop %v3682
      %v3700 = vmul.f32 %v3699, %v3682
      %v3701 = vmul.f32 %v3700, %v3699
      %v3702 = vmul.f32 0.5, %v3701
      %v3703 = vsub.f32 1.5, %v3702
      %v3704 = vmul.f32 %v3699, %v3703
      %vm3705 = vweird.f32 %v3682
      %vm3706 = vweird.f32 %v3699
      %vm3707 = vmor %vm3705, %vm3706
      %v3708 = vsel %vm3707, %v3699, %v3704
      %v3709 = vrsqrt.pop %v3683
      %v3710 = vmul.f32 %v3709, %v3683
      %v3711 = vmul.f32 %v3710, %v3709
      %v3712 = vmul.f32 0.5, %v3711
      %v3713 = vsub.f32 1.5, %v3712
      %v3714 = vmul.f32 %v3709, %v3713
      %vm3715 = vweird.f32 %v3683
      %vm3716 = vweird.f32 %v3709
      %vm3717 = vmor %vm3715, %vm3716
      %v3718 = vsel %vm3717, %v3709, %v3714
      %v3719 = vrsqrt.pop %v3684
      %v3720 = vmul.f32 %v3719, %v3684
      %v3721 = vmul.f32 %v3720, %v3719
      %v3722 = vmul.f32 0.5, %v3721
      %v3723 = vsub.f32 1.5, %v3722
      %v3724 = vmul.f32 %v3719, %v3723
      %vm3725 = vweird.f32 %v3684
      %vm3726 = vweird.f32 %v3719
      %vm3727 = vmor %vm3725, %vm3726
      %v3728 = vsel %vm3727, %v3719, %v3724
      %v3729 = vrsqrt.pop %v3685
      %v3730 = vmul.f32 %v3729, %v3685
      %v3731 = vmul.f32 %v3730, %v3729
      %v3732 = vmul.f32 0.5, %v3731
      %v3733 = vsub.f32 1.5, %v3732
      %v3734 = vmul.f32 %v3729, %v3733
      %vm3735 = vweird.f32 %v3685
      %vm3736 = vweird.f32 %v3729
      %vm3737 = vmor %vm3735, %vm3736
      %v3738 = vsel %vm3737, %v3729, %v3734
      %v3739 = vrsqrt.pop %v3686
      %v3740 = vmul.f32 %v3739, %v3686
      %v3741 = vmul.f32 %v3740, %v3739
      %v3742 = vmul.f32 0.5, %v3741
      %v3743 = vsub.f32 1.5, %v3742
      %v3744 = vmul.f32 %v3739, %v3743
      %vm3745 = vweird.f32 %v3686
      %vm3746 = vweird.f32 %v3739
      %vm3747 = vmor %vm3745, %vm3746
      %v3748 = vsel %vm3747, %v3739, %v3744
      %v3749 = vrsqrt.pop %v3687
      %v3750 = vmul.f32 %v3749, %v3687
      %v3751 = vmul.f32 %v3750, %v3749
      %v3752 = vmul.f32 0.5, %v3751
      %v3753 = vsub.f32 1.5, %v3752
      %v3754 = vmul.f32 %v3749, %v3753
      %vm3755 = vweird.f32 %v3687
      %vm3756 = vweird.f32 %v3749
      %vm3757 = vmor %vm3755, %vm3756
      %v3758 = vsel %vm3757, %v3749, %v3754
      %v3759 = vrsqrt.pop %v3688
      %v3760 = vmul.f32 %v3759, %v3688
      %v3761 = vmul.f32 %v3760, %v3759
      %v3762 = vmul.f32 0.5, %v3761
      %v3763 = vsub.f32 1.5, %v3762
      %v3764 = vmul.f32 %v3759, %v3763
      %vm3765 = vweird.f32 %v3688
      %vm3766 = vweird.f32 %v3759
      %vm3767 = vmor %vm3765, %vm3766
      %v3768 = vsel %vm3767, %v3759, %v3764
      %v3769 = vmul.f32 %v3633, %v3698
      %v3770 = vmul.f32 %v3634, %v3708
      %v3771 = vmul.f32 %v3635, %v3718
      %v3772 = vmul.f32 %v3636, %v3728
      %v3773 = vmul.f32 %v3637, %v3738
      %v3774 = vmul.f32 %v3638, %v3748
      %v3775 = vmul.f32 %v3639, %v3758
      %v3776 = vmul.f32 %v3640, %v3768
      %v3778 = vperm.slane %v1853, 0
      %v3780 = vmul.f32 %v3769, %v3778
      %v3781 = vmul.f32 %v3770, %v3778
      %v3782 = vmul.f32 %v3771, %v3778
      %v3783 = vmul.f32 %v3772, %v3778
      %v3784 = vmul.f32 %v3773, %v3778
      %v3785 = vmul.f32 %v3774, %v3778
      %v3786 = vmul.f32 %v3775, %v3778
      %v3787 = vmul.f32 %v3776, %v3778
      %v3789 = vperm.slane %v1854, 0
      %v3791 = vadd.f32 %v3780, %v3789
      %v3792 = vadd.f32 %v3781, %v3789
      %v3793 = vadd.f32 %v3782, %v3789
      %v3794 = vadd.f32 %v3783, %v3789
      %v3795 = vadd.f32 %v3784, %v3789
      %v3796 = vadd.f32 %v3785, %v3789
      %v3797 = vadd.f32 %v3786, %v3789
      %v3798 = vadd.f32 %v3787, %v3789
      %v3799 = vld [vmem:[%s1651] sm:$0x1]
      %v3800 = vld [vmem:[%s1656] sm:$0xff]
      %v3801 = vld [vmem:[%s1656 + $0x8] sm:$0xff]
      %v3802 = vld [vmem:[%s1656 + $0x10] sm:$0xff]
      %v3803 = vld [vmem:[%s1656 + $0x18] sm:$0xff]
      %v3804 = vld [vmem:[%s1659] sm:$0x1]
      %v3805 = vld [vmem:[%s1664] sm:$0xff]
      %v3806 = vld [vmem:[%s1664 + $0x8] sm:$0xff]
      %v3807 = vld [vmem:[%s1664 + $0x10] sm:$0xff]
      %v3808 = vld [vmem:[%s1664 + $0x18] sm:$0xff]
      %v3809 = vld [vmem:[%s1667] sm:$0x1]
      %v3810 = vld [vmem:[%s1670] sm:$0x1]
      %v3811 = vld [vmem:[%s1673] sm:$0x1]
      %v3812 = vld [vmem:[%s1676] sm:$0x1]
      %v3813 = vld [vmem:[%s1679] sm:$0x1]
      %v3814 = vld [vmem:[%s1682] sm:$0x1]
      %v3815 = vld [vmem:[%s1687] sm:$0x1f]
      %v3816 = vld [vmem:[%s1687 + $0x8] sm:$0x1f]
      %v3817 = vld [vmem:[%s1687 + $0x10] sm:$0x1f]
      %v3818 = vld [vmem:[%s1690] sm:$0x1]
      %v3819 = vld [vmem:[%s1693] sm:$0x1]
      %v3820 = vld [vmem:[%s1696] sm:$0x1]
      %v3821 = vld [vmem:[%s1699] sm:$0x1]
      %vm3822 = vcmp.ge.f32.partialorder %v3791, 0.0
      %vm3823 = vcmp.ge.f32.partialorder %v3792, 0.0
      %vm3824 = vcmp.ge.f32.partialorder %v3793, 0.0
      %vm3825 = vcmp.ge.f32.partialorder %v3794, 0.0
      %vm3826 = vcmp.ge.f32.partialorder %v3795, 0.0
      %vm3827 = vcmp.ge.f32.partialorder %v3796, 0.0
      %vm3828 = vcmp.ge.f32.partialorder %v3797, 0.0
      %vm3829 = vcmp.ge.f32.partialorder %v3798, 0.0
      %v3831 = vperm.slane %v3799, 0
      %3832 = vset.pattern.permute.xlu0 0
      %3833 = vperm.xlu0 %3832, %v3831
      %v3834 = vpop.permute.xlu0 %3833
      %v3836 = vmul.f32 %v3834, %v3791
      %v3837 = vmul.f32 %v3834, %v3792
      %v3838 = vmul.f32 %v3834, %v3793
      %v3839 = vmul.f32 %v3834, %v3794
      %v3840 = vmul.f32 %v3834, %v3795
      %v3841 = vmul.f32 %v3834, %v3796
      %v3842 = vmul.f32 %v3834, %v3797
      %v3843 = vmul.f32 %v3834, %v3798
      %v3844 = vsel %vm3822, %v3791, %v3836
      %v3845 = vsel %vm3823, %v3792, %v3837
      %v3846 = vsel %vm3824, %v3793, %v3838
      %v3847 = vsel %vm3825, %v3794, %v3839
      %v3848 = vsel %vm3826, %v3795, %v3840
      %v3849 = vsel %vm3827, %v3796, %v3841
      %v3850 = vsel %vm3828, %v3797, %v3842
      %v3851 = vsel %vm3829, %v3798, %v3843
      %v3853 = vperm.slane %v3809, 0
      %v3856 = vsel %vm1858, %v3844, 0
      %v3859 = vsel %vm1858, %v3845, 0
      %v3862 = vsel %vm1858, %v3846, 0
      %v3865 = vsel %vm1858, %v3847, 0
      %v3868 = vsel %vm1858, %v3848, 0
      %v3871 = vsel %vm1858, %v3849, 0
      %v3874 = vsel %vm1858, %v3850, 0
      %v3877 = vsel %vm1858, %v3851, 0
      %3879 = vmatpush.msra.mxu0 0.0
      %3880 = vmatpush.msra.mxu0 0.0
      %3881 = vmatpush.msra.mxu0 0.0
      %3882 = vmatpush.msra.mxu0 0.0
      %3883 = vmatpush.msra.mxu0 0.0
      %3884 = vmatpush.msra.mxu0 0.0
      %3885 = vmatpush.msra.mxu0 0.0
      %3886 = vmatpush.msra.mxu0 0.0
      %3887 = vmatpush.msra.mxu0 0.0
      %3888 = vmatpush.msra.mxu0 0.0
      %3889 = vmatpush.msra.mxu0 0.0
      %3890 = vmatpush.msra.mxu0 0.0
      %3891 = vmatpush.msra.mxu0 %v3808
      %3892 = vmatpush.msra.mxu0 %v3807
      %3893 = vmatpush.msra.mxu0 %v3806
      %3894 = vmatpush.msra.mxu0 %v3805
      %3895 = vmatmul.f32.gmra.mxu0 %v3856
      %v3896 = vpop.f32.mrf.mxu0
      %v3897 = vadd.f32 %v3853, %v3896
      %3898 = vmatmul.f32.gmra.mxu0 %v3859
      %v3899 = vpop.f32.mrf.mxu0
      %v3900 = vadd.f32 %v3853, %v3899
      %3901 = vmatmul.f32.gmra.mxu0 %v3862
      %v3902 = vpop.f32.mrf.mxu0
      %v3903 = vadd.f32 %v3853, %v3902
      %3904 = vmatmul.f32.gmra.mxu0 %v3865
      %v3905 = vpop.f32.mrf.mxu0
      %v3906 = vadd.f32 %v3853, %v3905
      %3907 = vmatmul.f32.gmra.mxu0 %v3868
      %v3908 = vpop.f32.mrf.mxu0
      %v3909 = vadd.f32 %v3853, %v3908
      %3910 = vmatmul.f32.gmra.mxu0 %v3871
      %v3911 = vpop.f32.mrf.mxu0
      %v3912 = vadd.f32 %v3853, %v3911
      %3913 = vmatmul.f32.gmra.mxu0 %v3874
      %v3914 = vpop.f32.mrf.mxu0
      %v3915 = vadd.f32 %v3853, %v3914
      %3916 = vmatmul.f32.gmra.mxu0 %v3877
      %v3917 = vpop.f32.mrf.mxu0
      %v3918 = vadd.f32 %v3853, %v3917
      %3919 = vdwg.mxu0
      %vm3920 = vcmask 39936
      %v3921 = vsel %vm3920, %v3897, 0.0
      %v3922 = vsel %vm3920, %v3900, 0.0
      %v3923 = vadd.f32 %v3921, %v3922
      %v3924 = vsel %vm3920, %v3903, 0.0
      %v3925 = vadd.f32 %v3923, %v3924
      %v3926 = vsel %vm3920, %v3906, 0.0
      %v3927 = vadd.f32 %v3925, %v3926
      %v3928 = vsel %vm3920, %v3909, 0.0
      %v3929 = vadd.f32 %v3927, %v3928
      %v3930 = vsel %vm3920, %v3912, 0.0
      %v3931 = vadd.f32 %v3929, %v3930
      %v3932 = vsel %vm3920, %v3915, 0.0
      %v3933 = vadd.f32 %v3931, %v3932
      %v3934 = vsel %vm3920, %v3918, 0.0
      %v3935 = vadd.f32 %v3933, %v3934
      %v3936 = vrot.slane %v3935, 4
      %v3937 = vadd.f32 %v3935, %v3936
      %v3938 = vrot.slane %v3937, 2
      %v3939 = vadd.f32 %v3937, %v3938
      %v3940 = vrot.slane %v3939, 1
      %v3941 = vadd.f32 %v3939, %v3940
      %v3942 = vrcp.pop 64.0
      %v3943 = vmul.f32 64.0, %v3942
      %v3944 = vsub.f32 1.0, %v3943
      %v3945 = vmul.f32 %v3942, %v3944
      %v3946 = vadd.f32 %v3942, %v3945
      %vm3947 = vweird.f32 %v3942
      %v3948 = vsel %vm3947, %v3942, %v3946
      %v3949 = vmul.f32 %v3941, %v3948
      %v3950 = vsub.f32 %v3897, %v3949
      %v3951 = vsub.f32 %v3900, %v3949
      %v3952 = vsub.f32 %v3903, %v3949
      %v3953 = vsub.f32 %v3906, %v3949
      %v3954 = vsub.f32 %v3909, %v3949
      %v3955 = vsub.f32 %v3912, %v3949
      %v3956 = vsub.f32 %v3915, %v3949
      %v3957 = vsub.f32 %v3918, %v3949
      %v3958 = vmul.f32 %v3950, %v3950
      %v3959 = vmul.f32 %v3951, %v3951
      %v3960 = vmul.f32 %v3952, %v3952
      %v3961 = vmul.f32 %v3953, %v3953
      %v3962 = vmul.f32 %v3954, %v3954
      %v3963 = vmul.f32 %v3955, %v3955
      %v3964 = vmul.f32 %v3956, %v3956
      %v3965 = vmul.f32 %v3957, %v3957
      %v3966 = vsel %vm3920, %v3958, 0.0
      %v3967 = vsel %vm3920, %v3959, 0.0
      %v3968 = vadd.f32 %v3966, %v3967
      %v3969 = vsel %vm3920, %v3960, 0.0
      %v3970 = vadd.f32 %v3968, %v3969
      %v3971 = vsel %vm3920, %v3961, 0.0
      %v3972 = vadd.f32 %v3970, %v3971
      %v3973 = vsel %vm3920, %v3962, 0.0
      %v3974 = vadd.f32 %v3972, %v3973
      %v3975 = vsel %vm3920, %v3963, 0.0
      %v3976 = vadd.f32 %v3974, %v3975
      %v3977 = vsel %vm3920, %v3964, 0.0
      %v3978 = vadd.f32 %v3976, %v3977
      %v3979 = vsel %vm3920, %v3965, 0.0
      %v3980 = vadd.f32 %v3978, %v3979
      %v3981 = vrot.slane %v3980, 4
      %v3982 = vadd.f32 %v3980, %v3981
      %v3983 = vrot.slane %v3982, 2
      %v3984 = vadd.f32 %v3982, %v3983
      %v3985 = vrot.slane %v3984, 1
      %v3986 = vadd.f32 %v3984, %v3985
      %v3987 = vmul.f32 %v3986, %v3948
      %v3988 = vadd.f32 %v3987, 1e-05
      %v3989 = vrsqrt.pop %v3988
      %v3990 = vmul.f32 %v3989, %v3988
      %v3991 = vmul.f32 %v3990, %v3989
      %v3992 = vmul.f32 0.5, %v3991
      %v3993 = vsub.f32 1.5, %v3992
      %v3994 = vmul.f32 %v3989, %v3993
      %vm3995 = vweird.f32 %v3988
      %vm3996 = vweird.f32 %v3989
      %vm3997 = vmor %vm3995, %vm3996
      %v3998 = vsel %vm3997, %v3989, %v3994
      %v3999 = vmul.f32 %v3950, %v3998
      %v4000 = vmul.f32 %v3951, %v3998
      %v4001 = vmul.f32 %v3952, %v3998
      %v4002 = vmul.f32 %v3953, %v3998
      %v4003 = vmul.f32 %v3954, %v3998
      %v4004 = vmul.f32 %v3955, %v3998
      %v4005 = vmul.f32 %v3956, %v3998
      %v4006 = vmul.f32 %v3957, %v3998
      %v4008 = vperm.slane %v3810, 0
      %v4010 = vmul.f32 %v3999, %v4008
      %v4011 = vmul.f32 %v4000, %v4008
      %v4012 = vmul.f32 %v4001, %v4008
      %v4013 = vmul.f32 %v4002, %v4008
      %v4014 = vmul.f32 %v4003, %v4008
      %v4015 = vmul.f32 %v4004, %v4008
      %v4016 = vmul.f32 %v4005, %v4008
      %v4017 = vmul.f32 %v4006, %v4008
      %v4019 = vperm.slane %v3811, 0
      %v4021 = vadd.f32 %v4010, %v4019
      %v4022 = vadd.f32 %v4011, %v4019
      %v4023 = vadd.f32 %v4012, %v4019
      %v4024 = vadd.f32 %v4013, %v4019
      %v4025 = vadd.f32 %v4014, %v4019
      %v4026 = vadd.f32 %v4015, %v4019
      %v4027 = vadd.f32 %v4016, %v4019
      %v4028 = vadd.f32 %v4017, %v4019
      %v4030 = vperm.slane %v3804, 0
      %4032 = vmatpush.msra.mxu0 0.0
      %4033 = vmatpush.msra.mxu0 0.0
      %4034 = vmatpush.msra.mxu0 0.0
      %4035 = vmatpush.msra.mxu0 0.0
      %4036 = vmatpush.msra.mxu0 0.0
      %4037 = vmatpush.msra.mxu0 0.0
      %4038 = vmatpush.msra.mxu0 0.0
      %4039 = vmatpush.msra.mxu0 0.0
      %4040 = vmatpush.msra.mxu0 0.0
      %4041 = vmatpush.msra.mxu0 0.0
      %4042 = vmatpush.msra.mxu0 0.0
      %4043 = vmatpush.msra.mxu0 0.0
      %4044 = vmatpush.msra.mxu0 %v3803
      %4045 = vmatpush.msra.mxu0 %v3802
      %4046 = vmatpush.msra.mxu0 %v3801
      %4047 = vmatpush.msra.mxu0 %v3800
      %4048 = vmatmul.f32.gmra.mxu0 %v3856
      %v4049 = vpop.f32.mrf.mxu0
      %v4050 = vadd.f32 %v4030, %v4049
      %4051 = vmatmul.f32.gmra.mxu0 %v3859
      %v4052 = vpop.f32.mrf.mxu0
      %v4053 = vadd.f32 %v4030, %v4052
      %4054 = vmatmul.f32.gmra.mxu0 %v3862
      %v4055 = vpop.f32.mrf.mxu0
      %v4056 = vadd.f32 %v4030, %v4055
      %4057 = vmatmul.f32.gmra.mxu0 %v3865
      %v4058 = vpop.f32.mrf.mxu0
      %v4059 = vadd.f32 %v4030, %v4058
      %4060 = vmatmul.f32.gmra.mxu0 %v3868
      %v4061 = vpop.f32.mrf.mxu0
      %v4062 = vadd.f32 %v4030, %v4061
      %4063 = vmatmul.f32.gmra.mxu0 %v3871
      %v4064 = vpop.f32.mrf.mxu0
      %v4065 = vadd.f32 %v4030, %v4064
      %4066 = vmatmul.f32.gmra.mxu0 %v3874
      %v4067 = vpop.f32.mrf.mxu0
      %v4068 = vadd.f32 %v4030, %v4067
      %4069 = vmatmul.f32.gmra.mxu0 %v3877
      %v4070 = vpop.f32.mrf.mxu0
      %v4071 = vadd.f32 %v4030, %v4070
      %4072 = vdwg.mxu0
      %v4073 = vld [vmem:[%s5] sm:$0xff]
      %v4074 = vld [vmem:[%s5 + $0x8] sm:$0xff]
      %v4075 = vld [vmem:[%s5 + $0x10] sm:$0xff]
      %v4076 = vld [vmem:[%s5 + $0x18] sm:$0xff]
      %v4077 = vld [vmem:[%s5 + $0x20] sm:$0xff]
      %v4078 = vld [vmem:[%s5 + $0x28] sm:$0xff]
      %v4079 = vld [vmem:[%s5 + $0x30] sm:$0xff]
      %v4080 = vld [vmem:[%s5 + $0x38] sm:$0xff]
      %v4082 = vsel %vm2022, %v4073, 0
      %v4085 = vsel %vm2022, %v4074, 0
      %v4088 = vsel %vm2022, %v4075, 0
      %v4091 = vsel %vm2022, %v4076, 0
      %v4094 = vsel %vm2022, %v4077, 0
      %v4097 = vsel %vm2022, %v4078, 0
      %v4100 = vsel %vm2022, %v4079, 0
      %v4103 = vsel %vm2022, %v4080, 0
      %4105 = vmatpush.msra.mxu0 0.0
      %4106 = vmatpush.msra.mxu0 0.0
      %4107 = vmatpush.msra.mxu0 0.0
      %4108 = vmatpush.msra.mxu0 0.0
      %4109 = vmatpush.msra.mxu0 0.0
      %4110 = vmatpush.msra.mxu0 0.0
      %4111 = vmatpush.msra.mxu0 0.0
      %4112 = vmatpush.msra.mxu0 0.0
      %4113 = vmatpush.msra.mxu0 %v4071
      %4114 = vmatpush.msra.mxu0 %v4068
      %4115 = vmatpush.msra.mxu0 %v4065
      %4116 = vmatpush.msra.mxu0 %v4062
      %4117 = vmatpush.msra.mxu0 %v4059
      %4118 = vmatpush.msra.mxu0 %v4056
      %4119 = vmatpush.msra.mxu0 %v4053
      %4120 = vmatpush.msra.mxu0 %v4050
      %4121 = vmatmul.f32.gmra.mxu0 %v4082
      %v4122 = vpop.f32.mrf.mxu0
      %v4123 = vadd.f32 0.0, %v4122
      %4124 = vmatmul.f32.gmra.mxu0 %v4085
      %v4125 = vpop.f32.mrf.mxu0
      %v4126 = vadd.f32 0.0, %v4125
      %4127 = vmatmul.f32.gmra.mxu0 %v4088
      %v4128 = vpop.f32.mrf.mxu0
      %v4129 = vadd.f32 0.0, %v4128
      %4130 = vmatmul.f32.gmra.mxu0 %v4091
      %v4131 = vpop.f32.mrf.mxu0
      %v4132 = vadd.f32 0.0, %v4131
      %4133 = vmatmul.f32.gmra.mxu0 %v4094
      %v4134 = vpop.f32.mrf.mxu0
      %v4135 = vadd.f32 0.0, %v4134
      %4136 = vmatmul.f32.gmra.mxu0 %v4097
      %v4137 = vpop.f32.mrf.mxu0
      %v4138 = vadd.f32 0.0, %v4137
      %4139 = vmatmul.f32.gmra.mxu0 %v4100
      %v4140 = vpop.f32.mrf.mxu0
      %v4141 = vadd.f32 0.0, %v4140
      %4142 = vmatmul.f32.gmra.mxu0 %v4103
      %v4143 = vpop.f32.mrf.mxu0
      %v4144 = vadd.f32 0.0, %v4143
      %4145 = vdwg.mxu0
      %v4146 = vsel %vm3920, %v4123, 0.0
      %v4147 = vsel %vm3920, %v4126, 0.0
      %v4148 = vadd.f32 %v4146, %v4147
      %v4149 = vsel %vm3920, %v4129, 0.0
      %v4150 = vadd.f32 %v4148, %v4149
      %v4151 = vsel %vm3920, %v4132, 0.0
      %v4152 = vadd.f32 %v4150, %v4151
      %v4153 = vsel %vm3920, %v4135, 0.0
      %v4154 = vadd.f32 %v4152, %v4153
      %v4155 = vsel %vm3920, %v4138, 0.0
      %v4156 = vadd.f32 %v4154, %v4155
      %v4157 = vsel %vm3920, %v4141, 0.0
      %v4158 = vadd.f32 %v4156, %v4157
      %v4159 = vsel %vm3920, %v4144, 0.0
      %v4160 = vadd.f32 %v4158, %v4159
      %v4161 = vrot.slane %v4160, 4
      %v4162 = vadd.f32 %v4160, %v4161
      %v4163 = vrot.slane %v4162, 2
      %v4164 = vadd.f32 %v4162, %v4163
      %v4165 = vrot.slane %v4164, 1
      %v4166 = vadd.f32 %v4164, %v4165
      %v4167 = vmul.f32 %v4166, %v3948
      %v4168 = vsub.f32 %v4123, %v4167
      %v4169 = vsub.f32 %v4126, %v4167
      %v4170 = vsub.f32 %v4129, %v4167
      %v4171 = vsub.f32 %v4132, %v4167
      %v4172 = vsub.f32 %v4135, %v4167
      %v4173 = vsub.f32 %v4138, %v4167
      %v4174 = vsub.f32 %v4141, %v4167
      %v4175 = vsub.f32 %v4144, %v4167
      %v4176 = vmul.f32 %v4168, %v4168
      %v4177 = vmul.f32 %v4169, %v4169
      %v4178 = vmul.f32 %v4170, %v4170
      %v4179 = vmul.f32 %v4171, %v4171
      %v4180 = vmul.f32 %v4172, %v4172
      %v4181 = vmul.f32 %v4173, %v4173
      %v4182 = vmul.f32 %v4174, %v4174
      %v4183 = vmul.f32 %v4175, %v4175
      %v4184 = vsel %vm3920, %v4176, 0.0
      %v4185 = vsel %vm3920, %v4177, 0.0
      %v4186 = vadd.f32 %v4184, %v4185
      %v4187 = vsel %vm3920, %v4178, 0.0
      %v4188 = vadd.f32 %v4186, %v4187
      %v4189 = vsel %vm3920, %v4179, 0.0
      %v4190 = vadd.f32 %v4188, %v4189
      %v4191 = vsel %vm3920, %v4180, 0.0
      %v4192 = vadd.f32 %v4190, %v4191
      %v4193 = vsel %vm3920, %v4181, 0.0
      %v4194 = vadd.f32 %v4192, %v4193
      %v4195 = vsel %vm3920, %v4182, 0.0
      %v4196 = vadd.f32 %v4194, %v4195
      %v4197 = vsel %vm3920, %v4183, 0.0
      %v4198 = vadd.f32 %v4196, %v4197
      %v4199 = vrot.slane %v4198, 4
      %v4200 = vadd.f32 %v4198, %v4199
      %v4201 = vrot.slane %v4200, 2
      %v4202 = vadd.f32 %v4200, %v4201
      %v4203 = vrot.slane %v4202, 1
      %v4204 = vadd.f32 %v4202, %v4203
      %v4205 = vmul.f32 %v4204, %v3948
      %v4206 = vadd.f32 %v4205, 1e-05
      %v4207 = vrsqrt.pop %v4206
      %v4208 = vmul.f32 %v4207, %v4206
      %v4209 = vmul.f32 %v4208, %v4207
      %v4210 = vmul.f32 0.5, %v4209
      %v4211 = vsub.f32 1.5, %v4210
      %v4212 = vmul.f32 %v4207, %v4211
      %vm4213 = vweird.f32 %v4206
      %vm4214 = vweird.f32 %v4207
      %vm4215 = vmor %vm4213, %vm4214
      %v4216 = vsel %vm4215, %v4207, %v4212
      %v4217 = vmul.f32 %v4168, %v4216
      %v4218 = vmul.f32 %v4169, %v4216
      %v4219 = vmul.f32 %v4170, %v4216
      %v4220 = vmul.f32 %v4171, %v4216
      %v4221 = vmul.f32 %v4172, %v4216
      %v4222 = vmul.f32 %v4173, %v4216
      %v4223 = vmul.f32 %v4174, %v4216
      %v4224 = vmul.f32 %v4175, %v4216
      %v4226 = vperm.slane %v3812, 0
      %v4228 = vmul.f32 %v4217, %v4226
      %v4229 = vmul.f32 %v4218, %v4226
      %v4230 = vmul.f32 %v4219, %v4226
      %v4231 = vmul.f32 %v4220, %v4226
      %v4232 = vmul.f32 %v4221, %v4226
      %v4233 = vmul.f32 %v4222, %v4226
      %v4234 = vmul.f32 %v4223, %v4226
      %v4235 = vmul.f32 %v4224, %v4226
      %v4237 = vperm.slane %v3813, 0
      %v4239 = vadd.f32 %v4228, %v4237
      %v4240 = vadd.f32 %v4229, %v4237
      %v4241 = vadd.f32 %v4230, %v4237
      %v4242 = vadd.f32 %v4231, %v4237
      %v4243 = vadd.f32 %v4232, %v4237
      %v4244 = vadd.f32 %v4233, %v4237
      %v4245 = vadd.f32 %v4234, %v4237
      %v4246 = vadd.f32 %v4235, %v4237
      %vm4247 = vcmp.ge.f32.partialorder %v4239, 0.0
      %vm4248 = vcmp.ge.f32.partialorder %v4240, 0.0
      %vm4249 = vcmp.ge.f32.partialorder %v4241, 0.0
      %vm4250 = vcmp.ge.f32.partialorder %v4242, 0.0
      %vm4251 = vcmp.ge.f32.partialorder %v4243, 0.0
      %vm4252 = vcmp.ge.f32.partialorder %v4244, 0.0
      %vm4253 = vcmp.ge.f32.partialorder %v4245, 0.0
      %vm4254 = vcmp.ge.f32.partialorder %v4246, 0.0
      %v4256 = vperm.slane %v3814, 0
      %4257 = vset.pattern.permute.xlu0 0
      %4258 = vperm.xlu0 %4257, %v4256
      %v4259 = vpop.permute.xlu0 %4258
      %v4261 = vmul.f32 %v4259, %v4239
      %v4262 = vmul.f32 %v4259, %v4240
      %v4263 = vmul.f32 %v4259, %v4241
      %v4264 = vmul.f32 %v4259, %v4242
      %v4265 = vmul.f32 %v4259, %v4243
      %v4266 = vmul.f32 %v4259, %v4244
      %v4267 = vmul.f32 %v4259, %v4245
      %v4268 = vmul.f32 %v4259, %v4246
      %v4269 = vsel %vm4247, %v4239, %v4261
      %v4270 = vsel %vm4248, %v4240, %v4262
      %v4271 = vsel %vm4249, %v4241, %v4263
      %v4272 = vsel %vm4250, %v4242, %v4264
      %v4273 = vsel %vm4251, %v4243, %v4265
      %v4274 = vsel %vm4252, %v4244, %v4266
      %v4275 = vsel %vm4253, %v4245, %v4267
      %v4276 = vsel %vm4254, %v4246, %v4268
      %v4277 = vld [vmem:[%s7] sm:$0xff]
      %v4278 = vld [vmem:[%s7 + $0x8] sm:$0xff]
      %v4279 = vld [vmem:[%s7 + $0x10] sm:$0xff]
      %v4280 = vld [vmem:[%s7 + $0x18] sm:$0xff]
      %v4281 = vld [vmem:[%s7 + $0x20] sm:$0xff]
      %v4282 = vld [vmem:[%s7 + $0x28] sm:$0xff]
      %v4283 = vld [vmem:[%s7 + $0x30] sm:$0xff]
      %v4284 = vld [vmem:[%s7 + $0x38] sm:$0xff]
      %v4286 = vsel %vm2022, %v4277, 0
      %v4289 = vsel %vm2022, %v4278, 0
      %v4292 = vsel %vm2022, %v4279, 0
      %v4295 = vsel %vm2022, %v4280, 0
      %v4298 = vsel %vm2022, %v4281, 0
      %v4301 = vsel %vm2022, %v4282, 0
      %v4304 = vsel %vm2022, %v4283, 0
      %v4307 = vsel %vm2022, %v4284, 0
      %4309 = vmatpush.msra.mxu0 0.0
      %4310 = vmatpush.msra.mxu0 0.0
      %4311 = vmatpush.msra.mxu0 0.0
      %4312 = vmatpush.msra.mxu0 0.0
      %4313 = vmatpush.msra.mxu0 0.0
      %4314 = vmatpush.msra.mxu0 0.0
      %4315 = vmatpush.msra.mxu0 0.0
      %4316 = vmatpush.msra.mxu0 0.0
      %4317 = vmatpush.msra.mxu0 %v4276
      %4318 = vmatpush.msra.mxu0 %v4275
      %4319 = vmatpush.msra.mxu0 %v4274
      %4320 = vmatpush.msra.mxu0 %v4273
      %4321 = vmatpush.msra.mxu0 %v4272
      %4322 = vmatpush.msra.mxu0 %v4271
      %4323 = vmatpush.msra.mxu0 %v4270
      %4324 = vmatpush.msra.mxu0 %v4269
      %4325 = vmatmul.f32.gmra.mxu0 %v4286
      %v4326 = vpop.f32.mrf.mxu0
      %v4327 = vadd.f32 0.0, %v4326
      %4328 = vmatmul.f32.gmra.mxu0 %v4289
      %v4329 = vpop.f32.mrf.mxu0
      %v4330 = vadd.f32 0.0, %v4329
      %4331 = vmatmul.f32.gmra.mxu0 %v4292
      %v4332 = vpop.f32.mrf.mxu0
      %v4333 = vadd.f32 0.0, %v4332
      %4334 = vmatmul.f32.gmra.mxu0 %v4295
      %v4335 = vpop.f32.mrf.mxu0
      %v4336 = vadd.f32 0.0, %v4335
      %4337 = vmatmul.f32.gmra.mxu0 %v4298
      %v4338 = vpop.f32.mrf.mxu0
      %v4339 = vadd.f32 0.0, %v4338
      %4340 = vmatmul.f32.gmra.mxu0 %v4301
      %v4341 = vpop.f32.mrf.mxu0
      %v4342 = vadd.f32 0.0, %v4341
      %4343 = vmatmul.f32.gmra.mxu0 %v4304
      %v4344 = vpop.f32.mrf.mxu0
      %v4345 = vadd.f32 0.0, %v4344
      %4346 = vmatmul.f32.gmra.mxu0 %v4307
      %v4347 = vpop.f32.mrf.mxu0
      %v4348 = vadd.f32 0.0, %v4347
      %4349 = vdwg.mxu0
      %s4350 = scalar_lea.vmem %s7, 64
      %v4351 = vld [vmem:[%s4350] sm:$0xff]
      %v4352 = vld [vmem:[%s4350 + $0x8] sm:$0xff]
      %v4353 = vld [vmem:[%s4350 + $0x10] sm:$0xff]
      %v4354 = vld [vmem:[%s4350 + $0x18] sm:$0xff]
      %v4355 = vld [vmem:[%s4350 + $0x20] sm:$0xff]
      %v4356 = vld [vmem:[%s4350 + $0x28] sm:$0xff]
      %v4357 = vld [vmem:[%s4350 + $0x30] sm:$0xff]
      %v4358 = vld [vmem:[%s4350 + $0x38] sm:$0xff]
      %v4360 = vsel %vm2022, %v4351, 0
      %v4363 = vsel %vm2022, %v4352, 0
      %v4366 = vsel %vm2022, %v4353, 0
      %v4369 = vsel %vm2022, %v4354, 0
      %v4372 = vsel %vm2022, %v4355, 0
      %v4375 = vsel %vm2022, %v4356, 0
      %v4378 = vsel %vm2022, %v4357, 0
      %v4381 = vsel %vm2022, %v4358, 0
      %4383 = vmatpush.msra.mxu0 0.0
      %4384 = vmatpush.msra.mxu0 0.0
      %4385 = vmatpush.msra.mxu0 0.0
      %4386 = vmatpush.msra.mxu0 0.0
      %4387 = vmatpush.msra.mxu0 0.0
      %4388 = vmatpush.msra.mxu0 0.0
      %4389 = vmatpush.msra.mxu0 0.0
      %4390 = vmatpush.msra.mxu0 0.0
      %4391 = vmatpush.msra.mxu0 %v4276
      %4392 = vmatpush.msra.mxu0 %v4275
      %4393 = vmatpush.msra.mxu0 %v4274
      %4394 = vmatpush.msra.mxu0 %v4273
      %4395 = vmatpush.msra.mxu0 %v4272
      %4396 = vmatpush.msra.mxu0 %v4271
      %4397 = vmatpush.msra.mxu0 %v4270
      %4398 = vmatpush.msra.mxu0 %v4269
      %4399 = vmatmul.f32.gmra.mxu0 %v4360
      %v4400 = vpop.f32.mrf.mxu0
      %v4401 = vadd.f32 0.0, %v4400
      %4402 = vmatmul.f32.gmra.mxu0 %v4363
      %v4403 = vpop.f32.mrf.mxu0
      %v4404 = vadd.f32 0.0, %v4403
      %4405 = vmatmul.f32.gmra.mxu0 %v4366
      %v4406 = vpop.f32.mrf.mxu0
      %v4407 = vadd.f32 0.0, %v4406
      %4408 = vmatmul.f32.gmra.mxu0 %v4369
      %v4409 = vpop.f32.mrf.mxu0
      %v4410 = vadd.f32 0.0, %v4409
      %4411 = vmatmul.f32.gmra.mxu0 %v4372
      %v4412 = vpop.f32.mrf.mxu0
      %v4413 = vadd.f32 0.0, %v4412
      %4414 = vmatmul.f32.gmra.mxu0 %v4375
      %v4415 = vpop.f32.mrf.mxu0
      %v4416 = vadd.f32 0.0, %v4415
      %4417 = vmatmul.f32.gmra.mxu0 %v4378
      %v4418 = vpop.f32.mrf.mxu0
      %v4419 = vadd.f32 0.0, %v4418
      %4420 = vmatmul.f32.gmra.mxu0 %v4381
      %v4421 = vpop.f32.mrf.mxu0
      %v4422 = vadd.f32 0.0, %v4421
      %4423 = vdwg.mxu0
      %v4425 = vsel %vm3920, %v4269, 0
      %v4428 = vsel %vm3920, %v4270, 0
      %v4431 = vsel %vm3920, %v4271, 0
      %v4434 = vsel %vm3920, %v4272, 0
      %v4437 = vsel %vm3920, %v4273, 0
      %v4440 = vsel %vm3920, %v4274, 0
      %v4443 = vsel %vm3920, %v4275, 0
      %v4446 = vsel %vm3920, %v4276, 0
      %vm4448 = vcmask 1044480
      %v4450 = vsel %vm4448, %v3816, 0
      %4452 = vmatpush.msra.mxu0 0.0
      %4453 = vmatpush.msra.mxu0 0.0
      %4454 = vmatpush.msra.mxu0 0.0
      %4455 = vmatpush.msra.mxu0 0.0
      %4456 = vmatpush.msra.mxu0 0.0
      %4457 = vmatpush.msra.mxu0 0.0
      %4458 = vmatpush.msra.mxu0 0.0
      %4459 = vmatpush.msra.mxu0 0.0
      %4460 = vmatpush.msra.mxu0 0.0
      %4461 = vmatpush.msra.mxu0 0.0
      %4462 = vmatpush.msra.mxu0 0.0
      %4463 = vmatpush.msra.mxu0 0.0
      %4464 = vmatpush.msra.mxu0 0.0
      %4465 = vmatpush.msra.mxu0 0.0
      %4466 = vmatpush.msra.mxu0 0.0
      %4467 = vmatpush.msra.mxu0 %v4450
      %4468 = vmatmul.f32.gmra.mxu0 %v4425
      %v4469 = vpop.f32.mrf.mxu0
      %v4470 = vadd.f32 0.0, %v4469
      %4471 = vmatmul.f32.gmra.mxu0 %v4428
      %v4472 = vpop.f32.mrf.mxu0
      %v4473 = vadd.f32 0.0, %v4472
      %4474 = vmatmul.f32.gmra.mxu0 %v4431
      %v4475 = vpop.f32.mrf.mxu0
      %v4476 = vadd.f32 0.0, %v4475
      %4477 = vmatmul.f32.gmra.mxu0 %v4434
      %v4478 = vpop.f32.mrf.mxu0
      %v4479 = vadd.f32 0.0, %v4478
      %4480 = vmatmul.f32.gmra.mxu0 %v4437
      %v4481 = vpop.f32.mrf.mxu0
      %v4482 = vadd.f32 0.0, %v4481
      %4483 = vmatmul.f32.gmra.mxu0 %v4440
      %v4484 = vpop.f32.mrf.mxu0
      %v4485 = vadd.f32 0.0, %v4484
      %4486 = vmatmul.f32.gmra.mxu0 %v4443
      %v4487 = vpop.f32.mrf.mxu0
      %v4488 = vadd.f32 0.0, %v4487
      %4489 = vmatmul.f32.gmra.mxu0 %v4446
      %v4490 = vpop.f32.mrf.mxu0
      %v4491 = vadd.f32 0.0, %v4490
      %4492 = vdwg.mxu0
      %v4494 = vsel %vm3920, %v4327, 0
      %v4497 = vsel %vm3920, %v4330, 0
      %v4500 = vsel %vm3920, %v4333, 0
      %v4503 = vsel %vm3920, %v4336, 0
      %v4506 = vsel %vm3920, %v4339, 0
      %v4509 = vsel %vm3920, %v4342, 0
      %v4512 = vsel %vm3920, %v4345, 0
      %v4515 = vsel %vm3920, %v4348, 0
      %v4518 = vsel %vm4448, %v3815, 0
      %4520 = vmatpush.msra.mxu0 0.0
      %4521 = vmatpush.msra.mxu0 0.0
      %4522 = vmatpush.msra.mxu0 0.0
      %4523 = vmatpush.msra.mxu0 0.0
      %4524 = vmatpush.msra.mxu0 0.0
      %4525 = vmatpush.msra.mxu0 0.0
      %4526 = vmatpush.msra.mxu0 0.0
      %4527 = vmatpush.msra.mxu0 0.0
      %4528 = vmatpush.msra.mxu0 0.0
      %4529 = vmatpush.msra.mxu0 0.0
      %4530 = vmatpush.msra.mxu0 0.0
      %4531 = vmatpush.msra.mxu0 0.0
      %4532 = vmatpush.msra.mxu0 0.0
      %4533 = vmatpush.msra.mxu0 0.0
      %4534 = vmatpush.msra.mxu0 0.0
      %4535 = vmatpush.msra.mxu0 %v4518
      %4536 = vmatmul.f32.gmra.mxu0 %v4494
      %v4537 = vpop.f32.mrf.mxu0
      %v4538 = vadd.f32 %v4470, %v4537
      %4539 = vmatmul.f32.gmra.mxu0 %v4497
      %v4540 = vpop.f32.mrf.mxu0
      %v4541 = vadd.f32 %v4473, %v4540
      %4542 = vmatmul.f32.gmra.mxu0 %v4500
      %v4543 = vpop.f32.mrf.mxu0
      %v4544 = vadd.f32 %v4476, %v4543
      %4545 = vmatmul.f32.gmra.mxu0 %v4503
      %v4546 = vpop.f32.mrf.mxu0
      %v4547 = vadd.f32 %v4479, %v4546
      %4548 = vmatmul.f32.gmra.mxu0 %v4506
      %v4549 = vpop.f32.mrf.mxu0
      %v4550 = vadd.f32 %v4482, %v4549
      %4551 = vmatmul.f32.gmra.mxu0 %v4509
      %v4552 = vpop.f32.mrf.mxu0
      %v4553 = vadd.f32 %v4485, %v4552
      %4554 = vmatmul.f32.gmra.mxu0 %v4512
      %v4555 = vpop.f32.mrf.mxu0
      %v4556 = vadd.f32 %v4488, %v4555
      %4557 = vmatmul.f32.gmra.mxu0 %v4515
      %v4558 = vpop.f32.mrf.mxu0
      %v4559 = vadd.f32 %v4491, %v4558
      %4560 = vdwg.mxu0
      %v4562 = vsel %vm3920, %v4401, 0
      %v4565 = vsel %vm3920, %v4404, 0
      %v4568 = vsel %vm3920, %v4407, 0
      %v4571 = vsel %vm3920, %v4410, 0
      %v4574 = vsel %vm3920, %v4413, 0
      %v4577 = vsel %vm3920, %v4416, 0
      %v4580 = vsel %vm3920, %v4419, 0
      %v4583 = vsel %vm3920, %v4422, 0
      %v4586 = vsel %vm4448, %v3817, 0
      %4588 = vmatpush.msra.mxu0 0.0
      %4589 = vmatpush.msra.mxu0 0.0
      %4590 = vmatpush.msra.mxu0 0.0
      %4591 = vmatpush.msra.mxu0 0.0
      %4592 = vmatpush.msra.mxu0 0.0
      %4593 = vmatpush.msra.mxu0 0.0
      %4594 = vmatpush.msra.mxu0 0.0
      %4595 = vmatpush.msra.mxu0 0.0
      %4596 = vmatpush.msra.mxu0 0.0
      %4597 = vmatpush.msra.mxu0 0.0
      %4598 = vmatpush.msra.mxu0 0.0
      %4599 = vmatpush.msra.mxu0 0.0
      %4600 = vmatpush.msra.mxu0 0.0
      %4601 = vmatpush.msra.mxu0 0.0
      %4602 = vmatpush.msra.mxu0 0.0
      %4603 = vmatpush.msra.mxu0 %v4586
      %4604 = vmatmul.f32.gmra.mxu0 %v4562
      %v4605 = vpop.f32.mrf.mxu0
      %v4606 = vadd.f32 0.0, %v4605
      %4607 = vmatmul.f32.gmra.mxu0 %v4565
      %v4608 = vpop.f32.mrf.mxu0
      %v4609 = vadd.f32 0.0, %v4608
      %4610 = vmatmul.f32.gmra.mxu0 %v4568
      %v4611 = vpop.f32.mrf.mxu0
      %v4612 = vadd.f32 0.0, %v4611
      %4613 = vmatmul.f32.gmra.mxu0 %v4571
      %v4614 = vpop.f32.mrf.mxu0
      %v4615 = vadd.f32 0.0, %v4614
      %4616 = vmatmul.f32.gmra.mxu0 %v4574
      %v4617 = vpop.f32.mrf.mxu0
      %v4618 = vadd.f32 0.0, %v4617
      %4619 = vmatmul.f32.gmra.mxu0 %v4577
      %v4620 = vpop.f32.mrf.mxu0
      %v4621 = vadd.f32 0.0, %v4620
      %4622 = vmatmul.f32.gmra.mxu0 %v4580
      %v4623 = vpop.f32.mrf.mxu0
      %v4624 = vadd.f32 0.0, %v4623
      %4625 = vmatmul.f32.gmra.mxu0 %v4583
      %v4626 = vpop.f32.mrf.mxu0
      %v4627 = vadd.f32 0.0, %v4626
      %4628 = vdwg.mxu0
      %v4629 = vadd.f32 %v4538, %v4606
      %v4630 = vadd.f32 %v4541, %v4609
      %v4631 = vadd.f32 %v4544, %v4612
      %v4632 = vadd.f32 %v4547, %v4615
      %v4633 = vadd.f32 %v4550, %v4618
      %v4634 = vadd.f32 %v4553, %v4621
      %v4635 = vadd.f32 %v4556, %v4624
      %v4636 = vadd.f32 %v4559, %v4627
      %v4638 = vperm.slane %v3818, 0
      %v4640 = vadd.f32 %v4629, %v4638
      %v4641 = vadd.f32 %v4630, %v4638
      %v4642 = vadd.f32 %v4631, %v4638
      %v4643 = vadd.f32 %v4632, %v4638
      %v4644 = vadd.f32 %v4633, %v4638
      %v4645 = vadd.f32 %v4634, %v4638
      %v4646 = vadd.f32 %v4635, %v4638
      %v4647 = vadd.f32 %v4636, %v4638
      %v4648 = vsel %vm3920, %v4640, 0.0
      %v4649 = vsel %vm3920, %v4641, 0.0
      %v4650 = vadd.f32 %v4648, %v4649
      %v4651 = vsel %vm3920, %v4642, 0.0
      %v4652 = vadd.f32 %v4650, %v4651
      %v4653 = vsel %vm3920, %v4643, 0.0
      %v4654 = vadd.f32 %v4652, %v4653
      %v4655 = vsel %vm3920, %v4644, 0.0
      %v4656 = vadd.f32 %v4654, %v4655
      %v4657 = vsel %vm3920, %v4645, 0.0
      %v4658 = vadd.f32 %v4656, %v4657
      %v4659 = vsel %vm3920, %v4646, 0.0
      %v4660 = vadd.f32 %v4658, %v4659
      %v4661 = vsel %vm3920, %v4647, 0.0
      %v4662 = vadd.f32 %v4660, %v4661
      %v4663 = vrot.slane %v4662, 4
      %v4664 = vadd.f32 %v4662, %v4663
      %v4665 = vrot.slane %v4664, 2
      %v4666 = vadd.f32 %v4664, %v4665
      %v4667 = vrot.slane %v4666, 1
      %v4668 = vadd.f32 %v4666, %v4667
      %v4669 = vmul.f32 %v4668, %v3948
      %v4670 = vsub.f32 %v4640, %v4669
      %v4671 = vsub.f32 %v4641, %v4669
      %v4672 = vsub.f32 %v4642, %v4669
      %v4673 = vsub.f32 %v4643, %v4669
      %v4674 = vsub.f32 %v4644, %v4669
      %v4675 = vsub.f32 %v4645, %v4669
      %v4676 = vsub.f32 %v4646, %v4669
      %v4677 = vsub.f32 %v4647, %v4669
      %v4678 = vmul.f32 %v4670, %v4670
      %v4679 = vmul.f32 %v4671, %v4671
      %v4680 = vmul.f32 %v4672, %v4672
      %v4681 = vmul.f32 %v4673, %v4673
      %v4682 = vmul.f32 %v4674, %v4674
      %v4683 = vmul.f32 %v4675, %v4675
      %v4684 = vmul.f32 %v4676, %v4676
      %v4685 = vmul.f32 %v4677, %v4677
      %v4686 = vsel %vm3920, %v4678, 0.0
      %v4687 = vsel %vm3920, %v4679, 0.0
      %v4688 = vadd.f32 %v4686, %v4687
      %v4689 = vsel %vm3920, %v4680, 0.0
      %v4690 = vadd.f32 %v4688, %v4689
      %v4691 = vsel %vm3920, %v4681, 0.0
      %v4692 = vadd.f32 %v4690, %v4691
      %v4693 = vsel %vm3920, %v4682, 0.0
      %v4694 = vadd.f32 %v4692, %v4693
      %v4695 = vsel %vm3920, %v4683, 0.0
      %v4696 = vadd.f32 %v4694, %v4695
      %v4697 = vsel %vm3920, %v4684, 0.0
      %v4698 = vadd.f32 %v4696, %v4697
      %v4699 = vsel %vm3920, %v4685, 0.0
      %v4700 = vadd.f32 %v4698, %v4699
      %v4701 = vrot.slane %v4700, 4
      %v4702 = vadd.f32 %v4700, %v4701
      %v4703 = vrot.slane %v4702, 2
      %v4704 = vadd.f32 %v4702, %v4703
      %v4705 = vrot.slane %v4704, 1
      %v4706 = vadd.f32 %v4704, %v4705
      %v4707 = vmul.f32 %v4706, %v3948
      %v4708 = vadd.f32 %v4707, 1e-05
      %v4709 = vrsqrt.pop %v4708
      %v4710 = vmul.f32 %v4709, %v4708
      %v4711 = vmul.f32 %v4710, %v4709
      %v4712 = vmul.f32 0.5, %v4711
      %v4713 = vsub.f32 1.5, %v4712
      %v4714 = vmul.f32 %v4709, %v4713
      %vm4715 = vweird.f32 %v4708
      %vm4716 = vweird.f32 %v4709
      %vm4717 = vmor %vm4715, %vm4716
      %v4718 = vsel %vm4717, %v4709, %v4714
      %v4719 = vmul.f32 %v4670, %v4718
      %v4720 = vmul.f32 %v4671, %v4718
      %v4721 = vmul.f32 %v4672, %v4718
      %v4722 = vmul.f32 %v4673, %v4718
      %v4723 = vmul.f32 %v4674, %v4718
      %v4724 = vmul.f32 %v4675, %v4718
      %v4725 = vmul.f32 %v4676, %v4718
      %v4726 = vmul.f32 %v4677, %v4718
      %v4728 = vperm.slane %v3819, 0
      %v4730 = vmul.f32 %v4719, %v4728
      %v4731 = vmul.f32 %v4720, %v4728
      %v4732 = vmul.f32 %v4721, %v4728
      %v4733 = vmul.f32 %v4722, %v4728
      %v4734 = vmul.f32 %v4723, %v4728
      %v4735 = vmul.f32 %v4724, %v4728
      %v4736 = vmul.f32 %v4725, %v4728
      %v4737 = vmul.f32 %v4726, %v4728
      %v4739 = vperm.slane %v3820, 0
      %v4741 = vadd.f32 %v4730, %v4739
      %v4742 = vadd.f32 %v4731, %v4739
      %v4743 = vadd.f32 %v4732, %v4739
      %v4744 = vadd.f32 %v4733, %v4739
      %v4745 = vadd.f32 %v4734, %v4739
      %v4746 = vadd.f32 %v4735, %v4739
      %v4747 = vadd.f32 %v4736, %v4739
      %v4748 = vadd.f32 %v4737, %v4739
      %v4749 = vadd.f32 %v4741, %v4021
      %v4750 = vadd.f32 %v4742, %v4022
      %v4751 = vadd.f32 %v4743, %v4023
      %v4752 = vadd.f32 %v4744, %v4024
      %v4753 = vadd.f32 %v4745, %v4025
      %v4754 = vadd.f32 %v4746, %v4026
      %v4755 = vadd.f32 %v4747, %v4027
      %v4756 = vadd.f32 %v4748, %v4028
      %vm4757 = vcmp.ge.f32.partialorder %v4749, 0.0
      %vm4758 = vcmp.ge.f32.partialorder %v4750, 0.0
      %vm4759 = vcmp.ge.f32.partialorder %v4751, 0.0
      %vm4760 = vcmp.ge.f32.partialorder %v4752, 0.0
      %vm4761 = vcmp.ge.f32.partialorder %v4753, 0.0
      %vm4762 = vcmp.ge.f32.partialorder %v4754, 0.0
      %vm4763 = vcmp.ge.f32.partialorder %v4755, 0.0
      %vm4764 = vcmp.ge.f32.partialorder %v4756, 0.0
      %v4766 = vperm.slane %v3821, 0
      %4767 = vset.pattern.permute.xlu0 0
      %4768 = vperm.xlu0 %4767, %v4766
      %v4769 = vpop.permute.xlu0 %4768
      %v4771 = vmul.f32 %v4769, %v4749
      %v4772 = vmul.f32 %v4769, %v4750
      %v4773 = vmul.f32 %v4769, %v4751
      %v4774 = vmul.f32 %v4769, %v4752
      %v4775 = vmul.f32 %v4769, %v4753
      %v4776 = vmul.f32 %v4769, %v4754
      %v4777 = vmul.f32 %v4769, %v4755
      %v4778 = vmul.f32 %v4769, %v4756
      %v4779 = vsel %vm4757, %v4749, %v4771
      %v4780 = vsel %vm4758, %v4750, %v4772
      %v4781 = vsel %vm4759, %v4751, %v4773
      %v4782 = vsel %vm4760, %v4752, %v4774
      %v4783 = vsel %vm4761, %v4753, %v4775
      %v4784 = vsel %vm4762, %v4754, %v4776
      %v4785 = vsel %vm4763, %v4755, %v4777
      %v4786 = vsel %vm4764, %v4756, %v4778
      %v4787 = vlaneseq
      %v4788 = vshrl.u32 %v4787, 7
      %v4789 = vlaneseq
      %v4790 = vand.u32 %v4789, 127
      %vm4791 = vcmp.eq.s32.totalorder %v4788, %v4790
      %v4792 = vsel %vm4791, 1, 0
      %v4793 = vcvt.s32.f32 %v4792
      %v4795 = vsel %vm3920, %v4793, 0
      %v4798 = vsel %vm3920, %v4779, 0
      %v4801 = vsel %vm3920, %v4780, 0
      %v4804 = vsel %vm3920, %v4781, 0
      %v4807 = vsel %vm3920, %v4782, 0
      %v4810 = vsel %vm3920, %v4783, 0
      %v4813 = vsel %vm3920, %v4784, 0
      %v4816 = vsel %vm3920, %v4785, 0
      %v4819 = vsel %vm3920, %v4786, 0
      %4821 = vmatpush.xpose.msra.mxu0 0.0
      %4822 = vmatpush.xpose.msra.mxu0 0.0
      %4823 = vmatpush.xpose.msra.mxu0 0.0
      %4824 = vmatpush.xpose.msra.mxu0 0.0
      %4825 = vmatpush.xpose.msra.mxu0 0.0
      %4826 = vmatpush.xpose.msra.mxu0 0.0
      %4827 = vmatpush.xpose.msra.mxu0 0.0
      %4828 = vmatpush.xpose.msra.mxu0 0.0
      %4829 = vmatpush.xpose.msra.mxu0 %v4819
      %4830 = vmatpush.xpose.msra.mxu0 %v4816
      %4831 = vmatpush.xpose.msra.mxu0 %v4813
      %4832 = vmatpush.xpose.msra.mxu0 %v4810
      %4833 = vmatpush.xpose.msra.mxu0 %v4807
      %4834 = vmatpush.xpose.msra.mxu0 %v4804
      %4835 = vmatpush.xpose.msra.mxu0 %v4801
      %4836 = vmatpush.xpose.msra.mxu0 %v4798
      %4837 = vmatmul.f32.gmra.mxu0 %v4795
      %v4838 = vpop.f32.mrf.mxu0
      %v4839 = vadd.f32 0.0, %v4838
      %4840 = vdwg.mxu0
      %v4842 = vrot.slane %v4839, 1
      %4843 = vrot.lane.b32.xlu0 %v4842, 64
      %v4844 = vpop.permute.xlu0 %4843
      %v4846 = vrot.slane %v4839, 2
      %v4848 = vrot.slane %v4839, 3
      %4849 = vrot.lane.b32.xlu0 %v4848, 64
      %v4850 = vpop.permute.xlu0 %4849
      %v4852 = vrot.slane %v4839, 4
      %v4853 = vsel %vm2022, %v4839, %v4844
      %v4854 = vsel %vm2022, %v4846, %v4850
      %v4856 = vrot.slane %v4853, 7
      %4857 = vrot.lane.b32.xlu0 %v4856, 88
      %v4858 = vpop.permute.xlu0 %4857
      %v4860 = vrot.slane %v4853, 6
      %4861 = vrot.lane.b32.xlu0 %v4860, 48
      %v4862 = vpop.permute.xlu0 %4861
      %v4865 = vrot.slane %v4853, 5
      %v4866 = vrot.slane %v4854, 5
      %4867 = vrot.lane.b32.xlu0 %v4865, 8
      %v4868 = vpop.permute.xlu0 %4867
      %4869 = vrot.lane.b32.xlu0 %v4866, 8
      %v4870 = vpop.permute.xlu0 %4869
      %v4871 = vsel %vm1948, %v4868, %v4870
      %v4873 = vrot.slane %v4854, 4
      %4874 = vrot.lane.b32.xlu0 %v4873, 96
      %v4875 = vpop.permute.xlu0 %4874
      %v4877 = vrot.slane %v4854, 3
      %4878 = vrot.lane.b32.xlu0 %v4877, 56
      %v4879 = vpop.permute.xlu0 %4878
      %v4881 = vrot.slane %v4854, 2
      %v4882 = vrot.slane %v4852, 2
      %4883 = vrot.lane.b32.xlu0 %v4881, 16
      %v4884 = vpop.permute.xlu0 %4883
      %4885 = vrot.lane.b32.xlu0 %v4882, 16
      %v4886 = vpop.permute.xlu0 %4885
      %v4887 = vsel %vm3150, %v4884, %v4886
      %v4889 = vrot.slane %v4852, 1
      %4890 = vrot.lane.b32.xlu0 %v4889, 104
      %v4891 = vpop.permute.xlu0 %4890
      %vm4893 = vcmask 1040384
      %v4894 = vsel %vm4893, %v4853, %v4858
      %v4895 = vsel %vm1766, %v4894, %v4862
      %vm4896 = vcmask 1042432
      %v4897 = vsel %vm4896, %v4895, %v4871
      %vm4898 = vcmask 1043456
      %v4899 = vsel %vm4898, %v4897, %v4875
      %v4900 = vsel %vm4448, %v4899, %v4879
      %vm4901 = vcmask 1045504
      %v4902 = vsel %vm4901, %v4900, %v4887
      %vm4903 = vcmask 1046528
      %v4904 = vsel %vm4903, %v4902, %v4891
      %v4905 = vld [vmem:[%s1704] sm:$0xff]
      %v4906 = vld [vmem:[%s1704 + $0x8] sm:$0xf]
      %v4907 = vld [vmem:[%s1704 + $0x10] sm:$0xff]
      %v4908 = vld [vmem:[%s1704 + $0x18] sm:$0xf]
      %v4909 = vld [vmem:[%s1704 + $0x20] sm:$0xff]
      %v4910 = vld [vmem:[%s1704 + $0x28] sm:$0xf]
      %v4911 = vld [vmem:[%s1709] sm:$0xff]
      %v4912 = vld [vmem:[%s1709 + $0x8] sm:$0xf]
      %v4913 = vld [vmem:[%s1712] sm:$0x1]
      %v4914 = vld [vmem:[%s1717] sm:$0xff]
      %v4915 = vld [vmem:[%s1717 + $0x8] sm:$0xf]
      %v4916 = vld [vmem:[%s1717 + $0x10] sm:$0xff]
      %v4917 = vld [vmem:[%s1717 + $0x18] sm:$0xf]
      %v4918 = vld [vmem:[%s1717 + $0x20] sm:$0xff]
      %v4919 = vld [vmem:[%s1717 + $0x28] sm:$0xf]
      %v4920 = vld [vmem:[%s1717 + $0x30] sm:$0xff]
      %v4921 = vld [vmem:[%s1717 + $0x38] sm:$0xf]
      %v4922 = vld [vmem:[%s1717 + $0x40] sm:$0xff]
      %v4923 = vld [vmem:[%s1717 + $0x48] sm:$0xf]
      %v4924 = vld [vmem:[%s1717 + $0x50] sm:$0xff]
      %v4925 = vld [vmem:[%s1717 + $0x58] sm:$0xf]
      %v4926 = vld [vmem:[%s1717 + $0x60] sm:$0xff]
      %v4927 = vld [vmem:[%s1717 + $0x68] sm:$0xf]
      %v4928 = vld [vmem:[%s1717 + $0x70] sm:$0xff]
      %v4929 = vld [vmem:[%s1717 + $0x78] sm:$0xf]
      %v4930 = vld [vmem:[%s1717 + $0x80] sm:$0xff]
      %v4931 = vld [vmem:[%s1717 + $0x88] sm:$0xf]
      %v4932 = vld [vmem:[%s1722] sm:$0xff]
      %v4933 = vld [vmem:[%s1722 + $0x8] sm:$0xf]
      %s4934 = scalar_lea.vmem %s9, 40
      %v4935 = vld [vmem:[%s4934] sm:$0xff]
      %v4936 = vld [vmem:[%s4934 + $0x8] sm:$0xff]
      %v4937 = vld [vmem:[%s4934 + $0x10] sm:$0xff]
      %v4938 = vld [vmem:[%s4934 + $0x18] sm:$0xff]
      %v4939 = vld [vmem:[%s4934 + $0x20] sm:$0xff]
      %vm4940 = vcmask 326656
      %v4942 = vsel %vm4940, %v4904, 0
      %4944 = vmatpush.msra.mxu0 0.0
      %4945 = vmatpush.msra.mxu0 0.0
      %4946 = vmatpush.msra.mxu0 0.0
      %4947 = vmatpush.msra.mxu0 0.0
      %4948 = vmatpush.msra.mxu0 0.0
      %4949 = vmatpush.msra.mxu0 0.0
      %4950 = vmatpush.msra.mxu0 0.0
      %4951 = vmatpush.msra.mxu0 0.0
      %4952 = vmatpush.msra.mxu0 0.0
      %4953 = vmatpush.msra.mxu0 0.0
      %4954 = vmatpush.msra.mxu0 0.0
      %4955 = vmatpush.msra.mxu0 %v4939
      %4956 = vmatpush.msra.mxu0 %v4938
      %4957 = vmatpush.msra.mxu0 %v4937
      %4958 = vmatpush.msra.mxu0 %v4936
      %4959 = vmatpush.msra.mxu0 %v4935
      %4960 = vmatmul.f32.gmra.mxu0 %v4942
      %v4961 = vpop.f32.mrf.mxu0
      %v4962 = vadd.f32 0.0, %v4961
      %4963 = vdwg.mxu0
      %v4965 = vsel %vm1948, %v4905, 0
      %v4968 = vsel %vm1948, %v4906, 0
      %4970 = vmatpush.msra.mxu0 0.0
      %4971 = vmatpush.msra.mxu0 0.0
      %4972 = vmatpush.msra.mxu0 0.0
      %4973 = vmatpush.msra.mxu0 0.0
      %4974 = vmatpush.msra.mxu0 0.0
      %4975 = vmatpush.msra.mxu0 0.0
      %4976 = vmatpush.msra.mxu0 0.0
      %4977 = vmatpush.msra.mxu0 0.0
      %4978 = vmatpush.msra.mxu0 0.0
      %4979 = vmatpush.msra.mxu0 0.0
      %4980 = vmatpush.msra.mxu0 0.0
      %4981 = vmatpush.msra.mxu0 0.0
      %4982 = vmatpush.msra.mxu0 0.0
      %4983 = vmatpush.msra.mxu0 0.0
      %4984 = vmatpush.msra.mxu0 0.0
      %4985 = vmatpush.msra.mxu0 %v4962
      %4986 = vmatmul.f32.gmra.mxu0 %v4965
      %v4987 = vpop.f32.mrf.mxu0
      %v4988 = vadd.f32 0.0, %v4987
      %4989 = vmatmul.f32.gmra.mxu0 %v4968
      %v4990 = vpop.f32.mrf.mxu0
      %v4991 = vadd.f32 0.0, %v4990
      %4992 = vdwg.mxu0
      %4994 = vset.pattern.permute.xlu0 0
      %4995 = vperm.xlu0 %4994, %v4911
      %v4996 = vpop.permute.xlu0 %4995
      %4999 = vset.pattern.permute.xlu0 0
      %5000 = vperm.xlu0 %4999, %v4912
      %v5001 = vpop.permute.xlu0 %5000
      %v5003 = vadd.f32 %v4996, %v4988
      %v5004 = vadd.f32 %v5001, %v4991
      %s5005 = scalar_lea.vmem %s9, 160
      %v5006 = vld [vmem:[%s5005] sm:$0xff]
      %v5007 = vld [vmem:[%s5005 + $0x8] sm:$0xff]
      %v5008 = vld [vmem:[%s5005 + $0x10] sm:$0xff]
      %v5009 = vld [vmem:[%s5005 + $0x18] sm:$0xff]
      %v5010 = vld [vmem:[%s5005 + $0x20] sm:$0xff]
      %5011 = vmatpush.msra.mxu0 0.0
      %5012 = vmatpush.msra.mxu0 0.0
      %5013 = vmatpush.msra.mxu0 0.0
      %5014 = vmatpush.msra.mxu0 0.0
      %5015 = vmatpush.msra.mxu0 0.0
      %5016 = vmatpush.msra.mxu0 0.0
      %5017 = vmatpush.msra.mxu0 0.0
      %5018 = vmatpush.msra.mxu0 0.0
      %5019 = vmatpush.msra.mxu0 0.0
      %5020 = vmatpush.msra.mxu0 0.0
      %5021 = vmatpush.msra.mxu0 0.0
      %5022 = vmatpush.msra.mxu0 %v5010
      %5023 = vmatpush.msra.mxu0 %v5009
      %5024 = vmatpush.msra.mxu0 %v5008
      %5025 = vmatpush.msra.mxu0 %v5007
      %5026 = vmatpush.msra.mxu0 %v5006
      %5027 = vmatmul.f32.gmra.mxu0 %v4942
      %v5028 = vpop.f32.mrf.mxu0
      %v5029 = vadd.f32 0.0, %v5028
      %5030 = vdwg.mxu0
      %v5032 = vsel %vm1948, %v4907, 0
      %v5035 = vsel %vm1948, %v4908, 0
      %5037 = vmatpush.msra.mxu0 0.0
      %5038 = vmatpush.msra.mxu0 0.0
      %5039 = vmatpush.msra.mxu0 0.0
      %5040 = vmatpush.msra.mxu0 0.0
      %5041 = vmatpush.msra.mxu0 0.0
      %5042 = vmatpush.msra.mxu0 0.0
      %5043 = vmatpush.msra.mxu0 0.0
      %5044 = vmatpush.msra.mxu0 0.0
      %5045 = vmatpush.msra.mxu0 0.0
      %5046 = vmatpush.msra.mxu0 0.0
      %5047 = vmatpush.msra.mxu0 0.0
      %5048 = vmatpush.msra.mxu0 0.0
      %5049 = vmatpush.msra.mxu0 0.0
      %5050 = vmatpush.msra.mxu0 0.0
      %5051 = vmatpush.msra.mxu0 0.0
      %5052 = vmatpush.msra.mxu0 %v5029
      %5053 = vmatmul.f32.gmra.mxu0 %v5032
      %v5054 = vpop.f32.mrf.mxu0
      %v5055 = vadd.f32 0.0, %v5054
      %5056 = vmatmul.f32.gmra.mxu0 %v5035
      %v5057 = vpop.f32.mrf.mxu0
      %v5058 = vadd.f32 0.0, %v5057
      %5059 = vdwg.mxu0
      %v5060 = vadd.f32 %v5003, %v5055
      %v5061 = vadd.f32 %v5004, %v5058
      %s5062 = scalar_lea.vmem %s9, 280
      %v5063 = vld [vmem:[%s5062] sm:$0xff]
      %v5064 = vld [vmem:[%s5062 + $0x8] sm:$0xff]
      %v5065 = vld [vmem:[%s5062 + $0x10] sm:$0xff]
      %v5066 = vld [vmem:[%s5062 + $0x18] sm:$0xff]
      %v5067 = vld [vmem:[%s5062 + $0x20] sm:$0xff]
      %5068 = vmatpush.msra.mxu0 0.0
      %5069 = vmatpush.msra.mxu0 0.0
      %5070 = vmatpush.msra.mxu0 0.0
      %5071 = vmatpush.msra.mxu0 0.0
      %5072 = vmatpush.msra.mxu0 0.0
      %5073 = vmatpush.msra.mxu0 0.0
      %5074 = vmatpush.msra.mxu0 0.0
      %5075 = vmatpush.msra.mxu0 0.0
      %5076 = vmatpush.msra.mxu0 0.0
      %5077 = vmatpush.msra.mxu0 0.0
      %5078 = vmatpush.msra.mxu0 0.0
      %5079 = vmatpush.msra.mxu0 %v5067
      %5080 = vmatpush.msra.mxu0 %v5066
      %5081 = vmatpush.msra.mxu0 %v5065
      %5082 = vmatpush.msra.mxu0 %v5064
      %5083 = vmatpush.msra.mxu0 %v5063
      %5084 = vmatmul.f32.gmra.mxu0 %v4942
      %v5085 = vpop.f32.mrf.mxu0
      %v5086 = vadd.f32 0.0, %v5085
      %5087 = vdwg.mxu0
      %v5089 = vsel %vm1948, %v4909, 0
      %v5092 = vsel %vm1948, %v4910, 0
      %5094 = vmatpush.msra.mxu0 0.0
      %5095 = vmatpush.msra.mxu0 0.0
      %5096 = vmatpush.msra.mxu0 0.0
      %5097 = vmatpush.msra.mxu0 0.0
      %5098 = vmatpush.msra.mxu0 0.0
      %5099 = vmatpush.msra.mxu0 0.0
      %5100 = vmatpush.msra.mxu0 0.0
      %5101 = vmatpush.msra.mxu0 0.0
      %5102 = vmatpush.msra.mxu0 0.0
      %5103 = vmatpush.msra.mxu0 0.0
      %5104 = vmatpush.msra.mxu0 0.0
      %5105 = vmatpush.msra.mxu0 0.0
      %5106 = vmatpush.msra.mxu0 0.0
      %5107 = vmatpush.msra.mxu0 0.0
      %5108 = vmatpush.msra.mxu0 0.0
      %5109 = vmatpush.msra.mxu0 %v5086
      %5110 = vmatmul.f32.gmra.mxu0 %v5089
      %v5111 = vpop.f32.mrf.mxu0
      %v5112 = vadd.f32 0.0, %v5111
      %5113 = vmatmul.f32.gmra.mxu0 %v5092
      %v5114 = vpop.f32.mrf.mxu0
      %v5115 = vadd.f32 0.0, %v5114
      %5116 = vdwg.mxu0
      %v5117 = vadd.f32 %v5060, %v5112
      %v5118 = vadd.f32 %v5061, %v5115
      %vm5119 = vcmp.ge.f32.partialorder %v5117, 0.0
      %vm5120 = vcmp.ge.f32.partialorder %v5118, 0.0
      %v5122 = vperm.slane %v4913, 0
      %5123 = vset.pattern.permute.xlu0 0
      %5124 = vperm.xlu0 %5123, %v5122
      %v5125 = vpop.permute.xlu0 %5124
      %v5127 = vmul.f32 %v5125, %v5117
      %v5128 = vmul.f32 %v5125, %v5118
      %v5129 = vsel %vm5119, %v5117, %v5127
      %v5130 = vsel %vm5120, %v5118, %v5128
      %v5131 = vld [vmem:[%s9] sm:$0xff]
      %v5132 = vld [vmem:[%s9 + $0x8] sm:$0xff]
      %v5133 = vld [vmem:[%s9 + $0x10] sm:$0xff]
      %v5134 = vld [vmem:[%s9 + $0x18] sm:$0xff]
      %v5135 = vld [vmem:[%s9 + $0x20] sm:$0xff]
      %v5137 = vsel %vm4940, %v5129, 0
      %v5140 = vsel %vm4940, %v5130, 0
      %5142 = vmatpush.msra.mxu0 0.0
      %5143 = vmatpush.msra.mxu0 0.0
      %5144 = vmatpush.msra.mxu0 0.0
      %5145 = vmatpush.msra.mxu0 0.0
      %5146 = vmatpush.msra.mxu0 0.0
      %5147 = vmatpush.msra.mxu0 0.0
      %5148 = vmatpush.msra.mxu0 0.0
      %5149 = vmatpush.msra.mxu0 0.0
      %5150 = vmatpush.msra.mxu0 0.0
      %5151 = vmatpush.msra.mxu0 0.0
      %5152 = vmatpush.msra.mxu0 0.0
      %5153 = vmatpush.msra.mxu0 %v5135
      %5154 = vmatpush.msra.mxu0 %v5134
      %5155 = vmatpush.msra.mxu0 %v5133
      %5156 = vmatpush.msra.mxu0 %v5132
      %5157 = vmatpush.msra.mxu0 %v5131
      %5158 = vmatmul.f32.gmra.mxu0 %v5137
      %v5159 = vpop.f32.mrf.mxu0
      %v5160 = vadd.f32 0.0, %v5159
      %5161 = vmatmul.f32.gmra.mxu0 %v5140
      %v5162 = vpop.f32.mrf.mxu0
      %v5163 = vadd.f32 0.0, %v5162
      %5164 = vdwg.mxu0
      %vm5165 = vcmask 97280
      %v5167 = vsel %vm5165, %v4914, 0
      %v5170 = vsel %vm5165, %v4915, 0
      %v5173 = vsel %vm4898, %v5163, 0
      %5175 = vmatpush.msra.mxu0 0.0
      %5176 = vmatpush.msra.mxu0 0.0
      %5177 = vmatpush.msra.mxu0 0.0
      %5178 = vmatpush.msra.mxu0 0.0
      %5179 = vmatpush.msra.mxu0 0.0
      %5180 = vmatpush.msra.mxu0 0.0
      %5181 = vmatpush.msra.mxu0 0.0
      %5182 = vmatpush.msra.mxu0 0.0
      %5183 = vmatpush.msra.mxu0 0.0
      %5184 = vmatpush.msra.mxu0 0.0
      %5185 = vmatpush.msra.mxu0 0.0
      %5186 = vmatpush.msra.mxu0 0.0
      %5187 = vmatpush.msra.mxu0 0.0
      %5188 = vmatpush.msra.mxu0 0.0
      %5189 = vmatpush.msra.mxu0 %v5173
      %5190 = vmatpush.msra.mxu0 %v5160
      %5191 = vmatmul.f32.gmra.mxu0 %v5167
      %v5192 = vpop.f32.mrf.mxu0
      %v5193 = vadd.f32 0.0, %v5192
      %5194 = vmatmul.f32.gmra.mxu0 %v5170
      %v5195 = vpop.f32.mrf.mxu0
      %v5196 = vadd.f32 0.0, %v5195
      %5197 = vdwg.mxu0
      %5199 = vset.pattern.permute.xlu0 0
      %5200 = vperm.xlu0 %5199, %v4932
      %v5201 = vpop.permute.xlu0 %5200
      %5204 = vset.pattern.permute.xlu0 0
      %5205 = vperm.xlu0 %5204, %v4933
      %v5206 = vpop.permute.xlu0 %5205
      %v5208 = vadd.f32 %v5201, %v5193
      %v5209 = vadd.f32 %v5206, %v5196
      %5210 = vmatpush.msra.mxu0 0.0
      %5211 = vmatpush.msra.mxu0 0.0
      %5212 = vmatpush.msra.mxu0 0.0
      %5213 = vmatpush.msra.mxu0 0.0
      %5214 = vmatpush.msra.mxu0 0.0
      %5215 = vmatpush.msra.mxu0 0.0
      %5216 = vmatpush.msra.mxu0 0.0
      %5217 = vmatpush.msra.mxu0 0.0
      %5218 = vmatpush.msra.mxu0 0.0
      %5219 = vmatpush.msra.mxu0 0.0
      %5220 = vmatpush.msra.mxu0 0.0
      %5221 = vmatpush.msra.mxu0 %v4939
      %5222 = vmatpush.msra.mxu0 %v4938
      %5223 = vmatpush.msra.mxu0 %v4937
      %5224 = vmatpush.msra.mxu0 %v4936
      %5225 = vmatpush.msra.mxu0 %v4935
      %5226 = vmatmul.f32.gmra.mxu0 %v5137
      %v5227 = vpop.f32.mrf.mxu0
      %v5228 = vadd.f32 0.0, %v5227
      %5229 = vmatmul.f32.gmra.mxu0 %v5140
      %v5230 = vpop.f32.mrf.mxu0
      %v5231 = vadd.f32 0.0, %v5230
      %5232 = vdwg.mxu0
      %v5234 = vsel %vm5165, %v4916, 0
      %v5237 = vsel %vm5165, %v4917, 0
      %v5240 = vsel %vm4898, %v5231, 0
      %5242 = vmatpush.msra.mxu0 0.0
      %5243 = vmatpush.msra.mxu0 0.0
      %5244 = vmatpush.msra.mxu0 0.0
      %5245 = vmatpush.msra.mxu0 0.0
      %5246 = vmatpush.msra.mxu0 0.0
      %5247 = vmatpush.msra.mxu0 0.0
      %5248 = vmatpush.msra.mxu0 0.0
      %5249 = vmatpush.msra.mxu0 0.0
      %5250 = vmatpush.msra.mxu0 0.0
      %5251 = vmatpush.msra.mxu0 0.0
      %5252 = vmatpush.msra.mxu0 0.0
      %5253 = vmatpush.msra.mxu0 0.0
      %5254 = vmatpush.msra.mxu0 0.0
      %5255 = vmatpush.msra.mxu0 0.0
      %5256 = vmatpush.msra.mxu0 %v5240
      %5257 = vmatpush.msra.mxu0 %v5228
      %5258 = vmatmul.f32.gmra.mxu0 %v5234
      %v5259 = vpop.f32.mrf.mxu0
      %v5260 = vadd.f32 0.0, %v5259
      %5261 = vmatmul.f32.gmra.mxu0 %v5237
      %v5262 = vpop.f32.mrf.mxu0
      %v5263 = vadd.f32 0.0, %v5262
      %5264 = vdwg.mxu0
      %v5265 = vadd.f32 %v5208, %v5260
      %v5266 = vadd.f32 %v5209, %v5263
      %s5267 = scalar_lea.vmem %s9, 80
      %v5268 = vld [vmem:[%s5267] sm:$0xff]
      %v5269 = vld [vmem:[%s5267 + $0x8] sm:$0xff]
      %v5270 = vld [vmem:[%s5267 + $0x10] sm:$0xff]
      %v5271 = vld [vmem:[%s5267 + $0x18] sm:$0xff]
      %v5272 = vld [vmem:[%s5267 + $0x20] sm:$0xff]
      %5273 = vmatpush.msra.mxu0 0.0
      %5274 = vmatpush.msra.mxu0 0.0
      %5275 = vmatpush.msra.mxu0 0.0
      %5276 = vmatpush.msra.mxu0 0.0
      %5277 = vmatpush.msra.mxu0 0.0
      %5278 = vmatpush.msra.mxu0 0.0
      %5279 = vmatpush.msra.mxu0 0.0
      %5280 = vmatpush.msra.mxu0 0.0
      %5281 = vmatpush.msra.mxu0 0.0
      %5282 = vmatpush.msra.mxu0 0.0
      %5283 = vmatpush.msra.mxu0 0.0
      %5284 = vmatpush.msra.mxu0 %v5272
      %5285 = vmatpush.msra.mxu0 %v5271
      %5286 = vmatpush.msra.mxu0 %v5270
      %5287 = vmatpush.msra.mxu0 %v5269
      %5288 = vmatpush.msra.mxu0 %v5268
      %5289 = vmatmul.f32.gmra.mxu0 %v5137
      %v5290 = vpop.f32.mrf.mxu0
      %v5291 = vadd.f32 0.0, %v5290
      %5292 = vmatmul.f32.gmra.mxu0 %v5140
      %v5293 = vpop.f32.mrf.mxu0
      %v5294 = vadd.f32 0.0, %v5293
      %5295 = vdwg.mxu0
      %v5297 = vsel %vm5165, %v4918, 0
      %v5300 = vsel %vm5165, %v4919, 0
      %v5303 = vsel %vm4898, %v5294, 0
      %5305 = vmatpush.msra.mxu0 0.0
      %5306 = vmatpush.msra.mxu0 0.0
      %5307 = vmatpush.msra.mxu0 0.0
      %5308 = vmatpush.msra.mxu0 0.0
      %5309 = vmatpush.msra.mxu0 0.0
      %5310 = vmatpush.msra.mxu0 0.0
      %5311 = vmatpush.msra.mxu0 0.0
      %5312 = vmatpush.msra.mxu0 0.0
      %5313 = vmatpush.msra.mxu0 0.0
      %5314 = vmatpush.msra.mxu0 0.0
      %5315 = vmatpush.msra.mxu0 0.0
      %5316 = vmatpush.msra.mxu0 0.0
      %5317 = vmatpush.msra.mxu0 0.0
      %5318 = vmatpush.msra.mxu0 0.0
      %5319 = vmatpush.msra.mxu0 %v5303
      %5320 = vmatpush.msra.mxu0 %v5291
      %5321 = vmatmul.f32.gmra.mxu0 %v5297
      %v5322 = vpop.f32.mrf.mxu0
      %v5323 = vadd.f32 0.0, %v5322
      %5324 = vmatmul.f32.gmra.mxu0 %v5300
      %v5325 = vpop.f32.mrf.mxu0
      %v5326 = vadd.f32 0.0, %v5325
      %5327 = vdwg.mxu0
      %v5328 = vadd.f32 %v5265, %v5323
      %v5329 = vadd.f32 %v5266, %v5326
      %s5330 = scalar_lea.vmem %s9, 120
      %v5331 = vld [vmem:[%s5330] sm:$0xff]
      %v5332 = vld [vmem:[%s5330 + $0x8] sm:$0xff]
      %v5333 = vld [vmem:[%s5330 + $0x10] sm:$0xff]
      %v5334 = vld [vmem:[%s5330 + $0x18] sm:$0xff]
      %v5335 = vld [vmem:[%s5330 + $0x20] sm:$0xff]
      %5336 = vmatpush.msra.mxu0 0.0
      %5337 = vmatpush.msra.mxu0 0.0
      %5338 = vmatpush.msra.mxu0 0.0
      %5339 = vmatpush.msra.mxu0 0.0
      %5340 = vmatpush.msra.mxu0 0.0
      %5341 = vmatpush.msra.mxu0 0.0
      %5342 = vmatpush.msra.mxu0 0.0
      %5343 = vmatpush.msra.mxu0 0.0
      %5344 = vmatpush.msra.mxu0 0.0
      %5345 = vmatpush.msra.mxu0 0.0
      %5346 = vmatpush.msra.mxu0 0.0
      %5347 = vmatpush.msra.mxu0 %v5335
      %5348 = vmatpush.msra.mxu0 %v5334
      %5349 = vmatpush.msra.mxu0 %v5333
      %5350 = vmatpush.msra.mxu0 %v5332
      %5351 = vmatpush.msra.mxu0 %v5331
      %5352 = vmatmul.f32.gmra.mxu0 %v5137
      %v5353 = vpop.f32.mrf.mxu0
      %v5354 = vadd.f32 0.0, %v5353
      %5355 = vmatmul.f32.gmra.mxu0 %v5140
      %v5356 = vpop.f32.mrf.mxu0
      %v5357 = vadd.f32 0.0, %v5356
      %5358 = vdwg.mxu0
      %v5360 = vsel %vm5165, %v4920, 0
      %v5363 = vsel %vm5165, %v4921, 0
      %v5366 = vsel %vm4898, %v5357, 0
      %5368 = vmatpush.msra.mxu0 0.0
      %5369 = vmatpush.msra.mxu0 0.0
      %5370 = vmatpush.msra.mxu0 0.0
      %5371 = vmatpush.msra.mxu0 0.0
      %5372 = vmatpush.msra.mxu0 0.0
      %5373 = vmatpush.msra.mxu0 0.0
      %5374 = vmatpush.msra.mxu0 0.0
      %5375 = vmatpush.msra.mxu0 0.0
      %5376 = vmatpush.msra.mxu0 0.0
      %5377 = vmatpush.msra.mxu0 0.0
      %5378 = vmatpush.msra.mxu0 0.0
      %5379 = vmatpush.msra.mxu0 0.0
      %5380 = vmatpush.msra.mxu0 0.0
      %5381 = vmatpush.msra.mxu0 0.0
      %5382 = vmatpush.msra.mxu0 %v5366
      %5383 = vmatpush.msra.mxu0 %v5354
      %5384 = vmatmul.f32.gmra.mxu0 %v5360
      %v5385 = vpop.f32.mrf.mxu0
      %v5386 = vadd.f32 0.0, %v5385
      %5387 = vmatmul.f32.gmra.mxu0 %v5363
      %v5388 = vpop.f32.mrf.mxu0
      %v5389 = vadd.f32 0.0, %v5388
      %5390 = vdwg.mxu0
      %v5391 = vadd.f32 %v5328, %v5386
      %v5392 = vadd.f32 %v5329, %v5389
      %5393 = vmatpush.msra.mxu0 0.0
      %5394 = vmatpush.msra.mxu0 0.0
      %5395 = vmatpush.msra.mxu0 0.0
      %5396 = vmatpush.msra.mxu0 0.0
      %5397 = vmatpush.msra.mxu0 0.0
      %5398 = vmatpush.msra.mxu0 0.0
      %5399 = vmatpush.msra.mxu0 0.0
      %5400 = vmatpush.msra.mxu0 0.0
      %5401 = vmatpush.msra.mxu0 0.0
      %5402 = vmatpush.msra.mxu0 0.0
      %5403 = vmatpush.msra.mxu0 0.0
      %5404 = vmatpush.msra.mxu0 %v5010
      %5405 = vmatpush.msra.mxu0 %v5009
      %5406 = vmatpush.msra.mxu0 %v5008
      %5407 = vmatpush.msra.mxu0 %v5007
      %5408 = vmatpush.msra.mxu0 %v5006
      %5409 = vmatmul.f32.gmra.mxu0 %v5137
      %v5410 = vpop.f32.mrf.mxu0
      %v5411 = vadd.f32 0.0, %v5410
      %5412 = vmatmul.f32.gmra.mxu0 %v5140
      %v5413 = vpop.f32.mrf.mxu0
      %v5414 = vadd.f32 0.0, %v5413
      %5415 = vdwg.mxu0
      %v5417 = vsel %vm5165, %v4922, 0
      %v5420 = vsel %vm5165, %v4923, 0
      %v5423 = vsel %vm4898, %v5414, 0
      %5425 = vmatpush.msra.mxu0 0.0
      %5426 = vmatpush.msra.mxu0 0.0
      %5427 = vmatpush.msra.mxu0 0.0
      %5428 = vmatpush.msra.mxu0 0.0
      %5429 = vmatpush.msra.mxu0 0.0
      %5430 = vmatpush.msra.mxu0 0.0
      %5431 = vmatpush.msra.mxu0 0.0
      %5432 = vmatpush.msra.mxu0 0.0
      %5433 = vmatpush.msra.mxu0 0.0
      %5434 = vmatpush.msra.mxu0 0.0
      %5435 = vmatpush.msra.mxu0 0.0
      %5436 = vmatpush.msra.mxu0 0.0
      %5437 = vmatpush.msra.mxu0 0.0
      %5438 = vmatpush.msra.mxu0 0.0
      %5439 = vmatpush.msra.mxu0 %v5423
      %5440 = vmatpush.msra.mxu0 %v5411
      %5441 = vmatmul.f32.gmra.mxu0 %v5417
      %v5442 = vpop.f32.mrf.mxu0
      %v5443 = vadd.f32 0.0, %v5442
      %5444 = vmatmul.f32.gmra.mxu0 %v5420
      %v5445 = vpop.f32.mrf.mxu0
      %v5446 = vadd.f32 0.0, %v5445
      %5447 = vdwg.mxu0
      %v5448 = vadd.f32 %v5391, %v5443
      %v5449 = vadd.f32 %v5392, %v5446
      %s5450 = scalar_lea.vmem %s9, 200
      %v5451 = vld [vmem:[%s5450] sm:$0xff]
      %v5452 = vld [vmem:[%s5450 + $0x8] sm:$0xff]
      %v5453 = vld [vmem:[%s5450 + $0x10] sm:$0xff]
      %v5454 = vld [vmem:[%s5450 + $0x18] sm:$0xff]
      %v5455 = vld [vmem:[%s5450 + $0x20] sm:$0xff]
      %5456 = vmatpush.msra.mxu0 0.0
      %5457 = vmatpush.msra.mxu0 0.0
      %5458 = vmatpush.msra.mxu0 0.0
      %5459 = vmatpush.msra.mxu0 0.0
      %5460 = vmatpush.msra.mxu0 0.0
      %5461 = vmatpush.msra.mxu0 0.0
      %5462 = vmatpush.msra.mxu0 0.0
      %5463 = vmatpush.msra.mxu0 0.0
      %5464 = vmatpush.msra.mxu0 0.0
      %5465 = vmatpush.msra.mxu0 0.0
      %5466 = vmatpush.msra.mxu0 0.0
      %5467 = vmatpush.msra.mxu0 %v5455
      %5468 = vmatpush.msra.mxu0 %v5454
      %5469 = vmatpush.msra.mxu0 %v5453
      %5470 = vmatpush.msra.mxu0 %v5452
      %5471 = vmatpush.msra.mxu0 %v5451
      %5472 = vmatmul.f32.gmra.mxu0 %v5137
      %v5473 = vpop.f32.mrf.mxu0
      %v5474 = vadd.f32 0.0, %v5473
      %5475 = vmatmul.f32.gmra.mxu0 %v5140
      %v5476 = vpop.f32.mrf.mxu0
      %v5477 = vadd.f32 0.0, %v5476
      %5478 = vdwg.mxu0
      %v5480 = vsel %vm5165, %v4924, 0
      %v5483 = vsel %vm5165, %v4925, 0
      %v5486 = vsel %vm4898, %v5477, 0
      %5488 = vmatpush.msra.mxu0 0.0
      %5489 = vmatpush.msra.mxu0 0.0
      %5490 = vmatpush.msra.mxu0 0.0
      %5491 = vmatpush.msra.mxu0 0.0
      %5492 = vmatpush.msra.mxu0 0.0
      %5493 = vmatpush.msra.mxu0 0.0
      %5494 = vmatpush.msra.mxu0 0.0
      %5495 = vmatpush.msra.mxu0 0.0
      %5496 = vmatpush.msra.mxu0 0.0
      %5497 = vmatpush.msra.mxu0 0.0
      %5498 = vmatpush.msra.mxu0 0.0
      %5499 = vmatpush.msra.mxu0 0.0
      %5500 = vmatpush.msra.mxu0 0.0
      %5501 = vmatpush.msra.mxu0 0.0
      %5502 = vmatpush.msra.mxu0 %v5486
      %5503 = vmatpush.msra.mxu0 %v5474
      %5504 = vmatmul.f32.gmra.mxu0 %v5480
      %v5505 = vpop.f32.mrf.mxu0
      %v5506 = vadd.f32 0.0, %v5505
      %5507 = vmatmul.f32.gmra.mxu0 %v5483
      %v5508 = vpop.f32.mrf.mxu0
      %v5509 = vadd.f32 0.0, %v5508
      %5510 = vdwg.mxu0
      %v5511 = vadd.f32 %v5448, %v5506
      %v5512 = vadd.f32 %v5449, %v5509
      %s5513 = scalar_lea.vmem %s9, 240
      %v5514 = vld [vmem:[%s5513] sm:$0xff]
      %v5515 = vld [vmem:[%s5513 + $0x8] sm:$0xff]
      %v5516 = vld [vmem:[%s5513 + $0x10] sm:$0xff]
      %v5517 = vld [vmem:[%s5513 + $0x18] sm:$0xff]
      %v5518 = vld [vmem:[%s5513 + $0x20] sm:$0xff]
      %5519 = vmatpush.msra.mxu0 0.0
      %5520 = vmatpush.msra.mxu0 0.0
      %5521 = vmatpush.msra.mxu0 0.0
      %5522 = vmatpush.msra.mxu0 0.0
      %5523 = vmatpush.msra.mxu0 0.0
      %5524 = vmatpush.msra.mxu0 0.0
      %5525 = vmatpush.msra.mxu0 0.0
      %5526 = vmatpush.msra.mxu0 0.0
      %5527 = vmatpush.msra.mxu0 0.0
      %5528 = vmatpush.msra.mxu0 0.0
      %5529 = vmatpush.msra.mxu0 0.0
      %5530 = vmatpush.msra.mxu0 %v5518
      %5531 = vmatpush.msra.mxu0 %v5517
      %5532 = vmatpush.msra.mxu0 %v5516
      %5533 = vmatpush.msra.mxu0 %v5515
      %5534 = vmatpush.msra.mxu0 %v5514
      %5535 = vmatmul.f32.gmra.mxu0 %v5137
      %v5536 = vpop.f32.mrf.mxu0
      %v5537 = vadd.f32 0.0, %v5536
      %5538 = vmatmul.f32.gmra.mxu0 %v5140
      %v5539 = vpop.f32.mrf.mxu0
      %v5540 = vadd.f32 0.0, %v5539
      %5541 = vdwg.mxu0
      %v5543 = vsel %vm5165, %v4926, 0
      %v5546 = vsel %vm5165, %v4927, 0
      %v5549 = vsel %vm4898, %v5540, 0
      %5551 = vmatpush.msra.mxu0 0.0
      %5552 = vmatpush.msra.mxu0 0.0
      %5553 = vmatpush.msra.mxu0 0.0
      %5554 = vmatpush.msra.mxu0 0.0
      %5555 = vmatpush.msra.mxu0 0.0
      %5556 = vmatpush.msra.mxu0 0.0
      %5557 = vmatpush.msra.mxu0 0.0
      %5558 = vmatpush.msra.mxu0 0.0
      %5559 = vmatpush.msra.mxu0 0.0
      %5560 = vmatpush.msra.mxu0 0.0
      %5561 = vmatpush.msra.mxu0 0.0
      %5562 = vmatpush.msra.mxu0 0.0
      %5563 = vmatpush.msra.mxu0 0.0
      %5564 = vmatpush.msra.mxu0 0.0
      %5565 = vmatpush.msra.mxu0 %v5549
      %5566 = vmatpush.msra.mxu0 %v5537
      %5567 = vmatmul.f32.gmra.mxu0 %v5543
      %v5568 = vpop.f32.mrf.mxu0
      %v5569 = vadd.f32 0.0, %v5568
      %5570 = vmatmul.f32.gmra.mxu0 %v5546
      %v5571 = vpop.f32.mrf.mxu0
      %v5572 = vadd.f32 0.0, %v5571
      %5573 = vdwg.mxu0
      %v5574 = vadd.f32 %v5511, %v5569
      %v5575 = vadd.f32 %v5512, %v5572
      %5576 = vmatpush.msra.mxu0 0.0
      %5577 = vmatpush.msra.mxu0 0.0
      %5578 = vmatpush.msra.mxu0 0.0
      %5579 = vmatpush.msra.mxu0 0.0
      %5580 = vmatpush.msra.mxu0 0.0
      %5581 = vmatpush.msra.mxu0 0.0
      %5582 = vmatpush.msra.mxu0 0.0
      %5583 = vmatpush.msra.mxu0 0.0
      %5584 = vmatpush.msra.mxu0 0.0
      %5585 = vmatpush.msra.mxu0 0.0
      %5586 = vmatpush.msra.mxu0 0.0
      %5587 = vmatpush.msra.mxu0 %v5067
      %5588 = vmatpush.msra.mxu0 %v5066
      %5589 = vmatpush.msra.mxu0 %v5065
      %5590 = vmatpush.msra.mxu0 %v5064
      %5591 = vmatpush.msra.mxu0 %v5063
      %5592 = vmatmul.f32.gmra.mxu0 %v5137
      %v5593 = vpop.f32.mrf.mxu0
      %v5594 = vadd.f32 0.0, %v5593
      %5595 = vmatmul.f32.gmra.mxu0 %v5140
      %v5596 = vpop.f32.mrf.mxu0
      %v5597 = vadd.f32 0.0, %v5596
      %5598 = vdwg.mxu0
      %v5600 = vsel %vm5165, %v4928, 0
      %v5603 = vsel %vm5165, %v4929, 0
      %v5606 = vsel %vm4898, %v5597, 0
      %5608 = vmatpush.msra.mxu0 0.0
      %5609 = vmatpush.msra.mxu0 0.0
      %5610 = vmatpush.msra.mxu0 0.0
      %5611 = vmatpush.msra.mxu0 0.0
      %5612 = vmatpush.msra.mxu0 0.0
      %5613 = vmatpush.msra.mxu0 0.0
      %5614 = vmatpush.msra.mxu0 0.0
      %5615 = vmatpush.msra.mxu0 0.0
      %5616 = vmatpush.msra.mxu0 0.0
      %5617 = vmatpush.msra.mxu0 0.0
      %5618 = vmatpush.msra.mxu0 0.0
      %5619 = vmatpush.msra.mxu0 0.0
      %5620 = vmatpush.msra.mxu0 0.0
      %5621 = vmatpush.msra.mxu0 0.0
      %5622 = vmatpush.msra.mxu0 %v5606
      %5623 = vmatpush.msra.mxu0 %v5594
      %5624 = vmatmul.f32.gmra.mxu0 %v5600
      %v5625 = vpop.f32.mrf.mxu0
      %v5626 = vadd.f32 0.0, %v5625
      %5627 = vmatmul.f32.gmra.mxu0 %v5603
      %v5628 = vpop.f32.mrf.mxu0
      %v5629 = vadd.f32 0.0, %v5628
      %5630 = vdwg.mxu0
      %v5631 = vadd.f32 %v5574, %v5626
      %v5632 = vadd.f32 %v5575, %v5629
      %s5633 = scalar_lea.vmem %s9, 320
      %v5634 = vld [vmem:[%s5633] sm:$0xff]
      %v5635 = vld [vmem:[%s5633 + $0x8] sm:$0xff]
      %v5636 = vld [vmem:[%s5633 + $0x10] sm:$0xff]
      %v5637 = vld [vmem:[%s5633 + $0x18] sm:$0xff]
      %v5638 = vld [vmem:[%s5633 + $0x20] sm:$0xff]
      %5639 = vmatpush.msra.mxu0 0.0
      %5640 = vmatpush.msra.mxu0 0.0
      %5641 = vmatpush.msra.mxu0 0.0
      %5642 = vmatpush.msra.mxu0 0.0
      %5643 = vmatpush.msra.mxu0 0.0
      %5644 = vmatpush.msra.mxu0 0.0
      %5645 = vmatpush.msra.mxu0 0.0
      %5646 = vmatpush.msra.mxu0 0.0
      %5647 = vmatpush.msra.mxu0 0.0
      %5648 = vmatpush.msra.mxu0 0.0
      %5649 = vmatpush.msra.mxu0 0.0
      %5650 = vmatpush.msra.mxu0 %v5638
      %5651 = vmatpush.msra.mxu0 %v5637
      %5652 = vmatpush.msra.mxu0 %v5636
      %5653 = vmatpush.msra.mxu0 %v5635
      %5654 = vmatpush.msra.mxu0 %v5634
      %5655 = vmatmul.f32.gmra.mxu0 %v5137
      %v5656 = vpop.f32.mrf.mxu0
      %v5657 = vadd.f32 0.0, %v5656
      %5658 = vmatmul.f32.gmra.mxu0 %v5140
      %v5659 = vpop.f32.mrf.mxu0
      %v5660 = vadd.f32 0.0, %v5659
      %5661 = vdwg.mxu0
      %v5663 = vsel %vm5165, %v4930, 0
      %v5666 = vsel %vm5165, %v4931, 0
      %v5669 = vsel %vm4898, %v5660, 0
      %5671 = vmatpush.msra.mxu0 0.0
      %5672 = vmatpush.msra.mxu0 0.0
      %5673 = vmatpush.msra.mxu0 0.0
      %5674 = vmatpush.msra.mxu0 0.0
      %5675 = vmatpush.msra.mxu0 0.0
      %5676 = vmatpush.msra.mxu0 0.0
      %5677 = vmatpush.msra.mxu0 0.0
      %5678 = vmatpush.msra.mxu0 0.0
      %5679 = vmatpush.msra.mxu0 0.0
      %5680 = vmatpush.msra.mxu0 0.0
      %5681 = vmatpush.msra.mxu0 0.0
      %5682 = vmatpush.msra.mxu0 0.0
      %5683 = vmatpush.msra.mxu0 0.0
      %5684 = vmatpush.msra.mxu0 0.0
      %5685 = vmatpush.msra.mxu0 %v5669
      %5686 = vmatpush.msra.mxu0 %v5657
      %5687 = vmatmul.f32.gmra.mxu0 %v5663
      %v5688 = vpop.f32.mrf.mxu0
      %v5689 = vadd.f32 0.0, %v5688
      %5690 = vmatmul.f32.gmra.mxu0 %v5666
      %v5691 = vpop.f32.mrf.mxu0
      %v5692 = vadd.f32 0.0, %v5691
      %5693 = vdwg.mxu0
      %v5694 = vadd.f32 %v5631, %v5689
      %v5695 = vadd.f32 %v5632, %v5692
      %5696 = vst.msk [vmem:[%s1727] sm:$0xff] %vm4940, %v5694
      %vm5697 = vcmask 322560
      %5698 = vst.msk [vmem:[%s1727 + $0x8] sm:$0xf] %vm5697, %v5695
      %p5699 = scmp.lt.s32.totalorder %s90, 1
      %s5700 = scalar_select %p5699, %s90, 1
      %s5701 = smul.addr %s5700, 2
      %s5702 = smul.addr %s5701, 8
      %s5703 = scalar_lea.vmem %s79, %s5702
      // Predicated region
      $region177: #{pi_stgcn_any_order_forward.2} parent=175 // pred_check
        %p5704 = pneg %p1102
      $region178: #{pi_stgcn_any_order_forward.2} parent=175 // pred_check_branch
        %5706 = sbr.rel (%p5704) target = $region180
      $region179: #{pi_stgcn_any_order_forward.2} parent=175 // pred_region
        _
      $region180: #{pi_stgcn_any_order_forward.2} parent=175 // pred_fallthru
        _
    $region176: #{pi_stgcn_any_order_forward.2} parent=5 // pred_fallthru
      _
    %p5707 = scmp.le.s32.totalorder 2, %s85
    // Predicated region
    $region181: #{pi_stgcn_any_order_forward.2} parent=5 // pred_check
      %p5708 = pneg %p5707
    $region182: #{pi_stgcn_any_order_forward.2} parent=5 // pred_check_branch
      %5710 = sbr.rel (%p5708) target = $region184
    $region183: #{pi_stgcn_any_order_forward.2} parent=5 // pred_region
      %s5711 = ssub.s32 %s85, 2
      // Predicated region
      $region185: #{pi_stgcn_any_order_forward.2} parent=183 // pred_check
        %p5712 = pneg %p1108
      $region186: #{pi_stgcn_any_order_forward.2} parent=183 // pred_check_branch
        %5714 = sbr.rel (%p5712) target = $region188
      $region187: #{pi_stgcn_any_order_forward.2} parent=183 // pred_region
        %p5715 = scmp.lt.s32.totalorder %s91, 1
        %s5716 = scalar_select %p5715, %s91, 1
        %s5717 = smul.addr %s5716, 2
        %s5718 = smul.addr %s5717, 8
        %s5719 = scalar_lea.vmem %s79, %s5718
      $region188: #{pi_stgcn_any_order_forward.2} parent=183 // pred_fallthru
        _
    $region184: #{pi_stgcn_any_order_forward.2} parent=5 // pred_fallthru
      _
  $region6: #{pi_stgcn_any_order_forward.2} parent=0 // loop_footer
    %s89 = sadd.s32 1, %s85
  $region7: #{pi_stgcn_any_order_forward.2} parent=0 // loop_footer_branch
    %84 = sbr.rel target = $region3
  $region8: #{pi_stgcn_any_order_forward.2} parent=0 // loop_exit
    _

</llo_original>
